<compile_context>
chip_gen: v7x
topology: tpu7x:2x2x1
jax: 0.10.0
libtpu: 0.0.40
codegen_flags: <defaults>
</compile_context>

<pallas_src>
import functools

import numpy as np
import jax
import jax.numpy as jnp
from jax.experimental import pallas as pl
from jax.experimental.pallas import tpu as pltpu


# ---------------------------------------------------------------------------
# Pallas kernel: one (n, t) output slab per grid step.
# ---------------------------------------------------------------------------
def _block_kernel(*refs, h_low, has_skip, fuse_final):
    idx = 0
    x_ref = refs[idx]; idx += 1            # (1, T+2, H+2, (W+2)*Cx)     bf16
    wx_ref = refs[idx]; idx += 1           # (3, 3, (W+2)*Cx, 4*W*Cout)  bf16
    if has_skip:
        s_ref = refs[idx]; idx += 1        # (1, T+2, H+2, (W+2)*Cs)     bf16
        ws_ref = refs[idx]; idx += 1       # (3, 3, (W+2)*Cs, 4*W*Cout)  bf16
    b_ref = refs[idx]; idx += 1            # (1, 4*W*Cout) f32
    if fuse_final:
        fw_ref = refs[idx]; idx += 1       # (4*W*Cout, 4*W*Cout) f32  block-diag
        fb_ref = refs[idx]; idx += 1       # (1, 4*W*Cout) f32
    o_ref = refs[idx]                      # (1, 1, H, 4*W*Cout)

    t = pl.program_id(1)
    lanes = o_ref.shape[-1]                # (h_parity, w_out, w_parity, cout)

    acc = jnp.zeros((h_low, lanes), jnp.float32)
    for kt in range(3):                    # temporal taps (T not upsampled)
        x_plane = x_ref[0, t + kt]         # (H+2, (W+2)*Cx)
        if has_skip:
            s_plane = s_ref[0, t + kt]
        for d in range(3):                 # H row offsets (both parities folded
            acc = acc + jnp.dot(           #  into the weight lane axis)
                x_plane[d:d + h_low, :], wx_ref[kt, d],
                preferred_element_type=jnp.float32)
            if has_skip:
                acc = acc + jnp.dot(
                    s_plane[d:d + h_low, :], ws_ref[kt, d],
                    preferred_element_type=jnp.float32)

    acc = jnp.maximum(acc + b_ref[...], 0.0)          # bias + block ReLU
    if fuse_final:                                    # fused final 1x1x1 conv
        acc = jnp.dot(acc, fw_ref[...],
                      preferred_element_type=jnp.float32) + fb_ref[...]
    o_ref[0, 0] = acc.astype(o_ref.dtype)             # one lane-dense store


# ---------------------------------------------------------------------------
# Wrapper-side weight / input preparation (done once, outside the hot loop).
# ---------------------------------------------------------------------------
# Conv-3 on a 2x nearest-upsampled, zero-padded axis == 2-tap conv on the
# zero-padded low-res axis, per output parity p:
#   out[2m + p] = sum_j g_p[j] * x_pad[m + p + j]
#   g_0 = [w0, w1 + w2],   g_1 = [w0 + w1, w2]
_PARITY = np.array([[[1., 0., 0.], [0., 1., 1.]],
                    [[1., 1., 0.], [0., 0., 1.]]], np.float32)   # [p, j, k]


def _h_parity_taps():
    """[ph, d, kh]: tap for output H-parity ph at low-res row offset d."""
    gh = np.zeros((2, 3, 3), np.float32)
    for p in range(2):
        for j in range(2):
            gh[p, p + j] = _PARITY[p, j]
    return gh


def _band_weights(w, w_low):
    """(3,3,3,Cin,Cout) -> (3, 3, (W+2)*Cin, 2*W*2*Cout) bf16.

    Layout: [t_tap, h_row_offset, (w_in, ci), (h_parity, w_out, w_parity, co)].
    The W taps / W parity are folded into a banded dense matrix so the whole W
    axis is one MXU contraction over (W+2)*Cin; both H parities are folded into
    the output lanes so each (kt, d) pair is a single full-width matmul.
    """
    cin, cout = w.shape[3], w.shape[4]
    wp = w_low + 2
    gh = jnp.asarray(_h_parity_taps())               # [ph, d, kh]
    g = jnp.asarray(_PARITY)                         # [pw, jw, kw]
    band = np.zeros((2, 2, wp, w_low), np.float32)   # [jw, pw, w_in, w_out]
    for jw in range(2):
        for pw in range(2):
            for q in range(w_low):
                band[jw, pw, q + pw + jw, q] = 1.0
    # wc[kt, d, ph, pw, jw, ci, co]
    wc = jnp.einsum('adk,bml,tklcf->tdabmcf', gh, g, w.astype(jnp.float32))
    # big[kt, d, w_in, ci, ph, w_out, pw, co]
    big = jnp.einsum('mbiq,tdabmcf->tdicaqbf', jnp.asarray(band), wc)
    return big.reshape(3, 3, wp * cin, 2 * w_low * 2 * cout).astype(jnp.bfloat16)


def _pad_flatten(x):
    """(N,T,H,W,C) -> zero-padded, (W,C)-flattened (N,T+2,H+2,(W+2)*C) bf16."""
    x = x.astype(jnp.bfloat16)
    x = jnp.pad(x, ((0, 0), (1, 1), (1, 1), (1, 1), (0, 0)))
    n, tp, hp, wpad, c = x.shape
    return x.reshape(n, tp, hp, wpad * c)


# ---------------------------------------------------------------------------
# One UpsampleConvBlock3D (optionally fused with skip concat / final 1x1 conv).
# ---------------------------------------------------------------------------
def upsample_conv_block(x, skip, w, b, *, final_wb=None, out_dtype=jnp.bfloat16):
    n, t, h, w_low, cx = x.shape
    cout = w.shape[-1]
    lanes = 2 * w_low * 2 * cout          # (h_parity, w_out, w_parity, cout)
    tp, hp, wp = t + 2, h + 2, w_low + 2
    has_skip = skip is not None
    fuse_final = final_wb is not None

    inputs = [_pad_flatten(x), _band_weights(w[..., :cx, :], w_low)]
    in_specs = [
        pl.BlockSpec((1, tp, hp, wp * cx), lambda i, j: (i, 0, 0, 0)),
        pl.BlockSpec((3, 3, wp * cx, lanes), lambda i, j: (0, 0, 0, 0)),
    ]
    if has_skip:
        cs = skip.shape[-1]
        inputs += [_pad_flatten(skip), _band_weights(w[..., cx:, :], w_low)]
        in_specs += [
            pl.BlockSpec((1, tp, hp, wp * cs), lambda i, j: (i, 0, 0, 0)),
            pl.BlockSpec((3, 3, wp * cs, lanes), lambda i, j: (0, 0, 0, 0)),
        ]
    inputs.append(jnp.tile(b.astype(jnp.float32), 2 * 2 * w_low).reshape(1, lanes))
    in_specs.append(pl.BlockSpec((1, lanes), lambda i, j: (0, 0)))
    if fuse_final:
        fw, fb = final_wb
        inputs += [
            jnp.kron(jnp.eye(2 * 2 * w_low, dtype=jnp.float32),
                     fw.astype(jnp.float32)),
            jnp.tile(fb.astype(jnp.float32), 2 * 2 * w_low).reshape(1, lanes),
        ]
        in_specs += [pl.BlockSpec((lanes, lanes), lambda i, j: (0, 0)),
                     pl.BlockSpec((1, lanes), lambda i, j: (0, 0))]

    kernel = functools.partial(_block_kernel, h_low=h, has_skip=has_skip,
                               fuse_final=fuse_final)
    out = pl.pallas_call(
        kernel,
        out_shape=jax.ShapeDtypeStruct((n, t, h, lanes), out_dtype),
        grid=(n, t),
        in_specs=in_specs,
        out_specs=pl.BlockSpec((1, 1, h, lanes), lambda i, j: (i, j, 0, 0)),
        compiler_params=pltpu.CompilerParams(
            dimension_semantics=("parallel", "parallel"),
            vmem_limit_bytes=32 * 1024 * 1024),
    )(*inputs)

    # Lanes are (h_parity, w_out, w_parity, cout) -> free contiguous reshapes.
    out = out.reshape(n, t, h, 2, w_low, 2, cout)
    return out.reshape(n, t, 2 * h, 2 * w_low, cout)


# ---------------------------------------------------------------------------
# Decoder forward (PyTorch NCTHW layout at the boundaries).
# ---------------------------------------------------------------------------
def decoder3d_forward(latent_ncthw, encoder_outputs_ncthw, params, n_blocks):
    to_last = lambda a: jnp.transpose(a, (0, 2, 3, 4, 1))   # NCTHW -> NTHWC
    to_first = lambda a: jnp.transpose(a, (0, 4, 1, 2, 3))  # NTHWC -> NCTHW

    x = to_last(latent_ncthw)
    skips = [to_last(e) for e in encoder_outputs_ncthw]
    for i in range(n_blocks):
        w, b = params["blocks"][i]
        skip = None if i == 0 else skips[-i - 1]   # torch.cat([x, skip], dim=1)
        last = i == n_blocks - 1
        x = upsample_conv_block(
            x, skip, w, b,
            final_wb=params["final"] if last else None,
            out_dtype=jnp.float32 if last else jnp.bfloat16)
    return to_first(x)


# ---------------------------------------------------------------------------
# Pure-JAX reference (same assumed semantics, same bf16 rounding points).
# ---------------------------------------------------------------------------
def decoder3d_reference(latent_ncthw, encoder_outputs_ncthw, params, n_blocks):
    to_last = lambda a: jnp.transpose(a, (0, 2, 3, 4, 1))
    to_first = lambda a: jnp.transpose(a, (0, 4, 1, 2, 3))
    q = lambda a: a.astype(jnp.bfloat16).astype(jnp.float32)

    x = to_last(latent_ncthw)
    skips = [to_last(e) for e in encoder_outputs_ncthw]
    for i in range(n_blocks):
        w, b = params["blocks"][i]
        xin = q(x)
        if i > 0:
            xin = jnp.concatenate([xin, q(skips[-i - 1])], axis=-1)
        xin = jnp.repeat(jnp.repeat(xin, 2, axis=2), 2, axis=3)
        y = jax.lax.conv_general_dilated(
            xin, q(w), window_strides=(1, 1, 1),
            padding=((1, 1), (1, 1), (1, 1)),
            dimension_numbers=('NDHWC', 'DHWIO', 'NDHWC'))
        y = jnp.maximum(y + b, 0.0)
        if i == n_blocks - 1:
            fw, fb = params["final"]
            y = jnp.einsum('nthwc,cf->nthwf', y, fw) + fb
        x = y
    return to_first(x)


# ---------------------------------------------------------------------------
# Deterministic synthetic parameters (mirrors Decoder3d channel bookkeeping).
# ---------------------------------------------------------------------------
def build_params(key, encoder_output_channels, out_channels, n_blocks):
    in_channels = encoder_output_channels[-1]
    block_out = encoder_output_channels[-2]
    io = [(in_channels, block_out)]
    for i in range(1, n_blocks - 1):
        block_in = 2 * block_out
        block_out = encoder_output_channels[-i - 2]
        io.append((block_in, block_out))
    io.append((block_out * 2, out_channels))

    keys = jax.random.split(key, 2 * len(io) + 2)
    blocks = []
    for j, (ci, co) in enumerate(io):
        w = 0.05 * jax.random.normal(keys[2 * j], (3, 3, 3, ci, co), jnp.float32)
        bb = 0.05 * jax.random.normal(keys[2 * j + 1], (co,), jnp.float32)
        blocks.append((w, bb))
    wf = 0.05 * jax.random.normal(keys[-2], (out_channels, out_channels),
                                  jnp.float32)
    bf = 0.05 * jax.random.normal(keys[-1], (out_channels,), jnp.float32)
    return {"blocks": blocks, "final": (wf, bf)}


# ---------------------------------------------------------------------------
# Demo
# ---------------------------------------------------------------------------
if __name__ == "__main__":
    key = jax.random.PRNGKey(0)
    k_lat, k_e0, k_e1, k_e2, k_par = jax.random.split(key, 5)

    N, T = 2, 4
    out_channels = 4
    n_blocks = 3
    enc_channels = [8, 16, 32]     # encoder.output_channels (coarsest last)

    # PyTorch-convention (N, C, T, H, W) inputs.
    latent = jax.random.normal(k_lat, (N, enc_channels[-1], T, 4, 4), jnp.float32)
    encoder_outputs = [
        jax.random.normal(k_e0, (N, enc_channels[0], T, 16, 16), jnp.float32),
        jax.random.normal(k_e1, (N, enc_channels[1], T, 8, 8), jnp.float32),
        jax.random.normal(k_e2, (N, enc_channels[2], T, 4, 4), jnp.float32),
    ]
    params = build_params(k_par, enc_channels, out_channels, n_blocks)

    fwd = jax.jit(functools.partial(decoder3d_forward, n_blocks=n_blocks))
    out = jax.block_until_ready(fwd(latent, encoder_outputs, params))

    expected = (N, out_channels, T, 32, 32)
    assert out.shape == expected, (out.shape, expected)
    assert bool(jnp.isfinite(out).all())

    ref = jax.jit(functools.partial(decoder3d_reference, n_blocks=n_blocks))(
        latent, encoder_outputs, params)
    ref = jax.block_until_ready(ref)
    max_err = float(jnp.max(jnp.abs(out - ref)))
    assert max_err < 5e-2, f"kernel/reference mismatch: max abs err {max_err}"

    print("KERNEL_OK")
</pallas_src>

<mosaic_0001>
module attributes {stable_mosaic.version = 11 : i64} {
  func.func @_block_kernel(%arg0: i32, %arg1: i32, %arg2: memref<1x6x6x192xbf16, #tpu.memory_space<vmem>>, %arg3: memref<3x3x192x256xbf16, #tpu.memory_space<vmem>>, %arg4: memref<1x256xf32, #tpu.memory_space<vmem>>, %arg5: memref<1x1x4x256xbf16, #tpu.memory_space<vmem>>) attributes {dimension_semantics = [#tpu.dimension_semantics<parallel>, #tpu.dimension_semantics<parallel>], iteration_bounds = array<i64: 2, 4>, scalar_prefetch = 0 : i64, scratch_operands = 0 : i64, tpu.core_type = #tpu.core_type<tc>, window_params = [{transform_indices = @transform_0, window_bounds = array<i64: 1, 6, 6, 192>}, {pipeline_mode = #tpu.pipeline_mode<synchronous>, transform_indices = @transform_1, window_bounds = array<i64: 3, 3, 192, 256>}, {pipeline_mode = #tpu.pipeline_mode<synchronous>, transform_indices = @transform_2, window_bounds = array<i64: 1, 256>}, {transform_indices = @transform_3, window_bounds = array<i64: 1, 1, 4, 256>}]} {
    %cst = arith.constant 0.000000e+00 : f32
    %0 = vector.broadcast %cst : f32 to vector<4x256xf32>
    %c0_i32 = arith.constant 0 : i32
    %1 = arith.addi %arg1, %c0_i32 : i32
    %c0 = arith.constant 0 : index
    %2 = arith.index_cast %1 : i32 to index
    %c0_0 = arith.constant 0 : index
    %c0_1 = arith.constant 0 : index
    %3 = vector.load %arg2[%c0, %2, %c0_0, %c0_1] : memref<1x6x6x192xbf16, #tpu.memory_space<vmem>>, vector<1x1x6x192xbf16>
    %4 = vector.shape_cast %3 : vector<1x1x6x192xbf16> to vector<6x192xbf16>
    %5 = vector.extract_strided_slice %4 {offsets = [0, 0], sizes = [4, 192], strides = [1, 1]} : vector<6x192xbf16> to vector<4x192xbf16>
    %c0_2 = arith.constant 0 : index
    %c0_3 = arith.constant 0 : index
    %c0_4 = arith.constant 0 : index
    %c0_5 = arith.constant 0 : index
    %6 = vector.load %arg3[%c0_2, %c0_3, %c0_4, %c0_5] : memref<3x3x192x256xbf16, #tpu.memory_space<vmem>>, vector<1x1x192x256xbf16>
    %7 = vector.shape_cast %6 : vector<1x1x192x256xbf16> to vector<192x256xbf16>
    %cst_6 = arith.constant dense<0.000000e+00> : vector<4x256xf32>
    %8 = tpu.matmul %5, %7, %cst_6 {dimension_numbers = #tpu.dot_dimension_numbers<[1], [0], [0], [1], [0, 0, 1, 1], [], []>} : vector<4x192xbf16>, vector<192x256xbf16>, vector<4x256xf32> -> vector<4x256xf32>
    %9 = arith.addf %0, %8 : vector<4x256xf32>
    %10 = vector.extract_strided_slice %4 {offsets = [1, 0], sizes = [4, 192], strides = [1, 1]} : vector<6x192xbf16> to vector<4x192xbf16>
    %c0_7 = arith.constant 0 : index
    %c1 = arith.constant 1 : index
    %c0_8 = arith.constant 0 : index
    %c0_9 = arith.constant 0 : index
    %11 = vector.load %arg3[%c0_7, %c1, %c0_8, %c0_9] : memref<3x3x192x256xbf16, #tpu.memory_space<vmem>>, vector<1x1x192x256xbf16>
    %12 = vector.shape_cast %11 : vector<1x1x192x256xbf16> to vector<192x256xbf16>
    %cst_10 = arith.constant dense<0.000000e+00> : vector<4x256xf32>
    %13 = tpu.matmul %10, %12, %cst_10 {dimension_numbers = #tpu.dot_dimension_numbers<[1], [0], [0], [1], [0, 0, 1, 1], [], []>} : vector<4x192xbf16>, vector<192x256xbf16>, vector<4x256xf32> -> vector<4x256xf32>
    %14 = arith.addf %9, %13 : vector<4x256xf32>
    %15 = vector.extract_strided_slice %4 {offsets = [2, 0], sizes = [4, 192], strides = [1, 1]} : vector<6x192xbf16> to vector<4x192xbf16>
    %c0_11 = arith.constant 0 : index
    %c2 = arith.constant 2 : index
    %c0_12 = arith.constant 0 : index
    %c0_13 = arith.constant 0 : index
    %16 = vector.load %arg3[%c0_11, %c2, %c0_12, %c0_13] : memref<3x3x192x256xbf16, #tpu.memory_space<vmem>>, vector<1x1x192x256xbf16>
    %17 = vector.shape_cast %16 : vector<1x1x192x256xbf16> to vector<192x256xbf16>
    %cst_14 = arith.constant dense<0.000000e+00> : vector<4x256xf32>
    %18 = tpu.matmul %15, %17, %cst_14 {dimension_numbers = #tpu.dot_dimension_numbers<[1], [0], [0], [1], [0, 0, 1, 1], [], []>} : vector<4x192xbf16>, vector<192x256xbf16>, vector<4x256xf32> -> vector<4x256xf32>
    %19 = arith.addf %14, %18 : vector<4x256xf32>
    %c1_i32 = arith.constant 1 : i32
    %20 = arith.addi %arg1, %c1_i32 : i32
    %c0_15 = arith.constant 0 : index
    %21 = arith.index_cast %20 : i32 to index
    %c0_16 = arith.constant 0 : index
    %c0_17 = arith.constant 0 : index
    %22 = vector.load %arg2[%c0_15, %21, %c0_16, %c0_17] : memref<1x6x6x192xbf16, #tpu.memory_space<vmem>>, vector<1x1x6x192xbf16>
    %23 = vector.shape_cast %22 : vector<1x1x6x192xbf16> to vector<6x192xbf16>
    %24 = vector.extract_strided_slice %23 {offsets = [0, 0], sizes = [4, 192], strides = [1, 1]} : vector<6x192xbf16> to vector<4x192xbf16>
    %c1_18 = arith.constant 1 : index
    %c0_19 = arith.constant 0 : index
    %c0_20 = arith.constant 0 : index
    %c0_21 = arith.constant 0 : index
    %25 = vector.load %arg3[%c1_18, %c0_19, %c0_20, %c0_21] : memref<3x3x192x256xbf16, #tpu.memory_space<vmem>>, vector<1x1x192x256xbf16>
    %26 = vector.shape_cast %25 : vector<1x1x192x256xbf16> to vector<192x256xbf16>
    %cst_22 = arith.constant dense<0.000000e+00> : vector<4x256xf32>
    %27 = tpu.matmul %24, %26, %cst_22 {dimension_numbers = #tpu.dot_dimension_numbers<[1], [0], [0], [1], [0, 0, 1, 1], [], []>} : vector<4x192xbf16>, vector<192x256xbf16>, vector<4x256xf32> -> vector<4x256xf32>
    %28 = arith.addf %19, %27 : vector<4x256xf32>
    %29 = vector.extract_strided_slice %23 {offsets = [1, 0], sizes = [4, 192], strides = [1, 1]} : vector<6x192xbf16> to vector<4x192xbf16>
    %c1_23 = arith.constant 1 : index
    %c1_24 = arith.constant 1 : index
    %c0_25 = arith.constant 0 : index
    %c0_26 = arith.constant 0 : index
    %30 = vector.load %arg3[%c1_23, %c1_24, %c0_25, %c0_26] : memref<3x3x192x256xbf16, #tpu.memory_space<vmem>>, vector<1x1x192x256xbf16>
    %31 = vector.shape_cast %30 : vector<1x1x192x256xbf16> to vector<192x256xbf16>
    %cst_27 = arith.constant dense<0.000000e+00> : vector<4x256xf32>
    %32 = tpu.matmul %29, %31, %cst_27 {dimension_numbers = #tpu.dot_dimension_numbers<[1], [0], [0], [1], [0, 0, 1, 1], [], []>} : vector<4x192xbf16>, vector<192x256xbf16>, vector<4x256xf32> -> vector<4x256xf32>
    %33 = arith.addf %28, %32 : vector<4x256xf32>
    %34 = vector.extract_strided_slice %23 {offsets = [2, 0], sizes = [4, 192], strides = [1, 1]} : vector<6x192xbf16> to vector<4x192xbf16>
    %c1_28 = arith.constant 1 : index
    %c2_29 = arith.constant 2 : index
    %c0_30 = arith.constant 0 : index
    %c0_31 = arith.constant 0 : index
    %35 = vector.load %arg3[%c1_28, %c2_29, %c0_30, %c0_31] : memref<3x3x192x256xbf16, #tpu.memory_space<vmem>>, vector<1x1x192x256xbf16>
    %36 = vector.shape_cast %35 : vector<1x1x192x256xbf16> to vector<192x256xbf16>
    %cst_32 = arith.constant dense<0.000000e+00> : vector<4x256xf32>
    %37 = tpu.matmul %34, %36, %cst_32 {dimension_numbers = #tpu.dot_dimension_numbers<[1], [0], [0], [1], [0, 0, 1, 1], [], []>} : vector<4x192xbf16>, vector<192x256xbf16>, vector<4x256xf32> -> vector<4x256xf32>
    %38 = arith.addf %33, %37 : vector<4x256xf32>
    %c2_i32 = arith.constant 2 : i32
    %39 = arith.addi %arg1, %c2_i32 : i32
    %c0_33 = arith.constant 0 : index
    %40 = arith.index_cast %39 : i32 to index
    %c0_34 = arith.constant 0 : index
    %c0_35 = arith.constant 0 : index
    %41 = vector.load %arg2[%c0_33, %40, %c0_34, %c0_35] : memref<1x6x6x192xbf16, #tpu.memory_space<vmem>>, vector<1x1x6x192xbf16>
    %42 = vector.shape_cast %41 : vector<1x1x6x192xbf16> to vector<6x192xbf16>
    %43 = vector.extract_strided_slice %42 {offsets = [0, 0], sizes = [4, 192], strides = [1, 1]} : vector<6x192xbf16> to vector<4x192xbf16>
    %c2_36 = arith.constant 2 : index
    %c0_37 = arith.constant 0 : index
    %c0_38 = arith.constant 0 : index
    %c0_39 = arith.constant 0 : index
    %44 = vector.load %arg3[%c2_36, %c0_37, %c0_38, %c0_39] : memref<3x3x192x256xbf16, #tpu.memory_space<vmem>>, vector<1x1x192x256xbf16>
    %45 = vector.shape_cast %44 : vector<1x1x192x256xbf16> to vector<192x256xbf16>
    %cst_40 = arith.constant dense<0.000000e+00> : vector<4x256xf32>
    %46 = tpu.matmul %43, %45, %cst_40 {dimension_numbers = #tpu.dot_dimension_numbers<[1], [0], [0], [1], [0, 0, 1, 1], [], []>} : vector<4x192xbf16>, vector<192x256xbf16>, vector<4x256xf32> -> vector<4x256xf32>
    %47 = arith.addf %38, %46 : vector<4x256xf32>
    %48 = vector.extract_strided_slice %42 {offsets = [1, 0], sizes = [4, 192], strides = [1, 1]} : vector<6x192xbf16> to vector<4x192xbf16>
    %c2_41 = arith.constant 2 : index
    %c1_42 = arith.constant 1 : index
    %c0_43 = arith.constant 0 : index
    %c0_44 = arith.constant 0 : index
    %49 = vector.load %arg3[%c2_41, %c1_42, %c0_43, %c0_44] : memref<3x3x192x256xbf16, #tpu.memory_space<vmem>>, vector<1x1x192x256xbf16>
    %50 = vector.shape_cast %49 : vector<1x1x192x256xbf16> to vector<192x256xbf16>
    %cst_45 = arith.constant dense<0.000000e+00> : vector<4x256xf32>
    %51 = tpu.matmul %48, %50, %cst_45 {dimension_numbers = #tpu.dot_dimension_numbers<[1], [0], [0], [1], [0, 0, 1, 1], [], []>} : vector<4x192xbf16>, vector<192x256xbf16>, vector<4x256xf32> -> vector<4x256xf32>
    %52 = arith.addf %47, %51 : vector<4x256xf32>
    %53 = vector.extract_strided_slice %42 {offsets = [2, 0], sizes = [4, 192], strides = [1, 1]} : vector<6x192xbf16> to vector<4x192xbf16>
    %c2_46 = arith.constant 2 : index
    %c2_47 = arith.constant 2 : index
    %c0_48 = arith.constant 0 : index
    %c0_49 = arith.constant 0 : index
    %54 = vector.load %arg3[%c2_46, %c2_47, %c0_48, %c0_49] : memref<3x3x192x256xbf16, #tpu.memory_space<vmem>>, vector<1x1x192x256xbf16>
    %55 = vector.shape_cast %54 : vector<1x1x192x256xbf16> to vector<192x256xbf16>
    %cst_50 = arith.constant dense<0.000000e+00> : vector<4x256xf32>
    %56 = tpu.matmul %53, %55, %cst_50 {dimension_numbers = #tpu.dot_dimension_numbers<[1], [0], [0], [1], [0, 0, 1, 1], [], []>} : vector<4x192xbf16>, vector<192x256xbf16>, vector<4x256xf32> -> vector<4x256xf32>
    %57 = arith.addf %52, %56 : vector<4x256xf32>
    %c0_51 = arith.constant 0 : index
    %c0_52 = arith.constant 0 : index
    %58 = vector.load %arg4[%c0_51, %c0_52] : memref<1x256xf32, #tpu.memory_space<vmem>>, vector<1x256xf32>
    %59 = vector.broadcast %58 : vector<1x256xf32> to vector<4x256xf32>
    %60 = arith.addf %57, %59 : vector<4x256xf32>
    %cst_53 = arith.constant 0.000000e+00 : f32
    %61 = vector.broadcast %cst_53 : f32 to vector<4x256xf32>
    %62 = arith.maximumf %60, %61 : vector<4x256xf32>
    %63 = arith.truncf %62 : vector<4x256xf32> to vector<4x256xbf16>
    %c0_54 = arith.constant 0 : index
    %c0_55 = arith.constant 0 : index
    %c0_56 = arith.constant 0 : index
    %c0_57 = arith.constant 0 : index
    %64 = vector.load %arg5[%c0_54, %c0_55, %c0_56, %c0_57] : memref<1x1x4x256xbf16, #tpu.memory_space<vmem>>, vector<1x1x4x256xbf16>
    %65 = vector.shape_cast %64 : vector<1x1x4x256xbf16> to vector<4x256xbf16>
    %66 = vector.shape_cast %63 : vector<4x256xbf16> to vector<1x1x4x256xbf16>
    tpu.vector_store %arg5[%c0_54, %c0_55, %c0_56, %c0_57], %66 {strides = array<i32>} : memref<1x1x4x256xbf16, #tpu.memory_space<vmem>>, vector<1x1x4x256xbf16>,
    return
  }
  func.func @transform_0(%arg0: i32, %arg1: i32) -> (i32, i32, i32, i32) {
    %c0_i32 = arith.constant 0 : i32
    %c0_i32_0 = arith.constant 0 : i32
    %c0_i32_1 = arith.constant 0 : i32
    %c0_i32_2 = arith.constant 0 : i32
    return %arg0, %c0_i32, %c0_i32_0, %c0_i32_1 : i32, i32, i32, i32
  }
  func.func @transform_1(%arg0: i32, %arg1: i32) -> (i32, i32, i32, i32) {
    %c0_i32 = arith.constant 0 : i32
    %c0_i32_0 = arith.constant 0 : i32
    %c0_i32_1 = arith.constant 0 : i32
    %c0_i32_2 = arith.constant 0 : i32
    %c0_i32_3 = arith.constant 0 : i32
    return %c0_i32, %c0_i32_0, %c0_i32_1, %c0_i32_2 : i32, i32, i32, i32
  }
  func.func @transform_2(%arg0: i32, %arg1: i32) -> (i32, i32) {
    %c0_i32 = arith.constant 0 : i32
    %c0_i32_0 = arith.constant 0 : i32
    %c0_i32_1 = arith.constant 0 : i32
    return %c0_i32, %c0_i32_0 : i32, i32
  }
  func.func @transform_3(%arg0: i32, %arg1: i32) -> (i32, i32, i32, i32) {
    %c0_i32 = arith.constant 0 : i32
    %c0_i32_0 = arith.constant 0 : i32
    %c0_i32_1 = arith.constant 0 : i32
    return %arg0, %arg1, %c0_i32, %c0_i32_0 : i32, i32, i32, i32
  }
}

module attributes {stable_mosaic.version = 11 : i64} {
  func.func @_block_kernel(%arg0: i32, %arg1: i32, %arg2: memref<1x6x10x160xbf16, #tpu.memory_space<vmem>>, %arg3: memref<3x3x160x256xbf16, #tpu.memory_space<vmem>>, %arg4: memref<1x6x10x160xbf16, #tpu.memory_space<vmem>>, %arg5: memref<3x3x160x256xbf16, #tpu.memory_space<vmem>>, %arg6: memref<1x256xf32, #tpu.memory_space<vmem>>, %arg7: memref<1x1x8x256xbf16, #tpu.memory_space<vmem>>) attributes {dimension_semantics = [#tpu.dimension_semantics<parallel>, #tpu.dimension_semantics<parallel>], iteration_bounds = array<i64: 2, 4>, scalar_prefetch = 0 : i64, scratch_operands = 0 : i64, tpu.core_type = #tpu.core_type<tc>, window_params = [{transform_indices = @transform_0, window_bounds = array<i64: 1, 6, 10, 160>}, {pipeline_mode = #tpu.pipeline_mode<synchronous>, transform_indices = @transform_1, window_bounds = array<i64: 3, 3, 160, 256>}, {transform_indices = @transform_2, window_bounds = array<i64: 1, 6, 10, 160>}, {pipeline_mode = #tpu.pipeline_mode<synchronous>, transform_indices = @transform_3, window_bounds = array<i64: 3, 3, 160, 256>}, {pipeline_mode = #tpu.pipeline_mode<synchronous>, transform_indices = @transform_4, window_bounds = array<i64: 1, 256>}, {transform_indices = @transform_5, window_bounds = array<i64: 1, 1, 8, 256>}]} {
    %cst = arith.constant 0.000000e+00 : f32
    %0 = vector.broadcast %cst : f32 to vector<8x256xf32>
    %c0_i32 = arith.constant 0 : i32
    %1 = arith.addi %arg1, %c0_i32 : i32
    %c0 = arith.constant 0 : index
    %2 = arith.index_cast %1 : i32 to index
    %c0_0 = arith.constant 0 : index
    %c0_1 = arith.constant 0 : index
    %3 = vector.load %arg2[%c0, %2, %c0_0, %c0_1] : memref<1x6x10x160xbf16, #tpu.memory_space<vmem>>, vector<1x1x10x160xbf16>
    %4 = vector.shape_cast %3 : vector<1x1x10x160xbf16> to vector<10x160xbf16>
    %c0_i32_2 = arith.constant 0 : i32
    %5 = arith.addi %arg1, %c0_i32_2 : i32
    %c0_3 = arith.constant 0 : index
    %6 = arith.index_cast %5 : i32 to index
    %c0_4 = arith.constant 0 : index
    %c0_5 = arith.constant 0 : index
    %7 = vector.load %arg4[%c0_3, %6, %c0_4, %c0_5] : memref<1x6x10x160xbf16, #tpu.memory_space<vmem>>, vector<1x1x10x160xbf16>
    %8 = vector.shape_cast %7 : vector<1x1x10x160xbf16> to vector<10x160xbf16>
    %9 = vector.extract_strided_slice %4 {offsets = [0, 0], sizes = [8, 160], strides = [1, 1]} : vector<10x160xbf16> to vector<8x160xbf16>
    %c0_6 = arith.constant 0 : index
    %c0_7 = arith.constant 0 : index
    %c0_8 = arith.constant 0 : index
    %c0_9 = arith.constant 0 : index
    %10 = vector.load %arg3[%c0_6, %c0_7, %c0_8, %c0_9] : memref<3x3x160x256xbf16, #tpu.memory_space<vmem>>, vector<1x1x160x256xbf16>
    %11 = vector.shape_cast %10 : vector<1x1x160x256xbf16> to vector<160x256xbf16>
    %cst_10 = arith.constant dense<0.000000e+00> : vector<8x256xf32>
    %12 = tpu.matmul %9, %11, %cst_10 {dimension_numbers = #tpu.dot_dimension_numbers<[1], [0], [0], [1], [0, 0, 1, 1], [], []>} : vector<8x160xbf16>, vector<160x256xbf16>, vector<8x256xf32> -> vector<8x256xf32>
    %13 = arith.addf %0, %12 : vector<8x256xf32>
    %14 = vector.extract_strided_slice %8 {offsets = [0, 0], sizes = [8, 160], strides = [1, 1]} : vector<10x160xbf16> to vector<8x160xbf16>
    %c0_11 = arith.constant 0 : index
    %c0_12 = arith.constant 0 : index
    %c0_13 = arith.constant 0 : index
    %c0_14 = arith.constant 0 : index
    %15 = vector.load %arg5[%c0_11, %c0_12, %c0_13, %c0_14] : memref<3x3x160x256xbf16, #tpu.memory_space<vmem>>, vector<1x1x160x256xbf16>
    %16 = vector.shape_cast %15 : vector<1x1x160x256xbf16> to vector<160x256xbf16>
    %cst_15 = arith.constant dense<0.000000e+00> : vector<8x256xf32>
    %17 = tpu.matmul %14, %16, %cst_15 {dimension_numbers = #tpu.dot_dimension_numbers<[1], [0], [0], [1], [0, 0, 1, 1], [], []>} : vector<8x160xbf16>, vector<160x256xbf16>, vector<8x256xf32> -> vector<8x256xf32>
    %18 = arith.addf %13, %17 : vector<8x256xf32>
    %19 = vector.extract_strided_slice %4 {offsets = [1, 0], sizes = [8, 160], strides = [1, 1]} : vector<10x160xbf16> to vector<8x160xbf16>
    %c0_16 = arith.constant 0 : index
    %c1 = arith.constant 1 : index
    %c0_17 = arith.constant 0 : index
    %c0_18 = arith.constant 0 : index
    %20 = vector.load %arg3[%c0_16, %c1, %c0_17, %c0_18] : memref<3x3x160x256xbf16, #tpu.memory_space<vmem>>, vector<1x1x160x256xbf16>
    %21 = vector.shape_cast %20 : vector<1x1x160x256xbf16> to vector<160x256xbf16>
    %cst_19 = arith.constant dense<0.000000e+00> : vector<8x256xf32>
    %22 = tpu.matmul %19, %21, %cst_19 {dimension_numbers = #tpu.dot_dimension_numbers<[1], [0], [0], [1], [0, 0, 1, 1], [], []>} : vector<8x160xbf16>, vector<160x256xbf16>, vector<8x256xf32> -> vector<8x256xf32>
    %23 = arith.addf %18, %22 : vector<8x256xf32>
    %24 = vector.extract_strided_slice %8 {offsets = [1, 0], sizes = [8, 160], strides = [1, 1]} : vector<10x160xbf16> to vector<8x160xbf16>
    %c0_20 = arith.constant 0 : index
    %c1_21 = arith.constant 1 : index
    %c0_22 = arith.constant 0 : index
    %c0_23 = arith.constant 0 : index
    %25 = vector.load %arg5[%c0_20, %c1_21, %c0_22, %c0_23] : memref<3x3x160x256xbf16, #tpu.memory_space<vmem>>, vector<1x1x160x256xbf16>
    %26 = vector.shape_cast %25 : vector<1x1x160x256xbf16> to vector<160x256xbf16>
    %cst_24 = arith.constant dense<0.000000e+00> : vector<8x256xf32>
    %27 = tpu.matmul %24, %26, %cst_24 {dimension_numbers = #tpu.dot_dimension_numbers<[1], [0], [0], [1], [0, 0, 1, 1], [], []>} : vector<8x160xbf16>, vector<160x256xbf16>, vector<8x256xf32> -> vector<8x256xf32>
    %28 = arith.addf %23, %27 : vector<8x256xf32>
    %29 = vector.extract_strided_slice %4 {offsets = [2, 0], sizes = [8, 160], strides = [1, 1]} : vector<10x160xbf16> to vector<8x160xbf16>
    %c0_25 = arith.constant 0 : index
    %c2 = arith.constant 2 : index
    %c0_26 = arith.constant 0 : index
    %c0_27 = arith.constant 0 : index
    %30 = vector.load %arg3[%c0_25, %c2, %c0_26, %c0_27] : memref<3x3x160x256xbf16, #tpu.memory_space<vmem>>, vector<1x1x160x256xbf16>
    %31 = vector.shape_cast %30 : vector<1x1x160x256xbf16> to vector<160x256xbf16>
    %cst_28 = arith.constant dense<0.000000e+00> : vector<8x256xf32>
    %32 = tpu.matmul %29, %31, %cst_28 {dimension_numbers = #tpu.dot_dimension_numbers<[1], [0], [0], [1], [0, 0, 1, 1], [], []>} : vector<8x160xbf16>, vector<160x256xbf16>, vector<8x256xf32> -> vector<8x256xf32>
    %33 = arith.addf %28, %32 : vector<8x256xf32>
    %34 = vector.extract_strided_slice %8 {offsets = [2, 0], sizes = [8, 160], strides = [1, 1]} : vector<10x160xbf16> to vector<8x160xbf16>
    %c0_29 = arith.constant 0 : index
    %c2_30 = arith.constant 2 : index
    %c0_31 = arith.constant 0 : index
    %c0_32 = arith.constant 0 : index
    %35 = vector.load %arg5[%c0_29, %c2_30, %c0_31, %c0_32] : memref<3x3x160x256xbf16, #tpu.memory_space<vmem>>, vector<1x1x160x256xbf16>
    %36 = vector.shape_cast %35 : vector<1x1x160x256xbf16> to vector<160x256xbf16>
    %cst_33 = arith.constant dense<0.000000e+00> : vector<8x256xf32>
    %37 = tpu.matmul %34, %36, %cst_33 {dimension_numbers = #tpu.dot_dimension_numbers<[1], [0], [0], [1], [0, 0, 1, 1], [], []>} : vector<8x160xbf16>, vector<160x256xbf16>, vector<8x256xf32> -> vector<8x256xf32>
    %38 = arith.addf %33, %37 : vector<8x256xf32>
    %c1_i32 = arith.constant 1 : i32
    %39 = arith.addi %arg1, %c1_i32 : i32
    %c0_34 = arith.constant 0 : index
    %40 = arith.index_cast %39 : i32 to index
    %c0_35 = arith.constant 0 : index
    %c0_36 = arith.constant 0 : index
    %41 = vector.load %arg2[%c0_34, %40, %c0_35, %c0_36] : memref<1x6x10x160xbf16, #tpu.memory_space<vmem>>, vector<1x1x10x160xbf16>
    %42 = vector.shape_cast %41 : vector<1x1x10x160xbf16> to vector<10x160xbf16>
    %c1_i32_37 = arith.constant 1 : i32
    %43 = arith.addi %arg1, %c1_i32_37 : i32
    %c0_38 = arith.constant 0 : index
    %44 = arith.index_cast %43 : i32 to index
    %c0_39 = arith.constant 0 : index
    %c0_40 = arith.constant 0 : index
    %45 = vector.load %arg4[%c0_38, %44, %c0_39, %c0_40] : memref<1x6x10x160xbf16, #tpu.memory_space<vmem>>, vector<1x1x10x160xbf16>
    %46 = vector.shape_cast %45 : vector<1x1x10x160xbf16> to vector<10x160xbf16>
    %47 = vector.extract_strided_slice %42 {offsets = [0, 0], sizes = [8, 160], strides = [1, 1]} : vector<10x160xbf16> to vector<8x160xbf16>
    %c1_41 = arith.constant 1 : index
    %c0_42 = arith.constant 0 : index
    %c0_43 = arith.constant 0 : index
    %c0_44 = arith.constant 0 : index
    %48 = vector.load %arg3[%c1_41, %c0_42, %c0_43, %c0_44] : memref<3x3x160x256xbf16, #tpu.memory_space<vmem>>, vector<1x1x160x256xbf16>
    %49 = vector.shape_cast %48 : vector<1x1x160x256xbf16> to vector<160x256xbf16>
    %cst_45 = arith.constant dense<0.000000e+00> : vector<8x256xf32>
    %50 = tpu.matmul %47, %49, %cst_45 {dimension_numbers = #tpu.dot_dimension_numbers<[1], [0], [0], [1], [0, 0, 1, 1], [], []>} : vector<8x160xbf16>, vector<160x256xbf16>, vector<8x256xf32> -> vector<8x256xf32>
    %51 = arith.addf %38, %50 : vector<8x256xf32>
    %52 = vector.extract_strided_slice %46 {offsets = [0, 0], sizes = [8, 160], strides = [1, 1]} : vector<10x160xbf16> to vector<8x160xbf16>
    %c1_46 = arith.constant 1 : index
    %c0_47 = arith.constant 0 : index
    %c0_48 = arith.constant 0 : index
    %c0_49 = arith.constant 0 : index
    %53 = vector.load %arg5[%c1_46, %c0_47, %c0_48, %c0_49] : memref<3x3x160x256xbf16, #tpu.memory_space<vmem>>, vector<1x1x160x256xbf16>
    %54 = vector.shape_cast %53 : vector<1x1x160x256xbf16> to vector<160x256xbf16>
    %cst_50 = arith.constant dense<0.000000e+00> : vector<8x256xf32>
    %55 = tpu.matmul %52, %54, %cst_50 {dimension_numbers = #tpu.dot_dimension_numbers<[1], [0], [0], [1], [0, 0, 1, 1], [], []>} : vector<8x160xbf16>, vector<160x256xbf16>, vector<8x256xf32> -> vector<8x256xf32>
    %56 = arith.addf %51, %55 : vector<8x256xf32>
    %57 = vector.extract_strided_slice %42 {offsets = [1, 0], sizes = [8, 160], strides = [1, 1]} : vector<10x160xbf16> to vector<8x160xbf16>
    %c1_51 = arith.constant 1 : index
    %c1_52 = arith.constant 1 : index
    %c0_53 = arith.constant 0 : index
    %c0_54 = arith.constant 0 : index
    %58 = vector.load %arg3[%c1_51, %c1_52, %c0_53, %c0_54] : memref<3x3x160x256xbf16, #tpu.memory_space<vmem>>, vector<1x1x160x256xbf16>
    %59 = vector.shape_cast %58 : vector<1x1x160x256xbf16> to vector<160x256xbf16>
    %cst_55 = arith.constant dense<0.000000e+00> : vector<8x256xf32>
    %60 = tpu.matmul %57, %59, %cst_55 {dimension_numbers = #tpu.dot_dimension_numbers<[1], [0], [0], [1], [0, 0, 1, 1], [], []>} : vector<8x160xbf16>, vector<160x256xbf16>, vector<8x256xf32> -> vector<8x256xf32>
    %61 = arith.addf %56, %60 : vector<8x256xf32>
    %62 = vector.extract_strided_slice %46 {offsets = [1, 0], sizes = [8, 160], strides = [1, 1]} : vector<10x160xbf16> to vector<8x160xbf16>
    %c1_56 = arith.constant 1 : index
    %c1_57 = arith.constant 1 : index
    %c0_58 = arith.constant 0 : index
    %c0_59 = arith.constant 0 : index
    %63 = vector.load %arg5[%c1_56, %c1_57, %c0_58, %c0_59] : memref<3x3x160x256xbf16, #tpu.memory_space<vmem>>, vector<1x1x160x256xbf16>
    %64 = vector.shape_cast %63 : vector<1x1x160x256xbf16> to vector<160x256xbf16>
    %cst_60 = arith.constant dense<0.000000e+00> : vector<8x256xf32>
    %65 = tpu.matmul %62, %64, %cst_60 {dimension_numbers = #tpu.dot_dimension_numbers<[1], [0], [0], [1], [0, 0, 1, 1], [], []>} : vector<8x160xbf16>, vector<160x256xbf16>, vector<8x256xf32> -> vector<8x256xf32>
    %66 = arith.addf %61, %65 : vector<8x256xf32>
    %67 = vector.extract_strided_slice %42 {offsets = [2, 0], sizes = [8, 160], strides = [1, 1]} : vector<10x160xbf16> to vector<8x160xbf16>
    %c1_61 = arith.constant 1 : index
    %c2_62 = arith.constant 2 : index
    %c0_63 = arith.constant 0 : index
    %c0_64 = arith.constant 0 : index
    %68 = vector.load %arg3[%c1_61, %c2_62, %c0_63, %c0_64] : memref<3x3x160x256xbf16, #tpu.memory_space<vmem>>, vector<1x1x160x256xbf16>
    %69 = vector.shape_cast %68 : vector<1x1x160x256xbf16> to vector<160x256xbf16>
    %cst_65 = arith.constant dense<0.000000e+00> : vector<8x256xf32>
    %70 = tpu.matmul %67, %69, %cst_65 {dimension_numbers = #tpu.dot_dimension_numbers<[1], [0], [0], [1], [0, 0, 1, 1], [], []>} : vector<8x160xbf16>, vector<160x256xbf16>, vector<8x256xf32> -> vector<8x256xf32>
    %71 = arith.addf %66, %70 : vector<8x256xf32>
    %72 = vector.extract_strided_slice %46 {offsets = [2, 0], sizes = [8, 160], strides = [1, 1]} : vector<10x160xbf16> to vector<8x160xbf16>
    %c1_66 = arith.constant 1 : index
    %c2_67 = arith.constant 2 : index
    %c0_68 = arith.constant 0 : index
    %c0_69 = arith.constant 0 : index
    %73 = vector.load %arg5[%c1_66, %c2_67, %c0_68, %c0_69] : memref<3x3x160x256xbf16, #tpu.memory_space<vmem>>, vector<1x1x160x256xbf16>
    %74 = vector.shape_cast %73 : vector<1x1x160x256xbf16> to vector<160x256xbf16>
    %cst_70 = arith.constant dense<0.000000e+00> : vector<8x256xf32>
    %75 = tpu.matmul %72, %74, %cst_70 {dimension_numbers = #tpu.dot_dimension_numbers<[1], [0], [0], [1], [0, 0, 1, 1], [], []>} : vector<8x160xbf16>, vector<160x256xbf16>, vector<8x256xf32> -> vector<8x256xf32>
    %76 = arith.addf %71, %75 : vector<8x256xf32>
    %c2_i32 = arith.constant 2 : i32
    %77 = arith.addi %arg1, %c2_i32 : i32
    %c0_71 = arith.constant 0 : index
    %78 = arith.index_cast %77 : i32 to index
    %c0_72 = arith.constant 0 : index
    %c0_73 = arith.constant 0 : index
    %79 = vector.load %arg2[%c0_71, %78, %c0_72, %c0_73] : memref<1x6x10x160xbf16, #tpu.memory_space<vmem>>, vector<1x1x10x160xbf16>
    %80 = vector.shape_cast %79 : vector<1x1x10x160xbf16> to vector<10x160xbf16>
    %c2_i32_74 = arith.constant 2 : i32
    %81 = arith.addi %arg1, %c2_i32_74 : i32
    %c0_75 = arith.constant 0 : index
    %82 = arith.index_cast %81 : i32 to index
    %c0_76 = arith.constant 0 : index
    %c0_77 = arith.constant 0 : index
    %83 = vector.load %arg4[%c0_75, %82, %c0_76, %c0_77] : memref<1x6x10x160xbf16, #tpu.memory_space<vmem>>, vector<1x1x10x160xbf16>
    %84 = vector.shape_cast %83 : vector<1x1x10x160xbf16> to vector<10x160xbf16>
    %85 = vector.extract_strided_slice %80 {offsets = [0, 0], sizes = [8, 160], strides = [1, 1]} : vector<10x160xbf16> to vector<8x160xbf16>
    %c2_78 = arith.constant 2 : index
    %c0_79 = arith.constant 0 : index
    %c0_80 = arith.constant 0 : index
    %c0_81 = arith.constant 0 : index
    %86 = vector.load %arg3[%c2_78, %c0_79, %c0_80, %c0_81] : memref<3x3x160x256xbf16, #tpu.memory_space<vmem>>, vector<1x1x160x256xbf16>
    %87 = vector.shape_cast %86 : vector<1x1x160x256xbf16> to vector<160x256xbf16>
    %cst_82 = arith.constant dense<0.000000e+00> : vector<8x256xf32>
    %88 = tpu.matmul %85, %87, %cst_82 {dimension_numbers = #tpu.dot_dimension_numbers<[1], [0], [0], [1], [0, 0, 1, 1], [], []>} : vector<8x160xbf16>, vector<160x256xbf16>, vector<8x256xf32> -> vector<8x256xf32>
    %89 = arith.addf %76, %88 : vector<8x256xf32>
    %90 = vector.extract_strided_slice %84 {offsets = [0, 0], sizes = [8, 160], strides = [1, 1]} : vector<10x160xbf16> to vector<8x160xbf16>
    %c2_83 = arith.constant 2 : index
    %c0_84 = arith.constant 0 : index
    %c0_85 = arith.constant 0 : index
    %c0_86 = arith.constant 0 : index
    %91 = vector.load %arg5[%c2_83, %c0_84, %c0_85, %c0_86] : memref<3x3x160x256xbf16, #tpu.memory_space<vmem>>, vector<1x1x160x256xbf16>
    %92 = vector.shape_cast %91 : vector<1x1x160x256xbf16> to vector<160x256xbf16>
    %cst_87 = arith.constant dense<0.000000e+00> : vector<8x256xf32>
    %93 = tpu.matmul %90, %92, %cst_87 {dimension_numbers = #tpu.dot_dimension_numbers<[1], [0], [0], [1], [0, 0, 1, 1], [], []>} : vector<8x160xbf16>, vector<160x256xbf16>, vector<8x256xf32> -> vector<8x256xf32>
    %94 = arith.addf %89, %93 : vector<8x256xf32>
    %95 = vector.extract_strided_slice %80 {offsets = [1, 0], sizes = [8, 160], strides = [1, 1]} : vector<10x160xbf16> to vector<8x160xbf16>
    %c2_88 = arith.constant 2 : index
    %c1_89 = arith.constant 1 : index
    %c0_90 = arith.constant 0 : index
    %c0_91 = arith.constant 0 : index
    %96 = vector.load %arg3[%c2_88, %c1_89, %c0_90, %c0_91] : memref<3x3x160x256xbf16, #tpu.memory_space<vmem>>, vector<1x1x160x256xbf16>
    %97 = vector.shape_cast %96 : vector<1x1x160x256xbf16> to vector<160x256xbf16>
    %cst_92 = arith.constant dense<0.000000e+00> : vector<8x256xf32>
    %98 = tpu.matmul %95, %97, %cst_92 {dimension_numbers = #tpu.dot_dimension_numbers<[1], [0], [0], [1], [0, 0, 1, 1], [], []>} : vector<8x160xbf16>, vector<160x256xbf16>, vector<8x256xf32> -> vector<8x256xf32>
    %99 = arith.addf %94, %98 : vector<8x256xf32>
    %100 = vector.extract_strided_slice %84 {offsets = [1, 0], sizes = [8, 160], strides = [1, 1]} : vector<10x160xbf16> to vector<8x160xbf16>
    %c2_93 = arith.constant 2 : index
    %c1_94 = arith.constant 1 : index
    %c0_95 = arith.constant 0 : index
    %c0_96 = arith.constant 0 : index
    %101 = vector.load %arg5[%c2_93, %c1_94, %c0_95, %c0_96] : memref<3x3x160x256xbf16, #tpu.memory_space<vmem>>, vector<1x1x160x256xbf16>
    %102 = vector.shape_cast %101 : vector<1x1x160x256xbf16> to vector<160x256xbf16>
    %cst_97 = arith.constant dense<0.000000e+00> : vector<8x256xf32>
    %103 = tpu.matmul %100, %102, %cst_97 {dimension_numbers = #tpu.dot_dimension_numbers<[1], [0], [0], [1], [0, 0, 1, 1], [], []>} : vector<8x160xbf16>, vector<160x256xbf16>, vector<8x256xf32> -> vector<8x256xf32>
    %104 = arith.addf %99, %103 : vector<8x256xf32>
    %105 = vector.extract_strided_slice %80 {offsets = [2, 0], sizes = [8, 160], strides = [1, 1]} : vector<10x160xbf16> to vector<8x160xbf16>
    %c2_98 = arith.constant 2 : index
    %c2_99 = arith.constant 2 : index
    %c0_100 = arith.constant 0 : index
    %c0_101 = arith.constant 0 : index
    %106 = vector.load %arg3[%c2_98, %c2_99, %c0_100, %c0_101] : memref<3x3x160x256xbf16, #tpu.memory_space<vmem>>, vector<1x1x160x256xbf16>
    %107 = vector.shape_cast %106 : vector<1x1x160x256xbf16> to vector<160x256xbf16>
    %cst_102 = arith.constant dense<0.000000e+00> : vector<8x256xf32>
    %108 = tpu.matmul %105, %107, %cst_102 {dimension_numbers = #tpu.dot_dimension_numbers<[1], [0], [0], [1], [0, 0, 1, 1], [], []>} : vector<8x160xbf16>, vector<160x256xbf16>, vector<8x256xf32> -> vector<8x256xf32>
    %109 = arith.addf %104, %108 : vector<8x256xf32>
    %110 = vector.extract_strided_slice %84 {offsets = [2, 0], sizes = [8, 160], strides = [1, 1]} : vector<10x160xbf16> to vector<8x160xbf16>
    %c2_103 = arith.constant 2 : index
    %c2_104 = arith.constant 2 : index
    %c0_105 = arith.constant 0 : index
    %c0_106 = arith.constant 0 : index
    %111 = vector.load %arg5[%c2_103, %c2_104, %c0_105, %c0_106] : memref<3x3x160x256xbf16, #tpu.memory_space<vmem>>, vector<1x1x160x256xbf16>
    %112 = vector.shape_cast %111 : vector<1x1x160x256xbf16> to vector<160x256xbf16>
    %cst_107 = arith.constant dense<0.000000e+00> : vector<8x256xf32>
    %113 = tpu.matmul %110, %112, %cst_107 {dimension_numbers = #tpu.dot_dimension_numbers<[1], [0], [0], [1], [0, 0, 1, 1], [], []>} : vector<8x160xbf16>, vector<160x256xbf16>, vector<8x256xf32> -> vector<8x256xf32>
    %114 = arith.addf %109, %113 : vector<8x256xf32>
    %c0_108 = arith.constant 0 : index
    %c0_109 = arith.constant 0 : index
    %115 = vector.load %arg6[%c0_108, %c0_109] : memref<1x256xf32, #tpu.memory_space<vmem>>, vector<1x256xf32>
    %116 = vector.broadcast %115 : vector<1x256xf32> to vector<8x256xf32>
    %117 = arith.addf %114, %116 : vector<8x256xf32>
    %cst_110 = arith.constant 0.000000e+00 : f32
    %118 = vector.broadcast %cst_110 : f32 to vector<8x256xf32>
    %119 = arith.maximumf %117, %118 : vector<8x256xf32>
    %120 = arith.truncf %119 : vector<8x256xf32> to vector<8x256xbf16>
    %c0_111 = arith.constant 0 : index
    %c0_112 = arith.constant 0 : index
    %c0_113 = arith.constant 0 : index
    %c0_114 = arith.constant 0 : index
    %121 = vector.load %arg7[%c0_111, %c0_112, %c0_113, %c0_114] : memref<1x1x8x256xbf16, #tpu.memory_space<vmem>>, vector<1x1x8x256xbf16>
    %122 = vector.shape_cast %121 : vector<1x1x8x256xbf16> to vector<8x256xbf16>
    %123 = vector.shape_cast %120 : vector<8x256xbf16> to vector<1x1x8x256xbf16>
    tpu.vector_store %arg7[%c0_111, %c0_112, %c0_113, %c0_114], %123 {strides = array<i32>} : memref<1x1x8x256xbf16, #tpu.memory_space<vmem>>, vector<1x1x8x256xbf16>,
    return
  }
  func.func @transform_0(%arg0: i32, %arg1: i32) -> (i32, i32, i32, i32) {
    %c0_i32 = arith.constant 0 : i32
    %c0_i32_0 = arith.constant 0 : i32
    %c0_i32_1 = arith.constant 0 : i32
    %c0_i32_2 = arith.constant 0 : i32
    return %arg0, %c0_i32, %c0_i32_0, %c0_i32_1 : i32, i32, i32, i32
  }
  func.func @transform_1(%arg0: i32, %arg1: i32) -> (i32, i32, i32, i32) {
    %c0_i32 = arith.constant 0 : i32
    %c0_i32_0 = arith.constant 0 : i32
    %c0_i32_1 = arith.constant 0 : i32
    %c0_i32_2 = arith.constant 0 : i32
    %c0_i32_3 = arith.constant 0 : i32
    return %c0_i32, %c0_i32_0, %c0_i32_1, %c0_i32_2 : i32, i32, i32, i32
  }
  func.func @transform_2(%arg0: i32, %arg1: i32) -> (i32, i32, i32, i32) {
    %c0_i32 = arith.constant 0 : i32
    %c0_i32_0 = arith.constant 0 : i32
    %c0_i32_1 = arith.constant 0 : i32
    %c0_i32_2 = arith.constant 0 : i32
    return %arg0, %c0_i32, %c0_i32_0, %c0_i32_1 : i32, i32, i32, i32
  }
  func.func @transform_3(%arg0: i32, %arg1: i32) -> (i32, i32, i32, i32) {
    %c0_i32 = arith.constant 0 : i32
    %c0_i32_0 = arith.constant 0 : i32
    %c0_i32_1 = arith.constant 0 : i32
    %c0_i32_2 = arith.constant 0 : i32
    %c0_i32_3 = arith.constant 0 : i32
    return %c0_i32, %c0_i32_0, %c0_i32_1, %c0_i32_2 : i32, i32, i32, i32
  }
  func.func @transform_4(%arg0: i32, %arg1: i32) -> (i32, i32) {
    %c0_i32 = arith.constant 0 : i32
    %c0_i32_0 = arith.constant 0 : i32
    %c0_i32_1 = arith.constant 0 : i32
    return %c0_i32, %c0_i32_0 : i32, i32
  }
  func.func @transform_5(%arg0: i32, %arg1: i32) -> (i32, i32, i32, i32) {
    %c0_i32 = arith.constant 0 : i32
    %c0_i32_0 = arith.constant 0 : i32
    %c0_i32_1 = arith.constant 0 : i32
    return %arg0, %arg1, %c0_i32, %c0_i32_0 : i32, i32, i32, i32
  }
}

module attributes {stable_mosaic.version = 11 : i64} {
  func.func @_block_kernel(%arg0: i32, %arg1: i32, %arg2: memref<1x6x18x144xbf16, #tpu.memory_space<vmem>>, %arg3: memref<3x3x144x256xbf16, #tpu.memory_space<vmem>>, %arg4: memref<1x6x18x144xbf16, #tpu.memory_space<vmem>>, %arg5: memref<3x3x144x256xbf16, #tpu.memory_space<vmem>>, %arg6: memref<1x256xf32, #tpu.memory_space<vmem>>, %arg7: memref<256x256xf32, #tpu.memory_space<vmem>>, %arg8: memref<1x256xf32, #tpu.memory_space<vmem>>, %arg9: memref<1x1x16x256xf32, #tpu.memory_space<vmem>>) attributes {dimension_semantics = [#tpu.dimension_semantics<parallel>, #tpu.dimension_semantics<parallel>], iteration_bounds = array<i64: 2, 4>, scalar_prefetch = 0 : i64, scratch_operands = 0 : i64, tpu.core_type = #tpu.core_type<tc>, window_params = [{transform_indices = @transform_0, window_bounds = array<i64: 1, 6, 18, 144>}, {pipeline_mode = #tpu.pipeline_mode<synchronous>, transform_indices = @transform_1, window_bounds = array<i64: 3, 3, 144, 256>}, {transform_indices = @transform_2, window_bounds = array<i64: 1, 6, 18, 144>}, {pipeline_mode = #tpu.pipeline_mode<synchronous>, transform_indices = @transform_3, window_bounds = array<i64: 3, 3, 144, 256>}, {pipeline_mode = #tpu.pipeline_mode<synchronous>, transform_indices = @transform_4, window_bounds = array<i64: 1, 256>}, {pipeline_mode = #tpu.pipeline_mode<synchronous>, transform_indices = @transform_5, window_bounds = array<i64: 256, 256>}, {pipeline_mode = #tpu.pipeline_mode<synchronous>, transform_indices = @transform_6, window_bounds = array<i64: 1, 256>}, {transform_indices = @transform_7, window_bounds = array<i64: 1, 1, 16, 256>}]} {
    %cst = arith.constant 0.000000e+00 : f32
    %0 = vector.broadcast %cst : f32 to vector<16x256xf32>
    %c0_i32 = arith.constant 0 : i32
    %1 = arith.addi %arg1, %c0_i32 : i32
    %c0 = arith.constant 0 : index
    %2 = arith.index_cast %1 : i32 to index
    %c0_0 = arith.constant 0 : index
    %c0_1 = arith.constant 0 : index
    %3 = vector.load %arg2[%c0, %2, %c0_0, %c0_1] : memref<1x6x18x144xbf16, #tpu.memory_space<vmem>>, vector<1x1x18x144xbf16>
    %4 = vector.shape_cast %3 : vector<1x1x18x144xbf16> to vector<18x144xbf16>
    %c0_i32_2 = arith.constant 0 : i32
    %5 = arith.addi %arg1, %c0_i32_2 : i32
    %c0_3 = arith.constant 0 : index
    %6 = arith.index_cast %5 : i32 to index
    %c0_4 = arith.constant 0 : index
    %c0_5 = arith.constant 0 : index
    %7 = vector.load %arg4[%c0_3, %6, %c0_4, %c0_5] : memref<1x6x18x144xbf16, #tpu.memory_space<vmem>>, vector<1x1x18x144xbf16>
    %8 = vector.shape_cast %7 : vector<1x1x18x144xbf16> to vector<18x144xbf16>
    %9 = vector.extract_strided_slice %4 {offsets = [0, 0], sizes = [16, 144], strides = [1, 1]} : vector<18x144xbf16> to vector<16x144xbf16>
    %c0_6 = arith.constant 0 : index
    %c0_7 = arith.constant 0 : index
    %c0_8 = arith.constant 0 : index
    %c0_9 = arith.constant 0 : index
    %10 = vector.load %arg3[%c0_6, %c0_7, %c0_8, %c0_9] : memref<3x3x144x256xbf16, #tpu.memory_space<vmem>>, vector<1x1x144x256xbf16>
    %11 = vector.shape_cast %10 : vector<1x1x144x256xbf16> to vector<144x256xbf16>
    %cst_10 = arith.constant dense<0.000000e+00> : vector<16x256xf32>
    %12 = tpu.matmul %9, %11, %cst_10 {dimension_numbers = #tpu.dot_dimension_numbers<[1], [0], [0], [1], [0, 0, 1, 1], [], []>} : vector<16x144xbf16>, vector<144x256xbf16>, vector<16x256xf32> -> vector<16x256xf32>
    %13 = arith.addf %0, %12 : vector<16x256xf32>
    %14 = vector.extract_strided_slice %8 {offsets = [0, 0], sizes = [16, 144], strides = [1, 1]} : vector<18x144xbf16> to vector<16x144xbf16>
    %c0_11 = arith.constant 0 : index
    %c0_12 = arith.constant 0 : index
    %c0_13 = arith.constant 0 : index
    %c0_14 = arith.constant 0 : index
    %15 = vector.load %arg5[%c0_11, %c0_12, %c0_13, %c0_14] : memref<3x3x144x256xbf16, #tpu.memory_space<vmem>>, vector<1x1x144x256xbf16>
    %16 = vector.shape_cast %15 : vector<1x1x144x256xbf16> to vector<144x256xbf16>
    %cst_15 = arith.constant dense<0.000000e+00> : vector<16x256xf32>
    %17 = tpu.matmul %14, %16, %cst_15 {dimension_numbers = #tpu.dot_dimension_numbers<[1], [0], [0], [1], [0, 0, 1, 1], [], []>} : vector<16x144xbf16>, vector<144x256xbf16>, vector<16x256xf32> -> vector<16x256xf32>
    %18 = arith.addf %13, %17 : vector<16x256xf32>
    %19 = vector.extract_strided_slice %4 {offsets = [1, 0], sizes = [16, 144], strides = [1, 1]} : vector<18x144xbf16> to vector<16x144xbf16>
    %c0_16 = arith.constant 0 : index
    %c1 = arith.constant 1 : index
    %c0_17 = arith.constant 0 : index
    %c0_18 = arith.constant 0 : index
    %20 = vector.load %arg3[%c0_16, %c1, %c0_17, %c0_18] : memref<3x3x144x256xbf16, #tpu.memory_space<vmem>>, vector<1x1x144x256xbf16>
    %21 = vector.shape_cast %20 : vector<1x1x144x256xbf16> to vector<144x256xbf16>
    %cst_19 = arith.constant dense<0.000000e+00> : vector<16x256xf32>
    %22 = tpu.matmul %19, %21, %cst_19 {dimension_numbers = #tpu.dot_dimension_numbers<[1], [0], [0], [1], [0, 0, 1, 1], [], []>} : vector<16x144xbf16>, vector<144x256xbf16>, vector<16x256xf32> -> vector<16x256xf32>
    %23 = arith.addf %18, %22 : vector<16x256xf32>
    %24 = vector.extract_strided_slice %8 {offsets = [1, 0], sizes = [16, 144], strides = [1, 1]} : vector<18x144xbf16> to vector<16x144xbf16>
    %c0_20 = arith.constant 0 : index
    %c1_21 = arith.constant 1 : index
    %c0_22 = arith.constant 0 : index
    %c0_23 = arith.constant 0 : index
    %25 = vector.load %arg5[%c0_20, %c1_21, %c0_22, %c0_23] : memref<3x3x144x256xbf16, #tpu.memory_space<vmem>>, vector<1x1x144x256xbf16>
    %26 = vector.shape_cast %25 : vector<1x1x144x256xbf16> to vector<144x256xbf16>
    %cst_24 = arith.constant dense<0.000000e+00> : vector<16x256xf32>
    %27 = tpu.matmul %24, %26, %cst_24 {dimension_numbers = #tpu.dot_dimension_numbers<[1], [0], [0], [1], [0, 0, 1, 1], [], []>} : vector<16x144xbf16>, vector<144x256xbf16>, vector<16x256xf32> -> vector<16x256xf32>
    %28 = arith.addf %23, %27 : vector<16x256xf32>
    %29 = vector.extract_strided_slice %4 {offsets = [2, 0], sizes = [16, 144], strides = [1, 1]} : vector<18x144xbf16> to vector<16x144xbf16>
    %c0_25 = arith.constant 0 : index
    %c2 = arith.constant 2 : index
    %c0_26 = arith.constant 0 : index
    %c0_27 = arith.constant 0 : index
    %30 = vector.load %arg3[%c0_25, %c2, %c0_26, %c0_27] : memref<3x3x144x256xbf16, #tpu.memory_space<vmem>>, vector<1x1x144x256xbf16>
    %31 = vector.shape_cast %30 : vector<1x1x144x256xbf16> to vector<144x256xbf16>
    %cst_28 = arith.constant dense<0.000000e+00> : vector<16x256xf32>
    %32 = tpu.matmul %29, %31, %cst_28 {dimension_numbers = #tpu.dot_dimension_numbers<[1], [0], [0], [1], [0, 0, 1, 1], [], []>} : vector<16x144xbf16>, vector<144x256xbf16>, vector<16x256xf32> -> vector<16x256xf32>
    %33 = arith.addf %28, %32 : vector<16x256xf32>
    %34 = vector.extract_strided_slice %8 {offsets = [2, 0], sizes = [16, 144], strides = [1, 1]} : vector<18x144xbf16> to vector<16x144xbf16>
    %c0_29 = arith.constant 0 : index
    %c2_30 = arith.constant 2 : index
    %c0_31 = arith.constant 0 : index
    %c0_32 = arith.constant 0 : index
    %35 = vector.load %arg5[%c0_29, %c2_30, %c0_31, %c0_32] : memref<3x3x144x256xbf16, #tpu.memory_space<vmem>>, vector<1x1x144x256xbf16>
    %36 = vector.shape_cast %35 : vector<1x1x144x256xbf16> to vector<144x256xbf16>
    %cst_33 = arith.constant dense<0.000000e+00> : vector<16x256xf32>
    %37 = tpu.matmul %34, %36, %cst_33 {dimension_numbers = #tpu.dot_dimension_numbers<[1], [0], [0], [1], [0, 0, 1, 1], [], []>} : vector<16x144xbf16>, vector<144x256xbf16>, vector<16x256xf32> -> vector<16x256xf32>
    %38 = arith.addf %33, %37 : vector<16x256xf32>
    %c1_i32 = arith.constant 1 : i32
    %39 = arith.addi %arg1, %c1_i32 : i32
    %c0_34 = arith.constant 0 : index
    %40 = arith.index_cast %39 : i32 to index
    %c0_35 = arith.constant 0 : index
    %c0_36 = arith.constant 0 : index
    %41 = vector.load %arg2[%c0_34, %40, %c0_35, %c0_36] : memref<1x6x18x144xbf16, #tpu.memory_space<vmem>>, vector<1x1x18x144xbf16>
    %42 = vector.shape_cast %41 : vector<1x1x18x144xbf16> to vector<18x144xbf16>
    %c1_i32_37 = arith.constant 1 : i32
    %43 = arith.addi %arg1, %c1_i32_37 : i32
    %c0_38 = arith.constant 0 : index
    %44 = arith.index_cast %43 : i32 to index
    %c0_39 = arith.constant 0 : index
    %c0_40 = arith.constant 0 : index
    %45 = vector.load %arg4[%c0_38, %44, %c0_39, %c0_40] : memref<1x6x18x144xbf16, #tpu.memory_space<vmem>>, vector<1x1x18x144xbf16>
    %46 = vector.shape_cast %45 : vector<1x1x18x144xbf16> to vector<18x144xbf16>
    %47 = vector.extract_strided_slice %42 {offsets = [0, 0], sizes = [16, 144], strides = [1, 1]} : vector<18x144xbf16> to vector<16x144xbf16>
    %c1_41 = arith.constant 1 : index
    %c0_42 = arith.constant 0 : index
    %c0_43 = arith.constant 0 : index
    %c0_44 = arith.constant 0 : index
    %48 = vector.load %arg3[%c1_41, %c0_42, %c0_43, %c0_44] : memref<3x3x144x256xbf16, #tpu.memory_space<vmem>>, vector<1x1x144x256xbf16>
    %49 = vector.shape_cast %48 : vector<1x1x144x256xbf16> to vector<144x256xbf16>
    %cst_45 = arith.constant dense<0.000000e+00> : vector<16x256xf32>
    %50 = tpu.matmul %47, %49, %cst_45 {dimension_numbers = #tpu.dot_dimension_numbers<[1], [0], [0], [1], [0, 0, 1, 1], [], []>} : vector<16x144xbf16>, vector<144x256xbf16>, vector<16x256xf32> -> vector<16x256xf32>
    %51 = arith.addf %38, %50 : vector<16x256xf32>
    %52 = vector.extract_strided_slice %46 {offsets = [0, 0], sizes = [16, 144], strides = [1, 1]} : vector<18x144xbf16> to vector<16x144xbf16>
    %c1_46 = arith.constant 1 : index
    %c0_47 = arith.constant 0 : index
    %c0_48 = arith.constant 0 : index
    %c0_49 = arith.constant 0 : index
    %53 = vector.load %arg5[%c1_46, %c0_47, %c0_48, %c0_49] : memref<3x3x144x256xbf16, #tpu.memory_space<vmem>>, vector<1x1x144x256xbf16>
    %54 = vector.shape_cast %53 : vector<1x1x144x256xbf16> to vector<144x256xbf16>
    %cst_50 = arith.constant dense<0.000000e+00> : vector<16x256xf32>
    %55 = tpu.matmul %52, %54, %cst_50 {dimension_numbers = #tpu.dot_dimension_numbers<[1], [0], [0], [1], [0, 0, 1, 1], [], []>} : vector<16x144xbf16>, vector<144x256xbf16>, vector<16x256xf32> -> vector<16x256xf32>
    %56 = arith.addf %51, %55 : vector<16x256xf32>
    %57 = vector.extract_strided_slice %42 {offsets = [1, 0], sizes = [16, 144], strides = [1, 1]} : vector<18x144xbf16> to vector<16x144xbf16>
    %c1_51 = arith.constant 1 : index
    %c1_52 = arith.constant 1 : index
    %c0_53 = arith.constant 0 : index
    %c0_54 = arith.constant 0 : index
    %58 = vector.load %arg3[%c1_51, %c1_52, %c0_53, %c0_54] : memref<3x3x144x256xbf16, #tpu.memory_space<vmem>>, vector<1x1x144x256xbf16>
    %59 = vector.shape_cast %58 : vector<1x1x144x256xbf16> to vector<144x256xbf16>
    %cst_55 = arith.constant dense<0.000000e+00> : vector<16x256xf32>
    %60 = tpu.matmul %57, %59, %cst_55 {dimension_numbers = #tpu.dot_dimension_numbers<[1], [0], [0], [1], [0, 0, 1, 1], [], []>} : vector<16x144xbf16>, vector<144x256xbf16>, vector<16x256xf32> -> vector<16x256xf32>
    %61 = arith.addf %56, %60 : vector<16x256xf32>
    %62 = vector.extract_strided_slice %46 {offsets = [1, 0], sizes = [16, 144], strides = [1, 1]} : vector<18x144xbf16> to vector<16x144xbf16>
    %c1_56 = arith.constant 1 : index
    %c1_57 = arith.constant 1 : index
    %c0_58 = arith.constant 0 : index
    %c0_59 = arith.constant 0 : index
    %63 = vector.load %arg5[%c1_56, %c1_57, %c0_58, %c0_59] : memref<3x3x144x256xbf16, #tpu.memory_space<vmem>>, vector<1x1x144x256xbf16>
    %64 = vector.shape_cast %63 : vector<1x1x144x256xbf16> to vector<144x256xbf16>
    %cst_60 = arith.constant dense<0.000000e+00> : vector<16x256xf32>
    %65 = tpu.matmul %62, %64, %cst_60 {dimension_numbers = #tpu.dot_dimension_numbers<[1], [0], [0], [1], [0, 0, 1, 1], [], []>} : vector<16x144xbf16>, vector<144x256xbf16>, vector<16x256xf32> -> vector<16x256xf32>
    %66 = arith.addf %61, %65 : vector<16x256xf32>
    %67 = vector.extract_strided_slice %42 {offsets = [2, 0], sizes = [16, 144], strides = [1, 1]} : vector<18x144xbf16> to vector<16x144xbf16>
    %c1_61 = arith.constant 1 : index
    %c2_62 = arith.constant 2 : index
    %c0_63 = arith.constant 0 : index
    %c0_64 = arith.constant 0 : index
    %68 = vector.load %arg3[%c1_61, %c2_62, %c0_63, %c0_64] : memref<3x3x144x256xbf16, #tpu.memory_space<vmem>>, vector<1x1x144x256xbf16>
    %69 = vector.shape_cast %68 : vector<1x1x144x256xbf16> to vector<144x256xbf16>
    %cst_65 = arith.constant dense<0.000000e+00> : vector<16x256xf32>
    %70 = tpu.matmul %67, %69, %cst_65 {dimension_numbers = #tpu.dot_dimension_numbers<[1], [0], [0], [1], [0, 0, 1, 1], [], []>} : vector<16x144xbf16>, vector<144x256xbf16>, vector<16x256xf32> -> vector<16x256xf32>
    %71 = arith.addf %66, %70 : vector<16x256xf32>
    %72 = vector.extract_strided_slice %46 {offsets = [2, 0], sizes = [16, 144], strides = [1, 1]} : vector<18x144xbf16> to vector<16x144xbf16>
    %c1_66 = arith.constant 1 : index
    %c2_67 = arith.constant 2 : index
    %c0_68 = arith.constant 0 : index
    %c0_69 = arith.constant 0 : index
    %73 = vector.load %arg5[%c1_66, %c2_67, %c0_68, %c0_69] : memref<3x3x144x256xbf16, #tpu.memory_space<vmem>>, vector<1x1x144x256xbf16>
    %74 = vector.shape_cast %73 : vector<1x1x144x256xbf16> to vector<144x256xbf16>
    %cst_70 = arith.constant dense<0.000000e+00> : vector<16x256xf32>
    %75 = tpu.matmul %72, %74, %cst_70 {dimension_numbers = #tpu.dot_dimension_numbers<[1], [0], [0], [1], [0, 0, 1, 1], [], []>} : vector<16x144xbf16>, vector<144x256xbf16>, vector<16x256xf32> -> vector<16x256xf32>
    %76 = arith.addf %71, %75 : vector<16x256xf32>
    %c2_i32 = arith.constant 2 : i32
    %77 = arith.addi %arg1, %c2_i32 : i32
    %c0_71 = arith.constant 0 : index
    %78 = arith.index_cast %77 : i32 to index
    %c0_72 = arith.constant 0 : index
    %c0_73 = arith.constant 0 : index
    %79 = vector.load %arg2[%c0_71, %78, %c0_72, %c0_73] : memref<1x6x18x144xbf16, #tpu.memory_space<vmem>>, vector<1x1x18x144xbf16>
    %80 = vector.shape_cast %79 : vector<1x1x18x144xbf16> to vector<18x144xbf16>
    %c2_i32_74 = arith.constant 2 : i32
    %81 = arith.addi %arg1, %c2_i32_74 : i32
    %c0_75 = arith.constant 0 : index
    %82 = arith.index_cast %81 : i32 to index
    %c0_76 = arith.constant 0 : index
    %c0_77 = arith.constant 0 : index
    %83 = vector.load %arg4[%c0_75, %82, %c0_76, %c0_77] : memref<1x6x18x144xbf16, #tpu.memory_space<vmem>>, vector<1x1x18x144xbf16>
    %84 = vector.shape_cast %83 : vector<1x1x18x144xbf16> to vector<18x144xbf16>
    %85 = vector.extract_strided_slice %80 {offsets = [0, 0], sizes = [16, 144], strides = [1, 1]} : vector<18x144xbf16> to vector<16x144xbf16>
    %c2_78 = arith.constant 2 : index
    %c0_79 = arith.constant 0 : index
    %c0_80 = arith.constant 0 : index
    %c0_81 = arith.constant 0 : index
    %86 = vector.load %arg3[%c2_78, %c0_79, %c0_80, %c0_81] : memref<3x3x144x256xbf16, #tpu.memory_space<vmem>>, vector<1x1x144x256xbf16>
    %87 = vector.shape_cast %86 : vector<1x1x144x256xbf16> to vector<144x256xbf16>
    %cst_82 = arith.constant dense<0.000000e+00> : vector<16x256xf32>
    %88 = tpu.matmul %85, %87, %cst_82 {dimension_numbers = #tpu.dot_dimension_numbers<[1], [0], [0], [1], [0, 0, 1, 1], [], []>} : vector<16x144xbf16>, vector<144x256xbf16>, vector<16x256xf32> -> vector<16x256xf32>
    %89 = arith.addf %76, %88 : vector<16x256xf32>
    %90 = vector.extract_strided_slice %84 {offsets = [0, 0], sizes = [16, 144], strides = [1, 1]} : vector<18x144xbf16> to vector<16x144xbf16>
    %c2_83 = arith.constant 2 : index
    %c0_84 = arith.constant 0 : index
    %c0_85 = arith.constant 0 : index
    %c0_86 = arith.constant 0 : index
    %91 = vector.load %arg5[%c2_83, %c0_84, %c0_85, %c0_86] : memref<3x3x144x256xbf16, #tpu.memory_space<vmem>>, vector<1x1x144x256xbf16>
    %92 = vector.shape_cast %91 : vector<1x1x144x256xbf16> to vector<144x256xbf16>
    %cst_87 = arith.constant dense<0.000000e+00> : vector<16x256xf32>
    %93 = tpu.matmul %90, %92, %cst_87 {dimension_numbers = #tpu.dot_dimension_numbers<[1], [0], [0], [1], [0, 0, 1, 1], [], []>} : vector<16x144xbf16>, vector<144x256xbf16>, vector<16x256xf32> -> vector<16x256xf32>
    %94 = arith.addf %89, %93 : vector<16x256xf32>
    %95 = vector.extract_strided_slice %80 {offsets = [1, 0], sizes = [16, 144], strides = [1, 1]} : vector<18x144xbf16> to vector<16x144xbf16>
    %c2_88 = arith.constant 2 : index
    %c1_89 = arith.constant 1 : index
    %c0_90 = arith.constant 0 : index
    %c0_91 = arith.constant 0 : index
    %96 = vector.load %arg3[%c2_88, %c1_89, %c0_90, %c0_91] : memref<3x3x144x256xbf16, #tpu.memory_space<vmem>>, vector<1x1x144x256xbf16>
    %97 = vector.shape_cast %96 : vector<1x1x144x256xbf16> to vector<144x256xbf16>
    %cst_92 = arith.constant dense<0.000000e+00> : vector<16x256xf32>
    %98 = tpu.matmul %95, %97, %cst_92 {dimension_numbers = #tpu.dot_dimension_numbers<[1], [0], [0], [1], [0, 0, 1, 1], [], []>} : vector<16x144xbf16>, vector<144x256xbf16>, vector<16x256xf32> -> vector<16x256xf32>
    %99 = arith.addf %94, %98 : vector<16x256xf32>
    %100 = vector.extract_strided_slice %84 {offsets = [1, 0], sizes = [16, 144], strides = [1, 1]} : vector<18x144xbf16> to vector<16x144xbf16>
    %c2_93 = arith.constant 2 : index
    %c1_94 = arith.constant 1 : index
    %c0_95 = arith.constant 0 : index
    %c0_96 = arith.constant 0 : index
    %101 = vector.load %arg5[%c2_93, %c1_94, %c0_95, %c0_96] : memref<3x3x144x256xbf16, #tpu.memory_space<vmem>>, vector<1x1x144x256xbf16>
    %102 = vector.shape_cast %101 : vector<1x1x144x256xbf16> to vector<144x256xbf16>
    %cst_97 = arith.constant dense<0.000000e+00> : vector<16x256xf32>
    %103 = tpu.matmul %100, %102, %cst_97 {dimension_numbers = #tpu.dot_dimension_numbers<[1], [0], [0], [1], [0, 0, 1, 1], [], []>} : vector<16x144xbf16>, vector<144x256xbf16>, vector<16x256xf32> -> vector<16x256xf32>
    %104 = arith.addf %99, %103 : vector<16x256xf32>
    %105 = vector.extract_strided_slice %80 {offsets = [2, 0], sizes = [16, 144], strides = [1, 1]} : vector<18x144xbf16> to vector<16x144xbf16>
    %c2_98 = arith.constant 2 : index
    %c2_99 = arith.constant 2 : index
    %c0_100 = arith.constant 0 : index
    %c0_101 = arith.constant 0 : index
    %106 = vector.load %arg3[%c2_98, %c2_99, %c0_100, %c0_101] : memref<3x3x144x256xbf16, #tpu.memory_space<vmem>>, vector<1x1x144x256xbf16>
    %107 = vector.shape_cast %106 : vector<1x1x144x256xbf16> to vector<144x256xbf16>
    %cst_102 = arith.constant dense<0.000000e+00> : vector<16x256xf32>
    %108 = tpu.matmul %105, %107, %cst_102 {dimension_numbers = #tpu.dot_dimension_numbers<[1], [0], [0], [1], [0, 0, 1, 1], [], []>} : vector<16x144xbf16>, vector<144x256xbf16>, vector<16x256xf32> -> vector<16x256xf32>
    %109 = arith.addf %104, %108 : vector<16x256xf32>
    %110 = vector.extract_strided_slice %84 {offsets = [2, 0], sizes = [16, 144], strides = [1, 1]} : vector<18x144xbf16> to vector<16x144xbf16>
    %c2_103 = arith.constant 2 : index
    %c2_104 = arith.constant 2 : index
    %c0_105 = arith.constant 0 : index
    %c0_106 = arith.constant 0 : index
    %111 = vector.load %arg5[%c2_103, %c2_104, %c0_105, %c0_106] : memref<3x3x144x256xbf16, #tpu.memory_space<vmem>>, vector<1x1x144x256xbf16>
    %112 = vector.shape_cast %111 : vector<1x1x144x256xbf16> to vector<144x256xbf16>
    %cst_107 = arith.constant dense<0.000000e+00> : vector<16x256xf32>
    %113 = tpu.matmul %110, %112, %cst_107 {dimension_numbers = #tpu.dot_dimension_numbers<[1], [0], [0], [1], [0, 0, 1, 1], [], []>} : vector<16x144xbf16>, vector<144x256xbf16>, vector<16x256xf32> -> vector<16x256xf32>
    %114 = arith.addf %109, %113 : vector<16x256xf32>
    %c0_108 = arith.constant 0 : index
    %c0_109 = arith.constant 0 : index
    %115 = vector.load %arg6[%c0_108, %c0_109] : memref<1x256xf32, #tpu.memory_space<vmem>>, vector<1x256xf32>
    %116 = vector.broadcast %115 : vector<1x256xf32> to vector<16x256xf32>
    %117 = arith.addf %114, %116 : vector<16x256xf32>
    %cst_110 = arith.constant 0.000000e+00 : f32
    %118 = vector.broadcast %cst_110 : f32 to vector<16x256xf32>
    %119 = arith.maximumf %117, %118 : vector<16x256xf32>
    %c0_111 = arith.constant 0 : index
    %c0_112 = arith.constant 0 : index
    %120 = vector.load %arg7[%c0_111, %c0_112] : memref<256x256xf32, #tpu.memory_space<vmem>>, vector<256x256xf32>
    %cst_113 = arith.constant dense<0.000000e+00> : vector<16x256xf32>
    %121 = tpu.matmul %119, %120, %cst_113 {dimension_numbers = #tpu.dot_dimension_numbers<[1], [0], [0], [1], [0, 0, 1, 1], [], []>} : vector<16x256xf32>, vector<256x256xf32>, vector<16x256xf32> -> vector<16x256xf32>
    %c0_114 = arith.constant 0 : index
    %c0_115 = arith.constant 0 : index
    %122 = vector.load %arg8[%c0_114, %c0_115] : memref<1x256xf32, #tpu.memory_space<vmem>>, vector<1x256xf32>
    %123 = vector.broadcast %122 : vector<1x256xf32> to vector<16x256xf32>
    %124 = arith.addf %121, %123 : vector<16x256xf32>
    %c0_116 = arith.constant 0 : index
    %c0_117 = arith.constant 0 : index
    %c0_118 = arith.constant 0 : index
    %c0_119 = arith.constant 0 : index
    %125 = vector.load %arg9[%c0_116, %c0_117, %c0_118, %c0_119] : memref<1x1x16x256xf32, #tpu.memory_space<vmem>>, vector<1x1x16x256xf32>
    %126 = vector.shape_cast %125 : vector<1x1x16x256xf32> to vector<16x256xf32>
    %127 = vector.shape_cast %124 : vector<16x256xf32> to vector<1x1x16x256xf32>
    tpu.vector_store %arg9[%c0_116, %c0_117, %c0_118, %c0_119], %127 {strides = array<i32>} : memref<1x1x16x256xf32, #tpu.memory_space<vmem>>, vector<1x1x16x256xf32>,
    return
  }
  func.func @transform_0(%arg0: i32, %arg1: i32) -> (i32, i32, i32, i32) {
    %c0_i32 = arith.constant 0 : i32
    %c0_i32_0 = arith.constant 0 : i32
    %c0_i32_1 = arith.constant 0 : i32
    %c0_i32_2 = arith.constant 0 : i32
    return %arg0, %c0_i32, %c0_i32_0, %c0_i32_1 : i32, i32, i32, i32
  }
  func.func @transform_1(%arg0: i32, %arg1: i32) -> (i32, i32, i32, i32) {
    %c0_i32 = arith.constant 0 : i32
    %c0_i32_0 = arith.constant 0 : i32
    %c0_i32_1 = arith.constant 0 : i32
    %c0_i32_2 = arith.constant 0 : i32
    %c0_i32_3 = arith.constant 0 : i32
    return %c0_i32, %c0_i32_0, %c0_i32_1, %c0_i32_2 : i32, i32, i32, i32
  }
  func.func @transform_2(%arg0: i32, %arg1: i32) -> (i32, i32, i32, i32) {
    %c0_i32 = arith.constant 0 : i32
    %c0_i32_0 = arith.constant 0 : i32
    %c0_i32_1 = arith.constant 0 : i32
    %c0_i32_2 = arith.constant 0 : i32
    return %arg0, %c0_i32, %c0_i32_0, %c0_i32_1 : i32, i32, i32, i32
  }
  func.func @transform_3(%arg0: i32, %arg1: i32) -> (i32, i32, i32, i32) {
    %c0_i32 = arith.constant 0 : i32
    %c0_i32_0 = arith.constant 0 : i32
    %c0_i32_1 = arith.constant 0 : i32
    %c0_i32_2 = arith.constant 0 : i32
    %c0_i32_3 = arith.constant 0 : i32
    return %c0_i32, %c0_i32_0, %c0_i32_1, %c0_i32_2 : i32, i32, i32, i32
  }
  func.func @transform_4(%arg0: i32, %arg1: i32) -> (i32, i32) {
    %c0_i32 = arith.constant 0 : i32
    %c0_i32_0 = arith.constant 0 : i32
    %c0_i32_1 = arith.constant 0 : i32
    return %c0_i32, %c0_i32_0 : i32, i32
  }
  func.func @transform_5(%arg0: i32, %arg1: i32) -> (i32, i32) {
    %c0_i32 = arith.constant 0 : i32
    %c0_i32_0 = arith.constant 0 : i32
    %c0_i32_1 = arith.constant 0 : i32
    return %c0_i32, %c0_i32_0 : i32, i32
  }
  func.func @transform_6(%arg0: i32, %arg1: i32) -> (i32, i32) {
    %c0_i32 = arith.constant 0 : i32
    %c0_i32_0 = arith.constant 0 : i32
    %c0_i32_1 = arith.constant 0 : i32
    return %c0_i32, %c0_i32_0 : i32, i32
  }
  func.func @transform_7(%arg0: i32, %arg1: i32) -> (i32, i32, i32, i32) {
    %c0_i32 = arith.constant 0 : i32
    %c0_i32_0 = arith.constant 0 : i32
    %c0_i32_1 = arith.constant 0 : i32
    return %arg0, %arg1, %c0_i32, %c0_i32_0 : i32, i32, i32, i32
  }
}

</mosaic_0001>

<llo_original>
// kernel: tile.23
$region0: #{tile.23}
  #allocation0 [shape = 's32[1]{0}', space=sflag, size = 0x4, scoped, tag = 'scoped memory for tile.23']
  %s0 = inlined_call_operand.vmem [shape: f32[16], index: 0, kind: input, shape index: {}]
  %s1 = inlined_call_operand.vmem [shape: f32[16,16], index: 1, kind: output, shape index: {}]
  // Predicated region
  $region2: #{tile.23} parent=0 // pred_check
    _
  $region3: #{tile.23} parent=0 // pred_check_branch
    %3 = sbr.rel (0) target = $region5
  $region4: #{tile.23} parent=0 // pred_region
    _
  $region5: #{tile.23} parent=0 // pred_fallthru
    _
  %v4 = vld [vmem:[%s0] ss:$0 sm:$0xff]
  %5 = vst [vmem:[%s1] sm:$0xff] %v4
  %s6 = scalar_lea.vmem %s1, 8
  %7 = vst [vmem:[%s6] sm:$0xff] %v4

// kernel: tile.24
$region0: #{tile.24}
  %s0 = inlined_call_operand.vmem [shape: f32[16,16], index: 0, kind: input, shape index: {}]
  %s1 = inlined_call_operand.vmem [shape: f32[1,256], index: 1, kind: output, shape index: {}]
  $region1: #{tile.24} parent=0
    #allocation0 [shape = 'u8[8192]{0}', space=vmem, size = 0x2000, scoped, tag = 'scoped mem for output reshape']
    %s2 = smov 3
    %v3 = vld [vmem:[%s0] ss:$8 sm:%s2]
    %vm4 = vcmask 130048
    %5 = vst.msk [vmem:[#allocation0] ss:$8 sm:$0x3] %vm4, %v3
    %s6 = scalar_lea.vmem %s0, 7
    %s7 = smov 3
    %v8 = vld [vmem:[%s6] ss:$8 sm:%s7]
    %9 = vrot.lane.b32.xlu0 %v8, 112
    %v10 = vpop.permute.xlu0 %9
    %vm11 = vcmask 1048448
    %12 = vst.msk [vmem:[#allocation0] ss:$8 sm:$0x3] %vm11, %v10
    %s13 = scalar_lea.vmem %s0, 6
    %s14 = smov 3
    %v15 = vld [vmem:[%s13] ss:$8 sm:%s14]
    %16 = vrot.lane.b32.xlu0 %v15, 96
    %v17 = vpop.permute.xlu0 %16
    %vm18 = vcmask 917248
    %19 = vst.msk [vmem:[#allocation0] ss:$8 sm:$0x3] %vm18, %v17
    %s20 = scalar_lea.vmem %s0, 5
    %s21 = smov 3
    %v22 = vld [vmem:[%s20] ss:$8 sm:%s21]
    %23 = vrot.lane.b32.xlu0 %v22, 80
    %v24 = vpop.permute.xlu0 %23
    %vm25 = vcmask 786048
    %26 = vst.msk [vmem:[#allocation0] ss:$8 sm:$0x3] %vm25, %v24
    %s27 = scalar_lea.vmem %s0, 4
    %s28 = smov 3
    %v29 = vld [vmem:[%s27] ss:$8 sm:%s28]
    %30 = vrot.lane.b32.xlu0 %v29, 64
    %v31 = vpop.permute.xlu0 %30
    %vm32 = vcmask 654848
    %33 = vst.msk [vmem:[#allocation0] ss:$8 sm:$0x3] %vm32, %v31
    %s34 = scalar_lea.vmem %s0, 3
    %s35 = smov 3
    %v36 = vld [vmem:[%s34] ss:$8 sm:%s35]
    %37 = vrot.lane.b32.xlu0 %v36, 48
    %v38 = vpop.permute.xlu0 %37
    %vm39 = vcmask 523648
    %40 = vst.msk [vmem:[#allocation0] ss:$8 sm:$0x3] %vm39, %v38
    %s41 = scalar_lea.vmem %s0, 2
    %s42 = smov 3
    %v43 = vld [vmem:[%s41] ss:$8 sm:%s42]
    %44 = vrot.lane.b32.xlu0 %v43, 32
    %v45 = vpop.permute.xlu0 %44
    %vm46 = vcmask 392448
    %47 = vst.msk [vmem:[#allocation0] ss:$8 sm:$0x3] %vm46, %v45
    %s48 = scalar_lea.vmem %s0, 1
    %s49 = smov 3
    %v50 = vld [vmem:[%s48] ss:$8 sm:%s49]
    %51 = vrot.lane.b32.xlu0 %v50, 16
    %v52 = vpop.permute.xlu0 %51
    %vm53 = vcmask 261248
    %54 = vst.msk [vmem:[#allocation0] ss:$8 sm:$0x3] %vm53, %v52
    %s56 = sshllo.u32 0, 1
    %v58 = vld [vmem:[#allocation0] sm:%s56]
    %s59 = sshllo.u32 0, 1
    %60 = vst [vmem:[%s1] sm:%s59] %v58
    %s61 = scalar_lea.vmem [#allocation0], 8
    %v62 = vld [vmem:[%s61] sm:%s56]
    %s63 = sshllo.u32 0, 1
    %s64 = scalar_lea.vmem %s1, 1
    %65 = vst [vmem:[%s64] sm:%s63] %v62

// kernel: decoder3d_forward.3
$region0: #{decoder3d_forward.3}
  #allocation0 [shape = 'u32[]', space=smem, size = 0x4, offset = 0x4, fixed_abs, tag = 'smem constant byte address 0x4 - core index']
  #allocation1 [shape = 'u32[144,128]{1,0:T(1,128)}', space=vmem, size = 0x12000, scoped, tag = 'internal scratch']
  %s0 = inlined_call_operand.vmem [shape: bf16[2,6,6,192], index: 0, kind: input, shape index: {}]
  %s1 = inlined_call_operand.vmem [shape: bf16[3,3,192,256], index: 1, kind: input, shape index: {}]
  %s2 = inlined_call_operand.vmem [shape: f32[1,256], index: 2, kind: input, shape index: {}]
  %s3 = inlined_call_operand.vmem [shape: bf16[2,4,4,256], index: 3, kind: output, shape index: {}]
  %s4 = sld [smem:[#allocation0]]
  $region45: #{decoder3d_forward.3} parent=0
    _
  %s6 = ssub.s32 1, %s4
  %s7 = scalar_select 0, %s6, %s4
  loop: start=0, step=1, limit=10
  $region2: #{decoder3d_forward.3} parent=0 // loop_pre_header
    _
  $region3: #{decoder3d_forward.3} parent=0 // loop_header
    %s9 = sphi 0, %s13
    %p10 = scmp.ge.s32.totalorder %s9, 10
    %s16 = sphi 0, %s28
    %s17 = sphi 0, %s24
    %s18 = sphi 0, %s16
    %s19 = sphi 0, %s17
    %s20 = sphi 0, %s18
    %s21 = sphi 0, %s19
    %s31 = sphi 0, %s33
    %s34 = sphi 0, %s31
    %s35 = sphi 0, %s34
    %s51 = sphi 0, %s35
    %s55 = sphi 0, %s55
    %s57 = sphi 0, %s55
    %s58 = sphi 0, %s57
    %s72 = sphi 0, %s58
    %s76 = sphi 0, %s76
    %s78 = sphi 0, %s76
    %s79 = sphi 0, %s78
    %s93 = sphi 0, %s79
    %s101 = sphi 0, %s103
    %s104 = sphi 0, %s101
    %s105 = sphi 0, %s104
    %s121 = sphi 0, %s105
  $region4: #{decoder3d_forward.3} parent=0 // loop_header_branch
    %12 = sbr.rel (%p10) target = $region8
  $region5: #{decoder3d_forward.3} parent=0 // loop_body
    %s14 = ssub.s32 %s9, 1
    %s15 = ssub.s32 %s9, 2
    %s22 = sadd.s32 1, %s17
    %p23 = scmp.ge.s32.totalorder %s22, 4
    %s24 = scalar_select %p23, 0, %s22
    %s25 = sadd.s32 1, %s16
    %s26 = scalar_select %p23, %s25, %s16
    %p27 = scmp.ge.s32.totalorder %s26, 2
    %s28 = scalar_select %p27, 0, %s26
    %s29 = ssub.s32 %s16, %s28
    %p30 = scmp.eq.s32.totalorder %s29, 0
    %s32 = sadd.s32 %s31, 1
    %s33 = scalar_select %p30, %s31, %s32
    %p36 = pneg %p30
    %p37 = scmp.eq.s32.totalorder %s9, 7
    %p38 = por %p36, %p37
    %p39 = scmp.ne.s32.totalorder %s31, %s34
    %p40 = scmp.eq.s32.totalorder %s9, 0
    %p41 = por %p39, %p40
    %p42 = scmp.ne.s32.totalorder %s31, %s34
    %p43 = scmp.eq.s32.totalorder %s14, 7
    %p44 = por %p42, %p43
    %p45 = scmp.ne.s32.totalorder %s34, %s35
    %p46 = scmp.eq.s32.totalorder %s14, 0
    %p47 = por %p45, %p46
    %p48 = scmp.ne.s32.totalorder %s34, %s35
    %p49 = scmp.eq.s32.totalorder %s15, 7
    %p50 = por %p48, %p49
    %p52 = scmp.ne.s32.totalorder %s35, %s51
    %p53 = scmp.eq.s32.totalorder %s15, 0
    %p54 = por %p52, %p53
    %s56 = sadd.s32 %s55, 1
    %p59 = scmp.eq.s32.totalorder %s9, 7
    %p60 = scmp.ne.s32.totalorder %s55, %s57
    %p61 = scmp.eq.s32.totalorder %s9, 0
    %p62 = por %p60, %p61
    %p63 = scmp.ne.s32.totalorder %s55, %s57
    %p64 = scmp.eq.s32.totalorder %s14, 7
    %p65 = por %p63, %p64
    %p66 = scmp.ne.s32.totalorder %s57, %s58
    %p67 = scmp.eq.s32.totalorder %s14, 0
    %p68 = por %p66, %p67
    %p69 = scmp.ne.s32.totalorder %s57, %s58
    %p70 = scmp.eq.s32.totalorder %s15, 7
    %p71 = por %p69, %p70
    %p73 = scmp.ne.s32.totalorder %s58, %s72
    %p74 = scmp.eq.s32.totalorder %s15, 0
    %p75 = por %p73, %p74
    %s77 = sadd.s32 %s76, 1
    %p80 = scmp.eq.s32.totalorder %s9, 7
    %p81 = scmp.ne.s32.totalorder %s76, %s78
    %p82 = scmp.eq.s32.totalorder %s9, 0
    %p83 = por %p81, %p82
    %p84 = scmp.ne.s32.totalorder %s76, %s78
    %p85 = scmp.eq.s32.totalorder %s14, 7
    %p86 = por %p84, %p85
    %p87 = scmp.ne.s32.totalorder %s78, %s79
    %p88 = scmp.eq.s32.totalorder %s14, 0
    %p89 = por %p87, %p88
    %p90 = scmp.ne.s32.totalorder %s78, %s79
    %p91 = scmp.eq.s32.totalorder %s15, 7
    %p92 = por %p90, %p91
    %p94 = scmp.ne.s32.totalorder %s79, %s93
    %p95 = scmp.eq.s32.totalorder %s15, 0
    %p96 = por %p94, %p95
    %s97 = ssub.s32 %s16, %s28
    %s98 = ssub.s32 %s17, %s24
    %s99 = sor.u32 %s97, %s98
    %p100 = scmp.eq.s32.totalorder %s99, 0
    %s102 = sadd.s32 %s101, 1
    %s103 = scalar_select %p100, %s101, %s102
    %p106 = pneg %p100
    %p107 = scmp.eq.s32.totalorder %s9, 7
    %p108 = por %p106, %p107
    %p109 = scmp.ne.s32.totalorder %s101, %s104
    %p110 = scmp.eq.s32.totalorder %s9, 0
    %p111 = por %p109, %p110
    %p112 = scmp.ne.s32.totalorder %s101, %s104
    %p113 = scmp.eq.s32.totalorder %s14, 7
    %p114 = por %p112, %p113
    %p115 = scmp.ne.s32.totalorder %s104, %s105
    %p116 = scmp.eq.s32.totalorder %s14, 0
    %p117 = por %p115, %p116
    %p118 = scmp.ne.s32.totalorder %s104, %s105
    %p119 = scmp.eq.s32.totalorder %s15, 7
    %p120 = por %p118, %p119
    %p122 = scmp.ne.s32.totalorder %s105, %s121
    %p123 = scmp.eq.s32.totalorder %s15, 0
    %p124 = por %p122, %p123
    %p125 = scmp.le.s32.totalorder 1, %s9
    %p126 = scmp.lt.s32.totalorder %s9, 9
    %p127 = pnand %p125, %p126
    %p128 = pneg %p127
    // Predicated region
    $region9: #{decoder3d_forward.3} parent=5 // pred_check
      _
    $region10: #{decoder3d_forward.3} parent=5 // pred_check_branch
      %130 = sbr.rel (%p127) target = $region12
    $region11: #{decoder3d_forward.3} parent=5 // pred_region
      %s131 = ssub.s32 %s9, 1
      // Predicated region
      $region13: #{decoder3d_forward.3} parent=11 // pred_check
        %p132 = pneg %p68
      $region14: #{decoder3d_forward.3} parent=11 // pred_check_branch
        %134 = sbr.rel (%p132) target = $region16
      $region15: #{decoder3d_forward.3} parent=11 // pred_region
        _
      $region16: #{decoder3d_forward.3} parent=11 // pred_fallthru
        _
      // Predicated region
      $region17: #{decoder3d_forward.3} parent=11 // pred_check
        %p135 = pneg %p89
      $region18: #{decoder3d_forward.3} parent=11 // pred_check_branch
        %137 = sbr.rel (%p135) target = $region20
      $region19: #{decoder3d_forward.3} parent=11 // pred_region
        _
      $region20: #{decoder3d_forward.3} parent=11 // pred_fallthru
        _
    $region12: #{decoder3d_forward.3} parent=5 // pred_fallthru
      _
    %p138 = scmp.lt.s32.totalorder %s9, 8
    // Predicated region
    $region21: #{decoder3d_forward.3} parent=5 // pred_check
      %p139 = pneg %p138
    $region22: #{decoder3d_forward.3} parent=5 // pred_check_branch
      %141 = sbr.rel (%p139) target = $region24
    $region23: #{decoder3d_forward.3} parent=5 // pred_region
      // Predicated region
      $region25: #{decoder3d_forward.3} parent=23 // pred_check
        %p142 = pneg %p41
      $region26: #{decoder3d_forward.3} parent=23 // pred_check_branch
        %144 = sbr.rel (%p142) target = $region28
      $region27: #{decoder3d_forward.3} parent=23 // pred_region
        %p145 = scmp.lt.s32.totalorder %s16, 1
        %s146 = scalar_select %p145, %s16, 1
        %s147 = smul.addr %s146, 12
        %s148 = smul.addr %s147, 4
        %s149 = scalar_lea.vmem %s0, %s148
      $region28: #{decoder3d_forward.3} parent=23 // pred_fallthru
        _
    $region24: #{decoder3d_forward.3} parent=5 // pred_fallthru
      _
    %p150 = scmp.le.s32.totalorder 1, %s9
    %p151 = scmp.lt.s32.totalorder %s9, 9
    %p152 = pnand %p150, %p151
    %p153 = pneg %p152
    // Predicated region
    $region29: #{decoder3d_forward.3} parent=5 // pred_check
      _
    $region30: #{decoder3d_forward.3} parent=5 // pred_check_branch
      %155 = sbr.rel (%p152) target = $region32
    $region31: #{decoder3d_forward.3} parent=5 // pred_region
      %s156 = ssub.s32 %s9, 1
      %p157 = scmp.lt.s32.totalorder %s18, 1
      %s158 = scalar_select %p157, %s18, 1
      %s159 = smul.addr %s158, 12
      %s160 = smul.addr %s159, 4
      %s161 = scalar_lea.vmem %s0, %s160
      %p162 = pneg %p47
      %p163 = pneg %p44
      %p164 = pneg %p68
      %p165 = pneg %p65
      %p166 = pneg %p89
      %p167 = pneg %p86
      %p168 = pneg %p117
      %p169 = pneg %p114
      %p170 = scmp.lt.s32.totalorder %s18, 1
      %s171 = scalar_select %p170, %s18, 1
      %p172 = scmp.lt.s32.totalorder %s19, 3
      %s173 = scalar_select %p172, %s19, 3
      %s174 = smul.addr %s173, 2
      %s175 = smul.addr %s171, 8
      %s176 = sadd.s32 %s174, %s175
      %s177 = smul.addr %s176, 2
      %s178 = scalar_lea.vmem %s3, %s177
      %p179 = scmp.lt.s32.totalorder %s18, 1
      %s180 = scalar_select %p179, %s18, 1
      %s181 = smul.addr %s180, 12
      %s182 = smul.addr %s181, 4
      %s183 = scalar_lea.vmem %s0, %s182
      %p184 = scmp.lt.s32.totalorder %s18, 1
      %s185 = scalar_select %p184, %s18, 1
      %p186 = scmp.lt.s32.totalorder %s19, 3
      %s187 = scalar_select %p186, %s19, 3
      %s188 = smul.addr %s187, 2
      %s189 = smul.addr %s185, 8
      %s190 = sadd.s32 %s188, %s189
      %s191 = smul.addr %s190, 2
      %s192 = scalar_lea.vmem %s3, %s191
      %s194 = smul.u32 %s19, 2
      %s195 = smul.addr %s194, 4
      %s196 = scalar_lea.vmem %s183, %s195
      %v197 = vld [vmem:[%s196] sm:$0x77]
      %v198 = vld [vmem:[%s1] sm:$0xff]
      %v199 = vld [vmem:[%s1 + $0x8] sm:$0xff]
      %v200 = vld [vmem:[%s1 + $0x10] sm:$0xff]
      %v201 = vld [vmem:[%s1 + $0x18] sm:$0xff]
      %v202 = vld [vmem:[%s1 + $0x20] sm:$0xff]
      %v203 = vld [vmem:[%s1 + $0x28] sm:$0xff]
      %v204 = vld [vmem:[%s1 + $0x30] sm:$0xff]
      %v205 = vld [vmem:[%s1 + $0x38] sm:$0xff]
      %v206 = vld [vmem:[%s1 + $0x40] sm:$0xff]
      %v207 = vld [vmem:[%s1 + $0x48] sm:$0xff]
      %v208 = vld [vmem:[%s1 + $0x50] sm:$0xff]
      %v209 = vld [vmem:[%s1 + $0x58] sm:$0xff]
      %v210 = vld [vmem:[%s1 + $0x60] sm:$0xff]
      %v211 = vld [vmem:[%s1 + $0x68] sm:$0xff]
      %v212 = vld [vmem:[%s1 + $0x70] sm:$0xff]
      %v213 = vld [vmem:[%s1 + $0x78] sm:$0xff]
      %v214 = vld [vmem:[%s1 + $0x80] sm:$0xff]
      %v215 = vld [vmem:[%s1 + $0x88] sm:$0xff]
      %v216 = vld [vmem:[%s1 + $0x90] sm:$0xff]
      %v217 = vld [vmem:[%s1 + $0x98] sm:$0xff]
      %v218 = vld [vmem:[%s1 + $0xa0] sm:$0xff]
      %v219 = vld [vmem:[%s1 + $0xa8] sm:$0xff]
      %v220 = vld [vmem:[%s1 + $0xb0] sm:$0xff]
      %v221 = vld [vmem:[%s1 + $0xb8] sm:$0xff]
      %s222 = scalar_lea.vmem %s1, 192
      %v223 = vld [vmem:[%s222] sm:$0xff]
      %v224 = vld [vmem:[%s222 + $0x8] sm:$0xff]
      %v225 = vld [vmem:[%s222 + $0x10] sm:$0xff]
      %v226 = vld [vmem:[%s222 + $0x18] sm:$0xff]
      %v227 = vld [vmem:[%s222 + $0x20] sm:$0xff]
      %v228 = vld [vmem:[%s222 + $0x28] sm:$0xff]
      %v229 = vld [vmem:[%s222 + $0x30] sm:$0xff]
      %v230 = vld [vmem:[%s222 + $0x38] sm:$0xff]
      %v231 = vld [vmem:[%s222 + $0x40] sm:$0xff]
      %v232 = vld [vmem:[%s222 + $0x48] sm:$0xff]
      %v233 = vld [vmem:[%s222 + $0x50] sm:$0xff]
      %v234 = vld [vmem:[%s222 + $0x58] sm:$0xff]
      %v235 = vld [vmem:[%s222 + $0x60] sm:$0xff]
      %v236 = vld [vmem:[%s222 + $0x68] sm:$0xff]
      %v237 = vld [vmem:[%s222 + $0x70] sm:$0xff]
      %v238 = vld [vmem:[%s222 + $0x78] sm:$0xff]
      %v239 = vld [vmem:[%s222 + $0x80] sm:$0xff]
      %v240 = vld [vmem:[%s222 + $0x88] sm:$0xff]
      %v241 = vld [vmem:[%s222 + $0x90] sm:$0xff]
      %v242 = vld [vmem:[%s222 + $0x98] sm:$0xff]
      %v243 = vld [vmem:[%s222 + $0xa0] sm:$0xff]
      %v244 = vld [vmem:[%s222 + $0xa8] sm:$0xff]
      %v245 = vld [vmem:[%s222 + $0xb0] sm:$0xff]
      %v246 = vld [vmem:[%s222 + $0xb8] sm:$0xff]
      %v248 = vunpack.c.l.b16 %v197
      %v249 = vunpack.c.h.b16 %v197
      %v250 = vpack.c.b16 %v248, %v248
      %v251 = vpack.c.b16 %v249, %v249
      %v253 = vshrl.u32 %v250, 16
      %v255 = vshll.u32 %v250, 16
      %v257 = vrot.slane %v255, 1
      %v258 = vor.u32 %v253, %v257
      %v260 = vshrl.u32 %v251, 16
      %v262 = vshll.u32 %v251, 16
      %v264 = vrot.slane %v262, 1
      %v265 = vor.u32 %v260, %v264
      %v291 = vunpack.c.l.b16 %v223
      %v292 = vunpack.c.h.b16 %v223
      %v293 = vunpack.c.l.b16 %v224
      %v294 = vunpack.c.h.b16 %v224
      %v295 = vunpack.c.l.b16 %v225
      %v296 = vunpack.c.h.b16 %v225
      %v297 = vunpack.c.l.b16 %v226
      %v298 = vunpack.c.h.b16 %v226
      %v299 = vunpack.c.l.b16 %v227
      %v300 = vunpack.c.h.b16 %v227
      %v301 = vunpack.c.l.b16 %v228
      %v302 = vunpack.c.h.b16 %v228
      %v303 = vunpack.c.l.b16 %v229
      %v304 = vunpack.c.h.b16 %v229
      %v305 = vunpack.c.l.b16 %v230
      %v306 = vunpack.c.h.b16 %v230
      %v307 = vunpack.c.l.b16 %v231
      %v308 = vunpack.c.h.b16 %v231
      %v309 = vunpack.c.l.b16 %v232
      %v310 = vunpack.c.h.b16 %v232
      %v311 = vunpack.c.l.b16 %v233
      %v312 = vunpack.c.h.b16 %v233
      %v313 = vunpack.c.l.b16 %v234
      %v314 = vunpack.c.h.b16 %v234
      %v315 = vunpack.c.l.b16 %v235
      %v316 = vunpack.c.h.b16 %v235
      %v317 = vunpack.c.l.b16 %v236
      %v318 = vunpack.c.h.b16 %v236
      %v319 = vunpack.c.l.b16 %v237
      %v320 = vunpack.c.h.b16 %v237
      %v321 = vunpack.c.l.b16 %v238
      %v322 = vunpack.c.h.b16 %v238
      %v323 = vunpack.c.l.b16 %v239
      %v324 = vunpack.c.h.b16 %v239
      %v325 = vunpack.c.l.b16 %v240
      %v326 = vunpack.c.h.b16 %v240
      %v327 = vunpack.c.l.b16 %v241
      %v328 = vunpack.c.h.b16 %v241
      %v329 = vunpack.c.l.b16 %v242
      %v330 = vunpack.c.h.b16 %v242
      %v331 = vunpack.c.l.b16 %v243
      %v332 = vunpack.c.h.b16 %v243
      %v333 = vunpack.c.l.b16 %v244
      %v334 = vunpack.c.h.b16 %v244
      %v335 = vunpack.c.l.b16 %v245
      %v336 = vunpack.c.h.b16 %v245
      %v337 = vunpack.c.l.b16 %v246
      %v338 = vunpack.c.h.b16 %v246
      %v339 = vpack.c.b16 %v293, %v291
      %v340 = vpack.c.b16 %v294, %v292
      %v341 = vpack.c.b16 %v297, %v295
      %v342 = vpack.c.b16 %v298, %v296
      %v343 = vpack.c.b16 %v301, %v299
      %v344 = vpack.c.b16 %v302, %v300
      %v345 = vpack.c.b16 %v305, %v303
      %v346 = vpack.c.b16 %v306, %v304
      %v347 = vpack.c.b16 %v309, %v307
      %v348 = vpack.c.b16 %v310, %v308
      %v349 = vpack.c.b16 %v313, %v311
      %v350 = vpack.c.b16 %v314, %v312
      %v351 = vpack.c.b16 %v317, %v315
      %v352 = vpack.c.b16 %v318, %v316
      %v353 = vpack.c.b16 %v321, %v319
      %v354 = vpack.c.b16 %v322, %v320
      %v355 = vpack.c.b16 %v325, %v323
      %v356 = vpack.c.b16 %v326, %v324
      %v357 = vpack.c.b16 %v329, %v327
      %v358 = vpack.c.b16 %v330, %v328
      %v359 = vpack.c.b16 %v333, %v331
      %v360 = vpack.c.b16 %v334, %v332
      %v361 = vpack.c.b16 %v337, %v335
      %v362 = vpack.c.b16 %v338, %v336
      %vm387 = vcmask 523264
      %v389 = vsel %vm387, %v265, 0
      %391 = vmatprep.subr.bf16.mxu0 %v340
      %392 = vmatpush1.bf16.msra.mxu0 %v339
      %393 = vmatprep.subr.bf16.mxu0 %v342
      %394 = vmatpush1.bf16.msra.mxu0 %v341
      %395 = vmatprep.subr.bf16.mxu0 %v344
      %396 = vmatpush1.bf16.msra.mxu0 %v343
      %397 = vmatprep.subr.bf16.mxu0 %v346
      %398 = vmatpush1.bf16.msra.mxu0 %v345
      %399 = vmatprep.subr.bf16.mxu0 %v348
      %400 = vmatpush1.bf16.msra.mxu0 %v347
      %401 = vmatprep.subr.bf16.mxu0 %v350
      %402 = vmatpush1.bf16.msra.mxu0 %v349
      %403 = vmatprep.subr.bf16.mxu0 %v352
      %404 = vmatpush1.bf16.msra.mxu0 %v351
      %405 = vmatprep.subr.bf16.mxu0 %v354
      %406 = vmatpush1.bf16.msra.mxu0 %v353
      %407 = vmatprep.subr.bf16.mxu0 %v356
      %408 = vmatpush1.bf16.msra.mxu0 %v355
      %409 = vmatprep.subr.bf16.mxu0 %v358
      %410 = vmatpush1.bf16.msra.mxu0 %v357
      %411 = vmatprep.subr.bf16.mxu0 %v360
      %412 = vmatpush1.bf16.msra.mxu0 %v359
      %413 = vmatprep.subr.bf16.mxu0 %v362
      %414 = vmatpush1.bf16.msra.mxu0 %v361
      %415 = vmatprep.subr.bf16.mxu0 0
      %416 = vmatpush1.bf16.msra.mxu0 0
      %417 = vmatprep.subr.bf16.mxu0 0
      %418 = vmatpush1.bf16.msra.mxu0 0
      %419 = vmatprep.subr.bf16.mxu0 0
      %420 = vmatpush1.bf16.msra.mxu0 0
      %421 = vmatprep.subr.bf16.mxu0 0
      %422 = vmatpush1.bf16.msra.mxu0 0
      %423 = vmatprep.mubr.bf16.mxu0 %v389
      %424 = vmatmul.mubr.bf16.gmra.mrb[0].mxu0 %v258
      %v425 = vpop.f32.mrb[0].mxu0
      %v426 = vadd.f32 0.0, %v425
      %v427 = vpop.f32.mrb[0].mxu0
      %v428 = vadd.f32 0.0, %v427
      %v429 = vpop.f32.mrb[0].mxu0
      %v430 = vpop.f32.mrb[0].mxu0
      %431 = vdwg.mxu0
      %v457 = vunpack.c.l.b16 %v198
      %v458 = vunpack.c.h.b16 %v198
      %v459 = vunpack.c.l.b16 %v199
      %v460 = vunpack.c.h.b16 %v199
      %v461 = vunpack.c.l.b16 %v200
      %v462 = vunpack.c.h.b16 %v200
      %v463 = vunpack.c.l.b16 %v201
      %v464 = vunpack.c.h.b16 %v201
      %v465 = vunpack.c.l.b16 %v202
      %v466 = vunpack.c.h.b16 %v202
      %v467 = vunpack.c.l.b16 %v203
      %v468 = vunpack.c.h.b16 %v203
      %v469 = vunpack.c.l.b16 %v204
      %v470 = vunpack.c.h.b16 %v204
      %v471 = vunpack.c.l.b16 %v205
      %v472 = vunpack.c.h.b16 %v205
      %v473 = vunpack.c.l.b16 %v206
      %v474 = vunpack.c.h.b16 %v206
      %v475 = vunpack.c.l.b16 %v207
      %v476 = vunpack.c.h.b16 %v207
      %v477 = vunpack.c.l.b16 %v208
      %v478 = vunpack.c.h.b16 %v208
      %v479 = vunpack.c.l.b16 %v209
      %v480 = vunpack.c.h.b16 %v209
      %v481 = vunpack.c.l.b16 %v210
      %v482 = vunpack.c.h.b16 %v210
      %v483 = vunpack.c.l.b16 %v211
      %v484 = vunpack.c.h.b16 %v211
      %v485 = vunpack.c.l.b16 %v212
      %v486 = vunpack.c.h.b16 %v212
      %v487 = vunpack.c.l.b16 %v213
      %v488 = vunpack.c.h.b16 %v213
      %v489 = vunpack.c.l.b16 %v214
      %v490 = vunpack.c.h.b16 %v214
      %v491 = vunpack.c.l.b16 %v215
      %v492 = vunpack.c.h.b16 %v215
      %v493 = vunpack.c.l.b16 %v216
      %v494 = vunpack.c.h.b16 %v216
      %v495 = vunpack.c.l.b16 %v217
      %v496 = vunpack.c.h.b16 %v217
      %v497 = vunpack.c.l.b16 %v218
      %v498 = vunpack.c.h.b16 %v218
      %v499 = vunpack.c.l.b16 %v219
      %v500 = vunpack.c.h.b16 %v219
      %v501 = vunpack.c.l.b16 %v220
      %v502 = vunpack.c.h.b16 %v220
      %v503 = vunpack.c.l.b16 %v221
      %v504 = vunpack.c.h.b16 %v221
      %v505 = vpack.c.b16 %v459, %v457
      %v506 = vpack.c.b16 %v460, %v458
      %v507 = vpack.c.b16 %v463, %v461
      %v508 = vpack.c.b16 %v464, %v462
      %v509 = vpack.c.b16 %v467, %v465
      %v510 = vpack.c.b16 %v468, %v466
      %v511 = vpack.c.b16 %v471, %v469
      %v512 = vpack.c.b16 %v472, %v470
      %v513 = vpack.c.b16 %v475, %v473
      %v514 = vpack.c.b16 %v476, %v474
      %v515 = vpack.c.b16 %v479, %v477
      %v516 = vpack.c.b16 %v480, %v478
      %v517 = vpack.c.b16 %v483, %v481
      %v518 = vpack.c.b16 %v484, %v482
      %v519 = vpack.c.b16 %v487, %v485
      %v520 = vpack.c.b16 %v488, %v486
      %v521 = vpack.c.b16 %v491, %v489
      %v522 = vpack.c.b16 %v492, %v490
      %v523 = vpack.c.b16 %v495, %v493
      %v524 = vpack.c.b16 %v496, %v494
      %v525 = vpack.c.b16 %v499, %v497
      %v526 = vpack.c.b16 %v500, %v498
      %v527 = vpack.c.b16 %v503, %v501
      %v528 = vpack.c.b16 %v504, %v502
      %v553 = vsel %vm387, %v251, 0
      %555 = vmatprep.subr.bf16.mxu0 %v506
      %556 = vmatpush1.bf16.msra.mxu0 %v505
      %557 = vmatprep.subr.bf16.mxu0 %v508
      %558 = vmatpush1.bf16.msra.mxu0 %v507
      %559 = vmatprep.subr.bf16.mxu0 %v510
      %560 = vmatpush1.bf16.msra.mxu0 %v509
      %561 = vmatprep.subr.bf16.mxu0 %v512
      %562 = vmatpush1.bf16.msra.mxu0 %v511
      %563 = vmatprep.subr.bf16.mxu0 %v514
      %564 = vmatpush1.bf16.msra.mxu0 %v513
      %565 = vmatprep.subr.bf16.mxu0 %v516
      %566 = vmatpush1.bf16.msra.mxu0 %v515
      %567 = vmatprep.subr.bf16.mxu0 %v518
      %568 = vmatpush1.bf16.msra.mxu0 %v517
      %569 = vmatprep.subr.bf16.mxu0 %v520
      %570 = vmatpush1.bf16.msra.mxu0 %v519
      %571 = vmatprep.subr.bf16.mxu0 %v522
      %572 = vmatpush1.bf16.msra.mxu0 %v521
      %573 = vmatprep.subr.bf16.mxu0 %v524
      %574 = vmatpush1.bf16.msra.mxu0 %v523
      %575 = vmatprep.subr.bf16.mxu0 %v526
      %576 = vmatpush1.bf16.msra.mxu0 %v525
      %577 = vmatprep.subr.bf16.mxu0 %v528
      %578 = vmatpush1.bf16.msra.mxu0 %v527
      %579 = vmatprep.subr.bf16.mxu0 0
      %580 = vmatpush1.bf16.msra.mxu0 0
      %581 = vmatprep.subr.bf16.mxu0 0
      %582 = vmatpush1.bf16.msra.mxu0 0
      %583 = vmatprep.subr.bf16.mxu0 0
      %584 = vmatpush1.bf16.msra.mxu0 0
      %585 = vmatprep.subr.bf16.mxu0 0
      %586 = vmatpush1.bf16.msra.mxu0 0
      %587 = vmatprep.mubr.bf16.mxu0 %v553
      %588 = vmatmul.mubr.bf16.gmra.mrb[0].mxu0 %v250
      %v589 = vpop.f32.mrb[0].mxu0
      %v590 = vadd.f32 %v426, %v589
      %v591 = vpop.f32.mrb[0].mxu0
      %v592 = vadd.f32 %v428, %v591
      %v593 = vpop.f32.mrb[0].mxu0
      %v594 = vpop.f32.mrb[0].mxu0
      %595 = vdwg.mxu0
      %s596 = scalar_lea.vmem %s1, 384
      %v597 = vld [vmem:[%s596] sm:$0xff]
      %v598 = vld [vmem:[%s596 + $0x8] sm:$0xff]
      %v599 = vld [vmem:[%s596 + $0x10] sm:$0xff]
      %v600 = vld [vmem:[%s596 + $0x18] sm:$0xff]
      %v601 = vld [vmem:[%s596 + $0x20] sm:$0xff]
      %v602 = vld [vmem:[%s596 + $0x28] sm:$0xff]
      %v603 = vld [vmem:[%s596 + $0x30] sm:$0xff]
      %v604 = vld [vmem:[%s596 + $0x38] sm:$0xff]
      %v605 = vld [vmem:[%s596 + $0x40] sm:$0xff]
      %v606 = vld [vmem:[%s596 + $0x48] sm:$0xff]
      %v607 = vld [vmem:[%s596 + $0x50] sm:$0xff]
      %v608 = vld [vmem:[%s596 + $0x58] sm:$0xff]
      %v609 = vld [vmem:[%s596 + $0x60] sm:$0xff]
      %v610 = vld [vmem:[%s596 + $0x68] sm:$0xff]
      %v611 = vld [vmem:[%s596 + $0x70] sm:$0xff]
      %v612 = vld [vmem:[%s596 + $0x78] sm:$0xff]
      %v613 = vld [vmem:[%s596 + $0x80] sm:$0xff]
      %v614 = vld [vmem:[%s596 + $0x88] sm:$0xff]
      %v615 = vld [vmem:[%s596 + $0x90] sm:$0xff]
      %v616 = vld [vmem:[%s596 + $0x98] sm:$0xff]
      %v617 = vld [vmem:[%s596 + $0xa0] sm:$0xff]
      %v618 = vld [vmem:[%s596 + $0xa8] sm:$0xff]
      %v619 = vld [vmem:[%s596 + $0xb0] sm:$0xff]
      %v620 = vld [vmem:[%s596 + $0xb8] sm:$0xff]
      %v621 = vrot.slane %v250, 1
      %v622 = vrot.slane %v251, 1
      %v648 = vunpack.c.l.b16 %v597
      %v649 = vunpack.c.h.b16 %v597
      %v650 = vunpack.c.l.b16 %v598
      %v651 = vunpack.c.h.b16 %v598
      %v652 = vunpack.c.l.b16 %v599
      %v653 = vunpack.c.h.b16 %v599
      %v654 = vunpack.c.l.b16 %v600
      %v655 = vunpack.c.h.b16 %v600
      %v656 = vunpack.c.l.b16 %v601
      %v657 = vunpack.c.h.b16 %v601
      %v658 = vunpack.c.l.b16 %v602
      %v659 = vunpack.c.h.b16 %v602
      %v660 = vunpack.c.l.b16 %v603
      %v661 = vunpack.c.h.b16 %v603
      %v662 = vunpack.c.l.b16 %v604
      %v663 = vunpack.c.h.b16 %v604
      %v664 = vunpack.c.l.b16 %v605
      %v665 = vunpack.c.h.b16 %v605
      %v666 = vunpack.c.l.b16 %v606
      %v667 = vunpack.c.h.b16 %v606
      %v668 = vunpack.c.l.b16 %v607
      %v669 = vunpack.c.h.b16 %v607
      %v670 = vunpack.c.l.b16 %v608
      %v671 = vunpack.c.h.b16 %v608
      %v672 = vunpack.c.l.b16 %v609
      %v673 = vunpack.c.h.b16 %v609
      %v674 = vunpack.c.l.b16 %v610
      %v675 = vunpack.c.h.b16 %v610
      %v676 = vunpack.c.l.b16 %v611
      %v677 = vunpack.c.h.b16 %v611
      %v678 = vunpack.c.l.b16 %v612
      %v679 = vunpack.c.h.b16 %v612
      %v680 = vunpack.c.l.b16 %v613
      %v681 = vunpack.c.h.b16 %v613
      %v682 = vunpack.c.l.b16 %v614
      %v683 = vunpack.c.h.b16 %v614
      %v684 = vunpack.c.l.b16 %v615
      %v685 = vunpack.c.h.b16 %v615
      %v686 = vunpack.c.l.b16 %v616
      %v687 = vunpack.c.h.b16 %v616
      %v688 = vunpack.c.l.b16 %v617
      %v689 = vunpack.c.h.b16 %v617
      %v690 = vunpack.c.l.b16 %v618
      %v691 = vunpack.c.h.b16 %v618
      %v692 = vunpack.c.l.b16 %v619
      %v693 = vunpack.c.h.b16 %v619
      %v694 = vunpack.c.l.b16 %v620
      %v695 = vunpack.c.h.b16 %v620
      %v696 = vpack.c.b16 %v650, %v648
      %v697 = vpack.c.b16 %v651, %v649
      %v698 = vpack.c.b16 %v654, %v652
      %v699 = vpack.c.b16 %v655, %v653
      %v700 = vpack.c.b16 %v658, %v656
      %v701 = vpack.c.b16 %v659, %v657
      %v702 = vpack.c.b16 %v662, %v660
      %v703 = vpack.c.b16 %v663, %v661
      %v704 = vpack.c.b16 %v666, %v664
      %v705 = vpack.c.b16 %v667, %v665
      %v706 = vpack.c.b16 %v670, %v668
      %v707 = vpack.c.b16 %v671, %v669
      %v708 = vpack.c.b16 %v674, %v672
      %v709 = vpack.c.b16 %v675, %v673
      %v710 = vpack.c.b16 %v678, %v676
      %v711 = vpack.c.b16 %v679, %v677
      %v712 = vpack.c.b16 %v682, %v680
      %v713 = vpack.c.b16 %v683, %v681
      %v714 = vpack.c.b16 %v686, %v684
      %v715 = vpack.c.b16 %v687, %v685
      %v716 = vpack.c.b16 %v690, %v688
      %v717 = vpack.c.b16 %v691, %v689
      %v718 = vpack.c.b16 %v694, %v692
      %v719 = vpack.c.b16 %v695, %v693
      %v745 = vsel %vm387, %v622, 0
      %747 = vmatprep.subr.bf16.mxu0 %v697
      %748 = vmatpush1.bf16.msra.mxu0 %v696
      %749 = vmatprep.subr.bf16.mxu0 %v699
      %750 = vmatpush1.bf16.msra.mxu0 %v698
      %751 = vmatprep.subr.bf16.mxu0 %v701
      %752 = vmatpush1.bf16.msra.mxu0 %v700
      %753 = vmatprep.subr.bf16.mxu0 %v703
      %754 = vmatpush1.bf16.msra.mxu0 %v702
      %755 = vmatprep.subr.bf16.mxu0 %v705
      %756 = vmatpush1.bf16.msra.mxu0 %v704
      %757 = vmatprep.subr.bf16.mxu0 %v707
      %758 = vmatpush1.bf16.msra.mxu0 %v706
      %759 = vmatprep.subr.bf16.mxu0 %v709
      %760 = vmatpush1.bf16.msra.mxu0 %v708
      %761 = vmatprep.subr.bf16.mxu0 %v711
      %762 = vmatpush1.bf16.msra.mxu0 %v710
      %763 = vmatprep.subr.bf16.mxu0 %v713
      %764 = vmatpush1.bf16.msra.mxu0 %v712
      %765 = vmatprep.subr.bf16.mxu0 %v715
      %766 = vmatpush1.bf16.msra.mxu0 %v714
      %767 = vmatprep.subr.bf16.mxu0 %v717
      %768 = vmatpush1.bf16.msra.mxu0 %v716
      %769 = vmatprep.subr.bf16.mxu0 %v719
      %770 = vmatpush1.bf16.msra.mxu0 %v718
      %771 = vmatprep.subr.bf16.mxu0 0
      %772 = vmatpush1.bf16.msra.mxu0 0
      %773 = vmatprep.subr.bf16.mxu0 0
      %774 = vmatpush1.bf16.msra.mxu0 0
      %775 = vmatprep.subr.bf16.mxu0 0
      %776 = vmatpush1.bf16.msra.mxu0 0
      %777 = vmatprep.subr.bf16.mxu0 0
      %778 = vmatpush1.bf16.msra.mxu0 0
      %779 = vmatprep.mubr.bf16.mxu0 %v745
      %780 = vmatmul.mubr.bf16.gmra.mrb[0].mxu0 %v621
      %v781 = vpop.f32.mrb[0].mxu0
      %v782 = vadd.f32 0.0, %v781
      %v783 = vpop.f32.mrb[0].mxu0
      %v784 = vadd.f32 0.0, %v783
      %v785 = vpop.f32.mrb[0].mxu0
      %v786 = vpop.f32.mrb[0].mxu0
      %787 = vdwg.mxu0
      %v788 = vadd.f32 %v590, %v782
      %v789 = vadd.f32 %v592, %v784
      %s790 = sadd.s32 %s19, 1
      %s791 = smul.u32 %s790, 2
      %s792 = smul.addr %s791, 4
      %s793 = scalar_lea.vmem %s183, %s792
      %v794 = vld [vmem:[%s793] sm:$0x77]
      %s795 = scalar_lea.vmem %s1, 576
      %v796 = vld [vmem:[%s795] sm:$0xff]
      %v797 = vld [vmem:[%s795 + $0x8] sm:$0xff]
      %v798 = vld [vmem:[%s795 + $0x10] sm:$0xff]
      %v799 = vld [vmem:[%s795 + $0x18] sm:$0xff]
      %v800 = vld [vmem:[%s795 + $0x20] sm:$0xff]
      %v801 = vld [vmem:[%s795 + $0x28] sm:$0xff]
      %v802 = vld [vmem:[%s795 + $0x30] sm:$0xff]
      %v803 = vld [vmem:[%s795 + $0x38] sm:$0xff]
      %v804 = vld [vmem:[%s795 + $0x40] sm:$0xff]
      %v805 = vld [vmem:[%s795 + $0x48] sm:$0xff]
      %v806 = vld [vmem:[%s795 + $0x50] sm:$0xff]
      %v807 = vld [vmem:[%s795 + $0x58] sm:$0xff]
      %v808 = vld [vmem:[%s795 + $0x60] sm:$0xff]
      %v809 = vld [vmem:[%s795 + $0x68] sm:$0xff]
      %v810 = vld [vmem:[%s795 + $0x70] sm:$0xff]
      %v811 = vld [vmem:[%s795 + $0x78] sm:$0xff]
      %v812 = vld [vmem:[%s795 + $0x80] sm:$0xff]
      %v813 = vld [vmem:[%s795 + $0x88] sm:$0xff]
      %v814 = vld [vmem:[%s795 + $0x90] sm:$0xff]
      %v815 = vld [vmem:[%s795 + $0x98] sm:$0xff]
      %v816 = vld [vmem:[%s795 + $0xa0] sm:$0xff]
      %v817 = vld [vmem:[%s795 + $0xa8] sm:$0xff]
      %v818 = vld [vmem:[%s795 + $0xb0] sm:$0xff]
      %v819 = vld [vmem:[%s795 + $0xb8] sm:$0xff]
      %v821 = vunpack.c.l.b16 %v794
      %v822 = vunpack.c.h.b16 %v794
      %v823 = vpack.c.b16 %v821, %v821
      %v824 = vpack.c.b16 %v822, %v822
      %v850 = vunpack.c.l.b16 %v796
      %v851 = vunpack.c.h.b16 %v796
      %v852 = vunpack.c.l.b16 %v797
      %v853 = vunpack.c.h.b16 %v797
      %v854 = vunpack.c.l.b16 %v798
      %v855 = vunpack.c.h.b16 %v798
      %v856 = vunpack.c.l.b16 %v799
      %v857 = vunpack.c.h.b16 %v799
      %v858 = vunpack.c.l.b16 %v800
      %v859 = vunpack.c.h.b16 %v800
      %v860 = vunpack.c.l.b16 %v801
      %v861 = vunpack.c.h.b16 %v801
      %v862 = vunpack.c.l.b16 %v802
      %v863 = vunpack.c.h.b16 %v802
      %v864 = vunpack.c.l.b16 %v803
      %v865 = vunpack.c.h.b16 %v803
      %v866 = vunpack.c.l.b16 %v804
      %v867 = vunpack.c.h.b16 %v804
      %v868 = vunpack.c.l.b16 %v805
      %v869 = vunpack.c.h.b16 %v805
      %v870 = vunpack.c.l.b16 %v806
      %v871 = vunpack.c.h.b16 %v806
      %v872 = vunpack.c.l.b16 %v807
      %v873 = vunpack.c.h.b16 %v807
      %v874 = vunpack.c.l.b16 %v808
      %v875 = vunpack.c.h.b16 %v808
      %v876 = vunpack.c.l.b16 %v809
      %v877 = vunpack.c.h.b16 %v809
      %v878 = vunpack.c.l.b16 %v810
      %v879 = vunpack.c.h.b16 %v810
      %v880 = vunpack.c.l.b16 %v811
      %v881 = vunpack.c.h.b16 %v811
      %v882 = vunpack.c.l.b16 %v812
      %v883 = vunpack.c.h.b16 %v812
      %v884 = vunpack.c.l.b16 %v813
      %v885 = vunpack.c.h.b16 %v813
      %v886 = vunpack.c.l.b16 %v814
      %v887 = vunpack.c.h.b16 %v814
      %v888 = vunpack.c.l.b16 %v815
      %v889 = vunpack.c.h.b16 %v815
      %v890 = vunpack.c.l.b16 %v816
      %v891 = vunpack.c.h.b16 %v816
      %v892 = vunpack.c.l.b16 %v817
      %v893 = vunpack.c.h.b16 %v817
      %v894 = vunpack.c.l.b16 %v818
      %v895 = vunpack.c.h.b16 %v818
      %v896 = vunpack.c.l.b16 %v819
      %v897 = vunpack.c.h.b16 %v819
      %v898 = vpack.c.b16 %v852, %v850
      %v899 = vpack.c.b16 %v853, %v851
      %v900 = vpack.c.b16 %v856, %v854
      %v901 = vpack.c.b16 %v857, %v855
      %v902 = vpack.c.b16 %v860, %v858
      %v903 = vpack.c.b16 %v861, %v859
      %v904 = vpack.c.b16 %v864, %v862
      %v905 = vpack.c.b16 %v865, %v863
      %v906 = vpack.c.b16 %v868, %v866
      %v907 = vpack.c.b16 %v869, %v867
      %v908 = vpack.c.b16 %v872, %v870
      %v909 = vpack.c.b16 %v873, %v871
      %v910 = vpack.c.b16 %v876, %v874
      %v911 = vpack.c.b16 %v877, %v875
      %v912 = vpack.c.b16 %v880, %v878
      %v913 = vpack.c.b16 %v881, %v879
      %v914 = vpack.c.b16 %v884, %v882
      %v915 = vpack.c.b16 %v885, %v883
      %v916 = vpack.c.b16 %v888, %v886
      %v917 = vpack.c.b16 %v889, %v887
      %v918 = vpack.c.b16 %v892, %v890
      %v919 = vpack.c.b16 %v893, %v891
      %v920 = vpack.c.b16 %v896, %v894
      %v921 = vpack.c.b16 %v897, %v895
      %v947 = vsel %vm387, %v824, 0
      %949 = vmatprep.subr.bf16.mxu0 %v899
      %950 = vmatpush1.bf16.msra.mxu0 %v898
      %951 = vmatprep.subr.bf16.mxu0 %v901
      %952 = vmatpush1.bf16.msra.mxu0 %v900
      %953 = vmatprep.subr.bf16.mxu0 %v903
      %954 = vmatpush1.bf16.msra.mxu0 %v902
      %955 = vmatprep.subr.bf16.mxu0 %v905
      %956 = vmatpush1.bf16.msra.mxu0 %v904
      %957 = vmatprep.subr.bf16.mxu0 %v907
      %958 = vmatpush1.bf16.msra.mxu0 %v906
      %959 = vmatprep.subr.bf16.mxu0 %v909
      %960 = vmatpush1.bf16.msra.mxu0 %v908
      %961 = vmatprep.subr.bf16.mxu0 %v911
      %962 = vmatpush1.bf16.msra.mxu0 %v910
      %963 = vmatprep.subr.bf16.mxu0 %v913
      %964 = vmatpush1.bf16.msra.mxu0 %v912
      %965 = vmatprep.subr.bf16.mxu0 %v915
      %966 = vmatpush1.bf16.msra.mxu0 %v914
      %967 = vmatprep.subr.bf16.mxu0 %v917
      %968 = vmatpush1.bf16.msra.mxu0 %v916
      %969 = vmatprep.subr.bf16.mxu0 %v919
      %970 = vmatpush1.bf16.msra.mxu0 %v918
      %971 = vmatprep.subr.bf16.mxu0 %v921
      %972 = vmatpush1.bf16.msra.mxu0 %v920
      %973 = vmatprep.subr.bf16.mxu0 0
      %974 = vmatpush1.bf16.msra.mxu0 0
      %975 = vmatprep.subr.bf16.mxu0 0
      %976 = vmatpush1.bf16.msra.mxu0 0
      %977 = vmatprep.subr.bf16.mxu0 0
      %978 = vmatpush1.bf16.msra.mxu0 0
      %979 = vmatprep.subr.bf16.mxu0 0
      %980 = vmatpush1.bf16.msra.mxu0 0
      %981 = vmatprep.mubr.bf16.mxu0 %v947
      %982 = vmatmul.mubr.bf16.gmra.mrb[0].mxu0 %v823
      %v983 = vpop.f32.mrb[0].mxu0
      %v984 = vadd.f32 0.0, %v983
      %v985 = vpop.f32.mrb[0].mxu0
      %v986 = vadd.f32 0.0, %v985
      %v987 = vpop.f32.mrb[0].mxu0
      %v988 = vpop.f32.mrb[0].mxu0
      %989 = vdwg.mxu0
      %v990 = vadd.f32 %v788, %v984
      %v991 = vadd.f32 %v789, %v986
      %s992 = scalar_lea.vmem %s1, 768
      %v993 = vld [vmem:[%s992] sm:$0xff]
      %v994 = vld [vmem:[%s992 + $0x8] sm:$0xff]
      %v995 = vld [vmem:[%s992 + $0x10] sm:$0xff]
      %v996 = vld [vmem:[%s992 + $0x18] sm:$0xff]
      %v997 = vld [vmem:[%s992 + $0x20] sm:$0xff]
      %v998 = vld [vmem:[%s992 + $0x28] sm:$0xff]
      %v999 = vld [vmem:[%s992 + $0x30] sm:$0xff]
      %v1000 = vld [vmem:[%s992 + $0x38] sm:$0xff]
      %v1001 = vld [vmem:[%s992 + $0x40] sm:$0xff]
      %v1002 = vld [vmem:[%s992 + $0x48] sm:$0xff]
      %v1003 = vld [vmem:[%s992 + $0x50] sm:$0xff]
      %v1004 = vld [vmem:[%s992 + $0x58] sm:$0xff]
      %v1005 = vld [vmem:[%s992 + $0x60] sm:$0xff]
      %v1006 = vld [vmem:[%s992 + $0x68] sm:$0xff]
      %v1007 = vld [vmem:[%s992 + $0x70] sm:$0xff]
      %v1008 = vld [vmem:[%s992 + $0x78] sm:$0xff]
      %v1009 = vld [vmem:[%s992 + $0x80] sm:$0xff]
      %v1010 = vld [vmem:[%s992 + $0x88] sm:$0xff]
      %v1011 = vld [vmem:[%s992 + $0x90] sm:$0xff]
      %v1012 = vld [vmem:[%s992 + $0x98] sm:$0xff]
      %v1013 = vld [vmem:[%s992 + $0xa0] sm:$0xff]
      %v1014 = vld [vmem:[%s992 + $0xa8] sm:$0xff]
      %v1015 = vld [vmem:[%s992 + $0xb0] sm:$0xff]
      %v1016 = vld [vmem:[%s992 + $0xb8] sm:$0xff]
      %v1018 = vshrl.u32 %v823, 16
      %v1020 = vshll.u32 %v823, 16
      %v1022 = vrot.slane %v1020, 1
      %v1023 = vor.u32 %v1018, %v1022
      %v1024 = vshrl.u32 %v824, 16
      %v1026 = vshll.u32 %v824, 16
      %v1028 = vrot.slane %v1026, 1
      %v1029 = vor.u32 %v1024, %v1028
      %v1055 = vunpack.c.l.b16 %v993
      %v1056 = vunpack.c.h.b16 %v993
      %v1057 = vunpack.c.l.b16 %v994
      %v1058 = vunpack.c.h.b16 %v994
      %v1059 = vunpack.c.l.b16 %v995
      %v1060 = vunpack.c.h.b16 %v995
      %v1061 = vunpack.c.l.b16 %v996
      %v1062 = vunpack.c.h.b16 %v996
      %v1063 = vunpack.c.l.b16 %v997
      %v1064 = vunpack.c.h.b16 %v997
      %v1065 = vunpack.c.l.b16 %v998
      %v1066 = vunpack.c.h.b16 %v998
      %v1067 = vunpack.c.l.b16 %v999
      %v1068 = vunpack.c.h.b16 %v999
      %v1069 = vunpack.c.l.b16 %v1000
      %v1070 = vunpack.c.h.b16 %v1000
      %v1071 = vunpack.c.l.b16 %v1001
      %v1072 = vunpack.c.h.b16 %v1001
      %v1073 = vunpack.c.l.b16 %v1002
      %v1074 = vunpack.c.h.b16 %v1002
      %v1075 = vunpack.c.l.b16 %v1003
      %v1076 = vunpack.c.h.b16 %v1003
      %v1077 = vunpack.c.l.b16 %v1004
      %v1078 = vunpack.c.h.b16 %v1004
      %v1079 = vunpack.c.l.b16 %v1005
      %v1080 = vunpack.c.h.b16 %v1005
      %v1081 = vunpack.c.l.b16 %v1006
      %v1082 = vunpack.c.h.b16 %v1006
      %v1083 = vunpack.c.l.b16 %v1007
      %v1084 = vunpack.c.h.b16 %v1007
      %v1085 = vunpack.c.l.b16 %v1008
      %v1086 = vunpack.c.h.b16 %v1008
      %v1087 = vunpack.c.l.b16 %v1009
      %v1088 = vunpack.c.h.b16 %v1009
      %v1089 = vunpack.c.l.b16 %v1010
      %v1090 = vunpack.c.h.b16 %v1010
      %v1091 = vunpack.c.l.b16 %v1011
      %v1092 = vunpack.c.h.b16 %v1011
      %v1093 = vunpack.c.l.b16 %v1012
      %v1094 = vunpack.c.h.b16 %v1012
      %v1095 = vunpack.c.l.b16 %v1013
      %v1096 = vunpack.c.h.b16 %v1013
      %v1097 = vunpack.c.l.b16 %v1014
      %v1098 = vunpack.c.h.b16 %v1014
      %v1099 = vunpack.c.l.b16 %v1015
      %v1100 = vunpack.c.h.b16 %v1015
      %v1101 = vunpack.c.l.b16 %v1016
      %v1102 = vunpack.c.h.b16 %v1016
      %v1103 = vpack.c.b16 %v1057, %v1055
      %v1104 = vpack.c.b16 %v1058, %v1056
      %v1105 = vpack.c.b16 %v1061, %v1059
      %v1106 = vpack.c.b16 %v1062, %v1060
      %v1107 = vpack.c.b16 %v1065, %v1063
      %v1108 = vpack.c.b16 %v1066, %v1064
      %v1109 = vpack.c.b16 %v1069, %v1067
      %v1110 = vpack.c.b16 %v1070, %v1068
      %v1111 = vpack.c.b16 %v1073, %v1071
      %v1112 = vpack.c.b16 %v1074, %v1072
      %v1113 = vpack.c.b16 %v1077, %v1075
      %v1114 = vpack.c.b16 %v1078, %v1076
      %v1115 = vpack.c.b16 %v1081, %v1079
      %v1116 = vpack.c.b16 %v1082, %v1080
      %v1117 = vpack.c.b16 %v1085, %v1083
      %v1118 = vpack.c.b16 %v1086, %v1084
      %v1119 = vpack.c.b16 %v1089, %v1087
      %v1120 = vpack.c.b16 %v1090, %v1088
      %v1121 = vpack.c.b16 %v1093, %v1091
      %v1122 = vpack.c.b16 %v1094, %v1092
      %v1123 = vpack.c.b16 %v1097, %v1095
      %v1124 = vpack.c.b16 %v1098, %v1096
      %v1125 = vpack.c.b16 %v1101, %v1099
      %v1126 = vpack.c.b16 %v1102, %v1100
      %v1152 = vsel %vm387, %v1029, 0
      %1154 = vmatprep.subr.bf16.mxu0 %v1104
      %1155 = vmatpush1.bf16.msra.mxu0 %v1103
      %1156 = vmatprep.subr.bf16.mxu0 %v1106
      %1157 = vmatpush1.bf16.msra.mxu0 %v1105
      %1158 = vmatprep.subr.bf16.mxu0 %v1108
      %1159 = vmatpush1.bf16.msra.mxu0 %v1107
      %1160 = vmatprep.subr.bf16.mxu0 %v1110
      %1161 = vmatpush1.bf16.msra.mxu0 %v1109
      %1162 = vmatprep.subr.bf16.mxu0 %v1112
      %1163 = vmatpush1.bf16.msra.mxu0 %v1111
      %1164 = vmatprep.subr.bf16.mxu0 %v1114
      %1165 = vmatpush1.bf16.msra.mxu0 %v1113
      %1166 = vmatprep.subr.bf16.mxu0 %v1116
      %1167 = vmatpush1.bf16.msra.mxu0 %v1115
      %1168 = vmatprep.subr.bf16.mxu0 %v1118
      %1169 = vmatpush1.bf16.msra.mxu0 %v1117
      %1170 = vmatprep.subr.bf16.mxu0 %v1120
      %1171 = vmatpush1.bf16.msra.mxu0 %v1119
      %1172 = vmatprep.subr.bf16.mxu0 %v1122
      %1173 = vmatpush1.bf16.msra.mxu0 %v1121
      %1174 = vmatprep.subr.bf16.mxu0 %v1124
      %1175 = vmatpush1.bf16.msra.mxu0 %v1123
      %1176 = vmatprep.subr.bf16.mxu0 %v1126
      %1177 = vmatpush1.bf16.msra.mxu0 %v1125
      %1178 = vmatprep.subr.bf16.mxu0 0
      %1179 = vmatpush1.bf16.msra.mxu0 0
      %1180 = vmatprep.subr.bf16.mxu0 0
      %1181 = vmatpush1.bf16.msra.mxu0 0
      %1182 = vmatprep.subr.bf16.mxu0 0
      %1183 = vmatpush1.bf16.msra.mxu0 0
      %1184 = vmatprep.subr.bf16.mxu0 0
      %1185 = vmatpush1.bf16.msra.mxu0 0
      %1186 = vmatprep.mubr.bf16.mxu0 %v1152
      %1187 = vmatmul.mubr.bf16.gmra.mrb[0].mxu0 %v1023
      %v1188 = vpop.f32.mrb[0].mxu0
      %v1189 = vadd.f32 0.0, %v1188
      %v1190 = vpop.f32.mrb[0].mxu0
      %v1191 = vadd.f32 0.0, %v1190
      %v1192 = vpop.f32.mrb[0].mxu0
      %v1193 = vpop.f32.mrb[0].mxu0
      %1194 = vdwg.mxu0
      %v1195 = vadd.f32 %v990, %v1189
      %v1196 = vadd.f32 %v991, %v1191
      %s1197 = scalar_lea.vmem %s1, 960
      %v1198 = vld [vmem:[%s1197] sm:$0xff]
      %v1199 = vld [vmem:[%s1197 + $0x8] sm:$0xff]
      %v1200 = vld [vmem:[%s1197 + $0x10] sm:$0xff]
      %v1201 = vld [vmem:[%s1197 + $0x18] sm:$0xff]
      %v1202 = vld [vmem:[%s1197 + $0x20] sm:$0xff]
      %v1203 = vld [vmem:[%s1197 + $0x28] sm:$0xff]
      %v1204 = vld [vmem:[%s1197 + $0x30] sm:$0xff]
      %v1205 = vld [vmem:[%s1197 + $0x38] sm:$0xff]
      %v1206 = vld [vmem:[%s1197 + $0x40] sm:$0xff]
      %v1207 = vld [vmem:[%s1197 + $0x48] sm:$0xff]
      %v1208 = vld [vmem:[%s1197 + $0x50] sm:$0xff]
      %v1209 = vld [vmem:[%s1197 + $0x58] sm:$0xff]
      %v1210 = vld [vmem:[%s1197 + $0x60] sm:$0xff]
      %v1211 = vld [vmem:[%s1197 + $0x68] sm:$0xff]
      %v1212 = vld [vmem:[%s1197 + $0x70] sm:$0xff]
      %v1213 = vld [vmem:[%s1197 + $0x78] sm:$0xff]
      %v1214 = vld [vmem:[%s1197 + $0x80] sm:$0xff]
      %v1215 = vld [vmem:[%s1197 + $0x88] sm:$0xff]
      %v1216 = vld [vmem:[%s1197 + $0x90] sm:$0xff]
      %v1217 = vld [vmem:[%s1197 + $0x98] sm:$0xff]
      %v1218 = vld [vmem:[%s1197 + $0xa0] sm:$0xff]
      %v1219 = vld [vmem:[%s1197 + $0xa8] sm:$0xff]
      %v1220 = vld [vmem:[%s1197 + $0xb0] sm:$0xff]
      %v1221 = vld [vmem:[%s1197 + $0xb8] sm:$0xff]
      %v1222 = vrot.slane %v823, 1
      %v1223 = vrot.slane %v824, 1
      %v1249 = vunpack.c.l.b16 %v1198
      %v1250 = vunpack.c.h.b16 %v1198
      %v1251 = vunpack.c.l.b16 %v1199
      %v1252 = vunpack.c.h.b16 %v1199
      %v1253 = vunpack.c.l.b16 %v1200
      %v1254 = vunpack.c.h.b16 %v1200
      %v1255 = vunpack.c.l.b16 %v1201
      %v1256 = vunpack.c.h.b16 %v1201
      %v1257 = vunpack.c.l.b16 %v1202
      %v1258 = vunpack.c.h.b16 %v1202
      %v1259 = vunpack.c.l.b16 %v1203
      %v1260 = vunpack.c.h.b16 %v1203
      %v1261 = vunpack.c.l.b16 %v1204
      %v1262 = vunpack.c.h.b16 %v1204
      %v1263 = vunpack.c.l.b16 %v1205
      %v1264 = vunpack.c.h.b16 %v1205
      %v1265 = vunpack.c.l.b16 %v1206
      %v1266 = vunpack.c.h.b16 %v1206
      %v1267 = vunpack.c.l.b16 %v1207
      %v1268 = vunpack.c.h.b16 %v1207
      %v1269 = vunpack.c.l.b16 %v1208
      %v1270 = vunpack.c.h.b16 %v1208
      %v1271 = vunpack.c.l.b16 %v1209
      %v1272 = vunpack.c.h.b16 %v1209
      %v1273 = vunpack.c.l.b16 %v1210
      %v1274 = vunpack.c.h.b16 %v1210
      %v1275 = vunpack.c.l.b16 %v1211
      %v1276 = vunpack.c.h.b16 %v1211
      %v1277 = vunpack.c.l.b16 %v1212
      %v1278 = vunpack.c.h.b16 %v1212
      %v1279 = vunpack.c.l.b16 %v1213
      %v1280 = vunpack.c.h.b16 %v1213
      %v1281 = vunpack.c.l.b16 %v1214
      %v1282 = vunpack.c.h.b16 %v1214
      %v1283 = vunpack.c.l.b16 %v1215
      %v1284 = vunpack.c.h.b16 %v1215
      %v1285 = vunpack.c.l.b16 %v1216
      %v1286 = vunpack.c.h.b16 %v1216
      %v1287 = vunpack.c.l.b16 %v1217
      %v1288 = vunpack.c.h.b16 %v1217
      %v1289 = vunpack.c.l.b16 %v1218
      %v1290 = vunpack.c.h.b16 %v1218
      %v1291 = vunpack.c.l.b16 %v1219
      %v1292 = vunpack.c.h.b16 %v1219
      %v1293 = vunpack.c.l.b16 %v1220
      %v1294 = vunpack.c.h.b16 %v1220
      %v1295 = vunpack.c.l.b16 %v1221
      %v1296 = vunpack.c.h.b16 %v1221
      %v1297 = vpack.c.b16 %v1251, %v1249
      %v1298 = vpack.c.b16 %v1252, %v1250
      %v1299 = vpack.c.b16 %v1255, %v1253
      %v1300 = vpack.c.b16 %v1256, %v1254
      %v1301 = vpack.c.b16 %v1259, %v1257
      %v1302 = vpack.c.b16 %v1260, %v1258
      %v1303 = vpack.c.b16 %v1263, %v1261
      %v1304 = vpack.c.b16 %v1264, %v1262
      %v1305 = vpack.c.b16 %v1267, %v1265
      %v1306 = vpack.c.b16 %v1268, %v1266
      %v1307 = vpack.c.b16 %v1271, %v1269
      %v1308 = vpack.c.b16 %v1272, %v1270
      %v1309 = vpack.c.b16 %v1275, %v1273
      %v1310 = vpack.c.b16 %v1276, %v1274
      %v1311 = vpack.c.b16 %v1279, %v1277
      %v1312 = vpack.c.b16 %v1280, %v1278
      %v1313 = vpack.c.b16 %v1283, %v1281
      %v1314 = vpack.c.b16 %v1284, %v1282
      %v1315 = vpack.c.b16 %v1287, %v1285
      %v1316 = vpack.c.b16 %v1288, %v1286
      %v1317 = vpack.c.b16 %v1291, %v1289
      %v1318 = vpack.c.b16 %v1292, %v1290
      %v1319 = vpack.c.b16 %v1295, %v1293
      %v1320 = vpack.c.b16 %v1296, %v1294
      %v1346 = vsel %vm387, %v1223, 0
      %1348 = vmatprep.subr.bf16.mxu0 %v1298
      %1349 = vmatpush1.bf16.msra.mxu0 %v1297
      %1350 = vmatprep.subr.bf16.mxu0 %v1300
      %1351 = vmatpush1.bf16.msra.mxu0 %v1299
      %1352 = vmatprep.subr.bf16.mxu0 %v1302
      %1353 = vmatpush1.bf16.msra.mxu0 %v1301
      %1354 = vmatprep.subr.bf16.mxu0 %v1304
      %1355 = vmatpush1.bf16.msra.mxu0 %v1303
      %1356 = vmatprep.subr.bf16.mxu0 %v1306
      %1357 = vmatpush1.bf16.msra.mxu0 %v1305
      %1358 = vmatprep.subr.bf16.mxu0 %v1308
      %1359 = vmatpush1.bf16.msra.mxu0 %v1307
      %1360 = vmatprep.subr.bf16.mxu0 %v1310
      %1361 = vmatpush1.bf16.msra.mxu0 %v1309
      %1362 = vmatprep.subr.bf16.mxu0 %v1312
      %1363 = vmatpush1.bf16.msra.mxu0 %v1311
      %1364 = vmatprep.subr.bf16.mxu0 %v1314
      %1365 = vmatpush1.bf16.msra.mxu0 %v1313
      %1366 = vmatprep.subr.bf16.mxu0 %v1316
      %1367 = vmatpush1.bf16.msra.mxu0 %v1315
      %1368 = vmatprep.subr.bf16.mxu0 %v1318
      %1369 = vmatpush1.bf16.msra.mxu0 %v1317
      %1370 = vmatprep.subr.bf16.mxu0 %v1320
      %1371 = vmatpush1.bf16.msra.mxu0 %v1319
      %1372 = vmatprep.subr.bf16.mxu0 0
      %1373 = vmatpush1.bf16.msra.mxu0 0
      %1374 = vmatprep.subr.bf16.mxu0 0
      %1375 = vmatpush1.bf16.msra.mxu0 0
      %1376 = vmatprep.subr.bf16.mxu0 0
      %1377 = vmatpush1.bf16.msra.mxu0 0
      %1378 = vmatprep.subr.bf16.mxu0 0
      %1379 = vmatpush1.bf16.msra.mxu0 0
      %1380 = vmatprep.mubr.bf16.mxu0 %v1346
      %1381 = vmatmul.mubr.bf16.gmra.mrb[0].mxu0 %v1222
      %v1382 = vpop.f32.mrb[0].mxu0
      %v1383 = vadd.f32 0.0, %v1382
      %v1384 = vpop.f32.mrb[0].mxu0
      %v1385 = vadd.f32 0.0, %v1384
      %v1386 = vpop.f32.mrb[0].mxu0
      %v1387 = vpop.f32.mrb[0].mxu0
      %1388 = vdwg.mxu0
      %v1389 = vadd.f32 %v1195, %v1383
      %v1390 = vadd.f32 %v1196, %v1385
      %s1391 = sadd.s32 %s19, 2
      %s1392 = smul.u32 %s1391, 2
      %s1393 = smul.addr %s1392, 4
      %s1394 = scalar_lea.vmem %s183, %s1393
      %v1395 = vld [vmem:[%s1394] sm:$0x77]
      %s1396 = scalar_lea.vmem %s1, 1152
      %v1397 = vld [vmem:[%s1396] sm:$0xff]
      %v1398 = vld [vmem:[%s1396 + $0x8] sm:$0xff]
      %v1399 = vld [vmem:[%s1396 + $0x10] sm:$0xff]
      %v1400 = vld [vmem:[%s1396 + $0x18] sm:$0xff]
      %v1401 = vld [vmem:[%s1396 + $0x20] sm:$0xff]
      %v1402 = vld [vmem:[%s1396 + $0x28] sm:$0xff]
      %v1403 = vld [vmem:[%s1396 + $0x30] sm:$0xff]
      %v1404 = vld [vmem:[%s1396 + $0x38] sm:$0xff]
      %v1405 = vld [vmem:[%s1396 + $0x40] sm:$0xff]
      %v1406 = vld [vmem:[%s1396 + $0x48] sm:$0xff]
      %v1407 = vld [vmem:[%s1396 + $0x50] sm:$0xff]
      %v1408 = vld [vmem:[%s1396 + $0x58] sm:$0xff]
      %v1409 = vld [vmem:[%s1396 + $0x60] sm:$0xff]
      %v1410 = vld [vmem:[%s1396 + $0x68] sm:$0xff]
      %v1411 = vld [vmem:[%s1396 + $0x70] sm:$0xff]
      %v1412 = vld [vmem:[%s1396 + $0x78] sm:$0xff]
      %v1413 = vld [vmem:[%s1396 + $0x80] sm:$0xff]
      %v1414 = vld [vmem:[%s1396 + $0x88] sm:$0xff]
      %v1415 = vld [vmem:[%s1396 + $0x90] sm:$0xff]
      %v1416 = vld [vmem:[%s1396 + $0x98] sm:$0xff]
      %v1417 = vld [vmem:[%s1396 + $0xa0] sm:$0xff]
      %v1418 = vld [vmem:[%s1396 + $0xa8] sm:$0xff]
      %v1419 = vld [vmem:[%s1396 + $0xb0] sm:$0xff]
      %v1420 = vld [vmem:[%s1396 + $0xb8] sm:$0xff]
      %v1422 = vunpack.c.l.b16 %v1395
      %v1423 = vunpack.c.h.b16 %v1395
      %v1424 = vpack.c.b16 %v1422, %v1422
      %v1425 = vpack.c.b16 %v1423, %v1423
      %v1451 = vunpack.c.l.b16 %v1397
      %v1452 = vunpack.c.h.b16 %v1397
      %v1453 = vunpack.c.l.b16 %v1398
      %v1454 = vunpack.c.h.b16 %v1398
      %v1455 = vunpack.c.l.b16 %v1399
      %v1456 = vunpack.c.h.b16 %v1399
      %v1457 = vunpack.c.l.b16 %v1400
      %v1458 = vunpack.c.h.b16 %v1400
      %v1459 = vunpack.c.l.b16 %v1401
      %v1460 = vunpack.c.h.b16 %v1401
      %v1461 = vunpack.c.l.b16 %v1402
      %v1462 = vunpack.c.h.b16 %v1402
      %v1463 = vunpack.c.l.b16 %v1403
      %v1464 = vunpack.c.h.b16 %v1403
      %v1465 = vunpack.c.l.b16 %v1404
      %v1466 = vunpack.c.h.b16 %v1404
      %v1467 = vunpack.c.l.b16 %v1405
      %v1468 = vunpack.c.h.b16 %v1405
      %v1469 = vunpack.c.l.b16 %v1406
      %v1470 = vunpack.c.h.b16 %v1406
      %v1471 = vunpack.c.l.b16 %v1407
      %v1472 = vunpack.c.h.b16 %v1407
      %v1473 = vunpack.c.l.b16 %v1408
      %v1474 = vunpack.c.h.b16 %v1408
      %v1475 = vunpack.c.l.b16 %v1409
      %v1476 = vunpack.c.h.b16 %v1409
      %v1477 = vunpack.c.l.b16 %v1410
      %v1478 = vunpack.c.h.b16 %v1410
      %v1479 = vunpack.c.l.b16 %v1411
      %v1480 = vunpack.c.h.b16 %v1411
      %v1481 = vunpack.c.l.b16 %v1412
      %v1482 = vunpack.c.h.b16 %v1412
      %v1483 = vunpack.c.l.b16 %v1413
      %v1484 = vunpack.c.h.b16 %v1413
      %v1485 = vunpack.c.l.b16 %v1414
      %v1486 = vunpack.c.h.b16 %v1414
      %v1487 = vunpack.c.l.b16 %v1415
      %v1488 = vunpack.c.h.b16 %v1415
      %v1489 = vunpack.c.l.b16 %v1416
      %v1490 = vunpack.c.h.b16 %v1416
      %v1491 = vunpack.c.l.b16 %v1417
      %v1492 = vunpack.c.h.b16 %v1417
      %v1493 = vunpack.c.l.b16 %v1418
      %v1494 = vunpack.c.h.b16 %v1418
      %v1495 = vunpack.c.l.b16 %v1419
      %v1496 = vunpack.c.h.b16 %v1419
      %v1497 = vunpack.c.l.b16 %v1420
      %v1498 = vunpack.c.h.b16 %v1420
      %v1499 = vpack.c.b16 %v1453, %v1451
      %v1500 = vpack.c.b16 %v1454, %v1452
      %v1501 = vpack.c.b16 %v1457, %v1455
      %v1502 = vpack.c.b16 %v1458, %v1456
      %v1503 = vpack.c.b16 %v1461, %v1459
      %v1504 = vpack.c.b16 %v1462, %v1460
      %v1505 = vpack.c.b16 %v1465, %v1463
      %v1506 = vpack.c.b16 %v1466, %v1464
      %v1507 = vpack.c.b16 %v1469, %v1467
      %v1508 = vpack.c.b16 %v1470, %v1468
      %v1509 = vpack.c.b16 %v1473, %v1471
      %v1510 = vpack.c.b16 %v1474, %v1472
      %v1511 = vpack.c.b16 %v1477, %v1475
      %v1512 = vpack.c.b16 %v1478, %v1476
      %v1513 = vpack.c.b16 %v1481, %v1479
      %v1514 = vpack.c.b16 %v1482, %v1480
      %v1515 = vpack.c.b16 %v1485, %v1483
      %v1516 = vpack.c.b16 %v1486, %v1484
      %v1517 = vpack.c.b16 %v1489, %v1487
      %v1518 = vpack.c.b16 %v1490, %v1488
      %v1519 = vpack.c.b16 %v1493, %v1491
      %v1520 = vpack.c.b16 %v1494, %v1492
      %v1521 = vpack.c.b16 %v1497, %v1495
      %v1522 = vpack.c.b16 %v1498, %v1496
      %v1548 = vsel %vm387, %v1425, 0
      %1550 = vmatprep.subr.bf16.mxu0 %v1500
      %1551 = vmatpush1.bf16.msra.mxu0 %v1499
      %1552 = vmatprep.subr.bf16.mxu0 %v1502
      %1553 = vmatpush1.bf16.msra.mxu0 %v1501
      %1554 = vmatprep.subr.bf16.mxu0 %v1504
      %1555 = vmatpush1.bf16.msra.mxu0 %v1503
      %1556 = vmatprep.subr.bf16.mxu0 %v1506
      %1557 = vmatpush1.bf16.msra.mxu0 %v1505
      %1558 = vmatprep.subr.bf16.mxu0 %v1508
      %1559 = vmatpush1.bf16.msra.mxu0 %v1507
      %1560 = vmatprep.subr.bf16.mxu0 %v1510
      %1561 = vmatpush1.bf16.msra.mxu0 %v1509
      %1562 = vmatprep.subr.bf16.mxu0 %v1512
      %1563 = vmatpush1.bf16.msra.mxu0 %v1511
      %1564 = vmatprep.subr.bf16.mxu0 %v1514
      %1565 = vmatpush1.bf16.msra.mxu0 %v1513
      %1566 = vmatprep.subr.bf16.mxu0 %v1516
      %1567 = vmatpush1.bf16.msra.mxu0 %v1515
      %1568 = vmatprep.subr.bf16.mxu0 %v1518
      %1569 = vmatpush1.bf16.msra.mxu0 %v1517
      %1570 = vmatprep.subr.bf16.mxu0 %v1520
      %1571 = vmatpush1.bf16.msra.mxu0 %v1519
      %1572 = vmatprep.subr.bf16.mxu0 %v1522
      %1573 = vmatpush1.bf16.msra.mxu0 %v1521
      %1574 = vmatprep.subr.bf16.mxu0 0
      %1575 = vmatpush1.bf16.msra.mxu0 0
      %1576 = vmatprep.subr.bf16.mxu0 0
      %1577 = vmatpush1.bf16.msra.mxu0 0
      %1578 = vmatprep.subr.bf16.mxu0 0
      %1579 = vmatpush1.bf16.msra.mxu0 0
      %1580 = vmatprep.subr.bf16.mxu0 0
      %1581 = vmatpush1.bf16.msra.mxu0 0
      %1582 = vmatprep.mubr.bf16.mxu0 %v1548
      %1583 = vmatmul.mubr.bf16.gmra.mrb[0].mxu0 %v1424
      %v1584 = vpop.f32.mrb[0].mxu0
      %v1585 = vadd.f32 0.0, %v1584
      %v1586 = vpop.f32.mrb[0].mxu0
      %v1587 = vadd.f32 0.0, %v1586
      %v1588 = vpop.f32.mrb[0].mxu0
      %v1589 = vpop.f32.mrb[0].mxu0
      %1590 = vdwg.mxu0
      %v1591 = vadd.f32 %v1389, %v1585
      %v1592 = vadd.f32 %v1390, %v1587
      %s1593 = scalar_lea.vmem %s1, 1344
      %v1594 = vld [vmem:[%s1593] sm:$0xff]
      %v1595 = vld [vmem:[%s1593 + $0x8] sm:$0xff]
      %v1596 = vld [vmem:[%s1593 + $0x10] sm:$0xff]
      %v1597 = vld [vmem:[%s1593 + $0x18] sm:$0xff]
      %v1598 = vld [vmem:[%s1593 + $0x20] sm:$0xff]
      %v1599 = vld [vmem:[%s1593 + $0x28] sm:$0xff]
      %v1600 = vld [vmem:[%s1593 + $0x30] sm:$0xff]
      %v1601 = vld [vmem:[%s1593 + $0x38] sm:$0xff]
      %v1602 = vld [vmem:[%s1593 + $0x40] sm:$0xff]
      %v1603 = vld [vmem:[%s1593 + $0x48] sm:$0xff]
      %v1604 = vld [vmem:[%s1593 + $0x50] sm:$0xff]
      %v1605 = vld [vmem:[%s1593 + $0x58] sm:$0xff]
      %v1606 = vld [vmem:[%s1593 + $0x60] sm:$0xff]
      %v1607 = vld [vmem:[%s1593 + $0x68] sm:$0xff]
      %v1608 = vld [vmem:[%s1593 + $0x70] sm:$0xff]
      %v1609 = vld [vmem:[%s1593 + $0x78] sm:$0xff]
      %v1610 = vld [vmem:[%s1593 + $0x80] sm:$0xff]
      %v1611 = vld [vmem:[%s1593 + $0x88] sm:$0xff]
      %v1612 = vld [vmem:[%s1593 + $0x90] sm:$0xff]
      %v1613 = vld [vmem:[%s1593 + $0x98] sm:$0xff]
      %v1614 = vld [vmem:[%s1593 + $0xa0] sm:$0xff]
      %v1615 = vld [vmem:[%s1593 + $0xa8] sm:$0xff]
      %v1616 = vld [vmem:[%s1593 + $0xb0] sm:$0xff]
      %v1617 = vld [vmem:[%s1593 + $0xb8] sm:$0xff]
      %v1619 = vshrl.u32 %v1424, 16
      %v1621 = vshll.u32 %v1424, 16
      %v1623 = vrot.slane %v1621, 1
      %v1624 = vor.u32 %v1619, %v1623
      %v1625 = vshrl.u32 %v1425, 16
      %v1627 = vshll.u32 %v1425, 16
      %v1629 = vrot.slane %v1627, 1
      %v1630 = vor.u32 %v1625, %v1629
      %v1656 = vunpack.c.l.b16 %v1594
      %v1657 = vunpack.c.h.b16 %v1594
      %v1658 = vunpack.c.l.b16 %v1595
      %v1659 = vunpack.c.h.b16 %v1595
      %v1660 = vunpack.c.l.b16 %v1596
      %v1661 = vunpack.c.h.b16 %v1596
      %v1662 = vunpack.c.l.b16 %v1597
      %v1663 = vunpack.c.h.b16 %v1597
      %v1664 = vunpack.c.l.b16 %v1598
      %v1665 = vunpack.c.h.b16 %v1598
      %v1666 = vunpack.c.l.b16 %v1599
      %v1667 = vunpack.c.h.b16 %v1599
      %v1668 = vunpack.c.l.b16 %v1600
      %v1669 = vunpack.c.h.b16 %v1600
      %v1670 = vunpack.c.l.b16 %v1601
      %v1671 = vunpack.c.h.b16 %v1601
      %v1672 = vunpack.c.l.b16 %v1602
      %v1673 = vunpack.c.h.b16 %v1602
      %v1674 = vunpack.c.l.b16 %v1603
      %v1675 = vunpack.c.h.b16 %v1603
      %v1676 = vunpack.c.l.b16 %v1604
      %v1677 = vunpack.c.h.b16 %v1604
      %v1678 = vunpack.c.l.b16 %v1605
      %v1679 = vunpack.c.h.b16 %v1605
      %v1680 = vunpack.c.l.b16 %v1606
      %v1681 = vunpack.c.h.b16 %v1606
      %v1682 = vunpack.c.l.b16 %v1607
      %v1683 = vunpack.c.h.b16 %v1607
      %v1684 = vunpack.c.l.b16 %v1608
      %v1685 = vunpack.c.h.b16 %v1608
      %v1686 = vunpack.c.l.b16 %v1609
      %v1687 = vunpack.c.h.b16 %v1609
      %v1688 = vunpack.c.l.b16 %v1610
      %v1689 = vunpack.c.h.b16 %v1610
      %v1690 = vunpack.c.l.b16 %v1611
      %v1691 = vunpack.c.h.b16 %v1611
      %v1692 = vunpack.c.l.b16 %v1612
      %v1693 = vunpack.c.h.b16 %v1612
      %v1694 = vunpack.c.l.b16 %v1613
      %v1695 = vunpack.c.h.b16 %v1613
      %v1696 = vunpack.c.l.b16 %v1614
      %v1697 = vunpack.c.h.b16 %v1614
      %v1698 = vunpack.c.l.b16 %v1615
      %v1699 = vunpack.c.h.b16 %v1615
      %v1700 = vunpack.c.l.b16 %v1616
      %v1701 = vunpack.c.h.b16 %v1616
      %v1702 = vunpack.c.l.b16 %v1617
      %v1703 = vunpack.c.h.b16 %v1617
      %v1704 = vpack.c.b16 %v1658, %v1656
      %v1705 = vpack.c.b16 %v1659, %v1657
      %v1706 = vpack.c.b16 %v1662, %v1660
      %v1707 = vpack.c.b16 %v1663, %v1661
      %v1708 = vpack.c.b16 %v1666, %v1664
      %v1709 = vpack.c.b16 %v1667, %v1665
      %v1710 = vpack.c.b16 %v1670, %v1668
      %v1711 = vpack.c.b16 %v1671, %v1669
      %v1712 = vpack.c.b16 %v1674, %v1672
      %v1713 = vpack.c.b16 %v1675, %v1673
      %v1714 = vpack.c.b16 %v1678, %v1676
      %v1715 = vpack.c.b16 %v1679, %v1677
      %v1716 = vpack.c.b16 %v1682, %v1680
      %v1717 = vpack.c.b16 %v1683, %v1681
      %v1718 = vpack.c.b16 %v1686, %v1684
      %v1719 = vpack.c.b16 %v1687, %v1685
      %v1720 = vpack.c.b16 %v1690, %v1688
      %v1721 = vpack.c.b16 %v1691, %v1689
      %v1722 = vpack.c.b16 %v1694, %v1692
      %v1723 = vpack.c.b16 %v1695, %v1693
      %v1724 = vpack.c.b16 %v1698, %v1696
      %v1725 = vpack.c.b16 %v1699, %v1697
      %v1726 = vpack.c.b16 %v1702, %v1700
      %v1727 = vpack.c.b16 %v1703, %v1701
      %v1753 = vsel %vm387, %v1630, 0
      %1755 = vmatprep.subr.bf16.mxu0 %v1705
      %1756 = vmatpush1.bf16.msra.mxu0 %v1704
      %1757 = vmatprep.subr.bf16.mxu0 %v1707
      %1758 = vmatpush1.bf16.msra.mxu0 %v1706
      %1759 = vmatprep.subr.bf16.mxu0 %v1709
      %1760 = vmatpush1.bf16.msra.mxu0 %v1708
      %1761 = vmatprep.subr.bf16.mxu0 %v1711
      %1762 = vmatpush1.bf16.msra.mxu0 %v1710
      %1763 = vmatprep.subr.bf16.mxu0 %v1713
      %1764 = vmatpush1.bf16.msra.mxu0 %v1712
      %1765 = vmatprep.subr.bf16.mxu0 %v1715
      %1766 = vmatpush1.bf16.msra.mxu0 %v1714
      %1767 = vmatprep.subr.bf16.mxu0 %v1717
      %1768 = vmatpush1.bf16.msra.mxu0 %v1716
      %1769 = vmatprep.subr.bf16.mxu0 %v1719
      %1770 = vmatpush1.bf16.msra.mxu0 %v1718
      %1771 = vmatprep.subr.bf16.mxu0 %v1721
      %1772 = vmatpush1.bf16.msra.mxu0 %v1720
      %1773 = vmatprep.subr.bf16.mxu0 %v1723
      %1774 = vmatpush1.bf16.msra.mxu0 %v1722
      %1775 = vmatprep.subr.bf16.mxu0 %v1725
      %1776 = vmatpush1.bf16.msra.mxu0 %v1724
      %1777 = vmatprep.subr.bf16.mxu0 %v1727
      %1778 = vmatpush1.bf16.msra.mxu0 %v1726
      %1779 = vmatprep.subr.bf16.mxu0 0
      %1780 = vmatpush1.bf16.msra.mxu0 0
      %1781 = vmatprep.subr.bf16.mxu0 0
      %1782 = vmatpush1.bf16.msra.mxu0 0
      %1783 = vmatprep.subr.bf16.mxu0 0
      %1784 = vmatpush1.bf16.msra.mxu0 0
      %1785 = vmatprep.subr.bf16.mxu0 0
      %1786 = vmatpush1.bf16.msra.mxu0 0
      %1787 = vmatprep.mubr.bf16.mxu0 %v1753
      %1788 = vmatmul.mubr.bf16.gmra.mrb[0].mxu0 %v1624
      %v1789 = vpop.f32.mrb[0].mxu0
      %v1790 = vadd.f32 0.0, %v1789
      %v1791 = vpop.f32.mrb[0].mxu0
      %v1792 = vadd.f32 0.0, %v1791
      %v1793 = vpop.f32.mrb[0].mxu0
      %v1794 = vpop.f32.mrb[0].mxu0
      %1795 = vdwg.mxu0
      %v1796 = vadd.f32 %v1591, %v1790
      %v1797 = vadd.f32 %v1592, %v1792
      %s1798 = scalar_lea.vmem %s1, 1536
      %v1799 = vld [vmem:[%s1798] sm:$0xff]
      %v1800 = vld [vmem:[%s1798 + $0x8] sm:$0xff]
      %v1801 = vld [vmem:[%s1798 + $0x10] sm:$0xff]
      %v1802 = vld [vmem:[%s1798 + $0x18] sm:$0xff]
      %v1803 = vld [vmem:[%s1798 + $0x20] sm:$0xff]
      %v1804 = vld [vmem:[%s1798 + $0x28] sm:$0xff]
      %v1805 = vld [vmem:[%s1798 + $0x30] sm:$0xff]
      %v1806 = vld [vmem:[%s1798 + $0x38] sm:$0xff]
      %v1807 = vld [vmem:[%s1798 + $0x40] sm:$0xff]
      %v1808 = vld [vmem:[%s1798 + $0x48] sm:$0xff]
      %v1809 = vld [vmem:[%s1798 + $0x50] sm:$0xff]
      %v1810 = vld [vmem:[%s1798 + $0x58] sm:$0xff]
      %v1811 = vld [vmem:[%s1798 + $0x60] sm:$0xff]
      %v1812 = vld [vmem:[%s1798 + $0x68] sm:$0xff]
      %v1813 = vld [vmem:[%s1798 + $0x70] sm:$0xff]
      %v1814 = vld [vmem:[%s1798 + $0x78] sm:$0xff]
      %v1815 = vld [vmem:[%s1798 + $0x80] sm:$0xff]
      %v1816 = vld [vmem:[%s1798 + $0x88] sm:$0xff]
      %v1817 = vld [vmem:[%s1798 + $0x90] sm:$0xff]
      %v1818 = vld [vmem:[%s1798 + $0x98] sm:$0xff]
      %v1819 = vld [vmem:[%s1798 + $0xa0] sm:$0xff]
      %v1820 = vld [vmem:[%s1798 + $0xa8] sm:$0xff]
      %v1821 = vld [vmem:[%s1798 + $0xb0] sm:$0xff]
      %v1822 = vld [vmem:[%s1798 + $0xb8] sm:$0xff]
      %v1823 = vrot.slane %v1424, 1
      %v1824 = vrot.slane %v1425, 1
      %v1850 = vunpack.c.l.b16 %v1799
      %v1851 = vunpack.c.h.b16 %v1799
      %v1852 = vunpack.c.l.b16 %v1800
      %v1853 = vunpack.c.h.b16 %v1800
      %v1854 = vunpack.c.l.b16 %v1801
      %v1855 = vunpack.c.h.b16 %v1801
      %v1856 = vunpack.c.l.b16 %v1802
      %v1857 = vunpack.c.h.b16 %v1802
      %v1858 = vunpack.c.l.b16 %v1803
      %v1859 = vunpack.c.h.b16 %v1803
      %v1860 = vunpack.c.l.b16 %v1804
      %v1861 = vunpack.c.h.b16 %v1804
      %v1862 = vunpack.c.l.b16 %v1805
      %v1863 = vunpack.c.h.b16 %v1805
      %v1864 = vunpack.c.l.b16 %v1806
      %v1865 = vunpack.c.h.b16 %v1806
      %v1866 = vunpack.c.l.b16 %v1807
      %v1867 = vunpack.c.h.b16 %v1807
      %v1868 = vunpack.c.l.b16 %v1808
      %v1869 = vunpack.c.h.b16 %v1808
      %v1870 = vunpack.c.l.b16 %v1809
      %v1871 = vunpack.c.h.b16 %v1809
      %v1872 = vunpack.c.l.b16 %v1810
      %v1873 = vunpack.c.h.b16 %v1810
      %v1874 = vunpack.c.l.b16 %v1811
      %v1875 = vunpack.c.h.b16 %v1811
      %v1876 = vunpack.c.l.b16 %v1812
      %v1877 = vunpack.c.h.b16 %v1812
      %v1878 = vunpack.c.l.b16 %v1813
      %v1879 = vunpack.c.h.b16 %v1813
      %v1880 = vunpack.c.l.b16 %v1814
      %v1881 = vunpack.c.h.b16 %v1814
      %v1882 = vunpack.c.l.b16 %v1815
      %v1883 = vunpack.c.h.b16 %v1815
      %v1884 = vunpack.c.l.b16 %v1816
      %v1885 = vunpack.c.h.b16 %v1816
      %v1886 = vunpack.c.l.b16 %v1817
      %v1887 = vunpack.c.h.b16 %v1817
      %v1888 = vunpack.c.l.b16 %v1818
      %v1889 = vunpack.c.h.b16 %v1818
      %v1890 = vunpack.c.l.b16 %v1819
      %v1891 = vunpack.c.h.b16 %v1819
      %v1892 = vunpack.c.l.b16 %v1820
      %v1893 = vunpack.c.h.b16 %v1820
      %v1894 = vunpack.c.l.b16 %v1821
      %v1895 = vunpack.c.h.b16 %v1821
      %v1896 = vunpack.c.l.b16 %v1822
      %v1897 = vunpack.c.h.b16 %v1822
      %v1898 = vpack.c.b16 %v1852, %v1850
      %v1899 = vpack.c.b16 %v1853, %v1851
      %v1900 = vpack.c.b16 %v1856, %v1854
      %v1901 = vpack.c.b16 %v1857, %v1855
      %v1902 = vpack.c.b16 %v1860, %v1858
      %v1903 = vpack.c.b16 %v1861, %v1859
      %v1904 = vpack.c.b16 %v1864, %v1862
      %v1905 = vpack.c.b16 %v1865, %v1863
      %v1906 = vpack.c.b16 %v1868, %v1866
      %v1907 = vpack.c.b16 %v1869, %v1867
      %v1908 = vpack.c.b16 %v1872, %v1870
      %v1909 = vpack.c.b16 %v1873, %v1871
      %v1910 = vpack.c.b16 %v1876, %v1874
      %v1911 = vpack.c.b16 %v1877, %v1875
      %v1912 = vpack.c.b16 %v1880, %v1878
      %v1913 = vpack.c.b16 %v1881, %v1879
      %v1914 = vpack.c.b16 %v1884, %v1882
      %v1915 = vpack.c.b16 %v1885, %v1883
      %v1916 = vpack.c.b16 %v1888, %v1886
      %v1917 = vpack.c.b16 %v1889, %v1887
      %v1918 = vpack.c.b16 %v1892, %v1890
      %v1919 = vpack.c.b16 %v1893, %v1891
      %v1920 = vpack.c.b16 %v1896, %v1894
      %v1921 = vpack.c.b16 %v1897, %v1895
      %v1947 = vsel %vm387, %v1824, 0
      %1949 = vmatprep.subr.bf16.mxu0 %v1899
      %1950 = vmatpush1.bf16.msra.mxu0 %v1898
      %1951 = vmatprep.subr.bf16.mxu0 %v1901
      %1952 = vmatpush1.bf16.msra.mxu0 %v1900
      %1953 = vmatprep.subr.bf16.mxu0 %v1903
      %1954 = vmatpush1.bf16.msra.mxu0 %v1902
      %1955 = vmatprep.subr.bf16.mxu0 %v1905
      %1956 = vmatpush1.bf16.msra.mxu0 %v1904
      %1957 = vmatprep.subr.bf16.mxu0 %v1907
      %1958 = vmatpush1.bf16.msra.mxu0 %v1906
      %1959 = vmatprep.subr.bf16.mxu0 %v1909
      %1960 = vmatpush1.bf16.msra.mxu0 %v1908
      %1961 = vmatprep.subr.bf16.mxu0 %v1911
      %1962 = vmatpush1.bf16.msra.mxu0 %v1910
      %1963 = vmatprep.subr.bf16.mxu0 %v1913
      %1964 = vmatpush1.bf16.msra.mxu0 %v1912
      %1965 = vmatprep.subr.bf16.mxu0 %v1915
      %1966 = vmatpush1.bf16.msra.mxu0 %v1914
      %1967 = vmatprep.subr.bf16.mxu0 %v1917
      %1968 = vmatpush1.bf16.msra.mxu0 %v1916
      %1969 = vmatprep.subr.bf16.mxu0 %v1919
      %1970 = vmatpush1.bf16.msra.mxu0 %v1918
      %1971 = vmatprep.subr.bf16.mxu0 %v1921
      %1972 = vmatpush1.bf16.msra.mxu0 %v1920
      %1973 = vmatprep.subr.bf16.mxu0 0
      %1974 = vmatpush1.bf16.msra.mxu0 0
      %1975 = vmatprep.subr.bf16.mxu0 0
      %1976 = vmatpush1.bf16.msra.mxu0 0
      %1977 = vmatprep.subr.bf16.mxu0 0
      %1978 = vmatpush1.bf16.msra.mxu0 0
      %1979 = vmatprep.subr.bf16.mxu0 0
      %1980 = vmatpush1.bf16.msra.mxu0 0
      %1981 = vmatprep.mubr.bf16.mxu0 %v1947
      %1982 = vmatmul.mubr.bf16.gmra.mrb[0].mxu0 %v1823
      %v1983 = vpop.f32.mrb[0].mxu0
      %v1984 = vadd.f32 0.0, %v1983
      %v1985 = vpop.f32.mrb[0].mxu0
      %v1986 = vadd.f32 0.0, %v1985
      %v1987 = vpop.f32.mrb[0].mxu0
      %v1988 = vpop.f32.mrb[0].mxu0
      %1989 = vdwg.mxu0
      %v1990 = vadd.f32 %v1796, %v1984
      %v1991 = vadd.f32 %v1797, %v1986
      %v1992 = vld [vmem:[%s2] sm:$0x3]
      %v1994 = vlaneseq
      %v1995 = vshrl.u32 %v1994, 7
      %v1996 = vsub.s32 0, %v1995
      %v1997 = vrot.slane %v1992, %v1996
      %v1998 = vlaneseq
      %v1999 = vshrl.u32 %v1998, 7
      %v2000 = vsub.s32 1, %v1999
      %v2001 = vrot.slane %v1992, %v2000
      %v2004 = vadd.f32 %v1990, %v1997
      %v2005 = vadd.f32 %v1991, %v2001
      %v2006 = vmax.f32 %v2004, 0.0
      %v2007 = vmax.f32 %v2005, 0.0
      %v2008 = vpack.c.bf16 %v2006, %v2006
      %v2009 = vpack.c.bf16 %v2007, %v2007
      %v2012 = vcombine.low %v2008, %v2009
      %v2014 = vunpack.c.l.s4 1983009808
      %v2015 = vunpack.c.0.s8 %v2014
      %v2016 = vlaneseq
      %v2017 = vshrl.u32 %v2016, 7
      %v2018 = vsub.s32 %v2015, %v2017
      %v2019 = vrot.slane %v2012, %v2018
      %2021 = vst [vmem:[%s192] sm:$0xf] %v2019
      %p2022 = scmp.lt.s32.totalorder %s18, 1
      %s2023 = scalar_select %p2022, %s18, 1
      %p2024 = scmp.lt.s32.totalorder %s19, 3
      %s2025 = scalar_select %p2024, %s19, 3
      %s2026 = smul.addr %s2025, 2
      %s2027 = smul.addr %s2023, 8
      %s2028 = sadd.s32 %s2026, %s2027
      %s2029 = smul.addr %s2028, 2
      %s2030 = scalar_lea.vmem %s3, %s2029
      // Predicated region
      $region33: #{decoder3d_forward.3} parent=31 // pred_check
        %p2031 = pneg %p114
      $region34: #{decoder3d_forward.3} parent=31 // pred_check_branch
        %2033 = sbr.rel (%p2031) target = $region36
      $region35: #{decoder3d_forward.3} parent=31 // pred_region
        _
      $region36: #{decoder3d_forward.3} parent=31 // pred_fallthru
        _
    $region32: #{decoder3d_forward.3} parent=5 // pred_fallthru
      _
    %p2034 = scmp.le.s32.totalorder 2, %s9
    // Predicated region
    $region37: #{decoder3d_forward.3} parent=5 // pred_check
      %p2035 = pneg %p2034
    $region38: #{decoder3d_forward.3} parent=5 // pred_check_branch
      %2037 = sbr.rel (%p2035) target = $region40
    $region39: #{decoder3d_forward.3} parent=5 // pred_region
      %s2038 = ssub.s32 %s9, 2
      // Predicated region
      $region41: #{decoder3d_forward.3} parent=39 // pred_check
        %p2039 = pneg %p120
      $region42: #{decoder3d_forward.3} parent=39 // pred_check_branch
        %2041 = sbr.rel (%p2039) target = $region44
      $region43: #{decoder3d_forward.3} parent=39 // pred_region
        %p2042 = scmp.lt.s32.totalorder %s20, 1
        %s2043 = scalar_select %p2042, %s20, 1
        %p2044 = scmp.lt.s32.totalorder %s21, 3
        %s2045 = scalar_select %p2044, %s21, 3
        %s2046 = smul.addr %s2045, 2
        %s2047 = smul.addr %s2043, 8
        %s2048 = sadd.s32 %s2046, %s2047
        %s2049 = smul.addr %s2048, 2
        %s2050 = scalar_lea.vmem %s3, %s2049
      $region44: #{decoder3d_forward.3} parent=39 // pred_fallthru
        _
    $region40: #{decoder3d_forward.3} parent=5 // pred_fallthru
      _
  $region6: #{decoder3d_forward.3} parent=0 // loop_footer
    %s13 = sadd.s32 1, %s9
  $region7: #{decoder3d_forward.3} parent=0 // loop_footer_branch
    %8 = sbr.rel target = $region3
  $region8: #{decoder3d_forward.3} parent=0 // loop_exit
    _

// kernel: tile.28
$region0: #{tile.28}
  #allocation0 [shape = 's32[1]{0}', space=sflag, size = 0x4, scoped, tag = 'scoped memory for tile.28']
  %s0 = inlined_call_operand.vmem [shape: f32[8], index: 0, kind: input, shape index: {}]
  %s1 = inlined_call_operand.vmem [shape: f32[32,8], index: 1, kind: output, shape index: {}]
  // Predicated region
  $region2: #{tile.28} parent=0 // pred_check
    _
  $region3: #{tile.28} parent=0 // pred_check_branch
    %3 = sbr.rel (0) target = $region5
  $region4: #{tile.28} parent=0 // pred_region
    _
  $region5: #{tile.28} parent=0 // pred_fallthru
    _
  %v4 = vld [vmem:[%s0] ss:$0 sm:$0xff]
  %5 = vst [vmem:[%s1] sm:$0xff] %v4
  %s6 = scalar_lea.vmem %s1, 8
  %7 = vst [vmem:[%s6] sm:$0xff] %v4
  %s8 = scalar_lea.vmem %s1, 16
  %9 = vst [vmem:[%s8] sm:$0xff] %v4
  %s10 = scalar_lea.vmem %s1, 24
  %11 = vst [vmem:[%s10] sm:$0xff] %v4

// kernel: tile.29
$region0: #{tile.29}
  %s0 = inlined_call_operand.vmem [shape: f32[32,8], index: 0, kind: input, shape index: {}]
  %s1 = inlined_call_operand.vmem [shape: f32[1,256], index: 1, kind: output, shape index: {}]
  $region1: #{tile.29} parent=0
    #allocation0 [shape = 'u8[8192]{0}', space=vmem, size = 0x2000, scoped, tag = 'scoped mem for output reshape']
    %s2 = smov 3
    %v3 = vld [vmem:[%s0] ss:$16 sm:%s2]
    %vm4 = vcmask 64512
    %5 = vst.msk [vmem:[#allocation0] ss:$8 sm:$0x3] %vm4, %v3
    %s6 = scalar_lea.vmem %s0, 15
    %s7 = smov 3
    %v8 = vld [vmem:[%s6] ss:$16 sm:%s7]
    %9 = vrot.lane.b32.xlu0 %v8, 120
    %v10 = vpop.permute.xlu0 %9
    %vm11 = vcmask 1048512
    %12 = vst.msk [vmem:[#allocation0] ss:$8 sm:$0x3] %vm11, %v10
    %s13 = scalar_lea.vmem %s0, 14
    %s14 = smov 3
    %v15 = vld [vmem:[%s13] ss:$16 sm:%s14]
    %16 = vrot.lane.b32.xlu0 %v15, 112
    %v17 = vpop.permute.xlu0 %16
    %vm18 = vcmask 982912
    %19 = vst.msk [vmem:[#allocation0] ss:$8 sm:$0x3] %vm18, %v17
    %s20 = scalar_lea.vmem %s0, 13
    %s21 = smov 3
    %v22 = vld [vmem:[%s20] ss:$16 sm:%s21]
    %23 = vrot.lane.b32.xlu0 %v22, 104
    %v24 = vpop.permute.xlu0 %23
    %vm25 = vcmask 917312
    %26 = vst.msk [vmem:[#allocation0] ss:$8 sm:$0x3] %vm25, %v24
    %s27 = scalar_lea.vmem %s0, 12
    %s28 = smov 3
    %v29 = vld [vmem:[%s27] ss:$16 sm:%s28]
    %30 = vrot.lane.b32.xlu0 %v29, 96
    %v31 = vpop.permute.xlu0 %30
    %vm32 = vcmask 851712
    %33 = vst.msk [vmem:[#allocation0] ss:$8 sm:$0x3] %vm32, %v31
    %s34 = scalar_lea.vmem %s0, 11
    %s35 = smov 3
    %v36 = vld [vmem:[%s34] ss:$16 sm:%s35]
    %37 = vrot.lane.b32.xlu0 %v36, 88
    %v38 = vpop.permute.xlu0 %37
    %vm39 = vcmask 786112
    %40 = vst.msk [vmem:[#allocation0] ss:$8 sm:$0x3] %vm39, %v38
    %s41 = scalar_lea.vmem %s0, 10
    %s42 = smov 3
    %v43 = vld [vmem:[%s41] ss:$16 sm:%s42]
    %44 = vrot.lane.b32.xlu0 %v43, 80
    %v45 = vpop.permute.xlu0 %44
    %vm46 = vcmask 720512
    %47 = vst.msk [vmem:[#allocation0] ss:$8 sm:$0x3] %vm46, %v45
    %s48 = scalar_lea.vmem %s0, 9
    %s49 = smov 3
    %v50 = vld [vmem:[%s48] ss:$16 sm:%s49]
    %51 = vrot.lane.b32.xlu0 %v50, 72
    %v52 = vpop.permute.xlu0 %51
    %vm53 = vcmask 654912
    %54 = vst.msk [vmem:[#allocation0] ss:$8 sm:$0x3] %vm53, %v52
    %s55 = scalar_lea.vmem %s0, 8
    %s56 = smov 3
    %v57 = vld [vmem:[%s55] ss:$16 sm:%s56]
    %58 = vrot.lane.b32.xlu0 %v57, 64
    %v59 = vpop.permute.xlu0 %58
    %vm60 = vcmask 589312
    %61 = vst.msk [vmem:[#allocation0] ss:$8 sm:$0x3] %vm60, %v59
    %s62 = scalar_lea.vmem %s0, 7
    %s63 = smov 3
    %v64 = vld [vmem:[%s62] ss:$16 sm:%s63]
    %65 = vrot.lane.b32.xlu0 %v64, 56
    %v66 = vpop.permute.xlu0 %65
    %vm67 = vcmask 523712
    %68 = vst.msk [vmem:[#allocation0] ss:$8 sm:$0x3] %vm67, %v66
    %s69 = scalar_lea.vmem %s0, 6
    %s70 = smov 3
    %v71 = vld [vmem:[%s69] ss:$16 sm:%s70]
    %72 = vrot.lane.b32.xlu0 %v71, 48
    %v73 = vpop.permute.xlu0 %72
    %vm74 = vcmask 458112
    %75 = vst.msk [vmem:[#allocation0] ss:$8 sm:$0x3] %vm74, %v73
    %s76 = scalar_lea.vmem %s0, 5
    %s77 = smov 3
    %v78 = vld [vmem:[%s76] ss:$16 sm:%s77]
    %79 = vrot.lane.b32.xlu0 %v78, 40
    %v80 = vpop.permute.xlu0 %79
    %vm81 = vcmask 392512
    %82 = vst.msk [vmem:[#allocation0] ss:$8 sm:$0x3] %vm81, %v80
    %s83 = scalar_lea.vmem %s0, 4
    %s84 = smov 3
    %v85 = vld [vmem:[%s83] ss:$16 sm:%s84]
    %86 = vrot.lane.b32.xlu0 %v85, 32
    %v87 = vpop.permute.xlu0 %86
    %vm88 = vcmask 326912
    %89 = vst.msk [vmem:[#allocation0] ss:$8 sm:$0x3] %vm88, %v87
    %s90 = scalar_lea.vmem %s0, 3
    %s91 = smov 3
    %v92 = vld [vmem:[%s90] ss:$16 sm:%s91]
    %93 = vrot.lane.b32.xlu0 %v92, 24
    %v94 = vpop.permute.xlu0 %93
    %vm95 = vcmask 261312
    %96 = vst.msk [vmem:[#allocation0] ss:$8 sm:$0x3] %vm95, %v94
    %s97 = scalar_lea.vmem %s0, 2
    %s98 = smov 3
    %v99 = vld [vmem:[%s97] ss:$16 sm:%s98]
    %100 = vrot.lane.b32.xlu0 %v99, 16
    %v101 = vpop.permute.xlu0 %100
    %vm102 = vcmask 195712
    %103 = vst.msk [vmem:[#allocation0] ss:$8 sm:$0x3] %vm102, %v101
    %s104 = scalar_lea.vmem %s0, 1
    %s105 = smov 3
    %v106 = vld [vmem:[%s104] ss:$16 sm:%s105]
    %107 = vrot.lane.b32.xlu0 %v106, 8
    %v108 = vpop.permute.xlu0 %107
    %vm109 = vcmask 130112
    %110 = vst.msk [vmem:[#allocation0] ss:$8 sm:$0x3] %vm109, %v108
    %s112 = sshllo.u32 0, 1
    %v114 = vld [vmem:[#allocation0] sm:%s112]
    %s115 = sshllo.u32 0, 1
    %116 = vst [vmem:[%s1] sm:%s115] %v114
    %s117 = scalar_lea.vmem [#allocation0], 8
    %v118 = vld [vmem:[%s117] sm:%s112]
    %s119 = sshllo.u32 0, 1
    %s120 = scalar_lea.vmem %s1, 1
    %121 = vst [vmem:[%s120] sm:%s119] %v118

// kernel: decoder3d_forward.4
$region0: #{decoder3d_forward.4}
  #allocation0 [shape = 'u32[]', space=smem, size = 0x4, offset = 0x4, fixed_abs, tag = 'smem constant byte address 0x4 - core index']
  #allocation1 [shape = 'u32[144,128]{1,0:T(1,128)}', space=vmem, size = 0x12000, scoped, tag = 'internal scratch']
  %s0 = inlined_call_operand.vmem [shape: bf16[2,6,10,160], index: 0, kind: input, shape index: {}]
  %s1 = inlined_call_operand.vmem [shape: bf16[3,3,160,256], index: 1, kind: input, shape index: {}]
  %s2 = inlined_call_operand.vmem [shape: bf16[2,6,10,160], index: 2, kind: input, shape index: {}]
  %s3 = inlined_call_operand.vmem [shape: bf16[3,3,160,256], index: 3, kind: input, shape index: {}]
  %s4 = inlined_call_operand.vmem [shape: f32[1,256], index: 4, kind: input, shape index: {}]
  %s5 = inlined_call_operand.vmem [shape: bf16[2,4,8,256], index: 5, kind: output, shape index: {}]
  %s6 = sld [smem:[#allocation0]]
  $region53: #{decoder3d_forward.4} parent=0
    _
  %s8 = ssub.s32 1, %s6
  %s9 = scalar_select 0, %s8, %s6
  loop: start=0, step=1, limit=10
  $region2: #{decoder3d_forward.4} parent=0 // loop_pre_header
    _
  $region3: #{decoder3d_forward.4} parent=0 // loop_header
    %s11 = sphi 0, %s15
    %p12 = scmp.ge.s32.totalorder %s11, 10
    %s18 = sphi 0, %s30
    %s19 = sphi 0, %s26
    %s20 = sphi 0, %s18
    %s21 = sphi 0, %s19
    %s22 = sphi 0, %s20
    %s23 = sphi 0, %s21
    %s33 = sphi 0, %s35
    %s36 = sphi 0, %s33
    %s37 = sphi 0, %s36
    %s53 = sphi 0, %s37
    %s57 = sphi 0, %s57
    %s59 = sphi 0, %s57
    %s60 = sphi 0, %s59
    %s74 = sphi 0, %s60
    %s80 = sphi 0, %s82
    %s83 = sphi 0, %s80
    %s84 = sphi 0, %s83
    %s100 = sphi 0, %s84
    %s104 = sphi 0, %s104
    %s106 = sphi 0, %s104
    %s107 = sphi 0, %s106
    %s121 = sphi 0, %s107
    %s125 = sphi 0, %s125
    %s127 = sphi 0, %s125
    %s128 = sphi 0, %s127
    %s142 = sphi 0, %s128
    %s150 = sphi 0, %s152
    %s153 = sphi 0, %s150
    %s154 = sphi 0, %s153
    %s170 = sphi 0, %s154
  $region4: #{decoder3d_forward.4} parent=0 // loop_header_branch
    %14 = sbr.rel (%p12) target = $region8
  $region5: #{decoder3d_forward.4} parent=0 // loop_body
    %s16 = ssub.s32 %s11, 1
    %s17 = ssub.s32 %s11, 2
    %s24 = sadd.s32 1, %s19
    %p25 = scmp.ge.s32.totalorder %s24, 4
    %s26 = scalar_select %p25, 0, %s24
    %s27 = sadd.s32 1, %s18
    %s28 = scalar_select %p25, %s27, %s18
    %p29 = scmp.ge.s32.totalorder %s28, 2
    %s30 = scalar_select %p29, 0, %s28
    %s31 = ssub.s32 %s18, %s30
    %p32 = scmp.eq.s32.totalorder %s31, 0
    %s34 = sadd.s32 %s33, 1
    %s35 = scalar_select %p32, %s33, %s34
    %p38 = pneg %p32
    %p39 = scmp.eq.s32.totalorder %s11, 7
    %p40 = por %p38, %p39
    %p41 = scmp.ne.s32.totalorder %s33, %s36
    %p42 = scmp.eq.s32.totalorder %s11, 0
    %p43 = por %p41, %p42
    %p44 = scmp.ne.s32.totalorder %s33, %s36
    %p45 = scmp.eq.s32.totalorder %s16, 7
    %p46 = por %p44, %p45
    %p47 = scmp.ne.s32.totalorder %s36, %s37
    %p48 = scmp.eq.s32.totalorder %s16, 0
    %p49 = por %p47, %p48
    %p50 = scmp.ne.s32.totalorder %s36, %s37
    %p51 = scmp.eq.s32.totalorder %s17, 7
    %p52 = por %p50, %p51
    %p54 = scmp.ne.s32.totalorder %s37, %s53
    %p55 = scmp.eq.s32.totalorder %s17, 0
    %p56 = por %p54, %p55
    %s58 = sadd.s32 %s57, 1
    %p61 = scmp.eq.s32.totalorder %s11, 7
    %p62 = scmp.ne.s32.totalorder %s57, %s59
    %p63 = scmp.eq.s32.totalorder %s11, 0
    %p64 = por %p62, %p63
    %p65 = scmp.ne.s32.totalorder %s57, %s59
    %p66 = scmp.eq.s32.totalorder %s16, 7
    %p67 = por %p65, %p66
    %p68 = scmp.ne.s32.totalorder %s59, %s60
    %p69 = scmp.eq.s32.totalorder %s16, 0
    %p70 = por %p68, %p69
    %p71 = scmp.ne.s32.totalorder %s59, %s60
    %p72 = scmp.eq.s32.totalorder %s17, 7
    %p73 = por %p71, %p72
    %p75 = scmp.ne.s32.totalorder %s60, %s74
    %p76 = scmp.eq.s32.totalorder %s17, 0
    %p77 = por %p75, %p76
    %s78 = ssub.s32 %s18, %s30
    %p79 = scmp.eq.s32.totalorder %s78, 0
    %s81 = sadd.s32 %s80, 1
    %s82 = scalar_select %p79, %s80, %s81
    %p85 = pneg %p79
    %p86 = scmp.eq.s32.totalorder %s11, 7
    %p87 = por %p85, %p86
    %p88 = scmp.ne.s32.totalorder %s80, %s83
    %p89 = scmp.eq.s32.totalorder %s11, 0
    %p90 = por %p88, %p89
    %p91 = scmp.ne.s32.totalorder %s80, %s83
    %p92 = scmp.eq.s32.totalorder %s16, 7
    %p93 = por %p91, %p92
    %p94 = scmp.ne.s32.totalorder %s83, %s84
    %p95 = scmp.eq.s32.totalorder %s16, 0
    %p96 = por %p94, %p95
    %p97 = scmp.ne.s32.totalorder %s83, %s84
    %p98 = scmp.eq.s32.totalorder %s17, 7
    %p99 = por %p97, %p98
    %p101 = scmp.ne.s32.totalorder %s84, %s100
    %p102 = scmp.eq.s32.totalorder %s17, 0
    %p103 = por %p101, %p102
    %s105 = sadd.s32 %s104, 1
    %p108 = scmp.eq.s32.totalorder %s11, 7
    %p109 = scmp.ne.s32.totalorder %s104, %s106
    %p110 = scmp.eq.s32.totalorder %s11, 0
    %p111 = por %p109, %p110
    %p112 = scmp.ne.s32.totalorder %s104, %s106
    %p113 = scmp.eq.s32.totalorder %s16, 7
    %p114 = por %p112, %p113
    %p115 = scmp.ne.s32.totalorder %s106, %s107
    %p116 = scmp.eq.s32.totalorder %s16, 0
    %p117 = por %p115, %p116
    %p118 = scmp.ne.s32.totalorder %s106, %s107
    %p119 = scmp.eq.s32.totalorder %s17, 7
    %p120 = por %p118, %p119
    %p122 = scmp.ne.s32.totalorder %s107, %s121
    %p123 = scmp.eq.s32.totalorder %s17, 0
    %p124 = por %p122, %p123
    %s126 = sadd.s32 %s125, 1
    %p129 = scmp.eq.s32.totalorder %s11, 7
    %p130 = scmp.ne.s32.totalorder %s125, %s127
    %p131 = scmp.eq.s32.totalorder %s11, 0
    %p132 = por %p130, %p131
    %p133 = scmp.ne.s32.totalorder %s125, %s127
    %p134 = scmp.eq.s32.totalorder %s16, 7
    %p135 = por %p133, %p134
    %p136 = scmp.ne.s32.totalorder %s127, %s128
    %p137 = scmp.eq.s32.totalorder %s16, 0
    %p138 = por %p136, %p137
    %p139 = scmp.ne.s32.totalorder %s127, %s128
    %p140 = scmp.eq.s32.totalorder %s17, 7
    %p141 = por %p139, %p140
    %p143 = scmp.ne.s32.totalorder %s128, %s142
    %p144 = scmp.eq.s32.totalorder %s17, 0
    %p145 = por %p143, %p144
    %s146 = ssub.s32 %s18, %s30
    %s147 = ssub.s32 %s19, %s26
    %s148 = sor.u32 %s146, %s147
    %p149 = scmp.eq.s32.totalorder %s148, 0
    %s151 = sadd.s32 %s150, 1
    %s152 = scalar_select %p149, %s150, %s151
    %p155 = pneg %p149
    %p156 = scmp.eq.s32.totalorder %s11, 7
    %p157 = por %p155, %p156
    %p158 = scmp.ne.s32.totalorder %s150, %s153
    %p159 = scmp.eq.s32.totalorder %s11, 0
    %p160 = por %p158, %p159
    %p161 = scmp.ne.s32.totalorder %s150, %s153
    %p162 = scmp.eq.s32.totalorder %s16, 7
    %p163 = por %p161, %p162
    %p164 = scmp.ne.s32.totalorder %s153, %s154
    %p165 = scmp.eq.s32.totalorder %s16, 0
    %p166 = por %p164, %p165
    %p167 = scmp.ne.s32.totalorder %s153, %s154
    %p168 = scmp.eq.s32.totalorder %s17, 7
    %p169 = por %p167, %p168
    %p171 = scmp.ne.s32.totalorder %s154, %s170
    %p172 = scmp.eq.s32.totalorder %s17, 0
    %p173 = por %p171, %p172
    %p174 = scmp.le.s32.totalorder 1, %s11
    %p175 = scmp.lt.s32.totalorder %s11, 9
    %p176 = pnand %p174, %p175
    %p177 = pneg %p176
    // Predicated region
    $region9: #{decoder3d_forward.4} parent=5 // pred_check
      _
    $region10: #{decoder3d_forward.4} parent=5 // pred_check_branch
      %179 = sbr.rel (%p176) target = $region12
    $region11: #{decoder3d_forward.4} parent=5 // pred_region
      %s180 = ssub.s32 %s11, 1
      // Predicated region
      $region13: #{decoder3d_forward.4} parent=11 // pred_check
        %p181 = pneg %p70
      $region14: #{decoder3d_forward.4} parent=11 // pred_check_branch
        %183 = sbr.rel (%p181) target = $region16
      $region15: #{decoder3d_forward.4} parent=11 // pred_region
        _
      $region16: #{decoder3d_forward.4} parent=11 // pred_fallthru
        _
      // Predicated region
      $region17: #{decoder3d_forward.4} parent=11 // pred_check
        %p184 = pneg %p117
      $region18: #{decoder3d_forward.4} parent=11 // pred_check_branch
        %186 = sbr.rel (%p184) target = $region20
      $region19: #{decoder3d_forward.4} parent=11 // pred_region
        _
      $region20: #{decoder3d_forward.4} parent=11 // pred_fallthru
        _
      // Predicated region
      $region21: #{decoder3d_forward.4} parent=11 // pred_check
        %p187 = pneg %p138
      $region22: #{decoder3d_forward.4} parent=11 // pred_check_branch
        %189 = sbr.rel (%p187) target = $region24
      $region23: #{decoder3d_forward.4} parent=11 // pred_region
        _
      $region24: #{decoder3d_forward.4} parent=11 // pred_fallthru
        _
    $region12: #{decoder3d_forward.4} parent=5 // pred_fallthru
      _
    %p190 = scmp.lt.s32.totalorder %s11, 8
    // Predicated region
    $region25: #{decoder3d_forward.4} parent=5 // pred_check
      %p191 = pneg %p190
    $region26: #{decoder3d_forward.4} parent=5 // pred_check_branch
      %193 = sbr.rel (%p191) target = $region28
    $region27: #{decoder3d_forward.4} parent=5 // pred_region
      // Predicated region
      $region29: #{decoder3d_forward.4} parent=27 // pred_check
        %p194 = pneg %p43
      $region30: #{decoder3d_forward.4} parent=27 // pred_check_branch
        %196 = sbr.rel (%p194) target = $region32
      $region31: #{decoder3d_forward.4} parent=27 // pred_region
        %p197 = scmp.lt.s32.totalorder %s18, 1
        %s198 = scalar_select %p197, %s18, 1
        %s199 = smul.addr %s198, 24
        %s200 = smul.addr %s199, 4
        %s201 = scalar_lea.vmem %s0, %s200
      $region32: #{decoder3d_forward.4} parent=27 // pred_fallthru
        _
      // Predicated region
      $region33: #{decoder3d_forward.4} parent=27 // pred_check
        %p202 = pneg %p90
      $region34: #{decoder3d_forward.4} parent=27 // pred_check_branch
        %204 = sbr.rel (%p202) target = $region36
      $region35: #{decoder3d_forward.4} parent=27 // pred_region
        %p205 = scmp.lt.s32.totalorder %s18, 1
        %s206 = scalar_select %p205, %s18, 1
        %s207 = smul.addr %s206, 24
        %s208 = smul.addr %s207, 4
        %s209 = scalar_lea.vmem %s2, %s208
      $region36: #{decoder3d_forward.4} parent=27 // pred_fallthru
        _
    $region28: #{decoder3d_forward.4} parent=5 // pred_fallthru
      _
    %p210 = scmp.le.s32.totalorder 1, %s11
    %p211 = scmp.lt.s32.totalorder %s11, 9
    %p212 = pnand %p210, %p211
    %p213 = pneg %p212
    // Predicated region
    $region37: #{decoder3d_forward.4} parent=5 // pred_check
      _
    $region38: #{decoder3d_forward.4} parent=5 // pred_check_branch
      %215 = sbr.rel (%p212) target = $region40
    $region39: #{decoder3d_forward.4} parent=5 // pred_region
      %s216 = ssub.s32 %s11, 1
      %p217 = scmp.lt.s32.totalorder %s20, 1
      %s218 = scalar_select %p217, %s20, 1
      %s219 = smul.addr %s218, 24
      %s220 = smul.addr %s219, 4
      %s221 = scalar_lea.vmem %s0, %s220
      %p222 = pneg %p49
      %p223 = pneg %p46
      %p224 = pneg %p70
      %p225 = pneg %p67
      %p226 = scmp.lt.s32.totalorder %s20, 1
      %s227 = scalar_select %p226, %s20, 1
      %s228 = smul.addr %s227, 24
      %s229 = smul.addr %s228, 4
      %s230 = scalar_lea.vmem %s2, %s229
      %p231 = pneg %p96
      %p232 = pneg %p93
      %p233 = pneg %p117
      %p234 = pneg %p114
      %p235 = pneg %p138
      %p236 = pneg %p135
      %p237 = pneg %p166
      %p238 = pneg %p163
      %p239 = scmp.lt.s32.totalorder %s20, 1
      %s240 = scalar_select %p239, %s20, 1
      %p241 = scmp.lt.s32.totalorder %s21, 3
      %s242 = scalar_select %p241, %s21, 3
      %s243 = smul.addr %s242, 2
      %s244 = smul.addr %s240, 8
      %s245 = sadd.s32 %s243, %s244
      %s246 = smul.addr %s245, 4
      %s247 = scalar_lea.vmem %s5, %s246
      %p248 = scmp.lt.s32.totalorder %s20, 1
      %s249 = scalar_select %p248, %s20, 1
      %s250 = smul.addr %s249, 24
      %s251 = smul.addr %s250, 4
      %s252 = scalar_lea.vmem %s0, %s251
      %p253 = scmp.lt.s32.totalorder %s20, 1
      %s254 = scalar_select %p253, %s20, 1
      %s255 = smul.addr %s254, 24
      %s256 = smul.addr %s255, 4
      %s257 = scalar_lea.vmem %s2, %s256
      %p258 = scmp.lt.s32.totalorder %s20, 1
      %s259 = scalar_select %p258, %s20, 1
      %p260 = scmp.lt.s32.totalorder %s21, 3
      %s261 = scalar_select %p260, %s21, 3
      %s262 = smul.addr %s261, 2
      %s263 = smul.addr %s259, 8
      %s264 = sadd.s32 %s262, %s263
      %s265 = smul.addr %s264, 4
      %s266 = scalar_lea.vmem %s5, %s265
      %s268 = smul.u32 %s21, 4
      %s269 = smul.addr %s268, 4
      %s270 = scalar_lea.vmem %s252, %s269
      %v271 = vld [vmem:[%s270] sm:$0xff]
      %v272 = vld [vmem:[%s270 + $0x8] sm:$0x11]
      %s273 = smul.addr %s268, 4
      %s274 = scalar_lea.vmem %s257, %s273
      %v275 = vld [vmem:[%s274] sm:$0xff]
      %v276 = vld [vmem:[%s274 + $0x8] sm:$0x11]
      %v277 = vld [vmem:[%s1] sm:$0xff]
      %v278 = vld [vmem:[%s1 + $0x8] sm:$0xff]
      %v279 = vld [vmem:[%s1 + $0x10] sm:$0xff]
      %v280 = vld [vmem:[%s1 + $0x18] sm:$0xff]
      %v281 = vld [vmem:[%s1 + $0x20] sm:$0xff]
      %v282 = vld [vmem:[%s1 + $0x28] sm:$0xff]
      %v283 = vld [vmem:[%s1 + $0x30] sm:$0xff]
      %v284 = vld [vmem:[%s1 + $0x38] sm:$0xff]
      %v285 = vld [vmem:[%s1 + $0x40] sm:$0xff]
      %v286 = vld [vmem:[%s1 + $0x48] sm:$0xff]
      %v287 = vld [vmem:[%s1 + $0x50] sm:$0xff]
      %v288 = vld [vmem:[%s1 + $0x58] sm:$0xff]
      %v289 = vld [vmem:[%s1 + $0x60] sm:$0xff]
      %v290 = vld [vmem:[%s1 + $0x68] sm:$0xff]
      %v291 = vld [vmem:[%s1 + $0x70] sm:$0xff]
      %v292 = vld [vmem:[%s1 + $0x78] sm:$0xff]
      %v293 = vld [vmem:[%s1 + $0x80] sm:$0xff]
      %v294 = vld [vmem:[%s1 + $0x88] sm:$0xff]
      %v295 = vld [vmem:[%s1 + $0x90] sm:$0xff]
      %v296 = vld [vmem:[%s1 + $0x98] sm:$0xff]
      %v297 = vld [vmem:[%s3] sm:$0xff]
      %v298 = vld [vmem:[%s3 + $0x8] sm:$0xff]
      %v299 = vld [vmem:[%s3 + $0x10] sm:$0xff]
      %v300 = vld [vmem:[%s3 + $0x18] sm:$0xff]
      %v301 = vld [vmem:[%s3 + $0x20] sm:$0xff]
      %v302 = vld [vmem:[%s3 + $0x28] sm:$0xff]
      %v303 = vld [vmem:[%s3 + $0x30] sm:$0xff]
      %v304 = vld [vmem:[%s3 + $0x38] sm:$0xff]
      %v305 = vld [vmem:[%s3 + $0x40] sm:$0xff]
      %v306 = vld [vmem:[%s3 + $0x48] sm:$0xff]
      %v307 = vld [vmem:[%s3 + $0x50] sm:$0xff]
      %v308 = vld [vmem:[%s3 + $0x58] sm:$0xff]
      %v309 = vld [vmem:[%s3 + $0x60] sm:$0xff]
      %v310 = vld [vmem:[%s3 + $0x68] sm:$0xff]
      %v311 = vld [vmem:[%s3 + $0x70] sm:$0xff]
      %v312 = vld [vmem:[%s3 + $0x78] sm:$0xff]
      %v313 = vld [vmem:[%s3 + $0x80] sm:$0xff]
      %v314 = vld [vmem:[%s3 + $0x88] sm:$0xff]
      %v315 = vld [vmem:[%s3 + $0x90] sm:$0xff]
      %v316 = vld [vmem:[%s3 + $0x98] sm:$0xff]
      %v318 = vunpack.c.l.b16 %v275
      %v319 = vunpack.c.h.b16 %v275
      %v320 = vpack.c.b16 %v318, %v318
      %v321 = vpack.c.b16 %v319, %v319
      %v343 = vunpack.c.l.b16 %v297
      %v344 = vunpack.c.h.b16 %v297
      %v345 = vunpack.c.l.b16 %v298
      %v346 = vunpack.c.h.b16 %v298
      %v347 = vunpack.c.l.b16 %v299
      %v348 = vunpack.c.h.b16 %v299
      %v349 = vunpack.c.l.b16 %v300
      %v350 = vunpack.c.h.b16 %v300
      %v351 = vunpack.c.l.b16 %v301
      %v352 = vunpack.c.h.b16 %v301
      %v353 = vunpack.c.l.b16 %v302
      %v354 = vunpack.c.h.b16 %v302
      %v355 = vunpack.c.l.b16 %v303
      %v356 = vunpack.c.h.b16 %v303
      %v357 = vunpack.c.l.b16 %v304
      %v358 = vunpack.c.h.b16 %v304
      %v359 = vunpack.c.l.b16 %v305
      %v360 = vunpack.c.h.b16 %v305
      %v361 = vunpack.c.l.b16 %v306
      %v362 = vunpack.c.h.b16 %v306
      %v363 = vunpack.c.l.b16 %v307
      %v364 = vunpack.c.h.b16 %v307
      %v365 = vunpack.c.l.b16 %v308
      %v366 = vunpack.c.h.b16 %v308
      %v367 = vunpack.c.l.b16 %v309
      %v368 = vunpack.c.h.b16 %v309
      %v369 = vunpack.c.l.b16 %v310
      %v370 = vunpack.c.h.b16 %v310
      %v371 = vunpack.c.l.b16 %v311
      %v372 = vunpack.c.h.b16 %v311
      %v373 = vunpack.c.l.b16 %v312
      %v374 = vunpack.c.h.b16 %v312
      %v375 = vunpack.c.l.b16 %v313
      %v376 = vunpack.c.h.b16 %v313
      %v377 = vunpack.c.l.b16 %v314
      %v378 = vunpack.c.h.b16 %v314
      %v379 = vunpack.c.l.b16 %v315
      %v380 = vunpack.c.h.b16 %v315
      %v381 = vunpack.c.l.b16 %v316
      %v382 = vunpack.c.h.b16 %v316
      %v383 = vpack.c.b16 %v345, %v343
      %v384 = vpack.c.b16 %v346, %v344
      %v385 = vpack.c.b16 %v349, %v347
      %v386 = vpack.c.b16 %v350, %v348
      %v387 = vpack.c.b16 %v353, %v351
      %v388 = vpack.c.b16 %v354, %v352
      %v389 = vpack.c.b16 %v357, %v355
      %v390 = vpack.c.b16 %v358, %v356
      %v391 = vpack.c.b16 %v361, %v359
      %v392 = vpack.c.b16 %v362, %v360
      %v393 = vpack.c.b16 %v365, %v363
      %v394 = vpack.c.b16 %v366, %v364
      %v395 = vpack.c.b16 %v369, %v367
      %v396 = vpack.c.b16 %v370, %v368
      %v397 = vpack.c.b16 %v373, %v371
      %v398 = vpack.c.b16 %v374, %v372
      %v399 = vpack.c.b16 %v377, %v375
      %v400 = vpack.c.b16 %v378, %v376
      %v401 = vpack.c.b16 %v381, %v379
      %v402 = vpack.c.b16 %v382, %v380
      %vm423 = vcmask 261120
      %v425 = vsel %vm423, %v321, 0
      %427 = vmatprep.subr.bf16.mxu0 %v384
      %428 = vmatpush1.bf16.msra.mxu0 %v383
      %429 = vmatprep.subr.bf16.mxu0 %v386
      %430 = vmatpush1.bf16.msra.mxu0 %v385
      %431 = vmatprep.subr.bf16.mxu0 %v388
      %432 = vmatpush1.bf16.msra.mxu0 %v387
      %433 = vmatprep.subr.bf16.mxu0 %v390
      %434 = vmatpush1.bf16.msra.mxu0 %v389
      %435 = vmatprep.subr.bf16.mxu0 %v392
      %436 = vmatpush1.bf16.msra.mxu0 %v391
      %437 = vmatprep.subr.bf16.mxu0 %v394
      %438 = vmatpush1.bf16.msra.mxu0 %v393
      %439 = vmatprep.subr.bf16.mxu0 %v396
      %440 = vmatpush1.bf16.msra.mxu0 %v395
      %441 = vmatprep.subr.bf16.mxu0 %v398
      %442 = vmatpush1.bf16.msra.mxu0 %v397
      %443 = vmatprep.subr.bf16.mxu0 %v400
      %444 = vmatpush1.bf16.msra.mxu0 %v399
      %445 = vmatprep.subr.bf16.mxu0 %v402
      %446 = vmatpush1.bf16.msra.mxu0 %v401
      %447 = vmatprep.subr.bf16.mxu0 0
      %448 = vmatpush1.bf16.msra.mxu0 0
      %449 = vmatprep.subr.bf16.mxu0 0
      %450 = vmatpush1.bf16.msra.mxu0 0
      %451 = vmatprep.subr.bf16.mxu0 0
      %452 = vmatpush1.bf16.msra.mxu0 0
      %453 = vmatprep.subr.bf16.mxu0 0
      %454 = vmatpush1.bf16.msra.mxu0 0
      %455 = vmatprep.subr.bf16.mxu0 0
      %456 = vmatpush1.bf16.msra.mxu0 0
      %457 = vmatprep.subr.bf16.mxu0 0
      %458 = vmatpush1.bf16.msra.mxu0 0
      %459 = vmatprep.mubr.bf16.mxu0 %v425
      %460 = vmatmul.mubr.bf16.gmra.mrb[0].mxu0 %v320
      %v461 = vpop.f32.mrb[0].mxu0
      %v462 = vadd.f32 0.0, %v461
      %v463 = vpop.f32.mrb[0].mxu0
      %v464 = vadd.f32 0.0, %v463
      %v465 = vpop.f32.mrb[0].mxu0
      %v466 = vpop.f32.mrb[0].mxu0
      %467 = vdwg.mxu0
      %v469 = vunpack.c.l.b16 %v271
      %v470 = vunpack.c.h.b16 %v271
      %v471 = vpack.c.b16 %v469, %v469
      %v472 = vpack.c.b16 %v470, %v470
      %v494 = vunpack.c.l.b16 %v277
      %v495 = vunpack.c.h.b16 %v277
      %v496 = vunpack.c.l.b16 %v278
      %v497 = vunpack.c.h.b16 %v278
      %v498 = vunpack.c.l.b16 %v279
      %v499 = vunpack.c.h.b16 %v279
      %v500 = vunpack.c.l.b16 %v280
      %v501 = vunpack.c.h.b16 %v280
      %v502 = vunpack.c.l.b16 %v281
      %v503 = vunpack.c.h.b16 %v281
      %v504 = vunpack.c.l.b16 %v282
      %v505 = vunpack.c.h.b16 %v282
      %v506 = vunpack.c.l.b16 %v283
      %v507 = vunpack.c.h.b16 %v283
      %v508 = vunpack.c.l.b16 %v284
      %v509 = vunpack.c.h.b16 %v284
      %v510 = vunpack.c.l.b16 %v285
      %v511 = vunpack.c.h.b16 %v285
      %v512 = vunpack.c.l.b16 %v286
      %v513 = vunpack.c.h.b16 %v286
      %v514 = vunpack.c.l.b16 %v287
      %v515 = vunpack.c.h.b16 %v287
      %v516 = vunpack.c.l.b16 %v288
      %v517 = vunpack.c.h.b16 %v288
      %v518 = vunpack.c.l.b16 %v289
      %v519 = vunpack.c.h.b16 %v289
      %v520 = vunpack.c.l.b16 %v290
      %v521 = vunpack.c.h.b16 %v290
      %v522 = vunpack.c.l.b16 %v291
      %v523 = vunpack.c.h.b16 %v291
      %v524 = vunpack.c.l.b16 %v292
      %v525 = vunpack.c.h.b16 %v292
      %v526 = vunpack.c.l.b16 %v293
      %v527 = vunpack.c.h.b16 %v293
      %v528 = vunpack.c.l.b16 %v294
      %v529 = vunpack.c.h.b16 %v294
      %v530 = vunpack.c.l.b16 %v295
      %v531 = vunpack.c.h.b16 %v295
      %v532 = vunpack.c.l.b16 %v296
      %v533 = vunpack.c.h.b16 %v296
      %v534 = vpack.c.b16 %v496, %v494
      %v535 = vpack.c.b16 %v497, %v495
      %v536 = vpack.c.b16 %v500, %v498
      %v537 = vpack.c.b16 %v501, %v499
      %v538 = vpack.c.b16 %v504, %v502
      %v539 = vpack.c.b16 %v505, %v503
      %v540 = vpack.c.b16 %v508, %v506
      %v541 = vpack.c.b16 %v509, %v507
      %v542 = vpack.c.b16 %v512, %v510
      %v543 = vpack.c.b16 %v513, %v511
      %v544 = vpack.c.b16 %v516, %v514
      %v545 = vpack.c.b16 %v517, %v515
      %v546 = vpack.c.b16 %v520, %v518
      %v547 = vpack.c.b16 %v521, %v519
      %v548 = vpack.c.b16 %v524, %v522
      %v549 = vpack.c.b16 %v525, %v523
      %v550 = vpack.c.b16 %v528, %v526
      %v551 = vpack.c.b16 %v529, %v527
      %v552 = vpack.c.b16 %v532, %v530
      %v553 = vpack.c.b16 %v533, %v531
      %v575 = vsel %vm423, %v472, 0
      %577 = vmatprep.subr.bf16.mxu0 %v535
      %578 = vmatpush1.bf16.msra.mxu0 %v534
      %579 = vmatprep.subr.bf16.mxu0 %v537
      %580 = vmatpush1.bf16.msra.mxu0 %v536
      %581 = vmatprep.subr.bf16.mxu0 %v539
      %582 = vmatpush1.bf16.msra.mxu0 %v538
      %583 = vmatprep.subr.bf16.mxu0 %v541
      %584 = vmatpush1.bf16.msra.mxu0 %v540
      %585 = vmatprep.subr.bf16.mxu0 %v543
      %586 = vmatpush1.bf16.msra.mxu0 %v542
      %587 = vmatprep.subr.bf16.mxu0 %v545
      %588 = vmatpush1.bf16.msra.mxu0 %v544
      %589 = vmatprep.subr.bf16.mxu0 %v547
      %590 = vmatpush1.bf16.msra.mxu0 %v546
      %591 = vmatprep.subr.bf16.mxu0 %v549
      %592 = vmatpush1.bf16.msra.mxu0 %v548
      %593 = vmatprep.subr.bf16.mxu0 %v551
      %594 = vmatpush1.bf16.msra.mxu0 %v550
      %595 = vmatprep.subr.bf16.mxu0 %v553
      %596 = vmatpush1.bf16.msra.mxu0 %v552
      %597 = vmatprep.subr.bf16.mxu0 0
      %598 = vmatpush1.bf16.msra.mxu0 0
      %599 = vmatprep.subr.bf16.mxu0 0
      %600 = vmatpush1.bf16.msra.mxu0 0
      %601 = vmatprep.subr.bf16.mxu0 0
      %602 = vmatpush1.bf16.msra.mxu0 0
      %603 = vmatprep.subr.bf16.mxu0 0
      %604 = vmatpush1.bf16.msra.mxu0 0
      %605 = vmatprep.subr.bf16.mxu0 0
      %606 = vmatpush1.bf16.msra.mxu0 0
      %607 = vmatprep.subr.bf16.mxu0 0
      %608 = vmatpush1.bf16.msra.mxu0 0
      %609 = vmatprep.mubr.bf16.mxu0 %v575
      %610 = vmatmul.mubr.bf16.gmra.mrb[0].mxu0 %v471
      %v611 = vpop.f32.mrb[0].mxu0
      %v612 = vadd.f32 %v462, %v611
      %v613 = vpop.f32.mrb[0].mxu0
      %v614 = vadd.f32 %v464, %v613
      %v615 = vpop.f32.mrb[0].mxu0
      %v616 = vpop.f32.mrb[0].mxu0
      %617 = vdwg.mxu0
      %s618 = scalar_lea.vmem %s1, 160
      %v619 = vld [vmem:[%s618] sm:$0xff]
      %v620 = vld [vmem:[%s618 + $0x8] sm:$0xff]
      %v621 = vld [vmem:[%s618 + $0x10] sm:$0xff]
      %v622 = vld [vmem:[%s618 + $0x18] sm:$0xff]
      %v623 = vld [vmem:[%s618 + $0x20] sm:$0xff]
      %v624 = vld [vmem:[%s618 + $0x28] sm:$0xff]
      %v625 = vld [vmem:[%s618 + $0x30] sm:$0xff]
      %v626 = vld [vmem:[%s618 + $0x38] sm:$0xff]
      %v627 = vld [vmem:[%s618 + $0x40] sm:$0xff]
      %v628 = vld [vmem:[%s618 + $0x48] sm:$0xff]
      %v629 = vld [vmem:[%s618 + $0x50] sm:$0xff]
      %v630 = vld [vmem:[%s618 + $0x58] sm:$0xff]
      %v631 = vld [vmem:[%s618 + $0x60] sm:$0xff]
      %v632 = vld [vmem:[%s618 + $0x68] sm:$0xff]
      %v633 = vld [vmem:[%s618 + $0x70] sm:$0xff]
      %v634 = vld [vmem:[%s618 + $0x78] sm:$0xff]
      %v635 = vld [vmem:[%s618 + $0x80] sm:$0xff]
      %v636 = vld [vmem:[%s618 + $0x88] sm:$0xff]
      %v637 = vld [vmem:[%s618 + $0x90] sm:$0xff]
      %v638 = vld [vmem:[%s618 + $0x98] sm:$0xff]
      %v640 = vunpack.c.l.b16 %v272
      %v641 = vunpack.c.h.b16 %v272
      %v642 = vpack.c.b16 %v640, %v469
      %v643 = vpack.c.b16 %v641, %v470
      %v645 = vshrl.u32 %v642, 16
      %v647 = vshll.u32 %v642, 16
      %v649 = vrot.slane %v647, 1
      %v650 = vor.u32 %v645, %v649
      %v652 = vshrl.u32 %v643, 16
      %v654 = vshll.u32 %v643, 16
      %v656 = vrot.slane %v654, 1
      %v657 = vor.u32 %v652, %v656
      %v679 = vunpack.c.l.b16 %v619
      %v680 = vunpack.c.h.b16 %v619
      %v681 = vunpack.c.l.b16 %v620
      %v682 = vunpack.c.h.b16 %v620
      %v683 = vunpack.c.l.b16 %v621
      %v684 = vunpack.c.h.b16 %v621
      %v685 = vunpack.c.l.b16 %v622
      %v686 = vunpack.c.h.b16 %v622
      %v687 = vunpack.c.l.b16 %v623
      %v688 = vunpack.c.h.b16 %v623
      %v689 = vunpack.c.l.b16 %v624
      %v690 = vunpack.c.h.b16 %v624
      %v691 = vunpack.c.l.b16 %v625
      %v692 = vunpack.c.h.b16 %v625
      %v693 = vunpack.c.l.b16 %v626
      %v694 = vunpack.c.h.b16 %v626
      %v695 = vunpack.c.l.b16 %v627
      %v696 = vunpack.c.h.b16 %v627
      %v697 = vunpack.c.l.b16 %v628
      %v698 = vunpack.c.h.b16 %v628
      %v699 = vunpack.c.l.b16 %v629
      %v700 = vunpack.c.h.b16 %v629
      %v701 = vunpack.c.l.b16 %v630
      %v702 = vunpack.c.h.b16 %v630
      %v703 = vunpack.c.l.b16 %v631
      %v704 = vunpack.c.h.b16 %v631
      %v705 = vunpack.c.l.b16 %v632
      %v706 = vunpack.c.h.b16 %v632
      %v707 = vunpack.c.l.b16 %v633
      %v708 = vunpack.c.h.b16 %v633
      %v709 = vunpack.c.l.b16 %v634
      %v710 = vunpack.c.h.b16 %v634
      %v711 = vunpack.c.l.b16 %v635
      %v712 = vunpack.c.h.b16 %v635
      %v713 = vunpack.c.l.b16 %v636
      %v714 = vunpack.c.h.b16 %v636
      %v715 = vunpack.c.l.b16 %v637
      %v716 = vunpack.c.h.b16 %v637
      %v717 = vunpack.c.l.b16 %v638
      %v718 = vunpack.c.h.b16 %v638
      %v719 = vpack.c.b16 %v681, %v679
      %v720 = vpack.c.b16 %v682, %v680
      %v721 = vpack.c.b16 %v685, %v683
      %v722 = vpack.c.b16 %v686, %v684
      %v723 = vpack.c.b16 %v689, %v687
      %v724 = vpack.c.b16 %v690, %v688
      %v725 = vpack.c.b16 %v693, %v691
      %v726 = vpack.c.b16 %v694, %v692
      %v727 = vpack.c.b16 %v697, %v695
      %v728 = vpack.c.b16 %v698, %v696
      %v729 = vpack.c.b16 %v701, %v699
      %v730 = vpack.c.b16 %v702, %v700
      %v731 = vpack.c.b16 %v705, %v703
      %v732 = vpack.c.b16 %v706, %v704
      %v733 = vpack.c.b16 %v709, %v707
      %v734 = vpack.c.b16 %v710, %v708
      %v735 = vpack.c.b16 %v713, %v711
      %v736 = vpack.c.b16 %v714, %v712
      %v737 = vpack.c.b16 %v717, %v715
      %v738 = vpack.c.b16 %v718, %v716
      %v760 = vsel %vm423, %v657, 0
      %762 = vmatprep.subr.bf16.mxu0 %v720
      %763 = vmatpush1.bf16.msra.mxu0 %v719
      %764 = vmatprep.subr.bf16.mxu0 %v722
      %765 = vmatpush1.bf16.msra.mxu0 %v721
      %766 = vmatprep.subr.bf16.mxu0 %v724
      %767 = vmatpush1.bf16.msra.mxu0 %v723
      %768 = vmatprep.subr.bf16.mxu0 %v726
      %769 = vmatpush1.bf16.msra.mxu0 %v725
      %770 = vmatprep.subr.bf16.mxu0 %v728
      %771 = vmatpush1.bf16.msra.mxu0 %v727
      %772 = vmatprep.subr.bf16.mxu0 %v730
      %773 = vmatpush1.bf16.msra.mxu0 %v729
      %774 = vmatprep.subr.bf16.mxu0 %v732
      %775 = vmatpush1.bf16.msra.mxu0 %v731
      %776 = vmatprep.subr.bf16.mxu0 %v734
      %777 = vmatpush1.bf16.msra.mxu0 %v733
      %778 = vmatprep.subr.bf16.mxu0 %v736
      %779 = vmatpush1.bf16.msra.mxu0 %v735
      %780 = vmatprep.subr.bf16.mxu0 %v738
      %781 = vmatpush1.bf16.msra.mxu0 %v737
      %782 = vmatprep.subr.bf16.mxu0 0
      %783 = vmatpush1.bf16.msra.mxu0 0
      %784 = vmatprep.subr.bf16.mxu0 0
      %785 = vmatpush1.bf16.msra.mxu0 0
      %786 = vmatprep.subr.bf16.mxu0 0
      %787 = vmatpush1.bf16.msra.mxu0 0
      %788 = vmatprep.subr.bf16.mxu0 0
      %789 = vmatpush1.bf16.msra.mxu0 0
      %790 = vmatprep.subr.bf16.mxu0 0
      %791 = vmatpush1.bf16.msra.mxu0 0
      %792 = vmatprep.subr.bf16.mxu0 0
      %793 = vmatpush1.bf16.msra.mxu0 0
      %794 = vmatprep.mubr.bf16.mxu0 %v760
      %795 = vmatmul.mubr.bf16.gmra.mrb[0].mxu0 %v650
      %v796 = vpop.f32.mrb[0].mxu0
      %v797 = vadd.f32 0.0, %v796
      %v798 = vpop.f32.mrb[0].mxu0
      %v799 = vadd.f32 0.0, %v798
      %v800 = vpop.f32.mrb[0].mxu0
      %v801 = vpop.f32.mrb[0].mxu0
      %802 = vdwg.mxu0
      %v803 = vadd.f32 %v612, %v797
      %v804 = vadd.f32 %v614, %v799
      %s805 = scalar_lea.vmem %s3, 160
      %v806 = vld [vmem:[%s805] sm:$0xff]
      %v807 = vld [vmem:[%s805 + $0x8] sm:$0xff]
      %v808 = vld [vmem:[%s805 + $0x10] sm:$0xff]
      %v809 = vld [vmem:[%s805 + $0x18] sm:$0xff]
      %v810 = vld [vmem:[%s805 + $0x20] sm:$0xff]
      %v811 = vld [vmem:[%s805 + $0x28] sm:$0xff]
      %v812 = vld [vmem:[%s805 + $0x30] sm:$0xff]
      %v813 = vld [vmem:[%s805 + $0x38] sm:$0xff]
      %v814 = vld [vmem:[%s805 + $0x40] sm:$0xff]
      %v815 = vld [vmem:[%s805 + $0x48] sm:$0xff]
      %v816 = vld [vmem:[%s805 + $0x50] sm:$0xff]
      %v817 = vld [vmem:[%s805 + $0x58] sm:$0xff]
      %v818 = vld [vmem:[%s805 + $0x60] sm:$0xff]
      %v819 = vld [vmem:[%s805 + $0x68] sm:$0xff]
      %v820 = vld [vmem:[%s805 + $0x70] sm:$0xff]
      %v821 = vld [vmem:[%s805 + $0x78] sm:$0xff]
      %v822 = vld [vmem:[%s805 + $0x80] sm:$0xff]
      %v823 = vld [vmem:[%s805 + $0x88] sm:$0xff]
      %v824 = vld [vmem:[%s805 + $0x90] sm:$0xff]
      %v825 = vld [vmem:[%s805 + $0x98] sm:$0xff]
      %v827 = vunpack.c.l.b16 %v276
      %v828 = vunpack.c.h.b16 %v276
      %v829 = vpack.c.b16 %v827, %v318
      %v830 = vpack.c.b16 %v828, %v319
      %v832 = vshrl.u32 %v829, 16
      %v834 = vshll.u32 %v829, 16
      %v836 = vrot.slane %v834, 1
      %v837 = vor.u32 %v832, %v836
      %v839 = vshrl.u32 %v830, 16
      %v841 = vshll.u32 %v830, 16
      %v843 = vrot.slane %v841, 1
      %v844 = vor.u32 %v839, %v843
      %v866 = vunpack.c.l.b16 %v806
      %v867 = vunpack.c.h.b16 %v806
      %v868 = vunpack.c.l.b16 %v807
      %v869 = vunpack.c.h.b16 %v807
      %v870 = vunpack.c.l.b16 %v808
      %v871 = vunpack.c.h.b16 %v808
      %v872 = vunpack.c.l.b16 %v809
      %v873 = vunpack.c.h.b16 %v809
      %v874 = vunpack.c.l.b16 %v810
      %v875 = vunpack.c.h.b16 %v810
      %v876 = vunpack.c.l.b16 %v811
      %v877 = vunpack.c.h.b16 %v811
      %v878 = vunpack.c.l.b16 %v812
      %v879 = vunpack.c.h.b16 %v812
      %v880 = vunpack.c.l.b16 %v813
      %v881 = vunpack.c.h.b16 %v813
      %v882 = vunpack.c.l.b16 %v814
      %v883 = vunpack.c.h.b16 %v814
      %v884 = vunpack.c.l.b16 %v815
      %v885 = vunpack.c.h.b16 %v815
      %v886 = vunpack.c.l.b16 %v816
      %v887 = vunpack.c.h.b16 %v816
      %v888 = vunpack.c.l.b16 %v817
      %v889 = vunpack.c.h.b16 %v817
      %v890 = vunpack.c.l.b16 %v818
      %v891 = vunpack.c.h.b16 %v818
      %v892 = vunpack.c.l.b16 %v819
      %v893 = vunpack.c.h.b16 %v819
      %v894 = vunpack.c.l.b16 %v820
      %v895 = vunpack.c.h.b16 %v820
      %v896 = vunpack.c.l.b16 %v821
      %v897 = vunpack.c.h.b16 %v821
      %v898 = vunpack.c.l.b16 %v822
      %v899 = vunpack.c.h.b16 %v822
      %v900 = vunpack.c.l.b16 %v823
      %v901 = vunpack.c.h.b16 %v823
      %v902 = vunpack.c.l.b16 %v824
      %v903 = vunpack.c.h.b16 %v824
      %v904 = vunpack.c.l.b16 %v825
      %v905 = vunpack.c.h.b16 %v825
      %v906 = vpack.c.b16 %v868, %v866
      %v907 = vpack.c.b16 %v869, %v867
      %v908 = vpack.c.b16 %v872, %v870
      %v909 = vpack.c.b16 %v873, %v871
      %v910 = vpack.c.b16 %v876, %v874
      %v911 = vpack.c.b16 %v877, %v875
      %v912 = vpack.c.b16 %v880, %v878
      %v913 = vpack.c.b16 %v881, %v879
      %v914 = vpack.c.b16 %v884, %v882
      %v915 = vpack.c.b16 %v885, %v883
      %v916 = vpack.c.b16 %v888, %v886
      %v917 = vpack.c.b16 %v889, %v887
      %v918 = vpack.c.b16 %v892, %v890
      %v919 = vpack.c.b16 %v893, %v891
      %v920 = vpack.c.b16 %v896, %v894
      %v921 = vpack.c.b16 %v897, %v895
      %v922 = vpack.c.b16 %v900, %v898
      %v923 = vpack.c.b16 %v901, %v899
      %v924 = vpack.c.b16 %v904, %v902
      %v925 = vpack.c.b16 %v905, %v903
      %v947 = vsel %vm423, %v844, 0
      %949 = vmatprep.subr.bf16.mxu0 %v907
      %950 = vmatpush1.bf16.msra.mxu0 %v906
      %951 = vmatprep.subr.bf16.mxu0 %v909
      %952 = vmatpush1.bf16.msra.mxu0 %v908
      %953 = vmatprep.subr.bf16.mxu0 %v911
      %954 = vmatpush1.bf16.msra.mxu0 %v910
      %955 = vmatprep.subr.bf16.mxu0 %v913
      %956 = vmatpush1.bf16.msra.mxu0 %v912
      %957 = vmatprep.subr.bf16.mxu0 %v915
      %958 = vmatpush1.bf16.msra.mxu0 %v914
      %959 = vmatprep.subr.bf16.mxu0 %v917
      %960 = vmatpush1.bf16.msra.mxu0 %v916
      %961 = vmatprep.subr.bf16.mxu0 %v919
      %962 = vmatpush1.bf16.msra.mxu0 %v918
      %963 = vmatprep.subr.bf16.mxu0 %v921
      %964 = vmatpush1.bf16.msra.mxu0 %v920
      %965 = vmatprep.subr.bf16.mxu0 %v923
      %966 = vmatpush1.bf16.msra.mxu0 %v922
      %967 = vmatprep.subr.bf16.mxu0 %v925
      %968 = vmatpush1.bf16.msra.mxu0 %v924
      %969 = vmatprep.subr.bf16.mxu0 0
      %970 = vmatpush1.bf16.msra.mxu0 0
      %971 = vmatprep.subr.bf16.mxu0 0
      %972 = vmatpush1.bf16.msra.mxu0 0
      %973 = vmatprep.subr.bf16.mxu0 0
      %974 = vmatpush1.bf16.msra.mxu0 0
      %975 = vmatprep.subr.bf16.mxu0 0
      %976 = vmatpush1.bf16.msra.mxu0 0
      %977 = vmatprep.subr.bf16.mxu0 0
      %978 = vmatpush1.bf16.msra.mxu0 0
      %979 = vmatprep.subr.bf16.mxu0 0
      %980 = vmatpush1.bf16.msra.mxu0 0
      %981 = vmatprep.mubr.bf16.mxu0 %v947
      %982 = vmatmul.mubr.bf16.gmra.mrb[0].mxu0 %v837
      %v983 = vpop.f32.mrb[0].mxu0
      %v984 = vadd.f32 0.0, %v983
      %v985 = vpop.f32.mrb[0].mxu0
      %v986 = vadd.f32 0.0, %v985
      %v987 = vpop.f32.mrb[0].mxu0
      %v988 = vpop.f32.mrb[0].mxu0
      %989 = vdwg.mxu0
      %v990 = vadd.f32 %v803, %v984
      %v991 = vadd.f32 %v804, %v986
      %s992 = scalar_lea.vmem %s1, 320
      %v993 = vld [vmem:[%s992] sm:$0xff]
      %v994 = vld [vmem:[%s992 + $0x8] sm:$0xff]
      %v995 = vld [vmem:[%s992 + $0x10] sm:$0xff]
      %v996 = vld [vmem:[%s992 + $0x18] sm:$0xff]
      %v997 = vld [vmem:[%s992 + $0x20] sm:$0xff]
      %v998 = vld [vmem:[%s992 + $0x28] sm:$0xff]
      %v999 = vld [vmem:[%s992 + $0x30] sm:$0xff]
      %v1000 = vld [vmem:[%s992 + $0x38] sm:$0xff]
      %v1001 = vld [vmem:[%s992 + $0x40] sm:$0xff]
      %v1002 = vld [vmem:[%s992 + $0x48] sm:$0xff]
      %v1003 = vld [vmem:[%s992 + $0x50] sm:$0xff]
      %v1004 = vld [vmem:[%s992 + $0x58] sm:$0xff]
      %v1005 = vld [vmem:[%s992 + $0x60] sm:$0xff]
      %v1006 = vld [vmem:[%s992 + $0x68] sm:$0xff]
      %v1007 = vld [vmem:[%s992 + $0x70] sm:$0xff]
      %v1008 = vld [vmem:[%s992 + $0x78] sm:$0xff]
      %v1009 = vld [vmem:[%s992 + $0x80] sm:$0xff]
      %v1010 = vld [vmem:[%s992 + $0x88] sm:$0xff]
      %v1011 = vld [vmem:[%s992 + $0x90] sm:$0xff]
      %v1012 = vld [vmem:[%s992 + $0x98] sm:$0xff]
      %v1013 = vrot.slane %v642, 1
      %v1014 = vrot.slane %v643, 1
      %v1036 = vunpack.c.l.b16 %v993
      %v1037 = vunpack.c.h.b16 %v993
      %v1038 = vunpack.c.l.b16 %v994
      %v1039 = vunpack.c.h.b16 %v994
      %v1040 = vunpack.c.l.b16 %v995
      %v1041 = vunpack.c.h.b16 %v995
      %v1042 = vunpack.c.l.b16 %v996
      %v1043 = vunpack.c.h.b16 %v996
      %v1044 = vunpack.c.l.b16 %v997
      %v1045 = vunpack.c.h.b16 %v997
      %v1046 = vunpack.c.l.b16 %v998
      %v1047 = vunpack.c.h.b16 %v998
      %v1048 = vunpack.c.l.b16 %v999
      %v1049 = vunpack.c.h.b16 %v999
      %v1050 = vunpack.c.l.b16 %v1000
      %v1051 = vunpack.c.h.b16 %v1000
      %v1052 = vunpack.c.l.b16 %v1001
      %v1053 = vunpack.c.h.b16 %v1001
      %v1054 = vunpack.c.l.b16 %v1002
      %v1055 = vunpack.c.h.b16 %v1002
      %v1056 = vunpack.c.l.b16 %v1003
      %v1057 = vunpack.c.h.b16 %v1003
      %v1058 = vunpack.c.l.b16 %v1004
      %v1059 = vunpack.c.h.b16 %v1004
      %v1060 = vunpack.c.l.b16 %v1005
      %v1061 = vunpack.c.h.b16 %v1005
      %v1062 = vunpack.c.l.b16 %v1006
      %v1063 = vunpack.c.h.b16 %v1006
      %v1064 = vunpack.c.l.b16 %v1007
      %v1065 = vunpack.c.h.b16 %v1007
      %v1066 = vunpack.c.l.b16 %v1008
      %v1067 = vunpack.c.h.b16 %v1008
      %v1068 = vunpack.c.l.b16 %v1009
      %v1069 = vunpack.c.h.b16 %v1009
      %v1070 = vunpack.c.l.b16 %v1010
      %v1071 = vunpack.c.h.b16 %v1010
      %v1072 = vunpack.c.l.b16 %v1011
      %v1073 = vunpack.c.h.b16 %v1011
      %v1074 = vunpack.c.l.b16 %v1012
      %v1075 = vunpack.c.h.b16 %v1012
      %v1076 = vpack.c.b16 %v1038, %v1036
      %v1077 = vpack.c.b16 %v1039, %v1037
      %v1078 = vpack.c.b16 %v1042, %v1040
      %v1079 = vpack.c.b16 %v1043, %v1041
      %v1080 = vpack.c.b16 %v1046, %v1044
      %v1081 = vpack.c.b16 %v1047, %v1045
      %v1082 = vpack.c.b16 %v1050, %v1048
      %v1083 = vpack.c.b16 %v1051, %v1049
      %v1084 = vpack.c.b16 %v1054, %v1052
      %v1085 = vpack.c.b16 %v1055, %v1053
      %v1086 = vpack.c.b16 %v1058, %v1056
      %v1087 = vpack.c.b16 %v1059, %v1057
      %v1088 = vpack.c.b16 %v1062, %v1060
      %v1089 = vpack.c.b16 %v1063, %v1061
      %v1090 = vpack.c.b16 %v1066, %v1064
      %v1091 = vpack.c.b16 %v1067, %v1065
      %v1092 = vpack.c.b16 %v1070, %v1068
      %v1093 = vpack.c.b16 %v1071, %v1069
      %v1094 = vpack.c.b16 %v1074, %v1072
      %v1095 = vpack.c.b16 %v1075, %v1073
      %v1117 = vsel %vm423, %v1014, 0
      %1119 = vmatprep.subr.bf16.mxu0 %v1077
      %1120 = vmatpush1.bf16.msra.mxu0 %v1076
      %1121 = vmatprep.subr.bf16.mxu0 %v1079
      %1122 = vmatpush1.bf16.msra.mxu0 %v1078
      %1123 = vmatprep.subr.bf16.mxu0 %v1081
      %1124 = vmatpush1.bf16.msra.mxu0 %v1080
      %1125 = vmatprep.subr.bf16.mxu0 %v1083
      %1126 = vmatpush1.bf16.msra.mxu0 %v1082
      %1127 = vmatprep.subr.bf16.mxu0 %v1085
      %1128 = vmatpush1.bf16.msra.mxu0 %v1084
      %1129 = vmatprep.subr.bf16.mxu0 %v1087
      %1130 = vmatpush1.bf16.msra.mxu0 %v1086
      %1131 = vmatprep.subr.bf16.mxu0 %v1089
      %1132 = vmatpush1.bf16.msra.mxu0 %v1088
      %1133 = vmatprep.subr.bf16.mxu0 %v1091
      %1134 = vmatpush1.bf16.msra.mxu0 %v1090
      %1135 = vmatprep.subr.bf16.mxu0 %v1093
      %1136 = vmatpush1.bf16.msra.mxu0 %v1092
      %1137 = vmatprep.subr.bf16.mxu0 %v1095
      %1138 = vmatpush1.bf16.msra.mxu0 %v1094
      %1139 = vmatprep.subr.bf16.mxu0 0
      %1140 = vmatpush1.bf16.msra.mxu0 0
      %1141 = vmatprep.subr.bf16.mxu0 0
      %1142 = vmatpush1.bf16.msra.mxu0 0
      %1143 = vmatprep.subr.bf16.mxu0 0
      %1144 = vmatpush1.bf16.msra.mxu0 0
      %1145 = vmatprep.subr.bf16.mxu0 0
      %1146 = vmatpush1.bf16.msra.mxu0 0
      %1147 = vmatprep.subr.bf16.mxu0 0
      %1148 = vmatpush1.bf16.msra.mxu0 0
      %1149 = vmatprep.subr.bf16.mxu0 0
      %1150 = vmatpush1.bf16.msra.mxu0 0
      %1151 = vmatprep.mubr.bf16.mxu0 %v1117
      %1152 = vmatmul.mubr.bf16.gmra.mrb[0].mxu0 %v1013
      %v1153 = vpop.f32.mrb[0].mxu0
      %v1154 = vadd.f32 0.0, %v1153
      %v1155 = vpop.f32.mrb[0].mxu0
      %v1156 = vadd.f32 0.0, %v1155
      %v1157 = vpop.f32.mrb[0].mxu0
      %v1158 = vpop.f32.mrb[0].mxu0
      %1159 = vdwg.mxu0
      %v1160 = vadd.f32 %v990, %v1154
      %v1161 = vadd.f32 %v991, %v1156
      %s1162 = scalar_lea.vmem %s3, 320
      %v1163 = vld [vmem:[%s1162] sm:$0xff]
      %v1164 = vld [vmem:[%s1162 + $0x8] sm:$0xff]
      %v1165 = vld [vmem:[%s1162 + $0x10] sm:$0xff]
      %v1166 = vld [vmem:[%s1162 + $0x18] sm:$0xff]
      %v1167 = vld [vmem:[%s1162 + $0x20] sm:$0xff]
      %v1168 = vld [vmem:[%s1162 + $0x28] sm:$0xff]
      %v1169 = vld [vmem:[%s1162 + $0x30] sm:$0xff]
      %v1170 = vld [vmem:[%s1162 + $0x38] sm:$0xff]
      %v1171 = vld [vmem:[%s1162 + $0x40] sm:$0xff]
      %v1172 = vld [vmem:[%s1162 + $0x48] sm:$0xff]
      %v1173 = vld [vmem:[%s1162 + $0x50] sm:$0xff]
      %v1174 = vld [vmem:[%s1162 + $0x58] sm:$0xff]
      %v1175 = vld [vmem:[%s1162 + $0x60] sm:$0xff]
      %v1176 = vld [vmem:[%s1162 + $0x68] sm:$0xff]
      %v1177 = vld [vmem:[%s1162 + $0x70] sm:$0xff]
      %v1178 = vld [vmem:[%s1162 + $0x78] sm:$0xff]
      %v1179 = vld [vmem:[%s1162 + $0x80] sm:$0xff]
      %v1180 = vld [vmem:[%s1162 + $0x88] sm:$0xff]
      %v1181 = vld [vmem:[%s1162 + $0x90] sm:$0xff]
      %v1182 = vld [vmem:[%s1162 + $0x98] sm:$0xff]
      %v1183 = vrot.slane %v829, 1
      %v1184 = vrot.slane %v830, 1
      %v1206 = vunpack.c.l.b16 %v1163
      %v1207 = vunpack.c.h.b16 %v1163
      %v1208 = vunpack.c.l.b16 %v1164
      %v1209 = vunpack.c.h.b16 %v1164
      %v1210 = vunpack.c.l.b16 %v1165
      %v1211 = vunpack.c.h.b16 %v1165
      %v1212 = vunpack.c.l.b16 %v1166
      %v1213 = vunpack.c.h.b16 %v1166
      %v1214 = vunpack.c.l.b16 %v1167
      %v1215 = vunpack.c.h.b16 %v1167
      %v1216 = vunpack.c.l.b16 %v1168
      %v1217 = vunpack.c.h.b16 %v1168
      %v1218 = vunpack.c.l.b16 %v1169
      %v1219 = vunpack.c.h.b16 %v1169
      %v1220 = vunpack.c.l.b16 %v1170
      %v1221 = vunpack.c.h.b16 %v1170
      %v1222 = vunpack.c.l.b16 %v1171
      %v1223 = vunpack.c.h.b16 %v1171
      %v1224 = vunpack.c.l.b16 %v1172
      %v1225 = vunpack.c.h.b16 %v1172
      %v1226 = vunpack.c.l.b16 %v1173
      %v1227 = vunpack.c.h.b16 %v1173
      %v1228 = vunpack.c.l.b16 %v1174
      %v1229 = vunpack.c.h.b16 %v1174
      %v1230 = vunpack.c.l.b16 %v1175
      %v1231 = vunpack.c.h.b16 %v1175
      %v1232 = vunpack.c.l.b16 %v1176
      %v1233 = vunpack.c.h.b16 %v1176
      %v1234 = vunpack.c.l.b16 %v1177
      %v1235 = vunpack.c.h.b16 %v1177
      %v1236 = vunpack.c.l.b16 %v1178
      %v1237 = vunpack.c.h.b16 %v1178
      %v1238 = vunpack.c.l.b16 %v1179
      %v1239 = vunpack.c.h.b16 %v1179
      %v1240 = vunpack.c.l.b16 %v1180
      %v1241 = vunpack.c.h.b16 %v1180
      %v1242 = vunpack.c.l.b16 %v1181
      %v1243 = vunpack.c.h.b16 %v1181
      %v1244 = vunpack.c.l.b16 %v1182
      %v1245 = vunpack.c.h.b16 %v1182
      %v1246 = vpack.c.b16 %v1208, %v1206
      %v1247 = vpack.c.b16 %v1209, %v1207
      %v1248 = vpack.c.b16 %v1212, %v1210
      %v1249 = vpack.c.b16 %v1213, %v1211
      %v1250 = vpack.c.b16 %v1216, %v1214
      %v1251 = vpack.c.b16 %v1217, %v1215
      %v1252 = vpack.c.b16 %v1220, %v1218
      %v1253 = vpack.c.b16 %v1221, %v1219
      %v1254 = vpack.c.b16 %v1224, %v1222
      %v1255 = vpack.c.b16 %v1225, %v1223
      %v1256 = vpack.c.b16 %v1228, %v1226
      %v1257 = vpack.c.b16 %v1229, %v1227
      %v1258 = vpack.c.b16 %v1232, %v1230
      %v1259 = vpack.c.b16 %v1233, %v1231
      %v1260 = vpack.c.b16 %v1236, %v1234
      %v1261 = vpack.c.b16 %v1237, %v1235
      %v1262 = vpack.c.b16 %v1240, %v1238
      %v1263 = vpack.c.b16 %v1241, %v1239
      %v1264 = vpack.c.b16 %v1244, %v1242
      %v1265 = vpack.c.b16 %v1245, %v1243
      %v1287 = vsel %vm423, %v1184, 0
      %1289 = vmatprep.subr.bf16.mxu0 %v1247
      %1290 = vmatpush1.bf16.msra.mxu0 %v1246
      %1291 = vmatprep.subr.bf16.mxu0 %v1249
      %1292 = vmatpush1.bf16.msra.mxu0 %v1248
      %1293 = vmatprep.subr.bf16.mxu0 %v1251
      %1294 = vmatpush1.bf16.msra.mxu0 %v1250
      %1295 = vmatprep.subr.bf16.mxu0 %v1253
      %1296 = vmatpush1.bf16.msra.mxu0 %v1252
      %1297 = vmatprep.subr.bf16.mxu0 %v1255
      %1298 = vmatpush1.bf16.msra.mxu0 %v1254
      %1299 = vmatprep.subr.bf16.mxu0 %v1257
      %1300 = vmatpush1.bf16.msra.mxu0 %v1256
      %1301 = vmatprep.subr.bf16.mxu0 %v1259
      %1302 = vmatpush1.bf16.msra.mxu0 %v1258
      %1303 = vmatprep.subr.bf16.mxu0 %v1261
      %1304 = vmatpush1.bf16.msra.mxu0 %v1260
      %1305 = vmatprep.subr.bf16.mxu0 %v1263
      %1306 = vmatpush1.bf16.msra.mxu0 %v1262
      %1307 = vmatprep.subr.bf16.mxu0 %v1265
      %1308 = vmatpush1.bf16.msra.mxu0 %v1264
      %1309 = vmatprep.subr.bf16.mxu0 0
      %1310 = vmatpush1.bf16.msra.mxu0 0
      %1311 = vmatprep.subr.bf16.mxu0 0
      %1312 = vmatpush1.bf16.msra.mxu0 0
      %1313 = vmatprep.subr.bf16.mxu0 0
      %1314 = vmatpush1.bf16.msra.mxu0 0
      %1315 = vmatprep.subr.bf16.mxu0 0
      %1316 = vmatpush1.bf16.msra.mxu0 0
      %1317 = vmatprep.subr.bf16.mxu0 0
      %1318 = vmatpush1.bf16.msra.mxu0 0
      %1319 = vmatprep.subr.bf16.mxu0 0
      %1320 = vmatpush1.bf16.msra.mxu0 0
      %1321 = vmatprep.mubr.bf16.mxu0 %v1287
      %1322 = vmatmul.mubr.bf16.gmra.mrb[0].mxu0 %v1183
      %v1323 = vpop.f32.mrb[0].mxu0
      %v1324 = vadd.f32 0.0, %v1323
      %v1325 = vpop.f32.mrb[0].mxu0
      %v1326 = vadd.f32 0.0, %v1325
      %v1327 = vpop.f32.mrb[0].mxu0
      %v1328 = vpop.f32.mrb[0].mxu0
      %1329 = vdwg.mxu0
      %v1330 = vadd.f32 %v1160, %v1324
      %v1331 = vadd.f32 %v1161, %v1326
      %s1332 = sadd.s32 %s21, 1
      %s1333 = smul.u32 %s1332, 4
      %s1334 = smul.addr %s1333, 4
      %s1335 = scalar_lea.vmem %s252, %s1334
      %v1336 = vld [vmem:[%s1335] sm:$0xff]
      %v1337 = vld [vmem:[%s1335 + $0x8] sm:$0x11]
      %s1338 = smul.addr %s1333, 4
      %s1339 = scalar_lea.vmem %s257, %s1338
      %v1340 = vld [vmem:[%s1339] sm:$0xff]
      %v1341 = vld [vmem:[%s1339 + $0x8] sm:$0x11]
      %s1342 = scalar_lea.vmem %s1, 480
      %v1343 = vld [vmem:[%s1342] sm:$0xff]
      %v1344 = vld [vmem:[%s1342 + $0x8] sm:$0xff]
      %v1345 = vld [vmem:[%s1342 + $0x10] sm:$0xff]
      %v1346 = vld [vmem:[%s1342 + $0x18] sm:$0xff]
      %v1347 = vld [vmem:[%s1342 + $0x20] sm:$0xff]
      %v1348 = vld [vmem:[%s1342 + $0x28] sm:$0xff]
      %v1349 = vld [vmem:[%s1342 + $0x30] sm:$0xff]
      %v1350 = vld [vmem:[%s1342 + $0x38] sm:$0xff]
      %v1351 = vld [vmem:[%s1342 + $0x40] sm:$0xff]
      %v1352 = vld [vmem:[%s1342 + $0x48] sm:$0xff]
      %v1353 = vld [vmem:[%s1342 + $0x50] sm:$0xff]
      %v1354 = vld [vmem:[%s1342 + $0x58] sm:$0xff]
      %v1355 = vld [vmem:[%s1342 + $0x60] sm:$0xff]
      %v1356 = vld [vmem:[%s1342 + $0x68] sm:$0xff]
      %v1357 = vld [vmem:[%s1342 + $0x70] sm:$0xff]
      %v1358 = vld [vmem:[%s1342 + $0x78] sm:$0xff]
      %v1359 = vld [vmem:[%s1342 + $0x80] sm:$0xff]
      %v1360 = vld [vmem:[%s1342 + $0x88] sm:$0xff]
      %v1361 = vld [vmem:[%s1342 + $0x90] sm:$0xff]
      %v1362 = vld [vmem:[%s1342 + $0x98] sm:$0xff]
      %v1364 = vunpack.c.l.b16 %v1336
      %v1365 = vunpack.c.h.b16 %v1336
      %v1366 = vpack.c.b16 %v1364, %v1364
      %v1367 = vpack.c.b16 %v1365, %v1365
      %v1389 = vunpack.c.l.b16 %v1343
      %v1390 = vunpack.c.h.b16 %v1343
      %v1391 = vunpack.c.l.b16 %v1344
      %v1392 = vunpack.c.h.b16 %v1344
      %v1393 = vunpack.c.l.b16 %v1345
      %v1394 = vunpack.c.h.b16 %v1345
      %v1395 = vunpack.c.l.b16 %v1346
      %v1396 = vunpack.c.h.b16 %v1346
      %v1397 = vunpack.c.l.b16 %v1347
      %v1398 = vunpack.c.h.b16 %v1347
      %v1399 = vunpack.c.l.b16 %v1348
      %v1400 = vunpack.c.h.b16 %v1348
      %v1401 = vunpack.c.l.b16 %v1349
      %v1402 = vunpack.c.h.b16 %v1349
      %v1403 = vunpack.c.l.b16 %v1350
      %v1404 = vunpack.c.h.b16 %v1350
      %v1405 = vunpack.c.l.b16 %v1351
      %v1406 = vunpack.c.h.b16 %v1351
      %v1407 = vunpack.c.l.b16 %v1352
      %v1408 = vunpack.c.h.b16 %v1352
      %v1409 = vunpack.c.l.b16 %v1353
      %v1410 = vunpack.c.h.b16 %v1353
      %v1411 = vunpack.c.l.b16 %v1354
      %v1412 = vunpack.c.h.b16 %v1354
      %v1413 = vunpack.c.l.b16 %v1355
      %v1414 = vunpack.c.h.b16 %v1355
      %v1415 = vunpack.c.l.b16 %v1356
      %v1416 = vunpack.c.h.b16 %v1356
      %v1417 = vunpack.c.l.b16 %v1357
      %v1418 = vunpack.c.h.b16 %v1357
      %v1419 = vunpack.c.l.b16 %v1358
      %v1420 = vunpack.c.h.b16 %v1358
      %v1421 = vunpack.c.l.b16 %v1359
      %v1422 = vunpack.c.h.b16 %v1359
      %v1423 = vunpack.c.l.b16 %v1360
      %v1424 = vunpack.c.h.b16 %v1360
      %v1425 = vunpack.c.l.b16 %v1361
      %v1426 = vunpack.c.h.b16 %v1361
      %v1427 = vunpack.c.l.b16 %v1362
      %v1428 = vunpack.c.h.b16 %v1362
      %v1429 = vpack.c.b16 %v1391, %v1389
      %v1430 = vpack.c.b16 %v1392, %v1390
      %v1431 = vpack.c.b16 %v1395, %v1393
      %v1432 = vpack.c.b16 %v1396, %v1394
      %v1433 = vpack.c.b16 %v1399, %v1397
      %v1434 = vpack.c.b16 %v1400, %v1398
      %v1435 = vpack.c.b16 %v1403, %v1401
      %v1436 = vpack.c.b16 %v1404, %v1402
      %v1437 = vpack.c.b16 %v1407, %v1405
      %v1438 = vpack.c.b16 %v1408, %v1406
      %v1439 = vpack.c.b16 %v1411, %v1409
      %v1440 = vpack.c.b16 %v1412, %v1410
      %v1441 = vpack.c.b16 %v1415, %v1413
      %v1442 = vpack.c.b16 %v1416, %v1414
      %v1443 = vpack.c.b16 %v1419, %v1417
      %v1444 = vpack.c.b16 %v1420, %v1418
      %v1445 = vpack.c.b16 %v1423, %v1421
      %v1446 = vpack.c.b16 %v1424, %v1422
      %v1447 = vpack.c.b16 %v1427, %v1425
      %v1448 = vpack.c.b16 %v1428, %v1426
      %v1470 = vsel %vm423, %v1367, 0
      %1472 = vmatprep.subr.bf16.mxu0 %v1430
      %1473 = vmatpush1.bf16.msra.mxu0 %v1429
      %1474 = vmatprep.subr.bf16.mxu0 %v1432
      %1475 = vmatpush1.bf16.msra.mxu0 %v1431
      %1476 = vmatprep.subr.bf16.mxu0 %v1434
      %1477 = vmatpush1.bf16.msra.mxu0 %v1433
      %1478 = vmatprep.subr.bf16.mxu0 %v1436
      %1479 = vmatpush1.bf16.msra.mxu0 %v1435
      %1480 = vmatprep.subr.bf16.mxu0 %v1438
      %1481 = vmatpush1.bf16.msra.mxu0 %v1437
      %1482 = vmatprep.subr.bf16.mxu0 %v1440
      %1483 = vmatpush1.bf16.msra.mxu0 %v1439
      %1484 = vmatprep.subr.bf16.mxu0 %v1442
      %1485 = vmatpush1.bf16.msra.mxu0 %v1441
      %1486 = vmatprep.subr.bf16.mxu0 %v1444
      %1487 = vmatpush1.bf16.msra.mxu0 %v1443
      %1488 = vmatprep.subr.bf16.mxu0 %v1446
      %1489 = vmatpush1.bf16.msra.mxu0 %v1445
      %1490 = vmatprep.subr.bf16.mxu0 %v1448
      %1491 = vmatpush1.bf16.msra.mxu0 %v1447
      %1492 = vmatprep.subr.bf16.mxu0 0
      %1493 = vmatpush1.bf16.msra.mxu0 0
      %1494 = vmatprep.subr.bf16.mxu0 0
      %1495 = vmatpush1.bf16.msra.mxu0 0
      %1496 = vmatprep.subr.bf16.mxu0 0
      %1497 = vmatpush1.bf16.msra.mxu0 0
      %1498 = vmatprep.subr.bf16.mxu0 0
      %1499 = vmatpush1.bf16.msra.mxu0 0
      %1500 = vmatprep.subr.bf16.mxu0 0
      %1501 = vmatpush1.bf16.msra.mxu0 0
      %1502 = vmatprep.subr.bf16.mxu0 0
      %1503 = vmatpush1.bf16.msra.mxu0 0
      %1504 = vmatprep.mubr.bf16.mxu0 %v1470
      %1505 = vmatmul.mubr.bf16.gmra.mrb[0].mxu0 %v1366
      %v1506 = vpop.f32.mrb[0].mxu0
      %v1507 = vadd.f32 0.0, %v1506
      %v1508 = vpop.f32.mrb[0].mxu0
      %v1509 = vadd.f32 0.0, %v1508
      %v1510 = vpop.f32.mrb[0].mxu0
      %v1511 = vpop.f32.mrb[0].mxu0
      %1512 = vdwg.mxu0
      %v1513 = vadd.f32 %v1330, %v1507
      %v1514 = vadd.f32 %v1331, %v1509
      %s1515 = scalar_lea.vmem %s3, 480
      %v1516 = vld [vmem:[%s1515] sm:$0xff]
      %v1517 = vld [vmem:[%s1515 + $0x8] sm:$0xff]
      %v1518 = vld [vmem:[%s1515 + $0x10] sm:$0xff]
      %v1519 = vld [vmem:[%s1515 + $0x18] sm:$0xff]
      %v1520 = vld [vmem:[%s1515 + $0x20] sm:$0xff]
      %v1521 = vld [vmem:[%s1515 + $0x28] sm:$0xff]
      %v1522 = vld [vmem:[%s1515 + $0x30] sm:$0xff]
      %v1523 = vld [vmem:[%s1515 + $0x38] sm:$0xff]
      %v1524 = vld [vmem:[%s1515 + $0x40] sm:$0xff]
      %v1525 = vld [vmem:[%s1515 + $0x48] sm:$0xff]
      %v1526 = vld [vmem:[%s1515 + $0x50] sm:$0xff]
      %v1527 = vld [vmem:[%s1515 + $0x58] sm:$0xff]
      %v1528 = vld [vmem:[%s1515 + $0x60] sm:$0xff]
      %v1529 = vld [vmem:[%s1515 + $0x68] sm:$0xff]
      %v1530 = vld [vmem:[%s1515 + $0x70] sm:$0xff]
      %v1531 = vld [vmem:[%s1515 + $0x78] sm:$0xff]
      %v1532 = vld [vmem:[%s1515 + $0x80] sm:$0xff]
      %v1533 = vld [vmem:[%s1515 + $0x88] sm:$0xff]
      %v1534 = vld [vmem:[%s1515 + $0x90] sm:$0xff]
      %v1535 = vld [vmem:[%s1515 + $0x98] sm:$0xff]
      %v1537 = vunpack.c.l.b16 %v1340
      %v1538 = vunpack.c.h.b16 %v1340
      %v1539 = vpack.c.b16 %v1537, %v1537
      %v1540 = vpack.c.b16 %v1538, %v1538
      %v1562 = vunpack.c.l.b16 %v1516
      %v1563 = vunpack.c.h.b16 %v1516
      %v1564 = vunpack.c.l.b16 %v1517
      %v1565 = vunpack.c.h.b16 %v1517
      %v1566 = vunpack.c.l.b16 %v1518
      %v1567 = vunpack.c.h.b16 %v1518
      %v1568 = vunpack.c.l.b16 %v1519
      %v1569 = vunpack.c.h.b16 %v1519
      %v1570 = vunpack.c.l.b16 %v1520
      %v1571 = vunpack.c.h.b16 %v1520
      %v1572 = vunpack.c.l.b16 %v1521
      %v1573 = vunpack.c.h.b16 %v1521
      %v1574 = vunpack.c.l.b16 %v1522
      %v1575 = vunpack.c.h.b16 %v1522
      %v1576 = vunpack.c.l.b16 %v1523
      %v1577 = vunpack.c.h.b16 %v1523
      %v1578 = vunpack.c.l.b16 %v1524
      %v1579 = vunpack.c.h.b16 %v1524
      %v1580 = vunpack.c.l.b16 %v1525
      %v1581 = vunpack.c.h.b16 %v1525
      %v1582 = vunpack.c.l.b16 %v1526
      %v1583 = vunpack.c.h.b16 %v1526
      %v1584 = vunpack.c.l.b16 %v1527
      %v1585 = vunpack.c.h.b16 %v1527
      %v1586 = vunpack.c.l.b16 %v1528
      %v1587 = vunpack.c.h.b16 %v1528
      %v1588 = vunpack.c.l.b16 %v1529
      %v1589 = vunpack.c.h.b16 %v1529
      %v1590 = vunpack.c.l.b16 %v1530
      %v1591 = vunpack.c.h.b16 %v1530
      %v1592 = vunpack.c.l.b16 %v1531
      %v1593 = vunpack.c.h.b16 %v1531
      %v1594 = vunpack.c.l.b16 %v1532
      %v1595 = vunpack.c.h.b16 %v1532
      %v1596 = vunpack.c.l.b16 %v1533
      %v1597 = vunpack.c.h.b16 %v1533
      %v1598 = vunpack.c.l.b16 %v1534
      %v1599 = vunpack.c.h.b16 %v1534
      %v1600 = vunpack.c.l.b16 %v1535
      %v1601 = vunpack.c.h.b16 %v1535
      %v1602 = vpack.c.b16 %v1564, %v1562
      %v1603 = vpack.c.b16 %v1565, %v1563
      %v1604 = vpack.c.b16 %v1568, %v1566
      %v1605 = vpack.c.b16 %v1569, %v1567
      %v1606 = vpack.c.b16 %v1572, %v1570
      %v1607 = vpack.c.b16 %v1573, %v1571
      %v1608 = vpack.c.b16 %v1576, %v1574
      %v1609 = vpack.c.b16 %v1577, %v1575
      %v1610 = vpack.c.b16 %v1580, %v1578
      %v1611 = vpack.c.b16 %v1581, %v1579
      %v1612 = vpack.c.b16 %v1584, %v1582
      %v1613 = vpack.c.b16 %v1585, %v1583
      %v1614 = vpack.c.b16 %v1588, %v1586
      %v1615 = vpack.c.b16 %v1589, %v1587
      %v1616 = vpack.c.b16 %v1592, %v1590
      %v1617 = vpack.c.b16 %v1593, %v1591
      %v1618 = vpack.c.b16 %v1596, %v1594
      %v1619 = vpack.c.b16 %v1597, %v1595
      %v1620 = vpack.c.b16 %v1600, %v1598
      %v1621 = vpack.c.b16 %v1601, %v1599
      %v1643 = vsel %vm423, %v1540, 0
      %1645 = vmatprep.subr.bf16.mxu0 %v1603
      %1646 = vmatpush1.bf16.msra.mxu0 %v1602
      %1647 = vmatprep.subr.bf16.mxu0 %v1605
      %1648 = vmatpush1.bf16.msra.mxu0 %v1604
      %1649 = vmatprep.subr.bf16.mxu0 %v1607
      %1650 = vmatpush1.bf16.msra.mxu0 %v1606
      %1651 = vmatprep.subr.bf16.mxu0 %v1609
      %1652 = vmatpush1.bf16.msra.mxu0 %v1608
      %1653 = vmatprep.subr.bf16.mxu0 %v1611
      %1654 = vmatpush1.bf16.msra.mxu0 %v1610
      %1655 = vmatprep.subr.bf16.mxu0 %v1613
      %1656 = vmatpush1.bf16.msra.mxu0 %v1612
      %1657 = vmatprep.subr.bf16.mxu0 %v1615
      %1658 = vmatpush1.bf16.msra.mxu0 %v1614
      %1659 = vmatprep.subr.bf16.mxu0 %v1617
      %1660 = vmatpush1.bf16.msra.mxu0 %v1616
      %1661 = vmatprep.subr.bf16.mxu0 %v1619
      %1662 = vmatpush1.bf16.msra.mxu0 %v1618
      %1663 = vmatprep.subr.bf16.mxu0 %v1621
      %1664 = vmatpush1.bf16.msra.mxu0 %v1620
      %1665 = vmatprep.subr.bf16.mxu0 0
      %1666 = vmatpush1.bf16.msra.mxu0 0
      %1667 = vmatprep.subr.bf16.mxu0 0
      %1668 = vmatpush1.bf16.msra.mxu0 0
      %1669 = vmatprep.subr.bf16.mxu0 0
      %1670 = vmatpush1.bf16.msra.mxu0 0
      %1671 = vmatprep.subr.bf16.mxu0 0
      %1672 = vmatpush1.bf16.msra.mxu0 0
      %1673 = vmatprep.subr.bf16.mxu0 0
      %1674 = vmatpush1.bf16.msra.mxu0 0
      %1675 = vmatprep.subr.bf16.mxu0 0
      %1676 = vmatpush1.bf16.msra.mxu0 0
      %1677 = vmatprep.mubr.bf16.mxu0 %v1643
      %1678 = vmatmul.mubr.bf16.gmra.mrb[0].mxu0 %v1539
      %v1679 = vpop.f32.mrb[0].mxu0
      %v1680 = vadd.f32 0.0, %v1679
      %v1681 = vpop.f32.mrb[0].mxu0
      %v1682 = vadd.f32 0.0, %v1681
      %v1683 = vpop.f32.mrb[0].mxu0
      %v1684 = vpop.f32.mrb[0].mxu0
      %1685 = vdwg.mxu0
      %v1686 = vadd.f32 %v1513, %v1680
      %v1687 = vadd.f32 %v1514, %v1682
      %s1688 = scalar_lea.vmem %s1, 640
      %v1689 = vld [vmem:[%s1688] sm:$0xff]
      %v1690 = vld [vmem:[%s1688 + $0x8] sm:$0xff]
      %v1691 = vld [vmem:[%s1688 + $0x10] sm:$0xff]
      %v1692 = vld [vmem:[%s1688 + $0x18] sm:$0xff]
      %v1693 = vld [vmem:[%s1688 + $0x20] sm:$0xff]
      %v1694 = vld [vmem:[%s1688 + $0x28] sm:$0xff]
      %v1695 = vld [vmem:[%s1688 + $0x30] sm:$0xff]
      %v1696 = vld [vmem:[%s1688 + $0x38] sm:$0xff]
      %v1697 = vld [vmem:[%s1688 + $0x40] sm:$0xff]
      %v1698 = vld [vmem:[%s1688 + $0x48] sm:$0xff]
      %v1699 = vld [vmem:[%s1688 + $0x50] sm:$0xff]
      %v1700 = vld [vmem:[%s1688 + $0x58] sm:$0xff]
      %v1701 = vld [vmem:[%s1688 + $0x60] sm:$0xff]
      %v1702 = vld [vmem:[%s1688 + $0x68] sm:$0xff]
      %v1703 = vld [vmem:[%s1688 + $0x70] sm:$0xff]
      %v1704 = vld [vmem:[%s1688 + $0x78] sm:$0xff]
      %v1705 = vld [vmem:[%s1688 + $0x80] sm:$0xff]
      %v1706 = vld [vmem:[%s1688 + $0x88] sm:$0xff]
      %v1707 = vld [vmem:[%s1688 + $0x90] sm:$0xff]
      %v1708 = vld [vmem:[%s1688 + $0x98] sm:$0xff]
      %v1710 = vunpack.c.l.b16 %v1337
      %v1711 = vunpack.c.h.b16 %v1337
      %v1712 = vpack.c.b16 %v1710, %v1364
      %v1713 = vpack.c.b16 %v1711, %v1365
      %v1715 = vshrl.u32 %v1712, 16
      %v1717 = vshll.u32 %v1712, 16
      %v1719 = vrot.slane %v1717, 1
      %v1720 = vor.u32 %v1715, %v1719
      %v1722 = vshrl.u32 %v1713, 16
      %v1724 = vshll.u32 %v1713, 16
      %v1726 = vrot.slane %v1724, 1
      %v1727 = vor.u32 %v1722, %v1726
      %v1749 = vunpack.c.l.b16 %v1689
      %v1750 = vunpack.c.h.b16 %v1689
      %v1751 = vunpack.c.l.b16 %v1690
      %v1752 = vunpack.c.h.b16 %v1690
      %v1753 = vunpack.c.l.b16 %v1691
      %v1754 = vunpack.c.h.b16 %v1691
      %v1755 = vunpack.c.l.b16 %v1692
      %v1756 = vunpack.c.h.b16 %v1692
      %v1757 = vunpack.c.l.b16 %v1693
      %v1758 = vunpack.c.h.b16 %v1693
      %v1759 = vunpack.c.l.b16 %v1694
      %v1760 = vunpack.c.h.b16 %v1694
      %v1761 = vunpack.c.l.b16 %v1695
      %v1762 = vunpack.c.h.b16 %v1695
      %v1763 = vunpack.c.l.b16 %v1696
      %v1764 = vunpack.c.h.b16 %v1696
      %v1765 = vunpack.c.l.b16 %v1697
      %v1766 = vunpack.c.h.b16 %v1697
      %v1767 = vunpack.c.l.b16 %v1698
      %v1768 = vunpack.c.h.b16 %v1698
      %v1769 = vunpack.c.l.b16 %v1699
      %v1770 = vunpack.c.h.b16 %v1699
      %v1771 = vunpack.c.l.b16 %v1700
      %v1772 = vunpack.c.h.b16 %v1700
      %v1773 = vunpack.c.l.b16 %v1701
      %v1774 = vunpack.c.h.b16 %v1701
      %v1775 = vunpack.c.l.b16 %v1702
      %v1776 = vunpack.c.h.b16 %v1702
      %v1777 = vunpack.c.l.b16 %v1703
      %v1778 = vunpack.c.h.b16 %v1703
      %v1779 = vunpack.c.l.b16 %v1704
      %v1780 = vunpack.c.h.b16 %v1704
      %v1781 = vunpack.c.l.b16 %v1705
      %v1782 = vunpack.c.h.b16 %v1705
      %v1783 = vunpack.c.l.b16 %v1706
      %v1784 = vunpack.c.h.b16 %v1706
      %v1785 = vunpack.c.l.b16 %v1707
      %v1786 = vunpack.c.h.b16 %v1707
      %v1787 = vunpack.c.l.b16 %v1708
      %v1788 = vunpack.c.h.b16 %v1708
      %v1789 = vpack.c.b16 %v1751, %v1749
      %v1790 = vpack.c.b16 %v1752, %v1750
      %v1791 = vpack.c.b16 %v1755, %v1753
      %v1792 = vpack.c.b16 %v1756, %v1754
      %v1793 = vpack.c.b16 %v1759, %v1757
      %v1794 = vpack.c.b16 %v1760, %v1758
      %v1795 = vpack.c.b16 %v1763, %v1761
      %v1796 = vpack.c.b16 %v1764, %v1762
      %v1797 = vpack.c.b16 %v1767, %v1765
      %v1798 = vpack.c.b16 %v1768, %v1766
      %v1799 = vpack.c.b16 %v1771, %v1769
      %v1800 = vpack.c.b16 %v1772, %v1770
      %v1801 = vpack.c.b16 %v1775, %v1773
      %v1802 = vpack.c.b16 %v1776, %v1774
      %v1803 = vpack.c.b16 %v1779, %v1777
      %v1804 = vpack.c.b16 %v1780, %v1778
      %v1805 = vpack.c.b16 %v1783, %v1781
      %v1806 = vpack.c.b16 %v1784, %v1782
      %v1807 = vpack.c.b16 %v1787, %v1785
      %v1808 = vpack.c.b16 %v1788, %v1786
      %v1830 = vsel %vm423, %v1727, 0
      %1832 = vmatprep.subr.bf16.mxu0 %v1790
      %1833 = vmatpush1.bf16.msra.mxu0 %v1789
      %1834 = vmatprep.subr.bf16.mxu0 %v1792
      %1835 = vmatpush1.bf16.msra.mxu0 %v1791
      %1836 = vmatprep.subr.bf16.mxu0 %v1794
      %1837 = vmatpush1.bf16.msra.mxu0 %v1793
      %1838 = vmatprep.subr.bf16.mxu0 %v1796
      %1839 = vmatpush1.bf16.msra.mxu0 %v1795
      %1840 = vmatprep.subr.bf16.mxu0 %v1798
      %1841 = vmatpush1.bf16.msra.mxu0 %v1797
      %1842 = vmatprep.subr.bf16.mxu0 %v1800
      %1843 = vmatpush1.bf16.msra.mxu0 %v1799
      %1844 = vmatprep.subr.bf16.mxu0 %v1802
      %1845 = vmatpush1.bf16.msra.mxu0 %v1801
      %1846 = vmatprep.subr.bf16.mxu0 %v1804
      %1847 = vmatpush1.bf16.msra.mxu0 %v1803
      %1848 = vmatprep.subr.bf16.mxu0 %v1806
      %1849 = vmatpush1.bf16.msra.mxu0 %v1805
      %1850 = vmatprep.subr.bf16.mxu0 %v1808
      %1851 = vmatpush1.bf16.msra.mxu0 %v1807
      %1852 = vmatprep.subr.bf16.mxu0 0
      %1853 = vmatpush1.bf16.msra.mxu0 0
      %1854 = vmatprep.subr.bf16.mxu0 0
      %1855 = vmatpush1.bf16.msra.mxu0 0
      %1856 = vmatprep.subr.bf16.mxu0 0
      %1857 = vmatpush1.bf16.msra.mxu0 0
      %1858 = vmatprep.subr.bf16.mxu0 0
      %1859 = vmatpush1.bf16.msra.mxu0 0
      %1860 = vmatprep.subr.bf16.mxu0 0
      %1861 = vmatpush1.bf16.msra.mxu0 0
      %1862 = vmatprep.subr.bf16.mxu0 0
      %1863 = vmatpush1.bf16.msra.mxu0 0
      %1864 = vmatprep.mubr.bf16.mxu0 %v1830
      %1865 = vmatmul.mubr.bf16.gmra.mrb[0].mxu0 %v1720
      %v1866 = vpop.f32.mrb[0].mxu0
      %v1867 = vadd.f32 0.0, %v1866
      %v1868 = vpop.f32.mrb[0].mxu0
      %v1869 = vadd.f32 0.0, %v1868
      %v1870 = vpop.f32.mrb[0].mxu0
      %v1871 = vpop.f32.mrb[0].mxu0
      %1872 = vdwg.mxu0
      %v1873 = vadd.f32 %v1686, %v1867
      %v1874 = vadd.f32 %v1687, %v1869
      %s1875 = scalar_lea.vmem %s3, 640
      %v1876 = vld [vmem:[%s1875] sm:$0xff]
      %v1877 = vld [vmem:[%s1875 + $0x8] sm:$0xff]
      %v1878 = vld [vmem:[%s1875 + $0x10] sm:$0xff]
      %v1879 = vld [vmem:[%s1875 + $0x18] sm:$0xff]
      %v1880 = vld [vmem:[%s1875 + $0x20] sm:$0xff]
      %v1881 = vld [vmem:[%s1875 + $0x28] sm:$0xff]
      %v1882 = vld [vmem:[%s1875 + $0x30] sm:$0xff]
      %v1883 = vld [vmem:[%s1875 + $0x38] sm:$0xff]
      %v1884 = vld [vmem:[%s1875 + $0x40] sm:$0xff]
      %v1885 = vld [vmem:[%s1875 + $0x48] sm:$0xff]
      %v1886 = vld [vmem:[%s1875 + $0x50] sm:$0xff]
      %v1887 = vld [vmem:[%s1875 + $0x58] sm:$0xff]
      %v1888 = vld [vmem:[%s1875 + $0x60] sm:$0xff]
      %v1889 = vld [vmem:[%s1875 + $0x68] sm:$0xff]
      %v1890 = vld [vmem:[%s1875 + $0x70] sm:$0xff]
      %v1891 = vld [vmem:[%s1875 + $0x78] sm:$0xff]
      %v1892 = vld [vmem:[%s1875 + $0x80] sm:$0xff]
      %v1893 = vld [vmem:[%s1875 + $0x88] sm:$0xff]
      %v1894 = vld [vmem:[%s1875 + $0x90] sm:$0xff]
      %v1895 = vld [vmem:[%s1875 + $0x98] sm:$0xff]
      %v1897 = vunpack.c.l.b16 %v1341
      %v1898 = vunpack.c.h.b16 %v1341
      %v1899 = vpack.c.b16 %v1897, %v1537
      %v1900 = vpack.c.b16 %v1898, %v1538
      %v1902 = vshrl.u32 %v1899, 16
      %v1904 = vshll.u32 %v1899, 16
      %v1906 = vrot.slane %v1904, 1
      %v1907 = vor.u32 %v1902, %v1906
      %v1909 = vshrl.u32 %v1900, 16
      %v1911 = vshll.u32 %v1900, 16
      %v1913 = vrot.slane %v1911, 1
      %v1914 = vor.u32 %v1909, %v1913
      %v1936 = vunpack.c.l.b16 %v1876
      %v1937 = vunpack.c.h.b16 %v1876
      %v1938 = vunpack.c.l.b16 %v1877
      %v1939 = vunpack.c.h.b16 %v1877
      %v1940 = vunpack.c.l.b16 %v1878
      %v1941 = vunpack.c.h.b16 %v1878
      %v1942 = vunpack.c.l.b16 %v1879
      %v1943 = vunpack.c.h.b16 %v1879
      %v1944 = vunpack.c.l.b16 %v1880
      %v1945 = vunpack.c.h.b16 %v1880
      %v1946 = vunpack.c.l.b16 %v1881
      %v1947 = vunpack.c.h.b16 %v1881
      %v1948 = vunpack.c.l.b16 %v1882
      %v1949 = vunpack.c.h.b16 %v1882
      %v1950 = vunpack.c.l.b16 %v1883
      %v1951 = vunpack.c.h.b16 %v1883
      %v1952 = vunpack.c.l.b16 %v1884
      %v1953 = vunpack.c.h.b16 %v1884
      %v1954 = vunpack.c.l.b16 %v1885
      %v1955 = vunpack.c.h.b16 %v1885
      %v1956 = vunpack.c.l.b16 %v1886
      %v1957 = vunpack.c.h.b16 %v1886
      %v1958 = vunpack.c.l.b16 %v1887
      %v1959 = vunpack.c.h.b16 %v1887
      %v1960 = vunpack.c.l.b16 %v1888
      %v1961 = vunpack.c.h.b16 %v1888
      %v1962 = vunpack.c.l.b16 %v1889
      %v1963 = vunpack.c.h.b16 %v1889
      %v1964 = vunpack.c.l.b16 %v1890
      %v1965 = vunpack.c.h.b16 %v1890
      %v1966 = vunpack.c.l.b16 %v1891
      %v1967 = vunpack.c.h.b16 %v1891
      %v1968 = vunpack.c.l.b16 %v1892
      %v1969 = vunpack.c.h.b16 %v1892
      %v1970 = vunpack.c.l.b16 %v1893
      %v1971 = vunpack.c.h.b16 %v1893
      %v1972 = vunpack.c.l.b16 %v1894
      %v1973 = vunpack.c.h.b16 %v1894
      %v1974 = vunpack.c.l.b16 %v1895
      %v1975 = vunpack.c.h.b16 %v1895
      %v1976 = vpack.c.b16 %v1938, %v1936
      %v1977 = vpack.c.b16 %v1939, %v1937
      %v1978 = vpack.c.b16 %v1942, %v1940
      %v1979 = vpack.c.b16 %v1943, %v1941
      %v1980 = vpack.c.b16 %v1946, %v1944
      %v1981 = vpack.c.b16 %v1947, %v1945
      %v1982 = vpack.c.b16 %v1950, %v1948
      %v1983 = vpack.c.b16 %v1951, %v1949
      %v1984 = vpack.c.b16 %v1954, %v1952
      %v1985 = vpack.c.b16 %v1955, %v1953
      %v1986 = vpack.c.b16 %v1958, %v1956
      %v1987 = vpack.c.b16 %v1959, %v1957
      %v1988 = vpack.c.b16 %v1962, %v1960
      %v1989 = vpack.c.b16 %v1963, %v1961
      %v1990 = vpack.c.b16 %v1966, %v1964
      %v1991 = vpack.c.b16 %v1967, %v1965
      %v1992 = vpack.c.b16 %v1970, %v1968
      %v1993 = vpack.c.b16 %v1971, %v1969
      %v1994 = vpack.c.b16 %v1974, %v1972
      %v1995 = vpack.c.b16 %v1975, %v1973
      %v2017 = vsel %vm423, %v1914, 0
      %2019 = vmatprep.subr.bf16.mxu0 %v1977
      %2020 = vmatpush1.bf16.msra.mxu0 %v1976
      %2021 = vmatprep.subr.bf16.mxu0 %v1979
      %2022 = vmatpush1.bf16.msra.mxu0 %v1978
      %2023 = vmatprep.subr.bf16.mxu0 %v1981
      %2024 = vmatpush1.bf16.msra.mxu0 %v1980
      %2025 = vmatprep.subr.bf16.mxu0 %v1983
      %2026 = vmatpush1.bf16.msra.mxu0 %v1982
      %2027 = vmatprep.subr.bf16.mxu0 %v1985
      %2028 = vmatpush1.bf16.msra.mxu0 %v1984
      %2029 = vmatprep.subr.bf16.mxu0 %v1987
      %2030 = vmatpush1.bf16.msra.mxu0 %v1986
      %2031 = vmatprep.subr.bf16.mxu0 %v1989
      %2032 = vmatpush1.bf16.msra.mxu0 %v1988
      %2033 = vmatprep.subr.bf16.mxu0 %v1991
      %2034 = vmatpush1.bf16.msra.mxu0 %v1990
      %2035 = vmatprep.subr.bf16.mxu0 %v1993
      %2036 = vmatpush1.bf16.msra.mxu0 %v1992
      %2037 = vmatprep.subr.bf16.mxu0 %v1995
      %2038 = vmatpush1.bf16.msra.mxu0 %v1994
      %2039 = vmatprep.subr.bf16.mxu0 0
      %2040 = vmatpush1.bf16.msra.mxu0 0
      %2041 = vmatprep.subr.bf16.mxu0 0
      %2042 = vmatpush1.bf16.msra.mxu0 0
      %2043 = vmatprep.subr.bf16.mxu0 0
      %2044 = vmatpush1.bf16.msra.mxu0 0
      %2045 = vmatprep.subr.bf16.mxu0 0
      %2046 = vmatpush1.bf16.msra.mxu0 0
      %2047 = vmatprep.subr.bf16.mxu0 0
      %2048 = vmatpush1.bf16.msra.mxu0 0
      %2049 = vmatprep.subr.bf16.mxu0 0
      %2050 = vmatpush1.bf16.msra.mxu0 0
      %2051 = vmatprep.mubr.bf16.mxu0 %v2017
      %2052 = vmatmul.mubr.bf16.gmra.mrb[0].mxu0 %v1907
      %v2053 = vpop.f32.mrb[0].mxu0
      %v2054 = vadd.f32 0.0, %v2053
      %v2055 = vpop.f32.mrb[0].mxu0
      %v2056 = vadd.f32 0.0, %v2055
      %v2057 = vpop.f32.mrb[0].mxu0
      %v2058 = vpop.f32.mrb[0].mxu0
      %2059 = vdwg.mxu0
      %v2060 = vadd.f32 %v1873, %v2054
      %v2061 = vadd.f32 %v1874, %v2056
      %s2062 = scalar_lea.vmem %s1, 800
      %v2063 = vld [vmem:[%s2062] sm:$0xff]
      %v2064 = vld [vmem:[%s2062 + $0x8] sm:$0xff]
      %v2065 = vld [vmem:[%s2062 + $0x10] sm:$0xff]
      %v2066 = vld [vmem:[%s2062 + $0x18] sm:$0xff]
      %v2067 = vld [vmem:[%s2062 + $0x20] sm:$0xff]
      %v2068 = vld [vmem:[%s2062 + $0x28] sm:$0xff]
      %v2069 = vld [vmem:[%s2062 + $0x30] sm:$0xff]
      %v2070 = vld [vmem:[%s2062 + $0x38] sm:$0xff]
      %v2071 = vld [vmem:[%s2062 + $0x40] sm:$0xff]
      %v2072 = vld [vmem:[%s2062 + $0x48] sm:$0xff]
      %v2073 = vld [vmem:[%s2062 + $0x50] sm:$0xff]
      %v2074 = vld [vmem:[%s2062 + $0x58] sm:$0xff]
      %v2075 = vld [vmem:[%s2062 + $0x60] sm:$0xff]
      %v2076 = vld [vmem:[%s2062 + $0x68] sm:$0xff]
      %v2077 = vld [vmem:[%s2062 + $0x70] sm:$0xff]
      %v2078 = vld [vmem:[%s2062 + $0x78] sm:$0xff]
      %v2079 = vld [vmem:[%s2062 + $0x80] sm:$0xff]
      %v2080 = vld [vmem:[%s2062 + $0x88] sm:$0xff]
      %v2081 = vld [vmem:[%s2062 + $0x90] sm:$0xff]
      %v2082 = vld [vmem:[%s2062 + $0x98] sm:$0xff]
      %v2083 = vrot.slane %v1712, 1
      %v2084 = vrot.slane %v1713, 1
      %v2106 = vunpack.c.l.b16 %v2063
      %v2107 = vunpack.c.h.b16 %v2063
      %v2108 = vunpack.c.l.b16 %v2064
      %v2109 = vunpack.c.h.b16 %v2064
      %v2110 = vunpack.c.l.b16 %v2065
      %v2111 = vunpack.c.h.b16 %v2065
      %v2112 = vunpack.c.l.b16 %v2066
      %v2113 = vunpack.c.h.b16 %v2066
      %v2114 = vunpack.c.l.b16 %v2067
      %v2115 = vunpack.c.h.b16 %v2067
      %v2116 = vunpack.c.l.b16 %v2068
      %v2117 = vunpack.c.h.b16 %v2068
      %v2118 = vunpack.c.l.b16 %v2069
      %v2119 = vunpack.c.h.b16 %v2069
      %v2120 = vunpack.c.l.b16 %v2070
      %v2121 = vunpack.c.h.b16 %v2070
      %v2122 = vunpack.c.l.b16 %v2071
      %v2123 = vunpack.c.h.b16 %v2071
      %v2124 = vunpack.c.l.b16 %v2072
      %v2125 = vunpack.c.h.b16 %v2072
      %v2126 = vunpack.c.l.b16 %v2073
      %v2127 = vunpack.c.h.b16 %v2073
      %v2128 = vunpack.c.l.b16 %v2074
      %v2129 = vunpack.c.h.b16 %v2074
      %v2130 = vunpack.c.l.b16 %v2075
      %v2131 = vunpack.c.h.b16 %v2075
      %v2132 = vunpack.c.l.b16 %v2076
      %v2133 = vunpack.c.h.b16 %v2076
      %v2134 = vunpack.c.l.b16 %v2077
      %v2135 = vunpack.c.h.b16 %v2077
      %v2136 = vunpack.c.l.b16 %v2078
      %v2137 = vunpack.c.h.b16 %v2078
      %v2138 = vunpack.c.l.b16 %v2079
      %v2139 = vunpack.c.h.b16 %v2079
      %v2140 = vunpack.c.l.b16 %v2080
      %v2141 = vunpack.c.h.b16 %v2080
      %v2142 = vunpack.c.l.b16 %v2081
      %v2143 = vunpack.c.h.b16 %v2081
      %v2144 = vunpack.c.l.b16 %v2082
      %v2145 = vunpack.c.h.b16 %v2082
      %v2146 = vpack.c.b16 %v2108, %v2106
      %v2147 = vpack.c.b16 %v2109, %v2107
      %v2148 = vpack.c.b16 %v2112, %v2110
      %v2149 = vpack.c.b16 %v2113, %v2111
      %v2150 = vpack.c.b16 %v2116, %v2114
      %v2151 = vpack.c.b16 %v2117, %v2115
      %v2152 = vpack.c.b16 %v2120, %v2118
      %v2153 = vpack.c.b16 %v2121, %v2119
      %v2154 = vpack.c.b16 %v2124, %v2122
      %v2155 = vpack.c.b16 %v2125, %v2123
      %v2156 = vpack.c.b16 %v2128, %v2126
      %v2157 = vpack.c.b16 %v2129, %v2127
      %v2158 = vpack.c.b16 %v2132, %v2130
      %v2159 = vpack.c.b16 %v2133, %v2131
      %v2160 = vpack.c.b16 %v2136, %v2134
      %v2161 = vpack.c.b16 %v2137, %v2135
      %v2162 = vpack.c.b16 %v2140, %v2138
      %v2163 = vpack.c.b16 %v2141, %v2139
      %v2164 = vpack.c.b16 %v2144, %v2142
      %v2165 = vpack.c.b16 %v2145, %v2143
      %v2187 = vsel %vm423, %v2084, 0
      %2189 = vmatprep.subr.bf16.mxu0 %v2147
      %2190 = vmatpush1.bf16.msra.mxu0 %v2146
      %2191 = vmatprep.subr.bf16.mxu0 %v2149
      %2192 = vmatpush1.bf16.msra.mxu0 %v2148
      %2193 = vmatprep.subr.bf16.mxu0 %v2151
      %2194 = vmatpush1.bf16.msra.mxu0 %v2150
      %2195 = vmatprep.subr.bf16.mxu0 %v2153
      %2196 = vmatpush1.bf16.msra.mxu0 %v2152
      %2197 = vmatprep.subr.bf16.mxu0 %v2155
      %2198 = vmatpush1.bf16.msra.mxu0 %v2154
      %2199 = vmatprep.subr.bf16.mxu0 %v2157
      %2200 = vmatpush1.bf16.msra.mxu0 %v2156
      %2201 = vmatprep.subr.bf16.mxu0 %v2159
      %2202 = vmatpush1.bf16.msra.mxu0 %v2158
      %2203 = vmatprep.subr.bf16.mxu0 %v2161
      %2204 = vmatpush1.bf16.msra.mxu0 %v2160
      %2205 = vmatprep.subr.bf16.mxu0 %v2163
      %2206 = vmatpush1.bf16.msra.mxu0 %v2162
      %2207 = vmatprep.subr.bf16.mxu0 %v2165
      %2208 = vmatpush1.bf16.msra.mxu0 %v2164
      %2209 = vmatprep.subr.bf16.mxu0 0
      %2210 = vmatpush1.bf16.msra.mxu0 0
      %2211 = vmatprep.subr.bf16.mxu0 0
      %2212 = vmatpush1.bf16.msra.mxu0 0
      %2213 = vmatprep.subr.bf16.mxu0 0
      %2214 = vmatpush1.bf16.msra.mxu0 0
      %2215 = vmatprep.subr.bf16.mxu0 0
      %2216 = vmatpush1.bf16.msra.mxu0 0
      %2217 = vmatprep.subr.bf16.mxu0 0
      %2218 = vmatpush1.bf16.msra.mxu0 0
      %2219 = vmatprep.subr.bf16.mxu0 0
      %2220 = vmatpush1.bf16.msra.mxu0 0
      %2221 = vmatprep.mubr.bf16.mxu0 %v2187
      %2222 = vmatmul.mubr.bf16.gmra.mrb[0].mxu0 %v2083
      %v2223 = vpop.f32.mrb[0].mxu0
      %v2224 = vadd.f32 0.0, %v2223
      %v2225 = vpop.f32.mrb[0].mxu0
      %v2226 = vadd.f32 0.0, %v2225
      %v2227 = vpop.f32.mrb[0].mxu0
      %v2228 = vpop.f32.mrb[0].mxu0
      %2229 = vdwg.mxu0
      %v2230 = vadd.f32 %v2060, %v2224
      %v2231 = vadd.f32 %v2061, %v2226
      %s2232 = scalar_lea.vmem %s3, 800
      %v2233 = vld [vmem:[%s2232] sm:$0xff]
      %v2234 = vld [vmem:[%s2232 + $0x8] sm:$0xff]
      %v2235 = vld [vmem:[%s2232 + $0x10] sm:$0xff]
      %v2236 = vld [vmem:[%s2232 + $0x18] sm:$0xff]
      %v2237 = vld [vmem:[%s2232 + $0x20] sm:$0xff]
      %v2238 = vld [vmem:[%s2232 + $0x28] sm:$0xff]
      %v2239 = vld [vmem:[%s2232 + $0x30] sm:$0xff]
      %v2240 = vld [vmem:[%s2232 + $0x38] sm:$0xff]
      %v2241 = vld [vmem:[%s2232 + $0x40] sm:$0xff]
      %v2242 = vld [vmem:[%s2232 + $0x48] sm:$0xff]
      %v2243 = vld [vmem:[%s2232 + $0x50] sm:$0xff]
      %v2244 = vld [vmem:[%s2232 + $0x58] sm:$0xff]
      %v2245 = vld [vmem:[%s2232 + $0x60] sm:$0xff]
      %v2246 = vld [vmem:[%s2232 + $0x68] sm:$0xff]
      %v2247 = vld [vmem:[%s2232 + $0x70] sm:$0xff]
      %v2248 = vld [vmem:[%s2232 + $0x78] sm:$0xff]
      %v2249 = vld [vmem:[%s2232 + $0x80] sm:$0xff]
      %v2250 = vld [vmem:[%s2232 + $0x88] sm:$0xff]
      %v2251 = vld [vmem:[%s2232 + $0x90] sm:$0xff]
      %v2252 = vld [vmem:[%s2232 + $0x98] sm:$0xff]
      %v2253 = vrot.slane %v1899, 1
      %v2254 = vrot.slane %v1900, 1
      %v2276 = vunpack.c.l.b16 %v2233
      %v2277 = vunpack.c.h.b16 %v2233
      %v2278 = vunpack.c.l.b16 %v2234
      %v2279 = vunpack.c.h.b16 %v2234
      %v2280 = vunpack.c.l.b16 %v2235
      %v2281 = vunpack.c.h.b16 %v2235
      %v2282 = vunpack.c.l.b16 %v2236
      %v2283 = vunpack.c.h.b16 %v2236
      %v2284 = vunpack.c.l.b16 %v2237
      %v2285 = vunpack.c.h.b16 %v2237
      %v2286 = vunpack.c.l.b16 %v2238
      %v2287 = vunpack.c.h.b16 %v2238
      %v2288 = vunpack.c.l.b16 %v2239
      %v2289 = vunpack.c.h.b16 %v2239
      %v2290 = vunpack.c.l.b16 %v2240
      %v2291 = vunpack.c.h.b16 %v2240
      %v2292 = vunpack.c.l.b16 %v2241
      %v2293 = vunpack.c.h.b16 %v2241
      %v2294 = vunpack.c.l.b16 %v2242
      %v2295 = vunpack.c.h.b16 %v2242
      %v2296 = vunpack.c.l.b16 %v2243
      %v2297 = vunpack.c.h.b16 %v2243
      %v2298 = vunpack.c.l.b16 %v2244
      %v2299 = vunpack.c.h.b16 %v2244
      %v2300 = vunpack.c.l.b16 %v2245
      %v2301 = vunpack.c.h.b16 %v2245
      %v2302 = vunpack.c.l.b16 %v2246
      %v2303 = vunpack.c.h.b16 %v2246
      %v2304 = vunpack.c.l.b16 %v2247
      %v2305 = vunpack.c.h.b16 %v2247
      %v2306 = vunpack.c.l.b16 %v2248
      %v2307 = vunpack.c.h.b16 %v2248
      %v2308 = vunpack.c.l.b16 %v2249
      %v2309 = vunpack.c.h.b16 %v2249
      %v2310 = vunpack.c.l.b16 %v2250
      %v2311 = vunpack.c.h.b16 %v2250
      %v2312 = vunpack.c.l.b16 %v2251
      %v2313 = vunpack.c.h.b16 %v2251
      %v2314 = vunpack.c.l.b16 %v2252
      %v2315 = vunpack.c.h.b16 %v2252
      %v2316 = vpack.c.b16 %v2278, %v2276
      %v2317 = vpack.c.b16 %v2279, %v2277
      %v2318 = vpack.c.b16 %v2282, %v2280
      %v2319 = vpack.c.b16 %v2283, %v2281
      %v2320 = vpack.c.b16 %v2286, %v2284
      %v2321 = vpack.c.b16 %v2287, %v2285
      %v2322 = vpack.c.b16 %v2290, %v2288
      %v2323 = vpack.c.b16 %v2291, %v2289
      %v2324 = vpack.c.b16 %v2294, %v2292
      %v2325 = vpack.c.b16 %v2295, %v2293
      %v2326 = vpack.c.b16 %v2298, %v2296
      %v2327 = vpack.c.b16 %v2299, %v2297
      %v2328 = vpack.c.b16 %v2302, %v2300
      %v2329 = vpack.c.b16 %v2303, %v2301
      %v2330 = vpack.c.b16 %v2306, %v2304
      %v2331 = vpack.c.b16 %v2307, %v2305
      %v2332 = vpack.c.b16 %v2310, %v2308
      %v2333 = vpack.c.b16 %v2311, %v2309
      %v2334 = vpack.c.b16 %v2314, %v2312
      %v2335 = vpack.c.b16 %v2315, %v2313
      %v2357 = vsel %vm423, %v2254, 0
      %2359 = vmatprep.subr.bf16.mxu0 %v2317
      %2360 = vmatpush1.bf16.msra.mxu0 %v2316
      %2361 = vmatprep.subr.bf16.mxu0 %v2319
      %2362 = vmatpush1.bf16.msra.mxu0 %v2318
      %2363 = vmatprep.subr.bf16.mxu0 %v2321
      %2364 = vmatpush1.bf16.msra.mxu0 %v2320
      %2365 = vmatprep.subr.bf16.mxu0 %v2323
      %2366 = vmatpush1.bf16.msra.mxu0 %v2322
      %2367 = vmatprep.subr.bf16.mxu0 %v2325
      %2368 = vmatpush1.bf16.msra.mxu0 %v2324
      %2369 = vmatprep.subr.bf16.mxu0 %v2327
      %2370 = vmatpush1.bf16.msra.mxu0 %v2326
      %2371 = vmatprep.subr.bf16.mxu0 %v2329
      %2372 = vmatpush1.bf16.msra.mxu0 %v2328
      %2373 = vmatprep.subr.bf16.mxu0 %v2331
      %2374 = vmatpush1.bf16.msra.mxu0 %v2330
      %2375 = vmatprep.subr.bf16.mxu0 %v2333
      %2376 = vmatpush1.bf16.msra.mxu0 %v2332
      %2377 = vmatprep.subr.bf16.mxu0 %v2335
      %2378 = vmatpush1.bf16.msra.mxu0 %v2334
      %2379 = vmatprep.subr.bf16.mxu0 0
      %2380 = vmatpush1.bf16.msra.mxu0 0
      %2381 = vmatprep.subr.bf16.mxu0 0
      %2382 = vmatpush1.bf16.msra.mxu0 0
      %2383 = vmatprep.subr.bf16.mxu0 0
      %2384 = vmatpush1.bf16.msra.mxu0 0
      %2385 = vmatprep.subr.bf16.mxu0 0
      %2386 = vmatpush1.bf16.msra.mxu0 0
      %2387 = vmatprep.subr.bf16.mxu0 0
      %2388 = vmatpush1.bf16.msra.mxu0 0
      %2389 = vmatprep.subr.bf16.mxu0 0
      %2390 = vmatpush1.bf16.msra.mxu0 0
      %2391 = vmatprep.mubr.bf16.mxu0 %v2357
      %2392 = vmatmul.mubr.bf16.gmra.mrb[0].mxu0 %v2253
      %v2393 = vpop.f32.mrb[0].mxu0
      %v2394 = vadd.f32 0.0, %v2393
      %v2395 = vpop.f32.mrb[0].mxu0
      %v2396 = vadd.f32 0.0, %v2395
      %v2397 = vpop.f32.mrb[0].mxu0
      %v2398 = vpop.f32.mrb[0].mxu0
      %2399 = vdwg.mxu0
      %v2400 = vadd.f32 %v2230, %v2394
      %v2401 = vadd.f32 %v2231, %v2396
      %s2402 = sadd.s32 %s21, 2
      %s2403 = smul.u32 %s2402, 4
      %s2404 = smul.addr %s2403, 4
      %s2405 = scalar_lea.vmem %s252, %s2404
      %v2406 = vld [vmem:[%s2405] sm:$0xff]
      %v2407 = vld [vmem:[%s2405 + $0x8] sm:$0x11]
      %s2408 = smul.addr %s2403, 4
      %s2409 = scalar_lea.vmem %s257, %s2408
      %v2410 = vld [vmem:[%s2409] sm:$0xff]
      %v2411 = vld [vmem:[%s2409 + $0x8] sm:$0x11]
      %s2412 = scalar_lea.vmem %s1, 960
      %v2413 = vld [vmem:[%s2412] sm:$0xff]
      %v2414 = vld [vmem:[%s2412 + $0x8] sm:$0xff]
      %v2415 = vld [vmem:[%s2412 + $0x10] sm:$0xff]
      %v2416 = vld [vmem:[%s2412 + $0x18] sm:$0xff]
      %v2417 = vld [vmem:[%s2412 + $0x20] sm:$0xff]
      %v2418 = vld [vmem:[%s2412 + $0x28] sm:$0xff]
      %v2419 = vld [vmem:[%s2412 + $0x30] sm:$0xff]
      %v2420 = vld [vmem:[%s2412 + $0x38] sm:$0xff]
      %v2421 = vld [vmem:[%s2412 + $0x40] sm:$0xff]
      %v2422 = vld [vmem:[%s2412 + $0x48] sm:$0xff]
      %v2423 = vld [vmem:[%s2412 + $0x50] sm:$0xff]
      %v2424 = vld [vmem:[%s2412 + $0x58] sm:$0xff]
      %v2425 = vld [vmem:[%s2412 + $0x60] sm:$0xff]
      %v2426 = vld [vmem:[%s2412 + $0x68] sm:$0xff]
      %v2427 = vld [vmem:[%s2412 + $0x70] sm:$0xff]
      %v2428 = vld [vmem:[%s2412 + $0x78] sm:$0xff]
      %v2429 = vld [vmem:[%s2412 + $0x80] sm:$0xff]
      %v2430 = vld [vmem:[%s2412 + $0x88] sm:$0xff]
      %v2431 = vld [vmem:[%s2412 + $0x90] sm:$0xff]
      %v2432 = vld [vmem:[%s2412 + $0x98] sm:$0xff]
      %v2434 = vunpack.c.l.b16 %v2406
      %v2435 = vunpack.c.h.b16 %v2406
      %v2436 = vpack.c.b16 %v2434, %v2434
      %v2437 = vpack.c.b16 %v2435, %v2435
      %v2459 = vunpack.c.l.b16 %v2413
      %v2460 = vunpack.c.h.b16 %v2413
      %v2461 = vunpack.c.l.b16 %v2414
      %v2462 = vunpack.c.h.b16 %v2414
      %v2463 = vunpack.c.l.b16 %v2415
      %v2464 = vunpack.c.h.b16 %v2415
      %v2465 = vunpack.c.l.b16 %v2416
      %v2466 = vunpack.c.h.b16 %v2416
      %v2467 = vunpack.c.l.b16 %v2417
      %v2468 = vunpack.c.h.b16 %v2417
      %v2469 = vunpack.c.l.b16 %v2418
      %v2470 = vunpack.c.h.b16 %v2418
      %v2471 = vunpack.c.l.b16 %v2419
      %v2472 = vunpack.c.h.b16 %v2419
      %v2473 = vunpack.c.l.b16 %v2420
      %v2474 = vunpack.c.h.b16 %v2420
      %v2475 = vunpack.c.l.b16 %v2421
      %v2476 = vunpack.c.h.b16 %v2421
      %v2477 = vunpack.c.l.b16 %v2422
      %v2478 = vunpack.c.h.b16 %v2422
      %v2479 = vunpack.c.l.b16 %v2423
      %v2480 = vunpack.c.h.b16 %v2423
      %v2481 = vunpack.c.l.b16 %v2424
      %v2482 = vunpack.c.h.b16 %v2424
      %v2483 = vunpack.c.l.b16 %v2425
      %v2484 = vunpack.c.h.b16 %v2425
      %v2485 = vunpack.c.l.b16 %v2426
      %v2486 = vunpack.c.h.b16 %v2426
      %v2487 = vunpack.c.l.b16 %v2427
      %v2488 = vunpack.c.h.b16 %v2427
      %v2489 = vunpack.c.l.b16 %v2428
      %v2490 = vunpack.c.h.b16 %v2428
      %v2491 = vunpack.c.l.b16 %v2429
      %v2492 = vunpack.c.h.b16 %v2429
      %v2493 = vunpack.c.l.b16 %v2430
      %v2494 = vunpack.c.h.b16 %v2430
      %v2495 = vunpack.c.l.b16 %v2431
      %v2496 = vunpack.c.h.b16 %v2431
      %v2497 = vunpack.c.l.b16 %v2432
      %v2498 = vunpack.c.h.b16 %v2432
      %v2499 = vpack.c.b16 %v2461, %v2459
      %v2500 = vpack.c.b16 %v2462, %v2460
      %v2501 = vpack.c.b16 %v2465, %v2463
      %v2502 = vpack.c.b16 %v2466, %v2464
      %v2503 = vpack.c.b16 %v2469, %v2467
      %v2504 = vpack.c.b16 %v2470, %v2468
      %v2505 = vpack.c.b16 %v2473, %v2471
      %v2506 = vpack.c.b16 %v2474, %v2472
      %v2507 = vpack.c.b16 %v2477, %v2475
      %v2508 = vpack.c.b16 %v2478, %v2476
      %v2509 = vpack.c.b16 %v2481, %v2479
      %v2510 = vpack.c.b16 %v2482, %v2480
      %v2511 = vpack.c.b16 %v2485, %v2483
      %v2512 = vpack.c.b16 %v2486, %v2484
      %v2513 = vpack.c.b16 %v2489, %v2487
      %v2514 = vpack.c.b16 %v2490, %v2488
      %v2515 = vpack.c.b16 %v2493, %v2491
      %v2516 = vpack.c.b16 %v2494, %v2492
      %v2517 = vpack.c.b16 %v2497, %v2495
      %v2518 = vpack.c.b16 %v2498, %v2496
      %v2540 = vsel %vm423, %v2437, 0
      %2542 = vmatprep.subr.bf16.mxu0 %v2500
      %2543 = vmatpush1.bf16.msra.mxu0 %v2499
      %2544 = vmatprep.subr.bf16.mxu0 %v2502
      %2545 = vmatpush1.bf16.msra.mxu0 %v2501
      %2546 = vmatprep.subr.bf16.mxu0 %v2504
      %2547 = vmatpush1.bf16.msra.mxu0 %v2503
      %2548 = vmatprep.subr.bf16.mxu0 %v2506
      %2549 = vmatpush1.bf16.msra.mxu0 %v2505
      %2550 = vmatprep.subr.bf16.mxu0 %v2508
      %2551 = vmatpush1.bf16.msra.mxu0 %v2507
      %2552 = vmatprep.subr.bf16.mxu0 %v2510
      %2553 = vmatpush1.bf16.msra.mxu0 %v2509
      %2554 = vmatprep.subr.bf16.mxu0 %v2512
      %2555 = vmatpush1.bf16.msra.mxu0 %v2511
      %2556 = vmatprep.subr.bf16.mxu0 %v2514
      %2557 = vmatpush1.bf16.msra.mxu0 %v2513
      %2558 = vmatprep.subr.bf16.mxu0 %v2516
      %2559 = vmatpush1.bf16.msra.mxu0 %v2515
      %2560 = vmatprep.subr.bf16.mxu0 %v2518
      %2561 = vmatpush1.bf16.msra.mxu0 %v2517
      %2562 = vmatprep.subr.bf16.mxu0 0
      %2563 = vmatpush1.bf16.msra.mxu0 0
      %2564 = vmatprep.subr.bf16.mxu0 0
      %2565 = vmatpush1.bf16.msra.mxu0 0
      %2566 = vmatprep.subr.bf16.mxu0 0
      %2567 = vmatpush1.bf16.msra.mxu0 0
      %2568 = vmatprep.subr.bf16.mxu0 0
      %2569 = vmatpush1.bf16.msra.mxu0 0
      %2570 = vmatprep.subr.bf16.mxu0 0
      %2571 = vmatpush1.bf16.msra.mxu0 0
      %2572 = vmatprep.subr.bf16.mxu0 0
      %2573 = vmatpush1.bf16.msra.mxu0 0
      %2574 = vmatprep.mubr.bf16.mxu0 %v2540
      %2575 = vmatmul.mubr.bf16.gmra.mrb[0].mxu0 %v2436
      %v2576 = vpop.f32.mrb[0].mxu0
      %v2577 = vadd.f32 0.0, %v2576
      %v2578 = vpop.f32.mrb[0].mxu0
      %v2579 = vadd.f32 0.0, %v2578
      %v2580 = vpop.f32.mrb[0].mxu0
      %v2581 = vpop.f32.mrb[0].mxu0
      %2582 = vdwg.mxu0
      %v2583 = vadd.f32 %v2400, %v2577
      %v2584 = vadd.f32 %v2401, %v2579
      %s2585 = scalar_lea.vmem %s3, 960
      %v2586 = vld [vmem:[%s2585] sm:$0xff]
      %v2587 = vld [vmem:[%s2585 + $0x8] sm:$0xff]
      %v2588 = vld [vmem:[%s2585 + $0x10] sm:$0xff]
      %v2589 = vld [vmem:[%s2585 + $0x18] sm:$0xff]
      %v2590 = vld [vmem:[%s2585 + $0x20] sm:$0xff]
      %v2591 = vld [vmem:[%s2585 + $0x28] sm:$0xff]
      %v2592 = vld [vmem:[%s2585 + $0x30] sm:$0xff]
      %v2593 = vld [vmem:[%s2585 + $0x38] sm:$0xff]
      %v2594 = vld [vmem:[%s2585 + $0x40] sm:$0xff]
      %v2595 = vld [vmem:[%s2585 + $0x48] sm:$0xff]
      %v2596 = vld [vmem:[%s2585 + $0x50] sm:$0xff]
      %v2597 = vld [vmem:[%s2585 + $0x58] sm:$0xff]
      %v2598 = vld [vmem:[%s2585 + $0x60] sm:$0xff]
      %v2599 = vld [vmem:[%s2585 + $0x68] sm:$0xff]
      %v2600 = vld [vmem:[%s2585 + $0x70] sm:$0xff]
      %v2601 = vld [vmem:[%s2585 + $0x78] sm:$0xff]
      %v2602 = vld [vmem:[%s2585 + $0x80] sm:$0xff]
      %v2603 = vld [vmem:[%s2585 + $0x88] sm:$0xff]
      %v2604 = vld [vmem:[%s2585 + $0x90] sm:$0xff]
      %v2605 = vld [vmem:[%s2585 + $0x98] sm:$0xff]
      %v2607 = vunpack.c.l.b16 %v2410
      %v2608 = vunpack.c.h.b16 %v2410
      %v2609 = vpack.c.b16 %v2607, %v2607
      %v2610 = vpack.c.b16 %v2608, %v2608
      %v2632 = vunpack.c.l.b16 %v2586
      %v2633 = vunpack.c.h.b16 %v2586
      %v2634 = vunpack.c.l.b16 %v2587
      %v2635 = vunpack.c.h.b16 %v2587
      %v2636 = vunpack.c.l.b16 %v2588
      %v2637 = vunpack.c.h.b16 %v2588
      %v2638 = vunpack.c.l.b16 %v2589
      %v2639 = vunpack.c.h.b16 %v2589
      %v2640 = vunpack.c.l.b16 %v2590
      %v2641 = vunpack.c.h.b16 %v2590
      %v2642 = vunpack.c.l.b16 %v2591
      %v2643 = vunpack.c.h.b16 %v2591
      %v2644 = vunpack.c.l.b16 %v2592
      %v2645 = vunpack.c.h.b16 %v2592
      %v2646 = vunpack.c.l.b16 %v2593
      %v2647 = vunpack.c.h.b16 %v2593
      %v2648 = vunpack.c.l.b16 %v2594
      %v2649 = vunpack.c.h.b16 %v2594
      %v2650 = vunpack.c.l.b16 %v2595
      %v2651 = vunpack.c.h.b16 %v2595
      %v2652 = vunpack.c.l.b16 %v2596
      %v2653 = vunpack.c.h.b16 %v2596
      %v2654 = vunpack.c.l.b16 %v2597
      %v2655 = vunpack.c.h.b16 %v2597
      %v2656 = vunpack.c.l.b16 %v2598
      %v2657 = vunpack.c.h.b16 %v2598
      %v2658 = vunpack.c.l.b16 %v2599
      %v2659 = vunpack.c.h.b16 %v2599
      %v2660 = vunpack.c.l.b16 %v2600
      %v2661 = vunpack.c.h.b16 %v2600
      %v2662 = vunpack.c.l.b16 %v2601
      %v2663 = vunpack.c.h.b16 %v2601
      %v2664 = vunpack.c.l.b16 %v2602
      %v2665 = vunpack.c.h.b16 %v2602
      %v2666 = vunpack.c.l.b16 %v2603
      %v2667 = vunpack.c.h.b16 %v2603
      %v2668 = vunpack.c.l.b16 %v2604
      %v2669 = vunpack.c.h.b16 %v2604
      %v2670 = vunpack.c.l.b16 %v2605
      %v2671 = vunpack.c.h.b16 %v2605
      %v2672 = vpack.c.b16 %v2634, %v2632
      %v2673 = vpack.c.b16 %v2635, %v2633
      %v2674 = vpack.c.b16 %v2638, %v2636
      %v2675 = vpack.c.b16 %v2639, %v2637
      %v2676 = vpack.c.b16 %v2642, %v2640
      %v2677 = vpack.c.b16 %v2643, %v2641
      %v2678 = vpack.c.b16 %v2646, %v2644
      %v2679 = vpack.c.b16 %v2647, %v2645
      %v2680 = vpack.c.b16 %v2650, %v2648
      %v2681 = vpack.c.b16 %v2651, %v2649
      %v2682 = vpack.c.b16 %v2654, %v2652
      %v2683 = vpack.c.b16 %v2655, %v2653
      %v2684 = vpack.c.b16 %v2658, %v2656
      %v2685 = vpack.c.b16 %v2659, %v2657
      %v2686 = vpack.c.b16 %v2662, %v2660
      %v2687 = vpack.c.b16 %v2663, %v2661
      %v2688 = vpack.c.b16 %v2666, %v2664
      %v2689 = vpack.c.b16 %v2667, %v2665
      %v2690 = vpack.c.b16 %v2670, %v2668
      %v2691 = vpack.c.b16 %v2671, %v2669
      %v2713 = vsel %vm423, %v2610, 0
      %2715 = vmatprep.subr.bf16.mxu0 %v2673
      %2716 = vmatpush1.bf16.msra.mxu0 %v2672
      %2717 = vmatprep.subr.bf16.mxu0 %v2675
      %2718 = vmatpush1.bf16.msra.mxu0 %v2674
      %2719 = vmatprep.subr.bf16.mxu0 %v2677
      %2720 = vmatpush1.bf16.msra.mxu0 %v2676
      %2721 = vmatprep.subr.bf16.mxu0 %v2679
      %2722 = vmatpush1.bf16.msra.mxu0 %v2678
      %2723 = vmatprep.subr.bf16.mxu0 %v2681
      %2724 = vmatpush1.bf16.msra.mxu0 %v2680
      %2725 = vmatprep.subr.bf16.mxu0 %v2683
      %2726 = vmatpush1.bf16.msra.mxu0 %v2682
      %2727 = vmatprep.subr.bf16.mxu0 %v2685
      %2728 = vmatpush1.bf16.msra.mxu0 %v2684
      %2729 = vmatprep.subr.bf16.mxu0 %v2687
      %2730 = vmatpush1.bf16.msra.mxu0 %v2686
      %2731 = vmatprep.subr.bf16.mxu0 %v2689
      %2732 = vmatpush1.bf16.msra.mxu0 %v2688
      %2733 = vmatprep.subr.bf16.mxu0 %v2691
      %2734 = vmatpush1.bf16.msra.mxu0 %v2690
      %2735 = vmatprep.subr.bf16.mxu0 0
      %2736 = vmatpush1.bf16.msra.mxu0 0
      %2737 = vmatprep.subr.bf16.mxu0 0
      %2738 = vmatpush1.bf16.msra.mxu0 0
      %2739 = vmatprep.subr.bf16.mxu0 0
      %2740 = vmatpush1.bf16.msra.mxu0 0
      %2741 = vmatprep.subr.bf16.mxu0 0
      %2742 = vmatpush1.bf16.msra.mxu0 0
      %2743 = vmatprep.subr.bf16.mxu0 0
      %2744 = vmatpush1.bf16.msra.mxu0 0
      %2745 = vmatprep.subr.bf16.mxu0 0
      %2746 = vmatpush1.bf16.msra.mxu0 0
      %2747 = vmatprep.mubr.bf16.mxu0 %v2713
      %2748 = vmatmul.mubr.bf16.gmra.mrb[0].mxu0 %v2609
      %v2749 = vpop.f32.mrb[0].mxu0
      %v2750 = vadd.f32 0.0, %v2749
      %v2751 = vpop.f32.mrb[0].mxu0
      %v2752 = vadd.f32 0.0, %v2751
      %v2753 = vpop.f32.mrb[0].mxu0
      %v2754 = vpop.f32.mrb[0].mxu0
      %2755 = vdwg.mxu0
      %v2756 = vadd.f32 %v2583, %v2750
      %v2757 = vadd.f32 %v2584, %v2752
      %s2758 = scalar_lea.vmem %s1, 1120
      %v2759 = vld [vmem:[%s2758] sm:$0xff]
      %v2760 = vld [vmem:[%s2758 + $0x8] sm:$0xff]
      %v2761 = vld [vmem:[%s2758 + $0x10] sm:$0xff]
      %v2762 = vld [vmem:[%s2758 + $0x18] sm:$0xff]
      %v2763 = vld [vmem:[%s2758 + $0x20] sm:$0xff]
      %v2764 = vld [vmem:[%s2758 + $0x28] sm:$0xff]
      %v2765 = vld [vmem:[%s2758 + $0x30] sm:$0xff]
      %v2766 = vld [vmem:[%s2758 + $0x38] sm:$0xff]
      %v2767 = vld [vmem:[%s2758 + $0x40] sm:$0xff]
      %v2768 = vld [vmem:[%s2758 + $0x48] sm:$0xff]
      %v2769 = vld [vmem:[%s2758 + $0x50] sm:$0xff]
      %v2770 = vld [vmem:[%s2758 + $0x58] sm:$0xff]
      %v2771 = vld [vmem:[%s2758 + $0x60] sm:$0xff]
      %v2772 = vld [vmem:[%s2758 + $0x68] sm:$0xff]
      %v2773 = vld [vmem:[%s2758 + $0x70] sm:$0xff]
      %v2774 = vld [vmem:[%s2758 + $0x78] sm:$0xff]
      %v2775 = vld [vmem:[%s2758 + $0x80] sm:$0xff]
      %v2776 = vld [vmem:[%s2758 + $0x88] sm:$0xff]
      %v2777 = vld [vmem:[%s2758 + $0x90] sm:$0xff]
      %v2778 = vld [vmem:[%s2758 + $0x98] sm:$0xff]
      %v2780 = vunpack.c.l.b16 %v2407
      %v2781 = vunpack.c.h.b16 %v2407
      %v2782 = vpack.c.b16 %v2780, %v2434
      %v2783 = vpack.c.b16 %v2781, %v2435
      %v2785 = vshrl.u32 %v2782, 16
      %v2787 = vshll.u32 %v2782, 16
      %v2789 = vrot.slane %v2787, 1
      %v2790 = vor.u32 %v2785, %v2789
      %v2792 = vshrl.u32 %v2783, 16
      %v2794 = vshll.u32 %v2783, 16
      %v2796 = vrot.slane %v2794, 1
      %v2797 = vor.u32 %v2792, %v2796
      %v2819 = vunpack.c.l.b16 %v2759
      %v2820 = vunpack.c.h.b16 %v2759
      %v2821 = vunpack.c.l.b16 %v2760
      %v2822 = vunpack.c.h.b16 %v2760
      %v2823 = vunpack.c.l.b16 %v2761
      %v2824 = vunpack.c.h.b16 %v2761
      %v2825 = vunpack.c.l.b16 %v2762
      %v2826 = vunpack.c.h.b16 %v2762
      %v2827 = vunpack.c.l.b16 %v2763
      %v2828 = vunpack.c.h.b16 %v2763
      %v2829 = vunpack.c.l.b16 %v2764
      %v2830 = vunpack.c.h.b16 %v2764
      %v2831 = vunpack.c.l.b16 %v2765
      %v2832 = vunpack.c.h.b16 %v2765
      %v2833 = vunpack.c.l.b16 %v2766
      %v2834 = vunpack.c.h.b16 %v2766
      %v2835 = vunpack.c.l.b16 %v2767
      %v2836 = vunpack.c.h.b16 %v2767
      %v2837 = vunpack.c.l.b16 %v2768
      %v2838 = vunpack.c.h.b16 %v2768
      %v2839 = vunpack.c.l.b16 %v2769
      %v2840 = vunpack.c.h.b16 %v2769
      %v2841 = vunpack.c.l.b16 %v2770
      %v2842 = vunpack.c.h.b16 %v2770
      %v2843 = vunpack.c.l.b16 %v2771
      %v2844 = vunpack.c.h.b16 %v2771
      %v2845 = vunpack.c.l.b16 %v2772
      %v2846 = vunpack.c.h.b16 %v2772
      %v2847 = vunpack.c.l.b16 %v2773
      %v2848 = vunpack.c.h.b16 %v2773
      %v2849 = vunpack.c.l.b16 %v2774
      %v2850 = vunpack.c.h.b16 %v2774
      %v2851 = vunpack.c.l.b16 %v2775
      %v2852 = vunpack.c.h.b16 %v2775
      %v2853 = vunpack.c.l.b16 %v2776
      %v2854 = vunpack.c.h.b16 %v2776
      %v2855 = vunpack.c.l.b16 %v2777
      %v2856 = vunpack.c.h.b16 %v2777
      %v2857 = vunpack.c.l.b16 %v2778
      %v2858 = vunpack.c.h.b16 %v2778
      %v2859 = vpack.c.b16 %v2821, %v2819
      %v2860 = vpack.c.b16 %v2822, %v2820
      %v2861 = vpack.c.b16 %v2825, %v2823
      %v2862 = vpack.c.b16 %v2826, %v2824
      %v2863 = vpack.c.b16 %v2829, %v2827
      %v2864 = vpack.c.b16 %v2830, %v2828
      %v2865 = vpack.c.b16 %v2833, %v2831
      %v2866 = vpack.c.b16 %v2834, %v2832
      %v2867 = vpack.c.b16 %v2837, %v2835
      %v2868 = vpack.c.b16 %v2838, %v2836
      %v2869 = vpack.c.b16 %v2841, %v2839
      %v2870 = vpack.c.b16 %v2842, %v2840
      %v2871 = vpack.c.b16 %v2845, %v2843
      %v2872 = vpack.c.b16 %v2846, %v2844
      %v2873 = vpack.c.b16 %v2849, %v2847
      %v2874 = vpack.c.b16 %v2850, %v2848
      %v2875 = vpack.c.b16 %v2853, %v2851
      %v2876 = vpack.c.b16 %v2854, %v2852
      %v2877 = vpack.c.b16 %v2857, %v2855
      %v2878 = vpack.c.b16 %v2858, %v2856
      %v2900 = vsel %vm423, %v2797, 0
      %2902 = vmatprep.subr.bf16.mxu0 %v2860
      %2903 = vmatpush1.bf16.msra.mxu0 %v2859
      %2904 = vmatprep.subr.bf16.mxu0 %v2862
      %2905 = vmatpush1.bf16.msra.mxu0 %v2861
      %2906 = vmatprep.subr.bf16.mxu0 %v2864
      %2907 = vmatpush1.bf16.msra.mxu0 %v2863
      %2908 = vmatprep.subr.bf16.mxu0 %v2866
      %2909 = vmatpush1.bf16.msra.mxu0 %v2865
      %2910 = vmatprep.subr.bf16.mxu0 %v2868
      %2911 = vmatpush1.bf16.msra.mxu0 %v2867
      %2912 = vmatprep.subr.bf16.mxu0 %v2870
      %2913 = vmatpush1.bf16.msra.mxu0 %v2869
      %2914 = vmatprep.subr.bf16.mxu0 %v2872
      %2915 = vmatpush1.bf16.msra.mxu0 %v2871
      %2916 = vmatprep.subr.bf16.mxu0 %v2874
      %2917 = vmatpush1.bf16.msra.mxu0 %v2873
      %2918 = vmatprep.subr.bf16.mxu0 %v2876
      %2919 = vmatpush1.bf16.msra.mxu0 %v2875
      %2920 = vmatprep.subr.bf16.mxu0 %v2878
      %2921 = vmatpush1.bf16.msra.mxu0 %v2877
      %2922 = vmatprep.subr.bf16.mxu0 0
      %2923 = vmatpush1.bf16.msra.mxu0 0
      %2924 = vmatprep.subr.bf16.mxu0 0
      %2925 = vmatpush1.bf16.msra.mxu0 0
      %2926 = vmatprep.subr.bf16.mxu0 0
      %2927 = vmatpush1.bf16.msra.mxu0 0
      %2928 = vmatprep.subr.bf16.mxu0 0
      %2929 = vmatpush1.bf16.msra.mxu0 0
      %2930 = vmatprep.subr.bf16.mxu0 0
      %2931 = vmatpush1.bf16.msra.mxu0 0
      %2932 = vmatprep.subr.bf16.mxu0 0
      %2933 = vmatpush1.bf16.msra.mxu0 0
      %2934 = vmatprep.mubr.bf16.mxu0 %v2900
      %2935 = vmatmul.mubr.bf16.gmra.mrb[0].mxu0 %v2790
      %v2936 = vpop.f32.mrb[0].mxu0
      %v2937 = vadd.f32 0.0, %v2936
      %v2938 = vpop.f32.mrb[0].mxu0
      %v2939 = vadd.f32 0.0, %v2938
      %v2940 = vpop.f32.mrb[0].mxu0
      %v2941 = vpop.f32.mrb[0].mxu0
      %2942 = vdwg.mxu0
      %v2943 = vadd.f32 %v2756, %v2937
      %v2944 = vadd.f32 %v2757, %v2939
      %s2945 = scalar_lea.vmem %s3, 1120
      %v2946 = vld [vmem:[%s2945] sm:$0xff]
      %v2947 = vld [vmem:[%s2945 + $0x8] sm:$0xff]
      %v2948 = vld [vmem:[%s2945 + $0x10] sm:$0xff]
      %v2949 = vld [vmem:[%s2945 + $0x18] sm:$0xff]
      %v2950 = vld [vmem:[%s2945 + $0x20] sm:$0xff]
      %v2951 = vld [vmem:[%s2945 + $0x28] sm:$0xff]
      %v2952 = vld [vmem:[%s2945 + $0x30] sm:$0xff]
      %v2953 = vld [vmem:[%s2945 + $0x38] sm:$0xff]
      %v2954 = vld [vmem:[%s2945 + $0x40] sm:$0xff]
      %v2955 = vld [vmem:[%s2945 + $0x48] sm:$0xff]
      %v2956 = vld [vmem:[%s2945 + $0x50] sm:$0xff]
      %v2957 = vld [vmem:[%s2945 + $0x58] sm:$0xff]
      %v2958 = vld [vmem:[%s2945 + $0x60] sm:$0xff]
      %v2959 = vld [vmem:[%s2945 + $0x68] sm:$0xff]
      %v2960 = vld [vmem:[%s2945 + $0x70] sm:$0xff]
      %v2961 = vld [vmem:[%s2945 + $0x78] sm:$0xff]
      %v2962 = vld [vmem:[%s2945 + $0x80] sm:$0xff]
      %v2963 = vld [vmem:[%s2945 + $0x88] sm:$0xff]
      %v2964 = vld [vmem:[%s2945 + $0x90] sm:$0xff]
      %v2965 = vld [vmem:[%s2945 + $0x98] sm:$0xff]
      %v2967 = vunpack.c.l.b16 %v2411
      %v2968 = vunpack.c.h.b16 %v2411
      %v2969 = vpack.c.b16 %v2967, %v2607
      %v2970 = vpack.c.b16 %v2968, %v2608
      %v2972 = vshrl.u32 %v2969, 16
      %v2974 = vshll.u32 %v2969, 16
      %v2976 = vrot.slane %v2974, 1
      %v2977 = vor.u32 %v2972, %v2976
      %v2979 = vshrl.u32 %v2970, 16
      %v2981 = vshll.u32 %v2970, 16
      %v2983 = vrot.slane %v2981, 1
      %v2984 = vor.u32 %v2979, %v2983
      %v3006 = vunpack.c.l.b16 %v2946
      %v3007 = vunpack.c.h.b16 %v2946
      %v3008 = vunpack.c.l.b16 %v2947
      %v3009 = vunpack.c.h.b16 %v2947
      %v3010 = vunpack.c.l.b16 %v2948
      %v3011 = vunpack.c.h.b16 %v2948
      %v3012 = vunpack.c.l.b16 %v2949
      %v3013 = vunpack.c.h.b16 %v2949
      %v3014 = vunpack.c.l.b16 %v2950
      %v3015 = vunpack.c.h.b16 %v2950
      %v3016 = vunpack.c.l.b16 %v2951
      %v3017 = vunpack.c.h.b16 %v2951
      %v3018 = vunpack.c.l.b16 %v2952
      %v3019 = vunpack.c.h.b16 %v2952
      %v3020 = vunpack.c.l.b16 %v2953
      %v3021 = vunpack.c.h.b16 %v2953
      %v3022 = vunpack.c.l.b16 %v2954
      %v3023 = vunpack.c.h.b16 %v2954
      %v3024 = vunpack.c.l.b16 %v2955
      %v3025 = vunpack.c.h.b16 %v2955
      %v3026 = vunpack.c.l.b16 %v2956
      %v3027 = vunpack.c.h.b16 %v2956
      %v3028 = vunpack.c.l.b16 %v2957
      %v3029 = vunpack.c.h.b16 %v2957
      %v3030 = vunpack.c.l.b16 %v2958
      %v3031 = vunpack.c.h.b16 %v2958
      %v3032 = vunpack.c.l.b16 %v2959
      %v3033 = vunpack.c.h.b16 %v2959
      %v3034 = vunpack.c.l.b16 %v2960
      %v3035 = vunpack.c.h.b16 %v2960
      %v3036 = vunpack.c.l.b16 %v2961
      %v3037 = vunpack.c.h.b16 %v2961
      %v3038 = vunpack.c.l.b16 %v2962
      %v3039 = vunpack.c.h.b16 %v2962
      %v3040 = vunpack.c.l.b16 %v2963
      %v3041 = vunpack.c.h.b16 %v2963
      %v3042 = vunpack.c.l.b16 %v2964
      %v3043 = vunpack.c.h.b16 %v2964
      %v3044 = vunpack.c.l.b16 %v2965
      %v3045 = vunpack.c.h.b16 %v2965
      %v3046 = vpack.c.b16 %v3008, %v3006
      %v3047 = vpack.c.b16 %v3009, %v3007
      %v3048 = vpack.c.b16 %v3012, %v3010
      %v3049 = vpack.c.b16 %v3013, %v3011
      %v3050 = vpack.c.b16 %v3016, %v3014
      %v3051 = vpack.c.b16 %v3017, %v3015
      %v3052 = vpack.c.b16 %v3020, %v3018
      %v3053 = vpack.c.b16 %v3021, %v3019
      %v3054 = vpack.c.b16 %v3024, %v3022
      %v3055 = vpack.c.b16 %v3025, %v3023
      %v3056 = vpack.c.b16 %v3028, %v3026
      %v3057 = vpack.c.b16 %v3029, %v3027
      %v3058 = vpack.c.b16 %v3032, %v3030
      %v3059 = vpack.c.b16 %v3033, %v3031
      %v3060 = vpack.c.b16 %v3036, %v3034
      %v3061 = vpack.c.b16 %v3037, %v3035
      %v3062 = vpack.c.b16 %v3040, %v3038
      %v3063 = vpack.c.b16 %v3041, %v3039
      %v3064 = vpack.c.b16 %v3044, %v3042
      %v3065 = vpack.c.b16 %v3045, %v3043
      %v3087 = vsel %vm423, %v2984, 0
      %3089 = vmatprep.subr.bf16.mxu0 %v3047
      %3090 = vmatpush1.bf16.msra.mxu0 %v3046
      %3091 = vmatprep.subr.bf16.mxu0 %v3049
      %3092 = vmatpush1.bf16.msra.mxu0 %v3048
      %3093 = vmatprep.subr.bf16.mxu0 %v3051
      %3094 = vmatpush1.bf16.msra.mxu0 %v3050
      %3095 = vmatprep.subr.bf16.mxu0 %v3053
      %3096 = vmatpush1.bf16.msra.mxu0 %v3052
      %3097 = vmatprep.subr.bf16.mxu0 %v3055
      %3098 = vmatpush1.bf16.msra.mxu0 %v3054
      %3099 = vmatprep.subr.bf16.mxu0 %v3057
      %3100 = vmatpush1.bf16.msra.mxu0 %v3056
      %3101 = vmatprep.subr.bf16.mxu0 %v3059
      %3102 = vmatpush1.bf16.msra.mxu0 %v3058
      %3103 = vmatprep.subr.bf16.mxu0 %v3061
      %3104 = vmatpush1.bf16.msra.mxu0 %v3060
      %3105 = vmatprep.subr.bf16.mxu0 %v3063
      %3106 = vmatpush1.bf16.msra.mxu0 %v3062
      %3107 = vmatprep.subr.bf16.mxu0 %v3065
      %3108 = vmatpush1.bf16.msra.mxu0 %v3064
      %3109 = vmatprep.subr.bf16.mxu0 0
      %3110 = vmatpush1.bf16.msra.mxu0 0
      %3111 = vmatprep.subr.bf16.mxu0 0
      %3112 = vmatpush1.bf16.msra.mxu0 0
      %3113 = vmatprep.subr.bf16.mxu0 0
      %3114 = vmatpush1.bf16.msra.mxu0 0
      %3115 = vmatprep.subr.bf16.mxu0 0
      %3116 = vmatpush1.bf16.msra.mxu0 0
      %3117 = vmatprep.subr.bf16.mxu0 0
      %3118 = vmatpush1.bf16.msra.mxu0 0
      %3119 = vmatprep.subr.bf16.mxu0 0
      %3120 = vmatpush1.bf16.msra.mxu0 0
      %3121 = vmatprep.mubr.bf16.mxu0 %v3087
      %3122 = vmatmul.mubr.bf16.gmra.mrb[0].mxu0 %v2977
      %v3123 = vpop.f32.mrb[0].mxu0
      %v3124 = vadd.f32 0.0, %v3123
      %v3125 = vpop.f32.mrb[0].mxu0
      %v3126 = vadd.f32 0.0, %v3125
      %v3127 = vpop.f32.mrb[0].mxu0
      %v3128 = vpop.f32.mrb[0].mxu0
      %3129 = vdwg.mxu0
      %v3130 = vadd.f32 %v2943, %v3124
      %v3131 = vadd.f32 %v2944, %v3126
      %s3132 = scalar_lea.vmem %s1, 1280
      %v3133 = vld [vmem:[%s3132] sm:$0xff]
      %v3134 = vld [vmem:[%s3132 + $0x8] sm:$0xff]
      %v3135 = vld [vmem:[%s3132 + $0x10] sm:$0xff]
      %v3136 = vld [vmem:[%s3132 + $0x18] sm:$0xff]
      %v3137 = vld [vmem:[%s3132 + $0x20] sm:$0xff]
      %v3138 = vld [vmem:[%s3132 + $0x28] sm:$0xff]
      %v3139 = vld [vmem:[%s3132 + $0x30] sm:$0xff]
      %v3140 = vld [vmem:[%s3132 + $0x38] sm:$0xff]
      %v3141 = vld [vmem:[%s3132 + $0x40] sm:$0xff]
      %v3142 = vld [vmem:[%s3132 + $0x48] sm:$0xff]
      %v3143 = vld [vmem:[%s3132 + $0x50] sm:$0xff]
      %v3144 = vld [vmem:[%s3132 + $0x58] sm:$0xff]
      %v3145 = vld [vmem:[%s3132 + $0x60] sm:$0xff]
      %v3146 = vld [vmem:[%s3132 + $0x68] sm:$0xff]
      %v3147 = vld [vmem:[%s3132 + $0x70] sm:$0xff]
      %v3148 = vld [vmem:[%s3132 + $0x78] sm:$0xff]
      %v3149 = vld [vmem:[%s3132 + $0x80] sm:$0xff]
      %v3150 = vld [vmem:[%s3132 + $0x88] sm:$0xff]
      %v3151 = vld [vmem:[%s3132 + $0x90] sm:$0xff]
      %v3152 = vld [vmem:[%s3132 + $0x98] sm:$0xff]
      %v3153 = vrot.slane %v2782, 1
      %v3154 = vrot.slane %v2783, 1
      %v3176 = vunpack.c.l.b16 %v3133
      %v3177 = vunpack.c.h.b16 %v3133
      %v3178 = vunpack.c.l.b16 %v3134
      %v3179 = vunpack.c.h.b16 %v3134
      %v3180 = vunpack.c.l.b16 %v3135
      %v3181 = vunpack.c.h.b16 %v3135
      %v3182 = vunpack.c.l.b16 %v3136
      %v3183 = vunpack.c.h.b16 %v3136
      %v3184 = vunpack.c.l.b16 %v3137
      %v3185 = vunpack.c.h.b16 %v3137
      %v3186 = vunpack.c.l.b16 %v3138
      %v3187 = vunpack.c.h.b16 %v3138
      %v3188 = vunpack.c.l.b16 %v3139
      %v3189 = vunpack.c.h.b16 %v3139
      %v3190 = vunpack.c.l.b16 %v3140
      %v3191 = vunpack.c.h.b16 %v3140
      %v3192 = vunpack.c.l.b16 %v3141
      %v3193 = vunpack.c.h.b16 %v3141
      %v3194 = vunpack.c.l.b16 %v3142
      %v3195 = vunpack.c.h.b16 %v3142
      %v3196 = vunpack.c.l.b16 %v3143
      %v3197 = vunpack.c.h.b16 %v3143
      %v3198 = vunpack.c.l.b16 %v3144
      %v3199 = vunpack.c.h.b16 %v3144
      %v3200 = vunpack.c.l.b16 %v3145
      %v3201 = vunpack.c.h.b16 %v3145
      %v3202 = vunpack.c.l.b16 %v3146
      %v3203 = vunpack.c.h.b16 %v3146
      %v3204 = vunpack.c.l.b16 %v3147
      %v3205 = vunpack.c.h.b16 %v3147
      %v3206 = vunpack.c.l.b16 %v3148
      %v3207 = vunpack.c.h.b16 %v3148
      %v3208 = vunpack.c.l.b16 %v3149
      %v3209 = vunpack.c.h.b16 %v3149
      %v3210 = vunpack.c.l.b16 %v3150
      %v3211 = vunpack.c.h.b16 %v3150
      %v3212 = vunpack.c.l.b16 %v3151
      %v3213 = vunpack.c.h.b16 %v3151
      %v3214 = vunpack.c.l.b16 %v3152
      %v3215 = vunpack.c.h.b16 %v3152
      %v3216 = vpack.c.b16 %v3178, %v3176
      %v3217 = vpack.c.b16 %v3179, %v3177
      %v3218 = vpack.c.b16 %v3182, %v3180
      %v3219 = vpack.c.b16 %v3183, %v3181
      %v3220 = vpack.c.b16 %v3186, %v3184
      %v3221 = vpack.c.b16 %v3187, %v3185
      %v3222 = vpack.c.b16 %v3190, %v3188
      %v3223 = vpack.c.b16 %v3191, %v3189
      %v3224 = vpack.c.b16 %v3194, %v3192
      %v3225 = vpack.c.b16 %v3195, %v3193
      %v3226 = vpack.c.b16 %v3198, %v3196
      %v3227 = vpack.c.b16 %v3199, %v3197
      %v3228 = vpack.c.b16 %v3202, %v3200
      %v3229 = vpack.c.b16 %v3203, %v3201
      %v3230 = vpack.c.b16 %v3206, %v3204
      %v3231 = vpack.c.b16 %v3207, %v3205
      %v3232 = vpack.c.b16 %v3210, %v3208
      %v3233 = vpack.c.b16 %v3211, %v3209
      %v3234 = vpack.c.b16 %v3214, %v3212
      %v3235 = vpack.c.b16 %v3215, %v3213
      %v3257 = vsel %vm423, %v3154, 0
      %3259 = vmatprep.subr.bf16.mxu0 %v3217
      %3260 = vmatpush1.bf16.msra.mxu0 %v3216
      %3261 = vmatprep.subr.bf16.mxu0 %v3219
      %3262 = vmatpush1.bf16.msra.mxu0 %v3218
      %3263 = vmatprep.subr.bf16.mxu0 %v3221
      %3264 = vmatpush1.bf16.msra.mxu0 %v3220
      %3265 = vmatprep.subr.bf16.mxu0 %v3223
      %3266 = vmatpush1.bf16.msra.mxu0 %v3222
      %3267 = vmatprep.subr.bf16.mxu0 %v3225
      %3268 = vmatpush1.bf16.msra.mxu0 %v3224
      %3269 = vmatprep.subr.bf16.mxu0 %v3227
      %3270 = vmatpush1.bf16.msra.mxu0 %v3226
      %3271 = vmatprep.subr.bf16.mxu0 %v3229
      %3272 = vmatpush1.bf16.msra.mxu0 %v3228
      %3273 = vmatprep.subr.bf16.mxu0 %v3231
      %3274 = vmatpush1.bf16.msra.mxu0 %v3230
      %3275 = vmatprep.subr.bf16.mxu0 %v3233
      %3276 = vmatpush1.bf16.msra.mxu0 %v3232
      %3277 = vmatprep.subr.bf16.mxu0 %v3235
      %3278 = vmatpush1.bf16.msra.mxu0 %v3234
      %3279 = vmatprep.subr.bf16.mxu0 0
      %3280 = vmatpush1.bf16.msra.mxu0 0
      %3281 = vmatprep.subr.bf16.mxu0 0
      %3282 = vmatpush1.bf16.msra.mxu0 0
      %3283 = vmatprep.subr.bf16.mxu0 0
      %3284 = vmatpush1.bf16.msra.mxu0 0
      %3285 = vmatprep.subr.bf16.mxu0 0
      %3286 = vmatpush1.bf16.msra.mxu0 0
      %3287 = vmatprep.subr.bf16.mxu0 0
      %3288 = vmatpush1.bf16.msra.mxu0 0
      %3289 = vmatprep.subr.bf16.mxu0 0
      %3290 = vmatpush1.bf16.msra.mxu0 0
      %3291 = vmatprep.mubr.bf16.mxu0 %v3257
      %3292 = vmatmul.mubr.bf16.gmra.mrb[0].mxu0 %v3153
      %v3293 = vpop.f32.mrb[0].mxu0
      %v3294 = vadd.f32 0.0, %v3293
      %v3295 = vpop.f32.mrb[0].mxu0
      %v3296 = vadd.f32 0.0, %v3295
      %v3297 = vpop.f32.mrb[0].mxu0
      %v3298 = vpop.f32.mrb[0].mxu0
      %3299 = vdwg.mxu0
      %v3300 = vadd.f32 %v3130, %v3294
      %v3301 = vadd.f32 %v3131, %v3296
      %s3302 = scalar_lea.vmem %s3, 1280
      %v3303 = vld [vmem:[%s3302] sm:$0xff]
      %v3304 = vld [vmem:[%s3302 + $0x8] sm:$0xff]
      %v3305 = vld [vmem:[%s3302 + $0x10] sm:$0xff]
      %v3306 = vld [vmem:[%s3302 + $0x18] sm:$0xff]
      %v3307 = vld [vmem:[%s3302 + $0x20] sm:$0xff]
      %v3308 = vld [vmem:[%s3302 + $0x28] sm:$0xff]
      %v3309 = vld [vmem:[%s3302 + $0x30] sm:$0xff]
      %v3310 = vld [vmem:[%s3302 + $0x38] sm:$0xff]
      %v3311 = vld [vmem:[%s3302 + $0x40] sm:$0xff]
      %v3312 = vld [vmem:[%s3302 + $0x48] sm:$0xff]
      %v3313 = vld [vmem:[%s3302 + $0x50] sm:$0xff]
      %v3314 = vld [vmem:[%s3302 + $0x58] sm:$0xff]
      %v3315 = vld [vmem:[%s3302 + $0x60] sm:$0xff]
      %v3316 = vld [vmem:[%s3302 + $0x68] sm:$0xff]
      %v3317 = vld [vmem:[%s3302 + $0x70] sm:$0xff]
      %v3318 = vld [vmem:[%s3302 + $0x78] sm:$0xff]
      %v3319 = vld [vmem:[%s3302 + $0x80] sm:$0xff]
      %v3320 = vld [vmem:[%s3302 + $0x88] sm:$0xff]
      %v3321 = vld [vmem:[%s3302 + $0x90] sm:$0xff]
      %v3322 = vld [vmem:[%s3302 + $0x98] sm:$0xff]
      %v3323 = vrot.slane %v2969, 1
      %v3324 = vrot.slane %v2970, 1
      %v3346 = vunpack.c.l.b16 %v3303
      %v3347 = vunpack.c.h.b16 %v3303
      %v3348 = vunpack.c.l.b16 %v3304
      %v3349 = vunpack.c.h.b16 %v3304
      %v3350 = vunpack.c.l.b16 %v3305
      %v3351 = vunpack.c.h.b16 %v3305
      %v3352 = vunpack.c.l.b16 %v3306
      %v3353 = vunpack.c.h.b16 %v3306
      %v3354 = vunpack.c.l.b16 %v3307
      %v3355 = vunpack.c.h.b16 %v3307
      %v3356 = vunpack.c.l.b16 %v3308
      %v3357 = vunpack.c.h.b16 %v3308
      %v3358 = vunpack.c.l.b16 %v3309
      %v3359 = vunpack.c.h.b16 %v3309
      %v3360 = vunpack.c.l.b16 %v3310
      %v3361 = vunpack.c.h.b16 %v3310
      %v3362 = vunpack.c.l.b16 %v3311
      %v3363 = vunpack.c.h.b16 %v3311
      %v3364 = vunpack.c.l.b16 %v3312
      %v3365 = vunpack.c.h.b16 %v3312
      %v3366 = vunpack.c.l.b16 %v3313
      %v3367 = vunpack.c.h.b16 %v3313
      %v3368 = vunpack.c.l.b16 %v3314
      %v3369 = vunpack.c.h.b16 %v3314
      %v3370 = vunpack.c.l.b16 %v3315
      %v3371 = vunpack.c.h.b16 %v3315
      %v3372 = vunpack.c.l.b16 %v3316
      %v3373 = vunpack.c.h.b16 %v3316
      %v3374 = vunpack.c.l.b16 %v3317
      %v3375 = vunpack.c.h.b16 %v3317
      %v3376 = vunpack.c.l.b16 %v3318
      %v3377 = vunpack.c.h.b16 %v3318
      %v3378 = vunpack.c.l.b16 %v3319
      %v3379 = vunpack.c.h.b16 %v3319
      %v3380 = vunpack.c.l.b16 %v3320
      %v3381 = vunpack.c.h.b16 %v3320
      %v3382 = vunpack.c.l.b16 %v3321
      %v3383 = vunpack.c.h.b16 %v3321
      %v3384 = vunpack.c.l.b16 %v3322
      %v3385 = vunpack.c.h.b16 %v3322
      %v3386 = vpack.c.b16 %v3348, %v3346
      %v3387 = vpack.c.b16 %v3349, %v3347
      %v3388 = vpack.c.b16 %v3352, %v3350
      %v3389 = vpack.c.b16 %v3353, %v3351
      %v3390 = vpack.c.b16 %v3356, %v3354
      %v3391 = vpack.c.b16 %v3357, %v3355
      %v3392 = vpack.c.b16 %v3360, %v3358
      %v3393 = vpack.c.b16 %v3361, %v3359
      %v3394 = vpack.c.b16 %v3364, %v3362
      %v3395 = vpack.c.b16 %v3365, %v3363
      %v3396 = vpack.c.b16 %v3368, %v3366
      %v3397 = vpack.c.b16 %v3369, %v3367
      %v3398 = vpack.c.b16 %v3372, %v3370
      %v3399 = vpack.c.b16 %v3373, %v3371
      %v3400 = vpack.c.b16 %v3376, %v3374
      %v3401 = vpack.c.b16 %v3377, %v3375
      %v3402 = vpack.c.b16 %v3380, %v3378
      %v3403 = vpack.c.b16 %v3381, %v3379
      %v3404 = vpack.c.b16 %v3384, %v3382
      %v3405 = vpack.c.b16 %v3385, %v3383
      %v3427 = vsel %vm423, %v3324, 0
      %3429 = vmatprep.subr.bf16.mxu0 %v3387
      %3430 = vmatpush1.bf16.msra.mxu0 %v3386
      %3431 = vmatprep.subr.bf16.mxu0 %v3389
      %3432 = vmatpush1.bf16.msra.mxu0 %v3388
      %3433 = vmatprep.subr.bf16.mxu0 %v3391
      %3434 = vmatpush1.bf16.msra.mxu0 %v3390
      %3435 = vmatprep.subr.bf16.mxu0 %v3393
      %3436 = vmatpush1.bf16.msra.mxu0 %v3392
      %3437 = vmatprep.subr.bf16.mxu0 %v3395
      %3438 = vmatpush1.bf16.msra.mxu0 %v3394
      %3439 = vmatprep.subr.bf16.mxu0 %v3397
      %3440 = vmatpush1.bf16.msra.mxu0 %v3396
      %3441 = vmatprep.subr.bf16.mxu0 %v3399
      %3442 = vmatpush1.bf16.msra.mxu0 %v3398
      %3443 = vmatprep.subr.bf16.mxu0 %v3401
      %3444 = vmatpush1.bf16.msra.mxu0 %v3400
      %3445 = vmatprep.subr.bf16.mxu0 %v3403
      %3446 = vmatpush1.bf16.msra.mxu0 %v3402
      %3447 = vmatprep.subr.bf16.mxu0 %v3405
      %3448 = vmatpush1.bf16.msra.mxu0 %v3404
      %3449 = vmatprep.subr.bf16.mxu0 0
      %3450 = vmatpush1.bf16.msra.mxu0 0
      %3451 = vmatprep.subr.bf16.mxu0 0
      %3452 = vmatpush1.bf16.msra.mxu0 0
      %3453 = vmatprep.subr.bf16.mxu0 0
      %3454 = vmatpush1.bf16.msra.mxu0 0
      %3455 = vmatprep.subr.bf16.mxu0 0
      %3456 = vmatpush1.bf16.msra.mxu0 0
      %3457 = vmatprep.subr.bf16.mxu0 0
      %3458 = vmatpush1.bf16.msra.mxu0 0
      %3459 = vmatprep.subr.bf16.mxu0 0
      %3460 = vmatpush1.bf16.msra.mxu0 0
      %3461 = vmatprep.mubr.bf16.mxu0 %v3427
      %3462 = vmatmul.mubr.bf16.gmra.mrb[0].mxu0 %v3323
      %v3463 = vpop.f32.mrb[0].mxu0
      %v3464 = vadd.f32 0.0, %v3463
      %v3465 = vpop.f32.mrb[0].mxu0
      %v3466 = vadd.f32 0.0, %v3465
      %v3467 = vpop.f32.mrb[0].mxu0
      %v3468 = vpop.f32.mrb[0].mxu0
      %3469 = vdwg.mxu0
      %v3470 = vadd.f32 %v3300, %v3464
      %v3471 = vadd.f32 %v3301, %v3466
      %v3472 = vld [vmem:[%s4] sm:$0x3]
      %v3474 = vlaneseq
      %v3475 = vshrl.u32 %v3474, 7
      %v3476 = vsub.s32 0, %v3475
      %v3477 = vrot.slane %v3472, %v3476
      %v3478 = vlaneseq
      %v3479 = vshrl.u32 %v3478, 7
      %v3480 = vsub.s32 1, %v3479
      %v3481 = vrot.slane %v3472, %v3480
      %v3484 = vadd.f32 %v3470, %v3477
      %v3485 = vadd.f32 %v3471, %v3481
      %v3486 = vmax.f32 %v3484, 0.0
      %v3487 = vmax.f32 %v3485, 0.0
      %v3488 = vpack.c.bf16 %v3486, %v3486
      %v3489 = vpack.c.bf16 %v3487, %v3487
      %v3492 = vunpack.c.l.b16 %v3488
      %v3493 = vunpack.c.l.b16 %v3489
      %v3494 = vpack.c.b16 %v3493, %v3492
      %3496 = vst [vmem:[%s266] sm:$0xff] %v3494
      %p3497 = scmp.lt.s32.totalorder %s20, 1
      %s3498 = scalar_select %p3497, %s20, 1
      %p3499 = scmp.lt.s32.totalorder %s21, 3
      %s3500 = scalar_select %p3499, %s21, 3
      %s3501 = smul.addr %s3500, 2
      %s3502 = smul.addr %s3498, 8
      %s3503 = sadd.s32 %s3501, %s3502
      %s3504 = smul.addr %s3503, 4
      %s3505 = scalar_lea.vmem %s5, %s3504
      // Predicated region
      $region41: #{decoder3d_forward.4} parent=39 // pred_check
        %p3506 = pneg %p163
      $region42: #{decoder3d_forward.4} parent=39 // pred_check_branch
        %3508 = sbr.rel (%p3506) target = $region44
      $region43: #{decoder3d_forward.4} parent=39 // pred_region
        _
      $region44: #{decoder3d_forward.4} parent=39 // pred_fallthru
        _
    $region40: #{decoder3d_forward.4} parent=5 // pred_fallthru
      _
    %p3509 = scmp.le.s32.totalorder 2, %s11
    // Predicated region
    $region45: #{decoder3d_forward.4} parent=5 // pred_check
      %p3510 = pneg %p3509
    $region46: #{decoder3d_forward.4} parent=5 // pred_check_branch
      %3512 = sbr.rel (%p3510) target = $region48
    $region47: #{decoder3d_forward.4} parent=5 // pred_region
      %s3513 = ssub.s32 %s11, 2
      // Predicated region
      $region49: #{decoder3d_forward.4} parent=47 // pred_check
        %p3514 = pneg %p169
      $region50: #{decoder3d_forward.4} parent=47 // pred_check_branch
        %3516 = sbr.rel (%p3514) target = $region52
      $region51: #{decoder3d_forward.4} parent=47 // pred_region
        %p3517 = scmp.lt.s32.totalorder %s22, 1
        %s3518 = scalar_select %p3517, %s22, 1
        %p3519 = scmp.lt.s32.totalorder %s23, 3
        %s3520 = scalar_select %p3519, %s23, 3
        %s3521 = smul.addr %s3520, 2
        %s3522 = smul.addr %s3518, 8
        %s3523 = sadd.s32 %s3521, %s3522
        %s3524 = smul.addr %s3523, 4
        %s3525 = scalar_lea.vmem %s5, %s3524
      $region52: #{decoder3d_forward.4} parent=47 // pred_fallthru
        _
    $region48: #{decoder3d_forward.4} parent=5 // pred_fallthru
      _
  $region6: #{decoder3d_forward.4} parent=0 // loop_footer
    %s15 = sadd.s32 1, %s11
  $region7: #{decoder3d_forward.4} parent=0 // loop_footer_branch
    %10 = sbr.rel target = $region3
  $region8: #{decoder3d_forward.4} parent=0 // loop_exit
    _

// kernel: tile.33
$region0: #{tile.33}
  #allocation0 [shape = 's32[1]{0}', space=sflag, size = 0x4, scoped, tag = 'scoped memory for tile.33']
  %s0 = inlined_call_operand.vmem [shape: f32[4], index: 0, kind: input, shape index: {}]
  %s1 = inlined_call_operand.vmem [shape: f32[64,4], index: 1, kind: output, shape index: {}]
  // Predicated region
  $region2: #{tile.33} parent=0 // pred_check
    _
  $region3: #{tile.33} parent=0 // pred_check_branch
    %3 = sbr.rel (0) target = $region5
  $region4: #{tile.33} parent=0 // pred_region
    _
  $region5: #{tile.33} parent=0 // pred_fallthru
    _
  %v4 = vld [vmem:[%s0] ss:$0 sm:$0xff]
  %5 = vst [vmem:[%s1] sm:$0xff] %v4
  %s6 = scalar_lea.vmem %s1, 8
  %7 = vst [vmem:[%s6] sm:$0xff] %v4
  %s8 = scalar_lea.vmem %s1, 16
  %9 = vst [vmem:[%s8] sm:$0xff] %v4
  %s10 = scalar_lea.vmem %s1, 24
  %11 = vst [vmem:[%s10] sm:$0xff] %v4
  %s12 = scalar_lea.vmem %s1, 32
  %13 = vst [vmem:[%s12] sm:$0xff] %v4
  %s14 = scalar_lea.vmem %s1, 40
  %15 = vst [vmem:[%s14] sm:$0xff] %v4
  %s16 = scalar_lea.vmem %s1, 48
  %17 = vst [vmem:[%s16] sm:$0xff] %v4
  %s18 = scalar_lea.vmem %s1, 56
  %19 = vst [vmem:[%s18] sm:$0xff] %v4

// kernel: tile.34
$region0: #{tile.34}
  %s0 = inlined_call_operand.vmem [shape: f32[64,4], index: 0, kind: input, shape index: {}]
  %s1 = inlined_call_operand.vmem [shape: f32[1,256], index: 1, kind: output, shape index: {}]
  $region1: #{tile.34} parent=0
    #allocation0 [shape = 'u8[8192]{0}', space=vmem, size = 0x2000, scoped, tag = 'scoped mem for output reshape']
    %v2 = vld [vmem:[%s0] sm:$0x1]
    %s3 = scalar_lea.vmem %s0, 31
    %v4 = vld [vmem:[%s3] sm:$0x2]
    %vm5 = vcmask 1041409
    %v6 = vsel %vm5, %v4, %v2
    %vm7 = vcmask 31744
    %8 = vst.msk [vmem:[#allocation0] ss:$8 sm:$0x3] %vm7, %v6
    %s9 = scalar_lea.vmem %s0, 31
    %v10 = vld [vmem:[%s9] sm:$0x1]
    %s11 = scalar_lea.vmem %s0, 62
    %v12 = vld [vmem:[%s11] sm:$0x2]
    %vm13 = vcmask 1041409
    %v14 = vsel %vm13, %v12, %v10
    %15 = vrot.lane.b32.xlu0 %v14, 124
    %v16 = vpop.permute.xlu0 %15
    %vm17 = vcmask 1048544
    %18 = vst.msk [vmem:[#allocation0] ss:$8 sm:$0x3] %vm17, %v16
    %s19 = scalar_lea.vmem %s0, 30
    %v20 = vld [vmem:[%s19] sm:$0x1]
    %s21 = scalar_lea.vmem %s0, 61
    %v22 = vld [vmem:[%s21] sm:$0x2]
    %vm23 = vcmask 1041409
    %v24 = vsel %vm23, %v22, %v20
    %25 = vrot.lane.b32.xlu0 %v24, 120
    %v26 = vpop.permute.xlu0 %25
    %vm27 = vcmask 1015744
    %28 = vst.msk [vmem:[#allocation0] ss:$8 sm:$0x3] %vm27, %v26
    %s29 = scalar_lea.vmem %s0, 29
    %v30 = vld [vmem:[%s29] sm:$0x1]
    %s31 = scalar_lea.vmem %s0, 60
    %v32 = vld [vmem:[%s31] sm:$0x2]
    %vm33 = vcmask 1041409
    %v34 = vsel %vm33, %v32, %v30
    %35 = vrot.lane.b32.xlu0 %v34, 116
    %v36 = vpop.permute.xlu0 %35
    %vm37 = vcmask 982944
    %38 = vst.msk [vmem:[#allocation0] ss:$8 sm:$0x3] %vm37, %v36
    %s39 = scalar_lea.vmem %s0, 28
    %v40 = vld [vmem:[%s39] sm:$0x1]
    %s41 = scalar_lea.vmem %s0, 59
    %v42 = vld [vmem:[%s41] sm:$0x2]
    %vm43 = vcmask 1041409
    %v44 = vsel %vm43, %v42, %v40
    %45 = vrot.lane.b32.xlu0 %v44, 112
    %v46 = vpop.permute.xlu0 %45
    %vm47 = vcmask 950144
    %48 = vst.msk [vmem:[#allocation0] ss:$8 sm:$0x3] %vm47, %v46
    %s49 = scalar_lea.vmem %s0, 27
    %v50 = vld [vmem:[%s49] sm:$0x1]
    %s51 = scalar_lea.vmem %s0, 58
    %v52 = vld [vmem:[%s51] sm:$0x2]
    %vm53 = vcmask 1041409
    %v54 = vsel %vm53, %v52, %v50
    %55 = vrot.lane.b32.xlu0 %v54, 108
    %v56 = vpop.permute.xlu0 %55
    %vm57 = vcmask 917344
    %58 = vst.msk [vmem:[#allocation0] ss:$8 sm:$0x3] %vm57, %v56
    %s59 = scalar_lea.vmem %s0, 26
    %v60 = vld [vmem:[%s59] sm:$0x1]
    %s61 = scalar_lea.vmem %s0, 57
    %v62 = vld [vmem:[%s61] sm:$0x2]
    %vm63 = vcmask 1041409
    %v64 = vsel %vm63, %v62, %v60
    %65 = vrot.lane.b32.xlu0 %v64, 104
    %v66 = vpop.permute.xlu0 %65
    %vm67 = vcmask 884544
    %68 = vst.msk [vmem:[#allocation0] ss:$8 sm:$0x3] %vm67, %v66
    %s69 = scalar_lea.vmem %s0, 25
    %v70 = vld [vmem:[%s69] sm:$0x1]
    %s71 = scalar_lea.vmem %s0, 56
    %v72 = vld [vmem:[%s71] sm:$0x2]
    %vm73 = vcmask 1041409
    %v74 = vsel %vm73, %v72, %v70
    %75 = vrot.lane.b32.xlu0 %v74, 100
    %v76 = vpop.permute.xlu0 %75
    %vm77 = vcmask 851744
    %78 = vst.msk [vmem:[#allocation0] ss:$8 sm:$0x3] %vm77, %v76
    %s79 = scalar_lea.vmem %s0, 24
    %v80 = vld [vmem:[%s79] sm:$0x1]
    %s81 = scalar_lea.vmem %s0, 55
    %v82 = vld [vmem:[%s81] sm:$0x2]
    %vm83 = vcmask 1041409
    %v84 = vsel %vm83, %v82, %v80
    %85 = vrot.lane.b32.xlu0 %v84, 96
    %v86 = vpop.permute.xlu0 %85
    %vm87 = vcmask 818944
    %88 = vst.msk [vmem:[#allocation0] ss:$8 sm:$0x3] %vm87, %v86
    %s89 = scalar_lea.vmem %s0, 23
    %v90 = vld [vmem:[%s89] sm:$0x1]
    %s91 = scalar_lea.vmem %s0, 54
    %v92 = vld [vmem:[%s91] sm:$0x2]
    %vm93 = vcmask 1041409
    %v94 = vsel %vm93, %v92, %v90
    %95 = vrot.lane.b32.xlu0 %v94, 92
    %v96 = vpop.permute.xlu0 %95
    %vm97 = vcmask 786144
    %98 = vst.msk [vmem:[#allocation0] ss:$8 sm:$0x3] %vm97, %v96
    %s99 = scalar_lea.vmem %s0, 22
    %v100 = vld [vmem:[%s99] sm:$0x1]
    %s101 = scalar_lea.vmem %s0, 53
    %v102 = vld [vmem:[%s101] sm:$0x2]
    %vm103 = vcmask 1041409
    %v104 = vsel %vm103, %v102, %v100
    %105 = vrot.lane.b32.xlu0 %v104, 88
    %v106 = vpop.permute.xlu0 %105
    %vm107 = vcmask 753344
    %108 = vst.msk [vmem:[#allocation0] ss:$8 sm:$0x3] %vm107, %v106
    %s109 = scalar_lea.vmem %s0, 21
    %v110 = vld [vmem:[%s109] sm:$0x1]
    %s111 = scalar_lea.vmem %s0, 52
    %v112 = vld [vmem:[%s111] sm:$0x2]
    %vm113 = vcmask 1041409
    %v114 = vsel %vm113, %v112, %v110
    %115 = vrot.lane.b32.xlu0 %v114, 84
    %v116 = vpop.permute.xlu0 %115
    %vm117 = vcmask 720544
    %118 = vst.msk [vmem:[#allocation0] ss:$8 sm:$0x3] %vm117, %v116
    %s119 = scalar_lea.vmem %s0, 20
    %v120 = vld [vmem:[%s119] sm:$0x1]
    %s121 = scalar_lea.vmem %s0, 51
    %v122 = vld [vmem:[%s121] sm:$0x2]
    %vm123 = vcmask 1041409
    %v124 = vsel %vm123, %v122, %v120
    %125 = vrot.lane.b32.xlu0 %v124, 80
    %v126 = vpop.permute.xlu0 %125
    %vm127 = vcmask 687744
    %128 = vst.msk [vmem:[#allocation0] ss:$8 sm:$0x3] %vm127, %v126
    %s129 = scalar_lea.vmem %s0, 19
    %v130 = vld [vmem:[%s129] sm:$0x1]
    %s131 = scalar_lea.vmem %s0, 50
    %v132 = vld [vmem:[%s131] sm:$0x2]
    %vm133 = vcmask 1041409
    %v134 = vsel %vm133, %v132, %v130
    %135 = vrot.lane.b32.xlu0 %v134, 76
    %v136 = vpop.permute.xlu0 %135
    %vm137 = vcmask 654944
    %138 = vst.msk [vmem:[#allocation0] ss:$8 sm:$0x3] %vm137, %v136
    %s139 = scalar_lea.vmem %s0, 18
    %v140 = vld [vmem:[%s139] sm:$0x1]
    %s141 = scalar_lea.vmem %s0, 49
    %v142 = vld [vmem:[%s141] sm:$0x2]
    %vm143 = vcmask 1041409
    %v144 = vsel %vm143, %v142, %v140
    %145 = vrot.lane.b32.xlu0 %v144, 72
    %v146 = vpop.permute.xlu0 %145
    %vm147 = vcmask 622144
    %148 = vst.msk [vmem:[#allocation0] ss:$8 sm:$0x3] %vm147, %v146
    %s149 = scalar_lea.vmem %s0, 17
    %v150 = vld [vmem:[%s149] sm:$0x1]
    %s151 = scalar_lea.vmem %s0, 48
    %v152 = vld [vmem:[%s151] sm:$0x2]
    %vm153 = vcmask 1041409
    %v154 = vsel %vm153, %v152, %v150
    %155 = vrot.lane.b32.xlu0 %v154, 68
    %v156 = vpop.permute.xlu0 %155
    %vm157 = vcmask 589344
    %158 = vst.msk [vmem:[#allocation0] ss:$8 sm:$0x3] %vm157, %v156
    %s159 = scalar_lea.vmem %s0, 16
    %v160 = vld [vmem:[%s159] sm:$0x1]
    %s161 = scalar_lea.vmem %s0, 47
    %v162 = vld [vmem:[%s161] sm:$0x2]
    %vm163 = vcmask 1041409
    %v164 = vsel %vm163, %v162, %v160
    %165 = vrot.lane.b32.xlu0 %v164, 64
    %v166 = vpop.permute.xlu0 %165
    %vm167 = vcmask 556544
    %168 = vst.msk [vmem:[#allocation0] ss:$8 sm:$0x3] %vm167, %v166
    %s169 = scalar_lea.vmem %s0, 15
    %v170 = vld [vmem:[%s169] sm:$0x1]
    %s171 = scalar_lea.vmem %s0, 46
    %v172 = vld [vmem:[%s171] sm:$0x2]
    %vm173 = vcmask 1041409
    %v174 = vsel %vm173, %v172, %v170
    %175 = vrot.lane.b32.xlu0 %v174, 60
    %v176 = vpop.permute.xlu0 %175
    %vm177 = vcmask 523744
    %178 = vst.msk [vmem:[#allocation0] ss:$8 sm:$0x3] %vm177, %v176
    %s179 = scalar_lea.vmem %s0, 14
    %v180 = vld [vmem:[%s179] sm:$0x1]
    %s181 = scalar_lea.vmem %s0, 45
    %v182 = vld [vmem:[%s181] sm:$0x2]
    %vm183 = vcmask 1041409
    %v184 = vsel %vm183, %v182, %v180
    %185 = vrot.lane.b32.xlu0 %v184, 56
    %v186 = vpop.permute.xlu0 %185
    %vm187 = vcmask 490944
    %188 = vst.msk [vmem:[#allocation0] ss:$8 sm:$0x3] %vm187, %v186
    %s189 = scalar_lea.vmem %s0, 13
    %v190 = vld [vmem:[%s189] sm:$0x1]
    %s191 = scalar_lea.vmem %s0, 44
    %v192 = vld [vmem:[%s191] sm:$0x2]
    %vm193 = vcmask 1041409
    %v194 = vsel %vm193, %v192, %v190
    %195 = vrot.lane.b32.xlu0 %v194, 52
    %v196 = vpop.permute.xlu0 %195
    %vm197 = vcmask 458144
    %198 = vst.msk [vmem:[#allocation0] ss:$8 sm:$0x3] %vm197, %v196
    %s199 = scalar_lea.vmem %s0, 12
    %v200 = vld [vmem:[%s199] sm:$0x1]
    %s201 = scalar_lea.vmem %s0, 43
    %v202 = vld [vmem:[%s201] sm:$0x2]
    %vm203 = vcmask 1041409
    %v204 = vsel %vm203, %v202, %v200
    %205 = vrot.lane.b32.xlu0 %v204, 48
    %v206 = vpop.permute.xlu0 %205
    %vm207 = vcmask 425344
    %208 = vst.msk [vmem:[#allocation0] ss:$8 sm:$0x3] %vm207, %v206
    %s209 = scalar_lea.vmem %s0, 11
    %v210 = vld [vmem:[%s209] sm:$0x1]
    %s211 = scalar_lea.vmem %s0, 42
    %v212 = vld [vmem:[%s211] sm:$0x2]
    %vm213 = vcmask 1041409
    %v214 = vsel %vm213, %v212, %v210
    %215 = vrot.lane.b32.xlu0 %v214, 44
    %v216 = vpop.permute.xlu0 %215
    %vm217 = vcmask 392544
    %218 = vst.msk [vmem:[#allocation0] ss:$8 sm:$0x3] %vm217, %v216
    %s219 = scalar_lea.vmem %s0, 10
    %v220 = vld [vmem:[%s219] sm:$0x1]
    %s221 = scalar_lea.vmem %s0, 41
    %v222 = vld [vmem:[%s221] sm:$0x2]
    %vm223 = vcmask 1041409
    %v224 = vsel %vm223, %v222, %v220
    %225 = vrot.lane.b32.xlu0 %v224, 40
    %v226 = vpop.permute.xlu0 %225
    %vm227 = vcmask 359744
    %228 = vst.msk [vmem:[#allocation0] ss:$8 sm:$0x3] %vm227, %v226
    %s229 = scalar_lea.vmem %s0, 9
    %v230 = vld [vmem:[%s229] sm:$0x1]
    %s231 = scalar_lea.vmem %s0, 40
    %v232 = vld [vmem:[%s231] sm:$0x2]
    %vm233 = vcmask 1041409
    %v234 = vsel %vm233, %v232, %v230
    %235 = vrot.lane.b32.xlu0 %v234, 36
    %v236 = vpop.permute.xlu0 %235
    %vm237 = vcmask 326944
    %238 = vst.msk [vmem:[#allocation0] ss:$8 sm:$0x3] %vm237, %v236
    %s239 = scalar_lea.vmem %s0, 8
    %v240 = vld [vmem:[%s239] sm:$0x1]
    %s241 = scalar_lea.vmem %s0, 39
    %v242 = vld [vmem:[%s241] sm:$0x2]
    %vm243 = vcmask 1041409
    %v244 = vsel %vm243, %v242, %v240
    %245 = vrot.lane.b32.xlu0 %v244, 32
    %v246 = vpop.permute.xlu0 %245
    %vm247 = vcmask 294144
    %248 = vst.msk [vmem:[#allocation0] ss:$8 sm:$0x3] %vm247, %v246
    %s249 = scalar_lea.vmem %s0, 7
    %v250 = vld [vmem:[%s249] sm:$0x1]
    %s251 = scalar_lea.vmem %s0, 38
    %v252 = vld [vmem:[%s251] sm:$0x2]
    %vm253 = vcmask 1041409
    %v254 = vsel %vm253, %v252, %v250
    %255 = vrot.lane.b32.xlu0 %v254, 28
    %v256 = vpop.permute.xlu0 %255
    %vm257 = vcmask 261344
    %258 = vst.msk [vmem:[#allocation0] ss:$8 sm:$0x3] %vm257, %v256
    %s259 = scalar_lea.vmem %s0, 6
    %v260 = vld [vmem:[%s259] sm:$0x1]
    %s261 = scalar_lea.vmem %s0, 37
    %v262 = vld [vmem:[%s261] sm:$0x2]
    %vm263 = vcmask 1041409
    %v264 = vsel %vm263, %v262, %v260
    %265 = vrot.lane.b32.xlu0 %v264, 24
    %v266 = vpop.permute.xlu0 %265
    %vm267 = vcmask 228544
    %268 = vst.msk [vmem:[#allocation0] ss:$8 sm:$0x3] %vm267, %v266
    %s269 = scalar_lea.vmem %s0, 5
    %v270 = vld [vmem:[%s269] sm:$0x1]
    %s271 = scalar_lea.vmem %s0, 36
    %v272 = vld [vmem:[%s271] sm:$0x2]
    %vm273 = vcmask 1041409
    %v274 = vsel %vm273, %v272, %v270
    %275 = vrot.lane.b32.xlu0 %v274, 20
    %v276 = vpop.permute.xlu0 %275
    %vm277 = vcmask 195744
    %278 = vst.msk [vmem:[#allocation0] ss:$8 sm:$0x3] %vm277, %v276
    %s279 = scalar_lea.vmem %s0, 4
    %v280 = vld [vmem:[%s279] sm:$0x1]
    %s281 = scalar_lea.vmem %s0, 35
    %v282 = vld [vmem:[%s281] sm:$0x2]
    %vm283 = vcmask 1041409
    %v284 = vsel %vm283, %v282, %v280
    %285 = vrot.lane.b32.xlu0 %v284, 16
    %v286 = vpop.permute.xlu0 %285
    %vm287 = vcmask 162944
    %288 = vst.msk [vmem:[#allocation0] ss:$8 sm:$0x3] %vm287, %v286
    %s289 = scalar_lea.vmem %s0, 3
    %v290 = vld [vmem:[%s289] sm:$0x1]
    %s291 = scalar_lea.vmem %s0, 34
    %v292 = vld [vmem:[%s291] sm:$0x2]
    %vm293 = vcmask 1041409
    %v294 = vsel %vm293, %v292, %v290
    %295 = vrot.lane.b32.xlu0 %v294, 12
    %v296 = vpop.permute.xlu0 %295
    %vm297 = vcmask 130144
    %298 = vst.msk [vmem:[#allocation0] ss:$8 sm:$0x3] %vm297, %v296
    %s299 = scalar_lea.vmem %s0, 2
    %v300 = vld [vmem:[%s299] sm:$0x1]
    %s301 = scalar_lea.vmem %s0, 33
    %v302 = vld [vmem:[%s301] sm:$0x2]
    %vm303 = vcmask 1041409
    %v304 = vsel %vm303, %v302, %v300
    %305 = vrot.lane.b32.xlu0 %v304, 8
    %v306 = vpop.permute.xlu0 %305
    %vm307 = vcmask 97344
    %308 = vst.msk [vmem:[#allocation0] ss:$8 sm:$0x3] %vm307, %v306
    %s309 = scalar_lea.vmem %s0, 1
    %v310 = vld [vmem:[%s309] sm:$0x1]
    %s311 = scalar_lea.vmem %s0, 32
    %v312 = vld [vmem:[%s311] sm:$0x2]
    %vm313 = vcmask 1041409
    %v314 = vsel %vm313, %v312, %v310
    %315 = vrot.lane.b32.xlu0 %v314, 4
    %v316 = vpop.permute.xlu0 %315
    %vm317 = vcmask 64544
    %318 = vst.msk [vmem:[#allocation0] ss:$8 sm:$0x3] %vm317, %v316
    %s320 = sshllo.u32 0, 1
    %v322 = vld [vmem:[#allocation0] sm:%s320]
    %s323 = sshllo.u32 0, 1
    %324 = vst [vmem:[%s1] sm:%s323] %v322
    %s325 = scalar_lea.vmem [#allocation0], 8
    %v326 = vld [vmem:[%s325] sm:%s320]
    %s327 = sshllo.u32 0, 1
    %s328 = scalar_lea.vmem %s1, 1
    %329 = vst [vmem:[%s328] sm:%s327] %v326

// kernel: decoder3d_forward.5
$region0: #{decoder3d_forward.5}
  #allocation0 [shape = 'u32[]', space=smem, size = 0x4, offset = 0x4, fixed_abs, tag = 'smem constant byte address 0x4 - core index']
  #allocation1 [shape = 'u32[144,128]{1,0:T(1,128)}', space=vmem, size = 0x12000, scoped, tag = 'internal scratch']
  %s0 = inlined_call_operand.vmem [shape: bf16[2,6,18,144], index: 0, kind: input, shape index: {}]
  %s1 = inlined_call_operand.vmem [shape: bf16[3,3,144,256], index: 1, kind: input, shape index: {}]
  %s2 = inlined_call_operand.vmem [shape: bf16[2,6,18,144], index: 2, kind: input, shape index: {}]
  %s3 = inlined_call_operand.vmem [shape: bf16[3,3,144,256], index: 3, kind: input, shape index: {}]
  %s4 = inlined_call_operand.vmem [shape: f32[1,256], index: 4, kind: input, shape index: {}]
  %s5 = inlined_call_operand.vmem [shape: f32[256,256], index: 5, kind: input, shape index: {}]
  %s6 = inlined_call_operand.vmem [shape: f32[1,256], index: 6, kind: input, shape index: {}]
  %s7 = inlined_call_operand.vmem [shape: f32[2,4,16,256], index: 7, kind: output, shape index: {}]
  %s8 = sld [smem:[#allocation0]]
  $region61: #{decoder3d_forward.5} parent=0
    _
  %s10 = ssub.s32 1, %s8
  %s11 = scalar_select 0, %s10, %s8
  loop: start=0, step=1, limit=10
  $region2: #{decoder3d_forward.5} parent=0 // loop_pre_header
    _
  $region3: #{decoder3d_forward.5} parent=0 // loop_header
    %s13 = sphi 0, %s17
    %p14 = scmp.ge.s32.totalorder %s13, 10
    %s20 = sphi 0, %s32
    %s21 = sphi 0, %s28
    %s22 = sphi 0, %s20
    %s23 = sphi 0, %s21
    %s24 = sphi 0, %s22
    %s25 = sphi 0, %s23
    %s35 = sphi 0, %s37
    %s38 = sphi 0, %s35
    %s39 = sphi 0, %s38
    %s55 = sphi 0, %s39
    %s59 = sphi 0, %s59
    %s61 = sphi 0, %s59
    %s62 = sphi 0, %s61
    %s76 = sphi 0, %s62
    %s82 = sphi 0, %s84
    %s85 = sphi 0, %s82
    %s86 = sphi 0, %s85
    %s102 = sphi 0, %s86
    %s106 = sphi 0, %s106
    %s108 = sphi 0, %s106
    %s109 = sphi 0, %s108
    %s123 = sphi 0, %s109
    %s127 = sphi 0, %s127
    %s129 = sphi 0, %s127
    %s130 = sphi 0, %s129
    %s144 = sphi 0, %s130
    %s148 = sphi 0, %s148
    %s150 = sphi 0, %s148
    %s151 = sphi 0, %s150
    %s165 = sphi 0, %s151
    %s169 = sphi 0, %s169
    %s171 = sphi 0, %s169
    %s172 = sphi 0, %s171
    %s186 = sphi 0, %s172
    %s194 = sphi 0, %s196
    %s197 = sphi 0, %s194
    %s198 = sphi 0, %s197
    %s214 = sphi 0, %s198
  $region4: #{decoder3d_forward.5} parent=0 // loop_header_branch
    %16 = sbr.rel (%p14) target = $region8
  $region5: #{decoder3d_forward.5} parent=0 // loop_body
    %s18 = ssub.s32 %s13, 1
    %s19 = ssub.s32 %s13, 2
    %s26 = sadd.s32 1, %s21
    %p27 = scmp.ge.s32.totalorder %s26, 4
    %s28 = scalar_select %p27, 0, %s26
    %s29 = sadd.s32 1, %s20
    %s30 = scalar_select %p27, %s29, %s20
    %p31 = scmp.ge.s32.totalorder %s30, 2
    %s32 = scalar_select %p31, 0, %s30
    %s33 = ssub.s32 %s20, %s32
    %p34 = scmp.eq.s32.totalorder %s33, 0
    %s36 = sadd.s32 %s35, 1
    %s37 = scalar_select %p34, %s35, %s36
    %p40 = pneg %p34
    %p41 = scmp.eq.s32.totalorder %s13, 7
    %p42 = por %p40, %p41
    %p43 = scmp.ne.s32.totalorder %s35, %s38
    %p44 = scmp.eq.s32.totalorder %s13, 0
    %p45 = por %p43, %p44
    %p46 = scmp.ne.s32.totalorder %s35, %s38
    %p47 = scmp.eq.s32.totalorder %s18, 7
    %p48 = por %p46, %p47
    %p49 = scmp.ne.s32.totalorder %s38, %s39
    %p50 = scmp.eq.s32.totalorder %s18, 0
    %p51 = por %p49, %p50
    %p52 = scmp.ne.s32.totalorder %s38, %s39
    %p53 = scmp.eq.s32.totalorder %s19, 7
    %p54 = por %p52, %p53
    %p56 = scmp.ne.s32.totalorder %s39, %s55
    %p57 = scmp.eq.s32.totalorder %s19, 0
    %p58 = por %p56, %p57
    %s60 = sadd.s32 %s59, 1
    %p63 = scmp.eq.s32.totalorder %s13, 7
    %p64 = scmp.ne.s32.totalorder %s59, %s61
    %p65 = scmp.eq.s32.totalorder %s13, 0
    %p66 = por %p64, %p65
    %p67 = scmp.ne.s32.totalorder %s59, %s61
    %p68 = scmp.eq.s32.totalorder %s18, 7
    %p69 = por %p67, %p68
    %p70 = scmp.ne.s32.totalorder %s61, %s62
    %p71 = scmp.eq.s32.totalorder %s18, 0
    %p72 = por %p70, %p71
    %p73 = scmp.ne.s32.totalorder %s61, %s62
    %p74 = scmp.eq.s32.totalorder %s19, 7
    %p75 = por %p73, %p74
    %p77 = scmp.ne.s32.totalorder %s62, %s76
    %p78 = scmp.eq.s32.totalorder %s19, 0
    %p79 = por %p77, %p78
    %s80 = ssub.s32 %s20, %s32
    %p81 = scmp.eq.s32.totalorder %s80, 0
    %s83 = sadd.s32 %s82, 1
    %s84 = scalar_select %p81, %s82, %s83
    %p87 = pneg %p81
    %p88 = scmp.eq.s32.totalorder %s13, 7
    %p89 = por %p87, %p88
    %p90 = scmp.ne.s32.totalorder %s82, %s85
    %p91 = scmp.eq.s32.totalorder %s13, 0
    %p92 = por %p90, %p91
    %p93 = scmp.ne.s32.totalorder %s82, %s85
    %p94 = scmp.eq.s32.totalorder %s18, 7
    %p95 = por %p93, %p94
    %p96 = scmp.ne.s32.totalorder %s85, %s86
    %p97 = scmp.eq.s32.totalorder %s18, 0
    %p98 = por %p96, %p97
    %p99 = scmp.ne.s32.totalorder %s85, %s86
    %p100 = scmp.eq.s32.totalorder %s19, 7
    %p101 = por %p99, %p100
    %p103 = scmp.ne.s32.totalorder %s86, %s102
    %p104 = scmp.eq.s32.totalorder %s19, 0
    %p105 = por %p103, %p104
    %s107 = sadd.s32 %s106, 1
    %p110 = scmp.eq.s32.totalorder %s13, 7
    %p111 = scmp.ne.s32.totalorder %s106, %s108
    %p112 = scmp.eq.s32.totalorder %s13, 0
    %p113 = por %p111, %p112
    %p114 = scmp.ne.s32.totalorder %s106, %s108
    %p115 = scmp.eq.s32.totalorder %s18, 7
    %p116 = por %p114, %p115
    %p117 = scmp.ne.s32.totalorder %s108, %s109
    %p118 = scmp.eq.s32.totalorder %s18, 0
    %p119 = por %p117, %p118
    %p120 = scmp.ne.s32.totalorder %s108, %s109
    %p121 = scmp.eq.s32.totalorder %s19, 7
    %p122 = por %p120, %p121
    %p124 = scmp.ne.s32.totalorder %s109, %s123
    %p125 = scmp.eq.s32.totalorder %s19, 0
    %p126 = por %p124, %p125
    %s128 = sadd.s32 %s127, 1
    %p131 = scmp.eq.s32.totalorder %s13, 7
    %p132 = scmp.ne.s32.totalorder %s127, %s129
    %p133 = scmp.eq.s32.totalorder %s13, 0
    %p134 = por %p132, %p133
    %p135 = scmp.ne.s32.totalorder %s127, %s129
    %p136 = scmp.eq.s32.totalorder %s18, 7
    %p137 = por %p135, %p136
    %p138 = scmp.ne.s32.totalorder %s129, %s130
    %p139 = scmp.eq.s32.totalorder %s18, 0
    %p140 = por %p138, %p139
    %p141 = scmp.ne.s32.totalorder %s129, %s130
    %p142 = scmp.eq.s32.totalorder %s19, 7
    %p143 = por %p141, %p142
    %p145 = scmp.ne.s32.totalorder %s130, %s144
    %p146 = scmp.eq.s32.totalorder %s19, 0
    %p147 = por %p145, %p146
    %s149 = sadd.s32 %s148, 1
    %p152 = scmp.eq.s32.totalorder %s13, 7
    %p153 = scmp.ne.s32.totalorder %s148, %s150
    %p154 = scmp.eq.s32.totalorder %s13, 0
    %p155 = por %p153, %p154
    %p156 = scmp.ne.s32.totalorder %s148, %s150
    %p157 = scmp.eq.s32.totalorder %s18, 7
    %p158 = por %p156, %p157
    %p159 = scmp.ne.s32.totalorder %s150, %s151
    %p160 = scmp.eq.s32.totalorder %s18, 0
    %p161 = por %p159, %p160
    %p162 = scmp.ne.s32.totalorder %s150, %s151
    %p163 = scmp.eq.s32.totalorder %s19, 7
    %p164 = por %p162, %p163
    %p166 = scmp.ne.s32.totalorder %s151, %s165
    %p167 = scmp.eq.s32.totalorder %s19, 0
    %p168 = por %p166, %p167
    %s170 = sadd.s32 %s169, 1
    %p173 = scmp.eq.s32.totalorder %s13, 7
    %p174 = scmp.ne.s32.totalorder %s169, %s171
    %p175 = scmp.eq.s32.totalorder %s13, 0
    %p176 = por %p174, %p175
    %p177 = scmp.ne.s32.totalorder %s169, %s171
    %p178 = scmp.eq.s32.totalorder %s18, 7
    %p179 = por %p177, %p178
    %p180 = scmp.ne.s32.totalorder %s171, %s172
    %p181 = scmp.eq.s32.totalorder %s18, 0
    %p182 = por %p180, %p181
    %p183 = scmp.ne.s32.totalorder %s171, %s172
    %p184 = scmp.eq.s32.totalorder %s19, 7
    %p185 = por %p183, %p184
    %p187 = scmp.ne.s32.totalorder %s172, %s186
    %p188 = scmp.eq.s32.totalorder %s19, 0
    %p189 = por %p187, %p188
    %s190 = ssub.s32 %s20, %s32
    %s191 = ssub.s32 %s21, %s28
    %s192 = sor.u32 %s190, %s191
    %p193 = scmp.eq.s32.totalorder %s192, 0
    %s195 = sadd.s32 %s194, 1
    %s196 = scalar_select %p193, %s194, %s195
    %p199 = pneg %p193
    %p200 = scmp.eq.s32.totalorder %s13, 7
    %p201 = por %p199, %p200
    %p202 = scmp.ne.s32.totalorder %s194, %s197
    %p203 = scmp.eq.s32.totalorder %s13, 0
    %p204 = por %p202, %p203
    %p205 = scmp.ne.s32.totalorder %s194, %s197
    %p206 = scmp.eq.s32.totalorder %s18, 7
    %p207 = por %p205, %p206
    %p208 = scmp.ne.s32.totalorder %s197, %s198
    %p209 = scmp.eq.s32.totalorder %s18, 0
    %p210 = por %p208, %p209
    %p211 = scmp.ne.s32.totalorder %s197, %s198
    %p212 = scmp.eq.s32.totalorder %s19, 7
    %p213 = por %p211, %p212
    %p215 = scmp.ne.s32.totalorder %s198, %s214
    %p216 = scmp.eq.s32.totalorder %s19, 0
    %p217 = por %p215, %p216
    %p218 = scmp.le.s32.totalorder 1, %s13
    %p219 = scmp.lt.s32.totalorder %s13, 9
    %p220 = pnand %p218, %p219
    %p221 = pneg %p220
    // Predicated region
    $region9: #{decoder3d_forward.5} parent=5 // pred_check
      _
    $region10: #{decoder3d_forward.5} parent=5 // pred_check_branch
      %223 = sbr.rel (%p220) target = $region12
    $region11: #{decoder3d_forward.5} parent=5 // pred_region
      %s224 = ssub.s32 %s13, 1
      // Predicated region
      $region13: #{decoder3d_forward.5} parent=11 // pred_check
        %p225 = pneg %p72
      $region14: #{decoder3d_forward.5} parent=11 // pred_check_branch
        %227 = sbr.rel (%p225) target = $region16
      $region15: #{decoder3d_forward.5} parent=11 // pred_region
        _
      $region16: #{decoder3d_forward.5} parent=11 // pred_fallthru
        _
      // Predicated region
      $region17: #{decoder3d_forward.5} parent=11 // pred_check
        %p228 = pneg %p119
      $region18: #{decoder3d_forward.5} parent=11 // pred_check_branch
        %230 = sbr.rel (%p228) target = $region20
      $region19: #{decoder3d_forward.5} parent=11 // pred_region
        _
      $region20: #{decoder3d_forward.5} parent=11 // pred_fallthru
        _
      // Predicated region
      $region21: #{decoder3d_forward.5} parent=11 // pred_check
        %p231 = pneg %p140
      $region22: #{decoder3d_forward.5} parent=11 // pred_check_branch
        %233 = sbr.rel (%p231) target = $region24
      $region23: #{decoder3d_forward.5} parent=11 // pred_region
        _
      $region24: #{decoder3d_forward.5} parent=11 // pred_fallthru
        _
      // Predicated region
      $region25: #{decoder3d_forward.5} parent=11 // pred_check
        %p234 = pneg %p161
      $region26: #{decoder3d_forward.5} parent=11 // pred_check_branch
        %236 = sbr.rel (%p234) target = $region28
      $region27: #{decoder3d_forward.5} parent=11 // pred_region
        _
      $region28: #{decoder3d_forward.5} parent=11 // pred_fallthru
        _
      // Predicated region
      $region29: #{decoder3d_forward.5} parent=11 // pred_check
        %p237 = pneg %p182
      $region30: #{decoder3d_forward.5} parent=11 // pred_check_branch
        %239 = sbr.rel (%p237) target = $region32
      $region31: #{decoder3d_forward.5} parent=11 // pred_region
        _
      $region32: #{decoder3d_forward.5} parent=11 // pred_fallthru
        _
    $region12: #{decoder3d_forward.5} parent=5 // pred_fallthru
      _
    %p240 = scmp.lt.s32.totalorder %s13, 8
    // Predicated region
    $region33: #{decoder3d_forward.5} parent=5 // pred_check
      %p241 = pneg %p240
    $region34: #{decoder3d_forward.5} parent=5 // pred_check_branch
      %243 = sbr.rel (%p241) target = $region36
    $region35: #{decoder3d_forward.5} parent=5 // pred_region
      // Predicated region
      $region37: #{decoder3d_forward.5} parent=35 // pred_check
        %p244 = pneg %p45
      $region38: #{decoder3d_forward.5} parent=35 // pred_check_branch
        %246 = sbr.rel (%p244) target = $region40
      $region39: #{decoder3d_forward.5} parent=35 // pred_region
        %p247 = scmp.lt.s32.totalorder %s20, 1
        %s248 = scalar_select %p247, %s20, 1
        %s249 = smul.addr %s248, 36
        %s250 = smul.addr %s249, 4
        %s251 = scalar_lea.vmem %s0, %s250
      $region40: #{decoder3d_forward.5} parent=35 // pred_fallthru
        _
      // Predicated region
      $region41: #{decoder3d_forward.5} parent=35 // pred_check
        %p252 = pneg %p92
      $region42: #{decoder3d_forward.5} parent=35 // pred_check_branch
        %254 = sbr.rel (%p252) target = $region44
      $region43: #{decoder3d_forward.5} parent=35 // pred_region
        %p255 = scmp.lt.s32.totalorder %s20, 1
        %s256 = scalar_select %p255, %s20, 1
        %s257 = smul.addr %s256, 36
        %s258 = smul.addr %s257, 4
        %s259 = scalar_lea.vmem %s2, %s258
      $region44: #{decoder3d_forward.5} parent=35 // pred_fallthru
        _
    $region36: #{decoder3d_forward.5} parent=5 // pred_fallthru
      _
    %p260 = scmp.le.s32.totalorder 1, %s13
    %p261 = scmp.lt.s32.totalorder %s13, 9
    %p262 = pnand %p260, %p261
    %p263 = pneg %p262
    // Predicated region
    $region45: #{decoder3d_forward.5} parent=5 // pred_check
      _
    $region46: #{decoder3d_forward.5} parent=5 // pred_check_branch
      %265 = sbr.rel (%p262) target = $region48
    $region47: #{decoder3d_forward.5} parent=5 // pred_region
      %s266 = ssub.s32 %s13, 1
      %p267 = scmp.lt.s32.totalorder %s22, 1
      %s268 = scalar_select %p267, %s22, 1
      %s269 = smul.addr %s268, 36
      %s270 = smul.addr %s269, 4
      %s271 = scalar_lea.vmem %s0, %s270
      %p272 = pneg %p51
      %p273 = pneg %p48
      %p274 = pneg %p72
      %p275 = pneg %p69
      %p276 = scmp.lt.s32.totalorder %s22, 1
      %s277 = scalar_select %p276, %s22, 1
      %s278 = smul.addr %s277, 36
      %s279 = smul.addr %s278, 4
      %s280 = scalar_lea.vmem %s2, %s279
      %p281 = pneg %p98
      %p282 = pneg %p95
      %p283 = pneg %p119
      %p284 = pneg %p116
      %p285 = pneg %p140
      %p286 = pneg %p137
      %p287 = pneg %p161
      %p288 = pneg %p158
      %p289 = pneg %p182
      %p290 = pneg %p179
      %p291 = pneg %p210
      %p292 = pneg %p207
      %p293 = scmp.lt.s32.totalorder %s22, 1
      %s294 = scalar_select %p293, %s22, 1
      %p295 = scmp.lt.s32.totalorder %s23, 3
      %s296 = scalar_select %p295, %s23, 3
      %s297 = smul.addr %s296, 4
      %s298 = smul.addr %s294, 16
      %s299 = sadd.s32 %s297, %s298
      %s300 = smul.addr %s299, 8
      %s301 = scalar_lea.vmem %s7, %s300
      %p302 = scmp.lt.s32.totalorder %s22, 1
      %s303 = scalar_select %p302, %s22, 1
      %s304 = smul.addr %s303, 36
      %s305 = smul.addr %s304, 4
      %s306 = scalar_lea.vmem %s0, %s305
      %p307 = scmp.lt.s32.totalorder %s22, 1
      %s308 = scalar_select %p307, %s22, 1
      %s309 = smul.addr %s308, 36
      %s310 = smul.addr %s309, 4
      %s311 = scalar_lea.vmem %s2, %s310
      %p312 = scmp.lt.s32.totalorder %s22, 1
      %s313 = scalar_select %p312, %s22, 1
      %p314 = scmp.lt.s32.totalorder %s23, 3
      %s315 = scalar_select %p314, %s23, 3
      %s316 = smul.addr %s315, 4
      %s317 = smul.addr %s313, 16
      %s318 = sadd.s32 %s316, %s317
      %s319 = smul.addr %s318, 8
      %s320 = scalar_lea.vmem %s7, %s319
      %s322 = smul.u32 %s23, 6
      %s323 = smul.addr %s322, 4
      %s324 = scalar_lea.vmem %s306, %s323
      %v325 = vld [vmem:[%s324] sm:$0xff]
      %v326 = vld [vmem:[%s324 + $0x8] sm:$0xff]
      %v327 = vld [vmem:[%s324 + $0x10] sm:$0x11]
      %s328 = smul.addr %s322, 4
      %s329 = scalar_lea.vmem %s311, %s328
      %v330 = vld [vmem:[%s329] sm:$0xff]
      %v331 = vld [vmem:[%s329 + $0x8] sm:$0xff]
      %v332 = vld [vmem:[%s329 + $0x10] sm:$0x11]
      %v333 = vld [vmem:[%s1] sm:$0xff]
      %v334 = vld [vmem:[%s1 + $0x8] sm:$0xff]
      %v335 = vld [vmem:[%s1 + $0x10] sm:$0xff]
      %v336 = vld [vmem:[%s1 + $0x18] sm:$0xff]
      %v337 = vld [vmem:[%s1 + $0x20] sm:$0xff]
      %v338 = vld [vmem:[%s1 + $0x28] sm:$0xff]
      %v339 = vld [vmem:[%s1 + $0x30] sm:$0xff]
      %v340 = vld [vmem:[%s1 + $0x38] sm:$0xff]
      %v341 = vld [vmem:[%s1 + $0x40] sm:$0xff]
      %v342 = vld [vmem:[%s1 + $0x48] sm:$0xff]
      %v343 = vld [vmem:[%s1 + $0x50] sm:$0xff]
      %v344 = vld [vmem:[%s1 + $0x58] sm:$0xff]
      %v345 = vld [vmem:[%s1 + $0x60] sm:$0xff]
      %v346 = vld [vmem:[%s1 + $0x68] sm:$0xff]
      %v347 = vld [vmem:[%s1 + $0x70] sm:$0xff]
      %v348 = vld [vmem:[%s1 + $0x78] sm:$0xff]
      %v349 = vld [vmem:[%s1 + $0x80] sm:$0xff]
      %v350 = vld [vmem:[%s1 + $0x88] sm:$0xff]
      %v351 = vld [vmem:[%s3] sm:$0xff]
      %v352 = vld [vmem:[%s3 + $0x8] sm:$0xff]
      %v353 = vld [vmem:[%s3 + $0x10] sm:$0xff]
      %v354 = vld [vmem:[%s3 + $0x18] sm:$0xff]
      %v355 = vld [vmem:[%s3 + $0x20] sm:$0xff]
      %v356 = vld [vmem:[%s3 + $0x28] sm:$0xff]
      %v357 = vld [vmem:[%s3 + $0x30] sm:$0xff]
      %v358 = vld [vmem:[%s3 + $0x38] sm:$0xff]
      %v359 = vld [vmem:[%s3 + $0x40] sm:$0xff]
      %v360 = vld [vmem:[%s3 + $0x48] sm:$0xff]
      %v361 = vld [vmem:[%s3 + $0x50] sm:$0xff]
      %v362 = vld [vmem:[%s3 + $0x58] sm:$0xff]
      %v363 = vld [vmem:[%s3 + $0x60] sm:$0xff]
      %v364 = vld [vmem:[%s3 + $0x68] sm:$0xff]
      %v365 = vld [vmem:[%s3 + $0x70] sm:$0xff]
      %v366 = vld [vmem:[%s3 + $0x78] sm:$0xff]
      %v367 = vld [vmem:[%s3 + $0x80] sm:$0xff]
      %v368 = vld [vmem:[%s3 + $0x88] sm:$0xff]
      %v371 = vunpack.c.l.b16 %v330
      %v372 = vunpack.c.h.b16 %v330
      %v373 = vunpack.c.l.b16 %v331
      %v374 = vunpack.c.h.b16 %v331
      %v375 = vpack.c.b16 %v373, %v371
      %v376 = vpack.c.b16 %v374, %v372
      %v396 = vunpack.c.l.b16 %v351
      %v397 = vunpack.c.h.b16 %v351
      %v398 = vunpack.c.l.b16 %v352
      %v399 = vunpack.c.h.b16 %v352
      %v400 = vunpack.c.l.b16 %v353
      %v401 = vunpack.c.h.b16 %v353
      %v402 = vunpack.c.l.b16 %v354
      %v403 = vunpack.c.h.b16 %v354
      %v404 = vunpack.c.l.b16 %v355
      %v405 = vunpack.c.h.b16 %v355
      %v406 = vunpack.c.l.b16 %v356
      %v407 = vunpack.c.h.b16 %v356
      %v408 = vunpack.c.l.b16 %v357
      %v409 = vunpack.c.h.b16 %v357
      %v410 = vunpack.c.l.b16 %v358
      %v411 = vunpack.c.h.b16 %v358
      %v412 = vunpack.c.l.b16 %v359
      %v413 = vunpack.c.h.b16 %v359
      %v414 = vunpack.c.l.b16 %v360
      %v415 = vunpack.c.h.b16 %v360
      %v416 = vunpack.c.l.b16 %v361
      %v417 = vunpack.c.h.b16 %v361
      %v418 = vunpack.c.l.b16 %v362
      %v419 = vunpack.c.h.b16 %v362
      %v420 = vunpack.c.l.b16 %v363
      %v421 = vunpack.c.h.b16 %v363
      %v422 = vunpack.c.l.b16 %v364
      %v423 = vunpack.c.h.b16 %v364
      %v424 = vunpack.c.l.b16 %v365
      %v425 = vunpack.c.h.b16 %v365
      %v426 = vunpack.c.l.b16 %v366
      %v427 = vunpack.c.h.b16 %v366
      %v428 = vunpack.c.l.b16 %v367
      %v429 = vunpack.c.h.b16 %v367
      %v430 = vunpack.c.l.b16 %v368
      %v431 = vunpack.c.h.b16 %v368
      %v432 = vpack.c.b16 %v398, %v396
      %v433 = vpack.c.b16 %v399, %v397
      %v434 = vpack.c.b16 %v402, %v400
      %v435 = vpack.c.b16 %v403, %v401
      %v436 = vpack.c.b16 %v406, %v404
      %v437 = vpack.c.b16 %v407, %v405
      %v438 = vpack.c.b16 %v410, %v408
      %v439 = vpack.c.b16 %v411, %v409
      %v440 = vpack.c.b16 %v414, %v412
      %v441 = vpack.c.b16 %v415, %v413
      %v442 = vpack.c.b16 %v418, %v416
      %v443 = vpack.c.b16 %v419, %v417
      %v444 = vpack.c.b16 %v422, %v420
      %v445 = vpack.c.b16 %v423, %v421
      %v446 = vpack.c.b16 %v426, %v424
      %v447 = vpack.c.b16 %v427, %v425
      %v448 = vpack.c.b16 %v430, %v428
      %v449 = vpack.c.b16 %v431, %v429
      %vm468 = vcmask 130048
      %v470 = vsel %vm468, %v376, 0
      %472 = vmatprep.subr.bf16.mxu0 %v433
      %473 = vmatpush1.bf16.msra.mxu0 %v432
      %474 = vmatprep.subr.bf16.mxu0 %v435
      %475 = vmatpush1.bf16.msra.mxu0 %v434
      %476 = vmatprep.subr.bf16.mxu0 %v437
      %477 = vmatpush1.bf16.msra.mxu0 %v436
      %478 = vmatprep.subr.bf16.mxu0 %v439
      %479 = vmatpush1.bf16.msra.mxu0 %v438
      %480 = vmatprep.subr.bf16.mxu0 %v441
      %481 = vmatpush1.bf16.msra.mxu0 %v440
      %482 = vmatprep.subr.bf16.mxu0 %v443
      %483 = vmatpush1.bf16.msra.mxu0 %v442
      %484 = vmatprep.subr.bf16.mxu0 %v445
      %485 = vmatpush1.bf16.msra.mxu0 %v444
      %486 = vmatprep.subr.bf16.mxu0 %v447
      %487 = vmatpush1.bf16.msra.mxu0 %v446
      %488 = vmatprep.subr.bf16.mxu0 %v449
      %489 = vmatpush1.bf16.msra.mxu0 %v448
      %490 = vmatprep.subr.bf16.mxu0 0
      %491 = vmatpush1.bf16.msra.mxu0 0
      %492 = vmatprep.subr.bf16.mxu0 0
      %493 = vmatpush1.bf16.msra.mxu0 0
      %494 = vmatprep.subr.bf16.mxu0 0
      %495 = vmatpush1.bf16.msra.mxu0 0
      %496 = vmatprep.subr.bf16.mxu0 0
      %497 = vmatpush1.bf16.msra.mxu0 0
      %498 = vmatprep.subr.bf16.mxu0 0
      %499 = vmatpush1.bf16.msra.mxu0 0
      %500 = vmatprep.subr.bf16.mxu0 0
      %501 = vmatpush1.bf16.msra.mxu0 0
      %502 = vmatprep.subr.bf16.mxu0 0
      %503 = vmatpush1.bf16.msra.mxu0 0
      %504 = vmatprep.mubr.bf16.mxu0 %v470
      %505 = vmatmul.mubr.bf16.gmra.mrb[0].mxu0 %v375
      %v506 = vpop.f32.mrb[0].mxu0
      %v507 = vadd.f32 0.0, %v506
      %v508 = vpop.f32.mrb[0].mxu0
      %v509 = vadd.f32 0.0, %v508
      %v510 = vpop.f32.mrb[0].mxu0
      %v511 = vadd.f32 0.0, %v510
      %v512 = vpop.f32.mrb[0].mxu0
      %v513 = vadd.f32 0.0, %v512
      %514 = vdwg.mxu0
      %v517 = vunpack.c.l.b16 %v325
      %v518 = vunpack.c.h.b16 %v325
      %v519 = vunpack.c.l.b16 %v326
      %v520 = vunpack.c.h.b16 %v326
      %v521 = vpack.c.b16 %v519, %v517
      %v522 = vpack.c.b16 %v520, %v518
      %v542 = vunpack.c.l.b16 %v333
      %v543 = vunpack.c.h.b16 %v333
      %v544 = vunpack.c.l.b16 %v334
      %v545 = vunpack.c.h.b16 %v334
      %v546 = vunpack.c.l.b16 %v335
      %v547 = vunpack.c.h.b16 %v335
      %v548 = vunpack.c.l.b16 %v336
      %v549 = vunpack.c.h.b16 %v336
      %v550 = vunpack.c.l.b16 %v337
      %v551 = vunpack.c.h.b16 %v337
      %v552 = vunpack.c.l.b16 %v338
      %v553 = vunpack.c.h.b16 %v338
      %v554 = vunpack.c.l.b16 %v339
      %v555 = vunpack.c.h.b16 %v339
      %v556 = vunpack.c.l.b16 %v340
      %v557 = vunpack.c.h.b16 %v340
      %v558 = vunpack.c.l.b16 %v341
      %v559 = vunpack.c.h.b16 %v341
      %v560 = vunpack.c.l.b16 %v342
      %v561 = vunpack.c.h.b16 %v342
      %v562 = vunpack.c.l.b16 %v343
      %v563 = vunpack.c.h.b16 %v343
      %v564 = vunpack.c.l.b16 %v344
      %v565 = vunpack.c.h.b16 %v344
      %v566 = vunpack.c.l.b16 %v345
      %v567 = vunpack.c.h.b16 %v345
      %v568 = vunpack.c.l.b16 %v346
      %v569 = vunpack.c.h.b16 %v346
      %v570 = vunpack.c.l.b16 %v347
      %v571 = vunpack.c.h.b16 %v347
      %v572 = vunpack.c.l.b16 %v348
      %v573 = vunpack.c.h.b16 %v348
      %v574 = vunpack.c.l.b16 %v349
      %v575 = vunpack.c.h.b16 %v349
      %v576 = vunpack.c.l.b16 %v350
      %v577 = vunpack.c.h.b16 %v350
      %v578 = vpack.c.b16 %v544, %v542
      %v579 = vpack.c.b16 %v545, %v543
      %v580 = vpack.c.b16 %v548, %v546
      %v581 = vpack.c.b16 %v549, %v547
      %v582 = vpack.c.b16 %v552, %v550
      %v583 = vpack.c.b16 %v553, %v551
      %v584 = vpack.c.b16 %v556, %v554
      %v585 = vpack.c.b16 %v557, %v555
      %v586 = vpack.c.b16 %v560, %v558
      %v587 = vpack.c.b16 %v561, %v559
      %v588 = vpack.c.b16 %v564, %v562
      %v589 = vpack.c.b16 %v565, %v563
      %v590 = vpack.c.b16 %v568, %v566
      %v591 = vpack.c.b16 %v569, %v567
      %v592 = vpack.c.b16 %v572, %v570
      %v593 = vpack.c.b16 %v573, %v571
      %v594 = vpack.c.b16 %v576, %v574
      %v595 = vpack.c.b16 %v577, %v575
      %v615 = vsel %vm468, %v522, 0
      %617 = vmatprep.subr.bf16.mxu0 %v579
      %618 = vmatpush1.bf16.msra.mxu0 %v578
      %619 = vmatprep.subr.bf16.mxu0 %v581
      %620 = vmatpush1.bf16.msra.mxu0 %v580
      %621 = vmatprep.subr.bf16.mxu0 %v583
      %622 = vmatpush1.bf16.msra.mxu0 %v582
      %623 = vmatprep.subr.bf16.mxu0 %v585
      %624 = vmatpush1.bf16.msra.mxu0 %v584
      %625 = vmatprep.subr.bf16.mxu0 %v587
      %626 = vmatpush1.bf16.msra.mxu0 %v586
      %627 = vmatprep.subr.bf16.mxu0 %v589
      %628 = vmatpush1.bf16.msra.mxu0 %v588
      %629 = vmatprep.subr.bf16.mxu0 %v591
      %630 = vmatpush1.bf16.msra.mxu0 %v590
      %631 = vmatprep.subr.bf16.mxu0 %v593
      %632 = vmatpush1.bf16.msra.mxu0 %v592
      %633 = vmatprep.subr.bf16.mxu0 %v595
      %634 = vmatpush1.bf16.msra.mxu0 %v594
      %635 = vmatprep.subr.bf16.mxu0 0
      %636 = vmatpush1.bf16.msra.mxu0 0
      %637 = vmatprep.subr.bf16.mxu0 0
      %638 = vmatpush1.bf16.msra.mxu0 0
      %639 = vmatprep.subr.bf16.mxu0 0
      %640 = vmatpush1.bf16.msra.mxu0 0
      %641 = vmatprep.subr.bf16.mxu0 0
      %642 = vmatpush1.bf16.msra.mxu0 0
      %643 = vmatprep.subr.bf16.mxu0 0
      %644 = vmatpush1.bf16.msra.mxu0 0
      %645 = vmatprep.subr.bf16.mxu0 0
      %646 = vmatpush1.bf16.msra.mxu0 0
      %647 = vmatprep.subr.bf16.mxu0 0
      %648 = vmatpush1.bf16.msra.mxu0 0
      %649 = vmatprep.mubr.bf16.mxu0 %v615
      %650 = vmatmul.mubr.bf16.gmra.mrb[0].mxu0 %v521
      %v651 = vpop.f32.mrb[0].mxu0
      %v652 = vadd.f32 %v507, %v651
      %v653 = vpop.f32.mrb[0].mxu0
      %v654 = vadd.f32 %v509, %v653
      %v655 = vpop.f32.mrb[0].mxu0
      %v656 = vadd.f32 %v511, %v655
      %v657 = vpop.f32.mrb[0].mxu0
      %v658 = vadd.f32 %v513, %v657
      %659 = vdwg.mxu0
      %s660 = scalar_lea.vmem %s1, 144
      %v661 = vld [vmem:[%s660] sm:$0xff]
      %v662 = vld [vmem:[%s660 + $0x8] sm:$0xff]
      %v663 = vld [vmem:[%s660 + $0x10] sm:$0xff]
      %v664 = vld [vmem:[%s660 + $0x18] sm:$0xff]
      %v665 = vld [vmem:[%s660 + $0x20] sm:$0xff]
      %v666 = vld [vmem:[%s660 + $0x28] sm:$0xff]
      %v667 = vld [vmem:[%s660 + $0x30] sm:$0xff]
      %v668 = vld [vmem:[%s660 + $0x38] sm:$0xff]
      %v669 = vld [vmem:[%s660 + $0x40] sm:$0xff]
      %v670 = vld [vmem:[%s660 + $0x48] sm:$0xff]
      %v671 = vld [vmem:[%s660 + $0x50] sm:$0xff]
      %v672 = vld [vmem:[%s660 + $0x58] sm:$0xff]
      %v673 = vld [vmem:[%s660 + $0x60] sm:$0xff]
      %v674 = vld [vmem:[%s660 + $0x68] sm:$0xff]
      %v675 = vld [vmem:[%s660 + $0x70] sm:$0xff]
      %v676 = vld [vmem:[%s660 + $0x78] sm:$0xff]
      %v677 = vld [vmem:[%s660 + $0x80] sm:$0xff]
      %v678 = vld [vmem:[%s660 + $0x88] sm:$0xff]
      %v680 = vunpack.c.l.b16 %v327
      %v681 = vunpack.c.h.b16 %v327
      %v682 = vpack.c.b16 %v680, %v680
      %v683 = vpack.c.b16 %v681, %v681
      %vm684 = vsmask.f32 7424
      %v686 = vshrl.u32 %v521, 16
      %v688 = vshll.u32 %v521, 16
      %v690 = vrot.slane %v688, 1
      %v691 = vor.u32 %v686, %v690
      %v693 = vshll.u32 %v682, 16
      %v695 = vrot.slane %v693, 1
      %v696 = vsel %vm684, %v691, %v695
      %v697 = vshrl.u32 %v522, 16
      %v699 = vshll.u32 %v522, 16
      %v701 = vrot.slane %v699, 1
      %v702 = vor.u32 %v697, %v701
      %v704 = vshll.u32 %v683, 16
      %v706 = vrot.slane %v704, 1
      %v707 = vsel %vm684, %v702, %v706
      %v727 = vunpack.c.l.b16 %v661
      %v728 = vunpack.c.h.b16 %v661
      %v729 = vunpack.c.l.b16 %v662
      %v730 = vunpack.c.h.b16 %v662
      %v731 = vunpack.c.l.b16 %v663
      %v732 = vunpack.c.h.b16 %v663
      %v733 = vunpack.c.l.b16 %v664
      %v734 = vunpack.c.h.b16 %v664
      %v735 = vunpack.c.l.b16 %v665
      %v736 = vunpack.c.h.b16 %v665
      %v737 = vunpack.c.l.b16 %v666
      %v738 = vunpack.c.h.b16 %v666
      %v739 = vunpack.c.l.b16 %v667
      %v740 = vunpack.c.h.b16 %v667
      %v741 = vunpack.c.l.b16 %v668
      %v742 = vunpack.c.h.b16 %v668
      %v743 = vunpack.c.l.b16 %v669
      %v744 = vunpack.c.h.b16 %v669
      %v745 = vunpack.c.l.b16 %v670
      %v746 = vunpack.c.h.b16 %v670
      %v747 = vunpack.c.l.b16 %v671
      %v748 = vunpack.c.h.b16 %v671
      %v749 = vunpack.c.l.b16 %v672
      %v750 = vunpack.c.h.b16 %v672
      %v751 = vunpack.c.l.b16 %v673
      %v752 = vunpack.c.h.b16 %v673
      %v753 = vunpack.c.l.b16 %v674
      %v754 = vunpack.c.h.b16 %v674
      %v755 = vunpack.c.l.b16 %v675
      %v756 = vunpack.c.h.b16 %v675
      %v757 = vunpack.c.l.b16 %v676
      %v758 = vunpack.c.h.b16 %v676
      %v759 = vunpack.c.l.b16 %v677
      %v760 = vunpack.c.h.b16 %v677
      %v761 = vunpack.c.l.b16 %v678
      %v762 = vunpack.c.h.b16 %v678
      %v763 = vpack.c.b16 %v729, %v727
      %v764 = vpack.c.b16 %v730, %v728
      %v765 = vpack.c.b16 %v733, %v731
      %v766 = vpack.c.b16 %v734, %v732
      %v767 = vpack.c.b16 %v737, %v735
      %v768 = vpack.c.b16 %v738, %v736
      %v769 = vpack.c.b16 %v741, %v739
      %v770 = vpack.c.b16 %v742, %v740
      %v771 = vpack.c.b16 %v745, %v743
      %v772 = vpack.c.b16 %v746, %v744
      %v773 = vpack.c.b16 %v749, %v747
      %v774 = vpack.c.b16 %v750, %v748
      %v775 = vpack.c.b16 %v753, %v751
      %v776 = vpack.c.b16 %v754, %v752
      %v777 = vpack.c.b16 %v757, %v755
      %v778 = vpack.c.b16 %v758, %v756
      %v779 = vpack.c.b16 %v761, %v759
      %v780 = vpack.c.b16 %v762, %v760
      %v800 = vsel %vm468, %v707, 0
      %802 = vmatprep.subr.bf16.mxu0 %v764
      %803 = vmatpush1.bf16.msra.mxu0 %v763
      %804 = vmatprep.subr.bf16.mxu0 %v766
      %805 = vmatpush1.bf16.msra.mxu0 %v765
      %806 = vmatprep.subr.bf16.mxu0 %v768
      %807 = vmatpush1.bf16.msra.mxu0 %v767
      %808 = vmatprep.subr.bf16.mxu0 %v770
      %809 = vmatpush1.bf16.msra.mxu0 %v769
      %810 = vmatprep.subr.bf16.mxu0 %v772
      %811 = vmatpush1.bf16.msra.mxu0 %v771
      %812 = vmatprep.subr.bf16.mxu0 %v774
      %813 = vmatpush1.bf16.msra.mxu0 %v773
      %814 = vmatprep.subr.bf16.mxu0 %v776
      %815 = vmatpush1.bf16.msra.mxu0 %v775
      %816 = vmatprep.subr.bf16.mxu0 %v778
      %817 = vmatpush1.bf16.msra.mxu0 %v777
      %818 = vmatprep.subr.bf16.mxu0 %v780
      %819 = vmatpush1.bf16.msra.mxu0 %v779
      %820 = vmatprep.subr.bf16.mxu0 0
      %821 = vmatpush1.bf16.msra.mxu0 0
      %822 = vmatprep.subr.bf16.mxu0 0
      %823 = vmatpush1.bf16.msra.mxu0 0
      %824 = vmatprep.subr.bf16.mxu0 0
      %825 = vmatpush1.bf16.msra.mxu0 0
      %826 = vmatprep.subr.bf16.mxu0 0
      %827 = vmatpush1.bf16.msra.mxu0 0
      %828 = vmatprep.subr.bf16.mxu0 0
      %829 = vmatpush1.bf16.msra.mxu0 0
      %830 = vmatprep.subr.bf16.mxu0 0
      %831 = vmatpush1.bf16.msra.mxu0 0
      %832 = vmatprep.subr.bf16.mxu0 0
      %833 = vmatpush1.bf16.msra.mxu0 0
      %834 = vmatprep.mubr.bf16.mxu0 %v800
      %835 = vmatmul.mubr.bf16.gmra.mrb[0].mxu0 %v696
      %v836 = vpop.f32.mrb[0].mxu0
      %v837 = vadd.f32 0.0, %v836
      %v838 = vpop.f32.mrb[0].mxu0
      %v839 = vadd.f32 0.0, %v838
      %v840 = vpop.f32.mrb[0].mxu0
      %v841 = vadd.f32 0.0, %v840
      %v842 = vpop.f32.mrb[0].mxu0
      %v843 = vadd.f32 0.0, %v842
      %844 = vdwg.mxu0
      %v845 = vadd.f32 %v652, %v837
      %v846 = vadd.f32 %v654, %v839
      %v847 = vadd.f32 %v656, %v841
      %v848 = vadd.f32 %v658, %v843
      %s849 = scalar_lea.vmem %s3, 144
      %v850 = vld [vmem:[%s849] sm:$0xff]
      %v851 = vld [vmem:[%s849 + $0x8] sm:$0xff]
      %v852 = vld [vmem:[%s849 + $0x10] sm:$0xff]
      %v853 = vld [vmem:[%s849 + $0x18] sm:$0xff]
      %v854 = vld [vmem:[%s849 + $0x20] sm:$0xff]
      %v855 = vld [vmem:[%s849 + $0x28] sm:$0xff]
      %v856 = vld [vmem:[%s849 + $0x30] sm:$0xff]
      %v857 = vld [vmem:[%s849 + $0x38] sm:$0xff]
      %v858 = vld [vmem:[%s849 + $0x40] sm:$0xff]
      %v859 = vld [vmem:[%s849 + $0x48] sm:$0xff]
      %v860 = vld [vmem:[%s849 + $0x50] sm:$0xff]
      %v861 = vld [vmem:[%s849 + $0x58] sm:$0xff]
      %v862 = vld [vmem:[%s849 + $0x60] sm:$0xff]
      %v863 = vld [vmem:[%s849 + $0x68] sm:$0xff]
      %v864 = vld [vmem:[%s849 + $0x70] sm:$0xff]
      %v865 = vld [vmem:[%s849 + $0x78] sm:$0xff]
      %v866 = vld [vmem:[%s849 + $0x80] sm:$0xff]
      %v867 = vld [vmem:[%s849 + $0x88] sm:$0xff]
      %v869 = vunpack.c.l.b16 %v332
      %v870 = vunpack.c.h.b16 %v332
      %v871 = vpack.c.b16 %v869, %v869
      %v872 = vpack.c.b16 %v870, %v870
      %v874 = vshrl.u32 %v375, 16
      %v876 = vshll.u32 %v375, 16
      %v878 = vrot.slane %v876, 1
      %v879 = vor.u32 %v874, %v878
      %v881 = vshll.u32 %v871, 16
      %v883 = vrot.slane %v881, 1
      %v884 = vsel %vm684, %v879, %v883
      %v885 = vshrl.u32 %v376, 16
      %v887 = vshll.u32 %v376, 16
      %v889 = vrot.slane %v887, 1
      %v890 = vor.u32 %v885, %v889
      %v892 = vshll.u32 %v872, 16
      %v894 = vrot.slane %v892, 1
      %v895 = vsel %vm684, %v890, %v894
      %v915 = vunpack.c.l.b16 %v850
      %v916 = vunpack.c.h.b16 %v850
      %v917 = vunpack.c.l.b16 %v851
      %v918 = vunpack.c.h.b16 %v851
      %v919 = vunpack.c.l.b16 %v852
      %v920 = vunpack.c.h.b16 %v852
      %v921 = vunpack.c.l.b16 %v853
      %v922 = vunpack.c.h.b16 %v853
      %v923 = vunpack.c.l.b16 %v854
      %v924 = vunpack.c.h.b16 %v854
      %v925 = vunpack.c.l.b16 %v855
      %v926 = vunpack.c.h.b16 %v855
      %v927 = vunpack.c.l.b16 %v856
      %v928 = vunpack.c.h.b16 %v856
      %v929 = vunpack.c.l.b16 %v857
      %v930 = vunpack.c.h.b16 %v857
      %v931 = vunpack.c.l.b16 %v858
      %v932 = vunpack.c.h.b16 %v858
      %v933 = vunpack.c.l.b16 %v859
      %v934 = vunpack.c.h.b16 %v859
      %v935 = vunpack.c.l.b16 %v860
      %v936 = vunpack.c.h.b16 %v860
      %v937 = vunpack.c.l.b16 %v861
      %v938 = vunpack.c.h.b16 %v861
      %v939 = vunpack.c.l.b16 %v862
      %v940 = vunpack.c.h.b16 %v862
      %v941 = vunpack.c.l.b16 %v863
      %v942 = vunpack.c.h.b16 %v863
      %v943 = vunpack.c.l.b16 %v864
      %v944 = vunpack.c.h.b16 %v864
      %v945 = vunpack.c.l.b16 %v865
      %v946 = vunpack.c.h.b16 %v865
      %v947 = vunpack.c.l.b16 %v866
      %v948 = vunpack.c.h.b16 %v866
      %v949 = vunpack.c.l.b16 %v867
      %v950 = vunpack.c.h.b16 %v867
      %v951 = vpack.c.b16 %v917, %v915
      %v952 = vpack.c.b16 %v918, %v916
      %v953 = vpack.c.b16 %v921, %v919
      %v954 = vpack.c.b16 %v922, %v920
      %v955 = vpack.c.b16 %v925, %v923
      %v956 = vpack.c.b16 %v926, %v924
      %v957 = vpack.c.b16 %v929, %v927
      %v958 = vpack.c.b16 %v930, %v928
      %v959 = vpack.c.b16 %v933, %v931
      %v960 = vpack.c.b16 %v934, %v932
      %v961 = vpack.c.b16 %v937, %v935
      %v962 = vpack.c.b16 %v938, %v936
      %v963 = vpack.c.b16 %v941, %v939
      %v964 = vpack.c.b16 %v942, %v940
      %v965 = vpack.c.b16 %v945, %v943
      %v966 = vpack.c.b16 %v946, %v944
      %v967 = vpack.c.b16 %v949, %v947
      %v968 = vpack.c.b16 %v950, %v948
      %v988 = vsel %vm468, %v895, 0
      %990 = vmatprep.subr.bf16.mxu0 %v952
      %991 = vmatpush1.bf16.msra.mxu0 %v951
      %992 = vmatprep.subr.bf16.mxu0 %v954
      %993 = vmatpush1.bf16.msra.mxu0 %v953
      %994 = vmatprep.subr.bf16.mxu0 %v956
      %995 = vmatpush1.bf16.msra.mxu0 %v955
      %996 = vmatprep.subr.bf16.mxu0 %v958
      %997 = vmatpush1.bf16.msra.mxu0 %v957
      %998 = vmatprep.subr.bf16.mxu0 %v960
      %999 = vmatpush1.bf16.msra.mxu0 %v959
      %1000 = vmatprep.subr.bf16.mxu0 %v962
      %1001 = vmatpush1.bf16.msra.mxu0 %v961
      %1002 = vmatprep.subr.bf16.mxu0 %v964
      %1003 = vmatpush1.bf16.msra.mxu0 %v963
      %1004 = vmatprep.subr.bf16.mxu0 %v966
      %1005 = vmatpush1.bf16.msra.mxu0 %v965
      %1006 = vmatprep.subr.bf16.mxu0 %v968
      %1007 = vmatpush1.bf16.msra.mxu0 %v967
      %1008 = vmatprep.subr.bf16.mxu0 0
      %1009 = vmatpush1.bf16.msra.mxu0 0
      %1010 = vmatprep.subr.bf16.mxu0 0
      %1011 = vmatpush1.bf16.msra.mxu0 0
      %1012 = vmatprep.subr.bf16.mxu0 0
      %1013 = vmatpush1.bf16.msra.mxu0 0
      %1014 = vmatprep.subr.bf16.mxu0 0
      %1015 = vmatpush1.bf16.msra.mxu0 0
      %1016 = vmatprep.subr.bf16.mxu0 0
      %1017 = vmatpush1.bf16.msra.mxu0 0
      %1018 = vmatprep.subr.bf16.mxu0 0
      %1019 = vmatpush1.bf16.msra.mxu0 0
      %1020 = vmatprep.subr.bf16.mxu0 0
      %1021 = vmatpush1.bf16.msra.mxu0 0
      %1022 = vmatprep.mubr.bf16.mxu0 %v988
      %1023 = vmatmul.mubr.bf16.gmra.mrb[0].mxu0 %v884
      %v1024 = vpop.f32.mrb[0].mxu0
      %v1025 = vadd.f32 0.0, %v1024
      %v1026 = vpop.f32.mrb[0].mxu0
      %v1027 = vadd.f32 0.0, %v1026
      %v1028 = vpop.f32.mrb[0].mxu0
      %v1029 = vadd.f32 0.0, %v1028
      %v1030 = vpop.f32.mrb[0].mxu0
      %v1031 = vadd.f32 0.0, %v1030
      %1032 = vdwg.mxu0
      %v1033 = vadd.f32 %v845, %v1025
      %v1034 = vadd.f32 %v846, %v1027
      %v1035 = vadd.f32 %v847, %v1029
      %v1036 = vadd.f32 %v848, %v1031
      %s1037 = scalar_lea.vmem %s1, 288
      %v1038 = vld [vmem:[%s1037] sm:$0xff]
      %v1039 = vld [vmem:[%s1037 + $0x8] sm:$0xff]
      %v1040 = vld [vmem:[%s1037 + $0x10] sm:$0xff]
      %v1041 = vld [vmem:[%s1037 + $0x18] sm:$0xff]
      %v1042 = vld [vmem:[%s1037 + $0x20] sm:$0xff]
      %v1043 = vld [vmem:[%s1037 + $0x28] sm:$0xff]
      %v1044 = vld [vmem:[%s1037 + $0x30] sm:$0xff]
      %v1045 = vld [vmem:[%s1037 + $0x38] sm:$0xff]
      %v1046 = vld [vmem:[%s1037 + $0x40] sm:$0xff]
      %v1047 = vld [vmem:[%s1037 + $0x48] sm:$0xff]
      %v1048 = vld [vmem:[%s1037 + $0x50] sm:$0xff]
      %v1049 = vld [vmem:[%s1037 + $0x58] sm:$0xff]
      %v1050 = vld [vmem:[%s1037 + $0x60] sm:$0xff]
      %v1051 = vld [vmem:[%s1037 + $0x68] sm:$0xff]
      %v1052 = vld [vmem:[%s1037 + $0x70] sm:$0xff]
      %v1053 = vld [vmem:[%s1037 + $0x78] sm:$0xff]
      %v1054 = vld [vmem:[%s1037 + $0x80] sm:$0xff]
      %v1055 = vld [vmem:[%s1037 + $0x88] sm:$0xff]
      %vm1056 = vcmask 1046528
      %v1057 = vrot.slane %v521, 1
      %v1058 = vrot.slane %v682, 1
      %v1059 = vsel %vm1056, %v1057, %v1058
      %v1060 = vrot.slane %v522, 1
      %v1061 = vrot.slane %v683, 1
      %v1062 = vsel %vm1056, %v1060, %v1061
      %v1082 = vunpack.c.l.b16 %v1038
      %v1083 = vunpack.c.h.b16 %v1038
      %v1084 = vunpack.c.l.b16 %v1039
      %v1085 = vunpack.c.h.b16 %v1039
      %v1086 = vunpack.c.l.b16 %v1040
      %v1087 = vunpack.c.h.b16 %v1040
      %v1088 = vunpack.c.l.b16 %v1041
      %v1089 = vunpack.c.h.b16 %v1041
      %v1090 = vunpack.c.l.b16 %v1042
      %v1091 = vunpack.c.h.b16 %v1042
      %v1092 = vunpack.c.l.b16 %v1043
      %v1093 = vunpack.c.h.b16 %v1043
      %v1094 = vunpack.c.l.b16 %v1044
      %v1095 = vunpack.c.h.b16 %v1044
      %v1096 = vunpack.c.l.b16 %v1045
      %v1097 = vunpack.c.h.b16 %v1045
      %v1098 = vunpack.c.l.b16 %v1046
      %v1099 = vunpack.c.h.b16 %v1046
      %v1100 = vunpack.c.l.b16 %v1047
      %v1101 = vunpack.c.h.b16 %v1047
      %v1102 = vunpack.c.l.b16 %v1048
      %v1103 = vunpack.c.h.b16 %v1048
      %v1104 = vunpack.c.l.b16 %v1049
      %v1105 = vunpack.c.h.b16 %v1049
      %v1106 = vunpack.c.l.b16 %v1050
      %v1107 = vunpack.c.h.b16 %v1050
      %v1108 = vunpack.c.l.b16 %v1051
      %v1109 = vunpack.c.h.b16 %v1051
      %v1110 = vunpack.c.l.b16 %v1052
      %v1111 = vunpack.c.h.b16 %v1052
      %v1112 = vunpack.c.l.b16 %v1053
      %v1113 = vunpack.c.h.b16 %v1053
      %v1114 = vunpack.c.l.b16 %v1054
      %v1115 = vunpack.c.h.b16 %v1054
      %v1116 = vunpack.c.l.b16 %v1055
      %v1117 = vunpack.c.h.b16 %v1055
      %v1118 = vpack.c.b16 %v1084, %v1082
      %v1119 = vpack.c.b16 %v1085, %v1083
      %v1120 = vpack.c.b16 %v1088, %v1086
      %v1121 = vpack.c.b16 %v1089, %v1087
      %v1122 = vpack.c.b16 %v1092, %v1090
      %v1123 = vpack.c.b16 %v1093, %v1091
      %v1124 = vpack.c.b16 %v1096, %v1094
      %v1125 = vpack.c.b16 %v1097, %v1095
      %v1126 = vpack.c.b16 %v1100, %v1098
      %v1127 = vpack.c.b16 %v1101, %v1099
      %v1128 = vpack.c.b16 %v1104, %v1102
      %v1129 = vpack.c.b16 %v1105, %v1103
      %v1130 = vpack.c.b16 %v1108, %v1106
      %v1131 = vpack.c.b16 %v1109, %v1107
      %v1132 = vpack.c.b16 %v1112, %v1110
      %v1133 = vpack.c.b16 %v1113, %v1111
      %v1134 = vpack.c.b16 %v1116, %v1114
      %v1135 = vpack.c.b16 %v1117, %v1115
      %v1155 = vsel %vm468, %v1062, 0
      %1157 = vmatprep.subr.bf16.mxu0 %v1119
      %1158 = vmatpush1.bf16.msra.mxu0 %v1118
      %1159 = vmatprep.subr.bf16.mxu0 %v1121
      %1160 = vmatpush1.bf16.msra.mxu0 %v1120
      %1161 = vmatprep.subr.bf16.mxu0 %v1123
      %1162 = vmatpush1.bf16.msra.mxu0 %v1122
      %1163 = vmatprep.subr.bf16.mxu0 %v1125
      %1164 = vmatpush1.bf16.msra.mxu0 %v1124
      %1165 = vmatprep.subr.bf16.mxu0 %v1127
      %1166 = vmatpush1.bf16.msra.mxu0 %v1126
      %1167 = vmatprep.subr.bf16.mxu0 %v1129
      %1168 = vmatpush1.bf16.msra.mxu0 %v1128
      %1169 = vmatprep.subr.bf16.mxu0 %v1131
      %1170 = vmatpush1.bf16.msra.mxu0 %v1130
      %1171 = vmatprep.subr.bf16.mxu0 %v1133
      %1172 = vmatpush1.bf16.msra.mxu0 %v1132
      %1173 = vmatprep.subr.bf16.mxu0 %v1135
      %1174 = vmatpush1.bf16.msra.mxu0 %v1134
      %1175 = vmatprep.subr.bf16.mxu0 0
      %1176 = vmatpush1.bf16.msra.mxu0 0
      %1177 = vmatprep.subr.bf16.mxu0 0
      %1178 = vmatpush1.bf16.msra.mxu0 0
      %1179 = vmatprep.subr.bf16.mxu0 0
      %1180 = vmatpush1.bf16.msra.mxu0 0
      %1181 = vmatprep.subr.bf16.mxu0 0
      %1182 = vmatpush1.bf16.msra.mxu0 0
      %1183 = vmatprep.subr.bf16.mxu0 0
      %1184 = vmatpush1.bf16.msra.mxu0 0
      %1185 = vmatprep.subr.bf16.mxu0 0
      %1186 = vmatpush1.bf16.msra.mxu0 0
      %1187 = vmatprep.subr.bf16.mxu0 0
      %1188 = vmatpush1.bf16.msra.mxu0 0
      %1189 = vmatprep.mubr.bf16.mxu0 %v1155
      %1190 = vmatmul.mubr.bf16.gmra.mrb[0].mxu0 %v1059
      %v1191 = vpop.f32.mrb[0].mxu0
      %v1192 = vadd.f32 0.0, %v1191
      %v1193 = vpop.f32.mrb[0].mxu0
      %v1194 = vadd.f32 0.0, %v1193
      %v1195 = vpop.f32.mrb[0].mxu0
      %v1196 = vadd.f32 0.0, %v1195
      %v1197 = vpop.f32.mrb[0].mxu0
      %v1198 = vadd.f32 0.0, %v1197
      %1199 = vdwg.mxu0
      %v1200 = vadd.f32 %v1033, %v1192
      %v1201 = vadd.f32 %v1034, %v1194
      %v1202 = vadd.f32 %v1035, %v1196
      %v1203 = vadd.f32 %v1036, %v1198
      %s1204 = scalar_lea.vmem %s3, 288
      %v1205 = vld [vmem:[%s1204] sm:$0xff]
      %v1206 = vld [vmem:[%s1204 + $0x8] sm:$0xff]
      %v1207 = vld [vmem:[%s1204 + $0x10] sm:$0xff]
      %v1208 = vld [vmem:[%s1204 + $0x18] sm:$0xff]
      %v1209 = vld [vmem:[%s1204 + $0x20] sm:$0xff]
      %v1210 = vld [vmem:[%s1204 + $0x28] sm:$0xff]
      %v1211 = vld [vmem:[%s1204 + $0x30] sm:$0xff]
      %v1212 = vld [vmem:[%s1204 + $0x38] sm:$0xff]
      %v1213 = vld [vmem:[%s1204 + $0x40] sm:$0xff]
      %v1214 = vld [vmem:[%s1204 + $0x48] sm:$0xff]
      %v1215 = vld [vmem:[%s1204 + $0x50] sm:$0xff]
      %v1216 = vld [vmem:[%s1204 + $0x58] sm:$0xff]
      %v1217 = vld [vmem:[%s1204 + $0x60] sm:$0xff]
      %v1218 = vld [vmem:[%s1204 + $0x68] sm:$0xff]
      %v1219 = vld [vmem:[%s1204 + $0x70] sm:$0xff]
      %v1220 = vld [vmem:[%s1204 + $0x78] sm:$0xff]
      %v1221 = vld [vmem:[%s1204 + $0x80] sm:$0xff]
      %v1222 = vld [vmem:[%s1204 + $0x88] sm:$0xff]
      %v1223 = vrot.slane %v375, 1
      %v1224 = vrot.slane %v871, 1
      %v1225 = vsel %vm1056, %v1223, %v1224
      %v1226 = vrot.slane %v376, 1
      %v1227 = vrot.slane %v872, 1
      %v1228 = vsel %vm1056, %v1226, %v1227
      %v1248 = vunpack.c.l.b16 %v1205
      %v1249 = vunpack.c.h.b16 %v1205
      %v1250 = vunpack.c.l.b16 %v1206
      %v1251 = vunpack.c.h.b16 %v1206
      %v1252 = vunpack.c.l.b16 %v1207
      %v1253 = vunpack.c.h.b16 %v1207
      %v1254 = vunpack.c.l.b16 %v1208
      %v1255 = vunpack.c.h.b16 %v1208
      %v1256 = vunpack.c.l.b16 %v1209
      %v1257 = vunpack.c.h.b16 %v1209
      %v1258 = vunpack.c.l.b16 %v1210
      %v1259 = vunpack.c.h.b16 %v1210
      %v1260 = vunpack.c.l.b16 %v1211
      %v1261 = vunpack.c.h.b16 %v1211
      %v1262 = vunpack.c.l.b16 %v1212
      %v1263 = vunpack.c.h.b16 %v1212
      %v1264 = vunpack.c.l.b16 %v1213
      %v1265 = vunpack.c.h.b16 %v1213
      %v1266 = vunpack.c.l.b16 %v1214
      %v1267 = vunpack.c.h.b16 %v1214
      %v1268 = vunpack.c.l.b16 %v1215
      %v1269 = vunpack.c.h.b16 %v1215
      %v1270 = vunpack.c.l.b16 %v1216
      %v1271 = vunpack.c.h.b16 %v1216
      %v1272 = vunpack.c.l.b16 %v1217
      %v1273 = vunpack.c.h.b16 %v1217
      %v1274 = vunpack.c.l.b16 %v1218
      %v1275 = vunpack.c.h.b16 %v1218
      %v1276 = vunpack.c.l.b16 %v1219
      %v1277 = vunpack.c.h.b16 %v1219
      %v1278 = vunpack.c.l.b16 %v1220
      %v1279 = vunpack.c.h.b16 %v1220
      %v1280 = vunpack.c.l.b16 %v1221
      %v1281 = vunpack.c.h.b16 %v1221
      %v1282 = vunpack.c.l.b16 %v1222
      %v1283 = vunpack.c.h.b16 %v1222
      %v1284 = vpack.c.b16 %v1250, %v1248
      %v1285 = vpack.c.b16 %v1251, %v1249
      %v1286 = vpack.c.b16 %v1254, %v1252
      %v1287 = vpack.c.b16 %v1255, %v1253
      %v1288 = vpack.c.b16 %v1258, %v1256
      %v1289 = vpack.c.b16 %v1259, %v1257
      %v1290 = vpack.c.b16 %v1262, %v1260
      %v1291 = vpack.c.b16 %v1263, %v1261
      %v1292 = vpack.c.b16 %v1266, %v1264
      %v1293 = vpack.c.b16 %v1267, %v1265
      %v1294 = vpack.c.b16 %v1270, %v1268
      %v1295 = vpack.c.b16 %v1271, %v1269
      %v1296 = vpack.c.b16 %v1274, %v1272
      %v1297 = vpack.c.b16 %v1275, %v1273
      %v1298 = vpack.c.b16 %v1278, %v1276
      %v1299 = vpack.c.b16 %v1279, %v1277
      %v1300 = vpack.c.b16 %v1282, %v1280
      %v1301 = vpack.c.b16 %v1283, %v1281
      %v1321 = vsel %vm468, %v1228, 0
      %1323 = vmatprep.subr.bf16.mxu0 %v1285
      %1324 = vmatpush1.bf16.msra.mxu0 %v1284
      %1325 = vmatprep.subr.bf16.mxu0 %v1287
      %1326 = vmatpush1.bf16.msra.mxu0 %v1286
      %1327 = vmatprep.subr.bf16.mxu0 %v1289
      %1328 = vmatpush1.bf16.msra.mxu0 %v1288
      %1329 = vmatprep.subr.bf16.mxu0 %v1291
      %1330 = vmatpush1.bf16.msra.mxu0 %v1290
      %1331 = vmatprep.subr.bf16.mxu0 %v1293
      %1332 = vmatpush1.bf16.msra.mxu0 %v1292
      %1333 = vmatprep.subr.bf16.mxu0 %v1295
      %1334 = vmatpush1.bf16.msra.mxu0 %v1294
      %1335 = vmatprep.subr.bf16.mxu0 %v1297
      %1336 = vmatpush1.bf16.msra.mxu0 %v1296
      %1337 = vmatprep.subr.bf16.mxu0 %v1299
      %1338 = vmatpush1.bf16.msra.mxu0 %v1298
      %1339 = vmatprep.subr.bf16.mxu0 %v1301
      %1340 = vmatpush1.bf16.msra.mxu0 %v1300
      %1341 = vmatprep.subr.bf16.mxu0 0
      %1342 = vmatpush1.bf16.msra.mxu0 0
      %1343 = vmatprep.subr.bf16.mxu0 0
      %1344 = vmatpush1.bf16.msra.mxu0 0
      %1345 = vmatprep.subr.bf16.mxu0 0
      %1346 = vmatpush1.bf16.msra.mxu0 0
      %1347 = vmatprep.subr.bf16.mxu0 0
      %1348 = vmatpush1.bf16.msra.mxu0 0
      %1349 = vmatprep.subr.bf16.mxu0 0
      %1350 = vmatpush1.bf16.msra.mxu0 0
      %1351 = vmatprep.subr.bf16.mxu0 0
      %1352 = vmatpush1.bf16.msra.mxu0 0
      %1353 = vmatprep.subr.bf16.mxu0 0
      %1354 = vmatpush1.bf16.msra.mxu0 0
      %1355 = vmatprep.mubr.bf16.mxu0 %v1321
      %1356 = vmatmul.mubr.bf16.gmra.mrb[0].mxu0 %v1225
      %v1357 = vpop.f32.mrb[0].mxu0
      %v1358 = vadd.f32 0.0, %v1357
      %v1359 = vpop.f32.mrb[0].mxu0
      %v1360 = vadd.f32 0.0, %v1359
      %v1361 = vpop.f32.mrb[0].mxu0
      %v1362 = vadd.f32 0.0, %v1361
      %v1363 = vpop.f32.mrb[0].mxu0
      %v1364 = vadd.f32 0.0, %v1363
      %1365 = vdwg.mxu0
      %v1366 = vadd.f32 %v1200, %v1358
      %v1367 = vadd.f32 %v1201, %v1360
      %v1368 = vadd.f32 %v1202, %v1362
      %v1369 = vadd.f32 %v1203, %v1364
      %s1370 = sadd.s32 %s23, 1
      %s1371 = smul.u32 %s1370, 6
      %s1372 = smul.addr %s1371, 4
      %s1373 = scalar_lea.vmem %s306, %s1372
      %v1374 = vld [vmem:[%s1373] sm:$0xff]
      %v1375 = vld [vmem:[%s1373 + $0x8] sm:$0xff]
      %v1376 = vld [vmem:[%s1373 + $0x10] sm:$0x11]
      %s1377 = smul.addr %s1371, 4
      %s1378 = scalar_lea.vmem %s311, %s1377
      %v1379 = vld [vmem:[%s1378] sm:$0xff]
      %v1380 = vld [vmem:[%s1378 + $0x8] sm:$0xff]
      %v1381 = vld [vmem:[%s1378 + $0x10] sm:$0x11]
      %s1382 = scalar_lea.vmem %s1, 432
      %v1383 = vld [vmem:[%s1382] sm:$0xff]
      %v1384 = vld [vmem:[%s1382 + $0x8] sm:$0xff]
      %v1385 = vld [vmem:[%s1382 + $0x10] sm:$0xff]
      %v1386 = vld [vmem:[%s1382 + $0x18] sm:$0xff]
      %v1387 = vld [vmem:[%s1382 + $0x20] sm:$0xff]
      %v1388 = vld [vmem:[%s1382 + $0x28] sm:$0xff]
      %v1389 = vld [vmem:[%s1382 + $0x30] sm:$0xff]
      %v1390 = vld [vmem:[%s1382 + $0x38] sm:$0xff]
      %v1391 = vld [vmem:[%s1382 + $0x40] sm:$0xff]
      %v1392 = vld [vmem:[%s1382 + $0x48] sm:$0xff]
      %v1393 = vld [vmem:[%s1382 + $0x50] sm:$0xff]
      %v1394 = vld [vmem:[%s1382 + $0x58] sm:$0xff]
      %v1395 = vld [vmem:[%s1382 + $0x60] sm:$0xff]
      %v1396 = vld [vmem:[%s1382 + $0x68] sm:$0xff]
      %v1397 = vld [vmem:[%s1382 + $0x70] sm:$0xff]
      %v1398 = vld [vmem:[%s1382 + $0x78] sm:$0xff]
      %v1399 = vld [vmem:[%s1382 + $0x80] sm:$0xff]
      %v1400 = vld [vmem:[%s1382 + $0x88] sm:$0xff]
      %v1403 = vunpack.c.l.b16 %v1374
      %v1404 = vunpack.c.h.b16 %v1374
      %v1405 = vunpack.c.l.b16 %v1375
      %v1406 = vunpack.c.h.b16 %v1375
      %v1407 = vpack.c.b16 %v1405, %v1403
      %v1408 = vpack.c.b16 %v1406, %v1404
      %v1428 = vunpack.c.l.b16 %v1383
      %v1429 = vunpack.c.h.b16 %v1383
      %v1430 = vunpack.c.l.b16 %v1384
      %v1431 = vunpack.c.h.b16 %v1384
      %v1432 = vunpack.c.l.b16 %v1385
      %v1433 = vunpack.c.h.b16 %v1385
      %v1434 = vunpack.c.l.b16 %v1386
      %v1435 = vunpack.c.h.b16 %v1386
      %v1436 = vunpack.c.l.b16 %v1387
      %v1437 = vunpack.c.h.b16 %v1387
      %v1438 = vunpack.c.l.b16 %v1388
      %v1439 = vunpack.c.h.b16 %v1388
      %v1440 = vunpack.c.l.b16 %v1389
      %v1441 = vunpack.c.h.b16 %v1389
      %v1442 = vunpack.c.l.b16 %v1390
      %v1443 = vunpack.c.h.b16 %v1390
      %v1444 = vunpack.c.l.b16 %v1391
      %v1445 = vunpack.c.h.b16 %v1391
      %v1446 = vunpack.c.l.b16 %v1392
      %v1447 = vunpack.c.h.b16 %v1392
      %v1448 = vunpack.c.l.b16 %v1393
      %v1449 = vunpack.c.h.b16 %v1393
      %v1450 = vunpack.c.l.b16 %v1394
      %v1451 = vunpack.c.h.b16 %v1394
      %v1452 = vunpack.c.l.b16 %v1395
      %v1453 = vunpack.c.h.b16 %v1395
      %v1454 = vunpack.c.l.b16 %v1396
      %v1455 = vunpack.c.h.b16 %v1396
      %v1456 = vunpack.c.l.b16 %v1397
      %v1457 = vunpack.c.h.b16 %v1397
      %v1458 = vunpack.c.l.b16 %v1398
      %v1459 = vunpack.c.h.b16 %v1398
      %v1460 = vunpack.c.l.b16 %v1399
      %v1461 = vunpack.c.h.b16 %v1399
      %v1462 = vunpack.c.l.b16 %v1400
      %v1463 = vunpack.c.h.b16 %v1400
      %v1464 = vpack.c.b16 %v1430, %v1428
      %v1465 = vpack.c.b16 %v1431, %v1429
      %v1466 = vpack.c.b16 %v1434, %v1432
      %v1467 = vpack.c.b16 %v1435, %v1433
      %v1468 = vpack.c.b16 %v1438, %v1436
      %v1469 = vpack.c.b16 %v1439, %v1437
      %v1470 = vpack.c.b16 %v1442, %v1440
      %v1471 = vpack.c.b16 %v1443, %v1441
      %v1472 = vpack.c.b16 %v1446, %v1444
      %v1473 = vpack.c.b16 %v1447, %v1445
      %v1474 = vpack.c.b16 %v1450, %v1448
      %v1475 = vpack.c.b16 %v1451, %v1449
      %v1476 = vpack.c.b16 %v1454, %v1452
      %v1477 = vpack.c.b16 %v1455, %v1453
      %v1478 = vpack.c.b16 %v1458, %v1456
      %v1479 = vpack.c.b16 %v1459, %v1457
      %v1480 = vpack.c.b16 %v1462, %v1460
      %v1481 = vpack.c.b16 %v1463, %v1461
      %v1501 = vsel %vm468, %v1408, 0
      %1503 = vmatprep.subr.bf16.mxu0 %v1465
      %1504 = vmatpush1.bf16.msra.mxu0 %v1464
      %1505 = vmatprep.subr.bf16.mxu0 %v1467
      %1506 = vmatpush1.bf16.msra.mxu0 %v1466
      %1507 = vmatprep.subr.bf16.mxu0 %v1469
      %1508 = vmatpush1.bf16.msra.mxu0 %v1468
      %1509 = vmatprep.subr.bf16.mxu0 %v1471
      %1510 = vmatpush1.bf16.msra.mxu0 %v1470
      %1511 = vmatprep.subr.bf16.mxu0 %v1473
      %1512 = vmatpush1.bf16.msra.mxu0 %v1472
      %1513 = vmatprep.subr.bf16.mxu0 %v1475
      %1514 = vmatpush1.bf16.msra.mxu0 %v1474
      %1515 = vmatprep.subr.bf16.mxu0 %v1477
      %1516 = vmatpush1.bf16.msra.mxu0 %v1476
      %1517 = vmatprep.subr.bf16.mxu0 %v1479
      %1518 = vmatpush1.bf16.msra.mxu0 %v1478
      %1519 = vmatprep.subr.bf16.mxu0 %v1481
      %1520 = vmatpush1.bf16.msra.mxu0 %v1480
      %1521 = vmatprep.subr.bf16.mxu0 0
      %1522 = vmatpush1.bf16.msra.mxu0 0
      %1523 = vmatprep.subr.bf16.mxu0 0
      %1524 = vmatpush1.bf16.msra.mxu0 0
      %1525 = vmatprep.subr.bf16.mxu0 0
      %1526 = vmatpush1.bf16.msra.mxu0 0
      %1527 = vmatprep.subr.bf16.mxu0 0
      %1528 = vmatpush1.bf16.msra.mxu0 0
      %1529 = vmatprep.subr.bf16.mxu0 0
      %1530 = vmatpush1.bf16.msra.mxu0 0
      %1531 = vmatprep.subr.bf16.mxu0 0
      %1532 = vmatpush1.bf16.msra.mxu0 0
      %1533 = vmatprep.subr.bf16.mxu0 0
      %1534 = vmatpush1.bf16.msra.mxu0 0
      %1535 = vmatprep.mubr.bf16.mxu0 %v1501
      %1536 = vmatmul.mubr.bf16.gmra.mrb[0].mxu0 %v1407
      %v1537 = vpop.f32.mrb[0].mxu0
      %v1538 = vadd.f32 0.0, %v1537
      %v1539 = vpop.f32.mrb[0].mxu0
      %v1540 = vadd.f32 0.0, %v1539
      %v1541 = vpop.f32.mrb[0].mxu0
      %v1542 = vadd.f32 0.0, %v1541
      %v1543 = vpop.f32.mrb[0].mxu0
      %v1544 = vadd.f32 0.0, %v1543
      %1545 = vdwg.mxu0
      %v1546 = vadd.f32 %v1366, %v1538
      %v1547 = vadd.f32 %v1367, %v1540
      %v1548 = vadd.f32 %v1368, %v1542
      %v1549 = vadd.f32 %v1369, %v1544
      %s1550 = scalar_lea.vmem %s3, 432
      %v1551 = vld [vmem:[%s1550] sm:$0xff]
      %v1552 = vld [vmem:[%s1550 + $0x8] sm:$0xff]
      %v1553 = vld [vmem:[%s1550 + $0x10] sm:$0xff]
      %v1554 = vld [vmem:[%s1550 + $0x18] sm:$0xff]
      %v1555 = vld [vmem:[%s1550 + $0x20] sm:$0xff]
      %v1556 = vld [vmem:[%s1550 + $0x28] sm:$0xff]
      %v1557 = vld [vmem:[%s1550 + $0x30] sm:$0xff]
      %v1558 = vld [vmem:[%s1550 + $0x38] sm:$0xff]
      %v1559 = vld [vmem:[%s1550 + $0x40] sm:$0xff]
      %v1560 = vld [vmem:[%s1550 + $0x48] sm:$0xff]
      %v1561 = vld [vmem:[%s1550 + $0x50] sm:$0xff]
      %v1562 = vld [vmem:[%s1550 + $0x58] sm:$0xff]
      %v1563 = vld [vmem:[%s1550 + $0x60] sm:$0xff]
      %v1564 = vld [vmem:[%s1550 + $0x68] sm:$0xff]
      %v1565 = vld [vmem:[%s1550 + $0x70] sm:$0xff]
      %v1566 = vld [vmem:[%s1550 + $0x78] sm:$0xff]
      %v1567 = vld [vmem:[%s1550 + $0x80] sm:$0xff]
      %v1568 = vld [vmem:[%s1550 + $0x88] sm:$0xff]
      %v1571 = vunpack.c.l.b16 %v1379
      %v1572 = vunpack.c.h.b16 %v1379
      %v1573 = vunpack.c.l.b16 %v1380
      %v1574 = vunpack.c.h.b16 %v1380
      %v1575 = vpack.c.b16 %v1573, %v1571
      %v1576 = vpack.c.b16 %v1574, %v1572
      %v1596 = vunpack.c.l.b16 %v1551
      %v1597 = vunpack.c.h.b16 %v1551
      %v1598 = vunpack.c.l.b16 %v1552
      %v1599 = vunpack.c.h.b16 %v1552
      %v1600 = vunpack.c.l.b16 %v1553
      %v1601 = vunpack.c.h.b16 %v1553
      %v1602 = vunpack.c.l.b16 %v1554
      %v1603 = vunpack.c.h.b16 %v1554
      %v1604 = vunpack.c.l.b16 %v1555
      %v1605 = vunpack.c.h.b16 %v1555
      %v1606 = vunpack.c.l.b16 %v1556
      %v1607 = vunpack.c.h.b16 %v1556
      %v1608 = vunpack.c.l.b16 %v1557
      %v1609 = vunpack.c.h.b16 %v1557
      %v1610 = vunpack.c.l.b16 %v1558
      %v1611 = vunpack.c.h.b16 %v1558
      %v1612 = vunpack.c.l.b16 %v1559
      %v1613 = vunpack.c.h.b16 %v1559
      %v1614 = vunpack.c.l.b16 %v1560
      %v1615 = vunpack.c.h.b16 %v1560
      %v1616 = vunpack.c.l.b16 %v1561
      %v1617 = vunpack.c.h.b16 %v1561
      %v1618 = vunpack.c.l.b16 %v1562
      %v1619 = vunpack.c.h.b16 %v1562
      %v1620 = vunpack.c.l.b16 %v1563
      %v1621 = vunpack.c.h.b16 %v1563
      %v1622 = vunpack.c.l.b16 %v1564
      %v1623 = vunpack.c.h.b16 %v1564
      %v1624 = vunpack.c.l.b16 %v1565
      %v1625 = vunpack.c.h.b16 %v1565
      %v1626 = vunpack.c.l.b16 %v1566
      %v1627 = vunpack.c.h.b16 %v1566
      %v1628 = vunpack.c.l.b16 %v1567
      %v1629 = vunpack.c.h.b16 %v1567
      %v1630 = vunpack.c.l.b16 %v1568
      %v1631 = vunpack.c.h.b16 %v1568
      %v1632 = vpack.c.b16 %v1598, %v1596
      %v1633 = vpack.c.b16 %v1599, %v1597
      %v1634 = vpack.c.b16 %v1602, %v1600
      %v1635 = vpack.c.b16 %v1603, %v1601
      %v1636 = vpack.c.b16 %v1606, %v1604
      %v1637 = vpack.c.b16 %v1607, %v1605
      %v1638 = vpack.c.b16 %v1610, %v1608
      %v1639 = vpack.c.b16 %v1611, %v1609
      %v1640 = vpack.c.b16 %v1614, %v1612
      %v1641 = vpack.c.b16 %v1615, %v1613
      %v1642 = vpack.c.b16 %v1618, %v1616
      %v1643 = vpack.c.b16 %v1619, %v1617
      %v1644 = vpack.c.b16 %v1622, %v1620
      %v1645 = vpack.c.b16 %v1623, %v1621
      %v1646 = vpack.c.b16 %v1626, %v1624
      %v1647 = vpack.c.b16 %v1627, %v1625
      %v1648 = vpack.c.b16 %v1630, %v1628
      %v1649 = vpack.c.b16 %v1631, %v1629
      %v1669 = vsel %vm468, %v1576, 0
      %1671 = vmatprep.subr.bf16.mxu0 %v1633
      %1672 = vmatpush1.bf16.msra.mxu0 %v1632
      %1673 = vmatprep.subr.bf16.mxu0 %v1635
      %1674 = vmatpush1.bf16.msra.mxu0 %v1634
      %1675 = vmatprep.subr.bf16.mxu0 %v1637
      %1676 = vmatpush1.bf16.msra.mxu0 %v1636
      %1677 = vmatprep.subr.bf16.mxu0 %v1639
      %1678 = vmatpush1.bf16.msra.mxu0 %v1638
      %1679 = vmatprep.subr.bf16.mxu0 %v1641
      %1680 = vmatpush1.bf16.msra.mxu0 %v1640
      %1681 = vmatprep.subr.bf16.mxu0 %v1643
      %1682 = vmatpush1.bf16.msra.mxu0 %v1642
      %1683 = vmatprep.subr.bf16.mxu0 %v1645
      %1684 = vmatpush1.bf16.msra.mxu0 %v1644
      %1685 = vmatprep.subr.bf16.mxu0 %v1647
      %1686 = vmatpush1.bf16.msra.mxu0 %v1646
      %1687 = vmatprep.subr.bf16.mxu0 %v1649
      %1688 = vmatpush1.bf16.msra.mxu0 %v1648
      %1689 = vmatprep.subr.bf16.mxu0 0
      %1690 = vmatpush1.bf16.msra.mxu0 0
      %1691 = vmatprep.subr.bf16.mxu0 0
      %1692 = vmatpush1.bf16.msra.mxu0 0
      %1693 = vmatprep.subr.bf16.mxu0 0
      %1694 = vmatpush1.bf16.msra.mxu0 0
      %1695 = vmatprep.subr.bf16.mxu0 0
      %1696 = vmatpush1.bf16.msra.mxu0 0
      %1697 = vmatprep.subr.bf16.mxu0 0
      %1698 = vmatpush1.bf16.msra.mxu0 0
      %1699 = vmatprep.subr.bf16.mxu0 0
      %1700 = vmatpush1.bf16.msra.mxu0 0
      %1701 = vmatprep.subr.bf16.mxu0 0
      %1702 = vmatpush1.bf16.msra.mxu0 0
      %1703 = vmatprep.mubr.bf16.mxu0 %v1669
      %1704 = vmatmul.mubr.bf16.gmra.mrb[0].mxu0 %v1575
      %v1705 = vpop.f32.mrb[0].mxu0
      %v1706 = vadd.f32 0.0, %v1705
      %v1707 = vpop.f32.mrb[0].mxu0
      %v1708 = vadd.f32 0.0, %v1707
      %v1709 = vpop.f32.mrb[0].mxu0
      %v1710 = vadd.f32 0.0, %v1709
      %v1711 = vpop.f32.mrb[0].mxu0
      %v1712 = vadd.f32 0.0, %v1711
      %1713 = vdwg.mxu0
      %v1714 = vadd.f32 %v1546, %v1706
      %v1715 = vadd.f32 %v1547, %v1708
      %v1716 = vadd.f32 %v1548, %v1710
      %v1717 = vadd.f32 %v1549, %v1712
      %s1718 = scalar_lea.vmem %s1, 576
      %v1719 = vld [vmem:[%s1718] sm:$0xff]
      %v1720 = vld [vmem:[%s1718 + $0x8] sm:$0xff]
      %v1721 = vld [vmem:[%s1718 + $0x10] sm:$0xff]
      %v1722 = vld [vmem:[%s1718 + $0x18] sm:$0xff]
      %v1723 = vld [vmem:[%s1718 + $0x20] sm:$0xff]
      %v1724 = vld [vmem:[%s1718 + $0x28] sm:$0xff]
      %v1725 = vld [vmem:[%s1718 + $0x30] sm:$0xff]
      %v1726 = vld [vmem:[%s1718 + $0x38] sm:$0xff]
      %v1727 = vld [vmem:[%s1718 + $0x40] sm:$0xff]
      %v1728 = vld [vmem:[%s1718 + $0x48] sm:$0xff]
      %v1729 = vld [vmem:[%s1718 + $0x50] sm:$0xff]
      %v1730 = vld [vmem:[%s1718 + $0x58] sm:$0xff]
      %v1731 = vld [vmem:[%s1718 + $0x60] sm:$0xff]
      %v1732 = vld [vmem:[%s1718 + $0x68] sm:$0xff]
      %v1733 = vld [vmem:[%s1718 + $0x70] sm:$0xff]
      %v1734 = vld [vmem:[%s1718 + $0x78] sm:$0xff]
      %v1735 = vld [vmem:[%s1718 + $0x80] sm:$0xff]
      %v1736 = vld [vmem:[%s1718 + $0x88] sm:$0xff]
      %v1738 = vunpack.c.l.b16 %v1376
      %v1739 = vunpack.c.h.b16 %v1376
      %v1740 = vpack.c.b16 %v1738, %v1738
      %v1741 = vpack.c.b16 %v1739, %v1739
      %v1743 = vshrl.u32 %v1407, 16
      %v1745 = vshll.u32 %v1407, 16
      %v1747 = vrot.slane %v1745, 1
      %v1748 = vor.u32 %v1743, %v1747
      %v1750 = vshll.u32 %v1740, 16
      %v1752 = vrot.slane %v1750, 1
      %v1753 = vsel %vm684, %v1748, %v1752
      %v1754 = vshrl.u32 %v1408, 16
      %v1756 = vshll.u32 %v1408, 16
      %v1758 = vrot.slane %v1756, 1
      %v1759 = vor.u32 %v1754, %v1758
      %v1761 = vshll.u32 %v1741, 16
      %v1763 = vrot.slane %v1761, 1
      %v1764 = vsel %vm684, %v1759, %v1763
      %v1784 = vunpack.c.l.b16 %v1719
      %v1785 = vunpack.c.h.b16 %v1719
      %v1786 = vunpack.c.l.b16 %v1720
      %v1787 = vunpack.c.h.b16 %v1720
      %v1788 = vunpack.c.l.b16 %v1721
      %v1789 = vunpack.c.h.b16 %v1721
      %v1790 = vunpack.c.l.b16 %v1722
      %v1791 = vunpack.c.h.b16 %v1722
      %v1792 = vunpack.c.l.b16 %v1723
      %v1793 = vunpack.c.h.b16 %v1723
      %v1794 = vunpack.c.l.b16 %v1724
      %v1795 = vunpack.c.h.b16 %v1724
      %v1796 = vunpack.c.l.b16 %v1725
      %v1797 = vunpack.c.h.b16 %v1725
      %v1798 = vunpack.c.l.b16 %v1726
      %v1799 = vunpack.c.h.b16 %v1726
      %v1800 = vunpack.c.l.b16 %v1727
      %v1801 = vunpack.c.h.b16 %v1727
      %v1802 = vunpack.c.l.b16 %v1728
      %v1803 = vunpack.c.h.b16 %v1728
      %v1804 = vunpack.c.l.b16 %v1729
      %v1805 = vunpack.c.h.b16 %v1729
      %v1806 = vunpack.c.l.b16 %v1730
      %v1807 = vunpack.c.h.b16 %v1730
      %v1808 = vunpack.c.l.b16 %v1731
      %v1809 = vunpack.c.h.b16 %v1731
      %v1810 = vunpack.c.l.b16 %v1732
      %v1811 = vunpack.c.h.b16 %v1732
      %v1812 = vunpack.c.l.b16 %v1733
      %v1813 = vunpack.c.h.b16 %v1733
      %v1814 = vunpack.c.l.b16 %v1734
      %v1815 = vunpack.c.h.b16 %v1734
      %v1816 = vunpack.c.l.b16 %v1735
      %v1817 = vunpack.c.h.b16 %v1735
      %v1818 = vunpack.c.l.b16 %v1736
      %v1819 = vunpack.c.h.b16 %v1736
      %v1820 = vpack.c.b16 %v1786, %v1784
      %v1821 = vpack.c.b16 %v1787, %v1785
      %v1822 = vpack.c.b16 %v1790, %v1788
      %v1823 = vpack.c.b16 %v1791, %v1789
      %v1824 = vpack.c.b16 %v1794, %v1792
      %v1825 = vpack.c.b16 %v1795, %v1793
      %v1826 = vpack.c.b16 %v1798, %v1796
      %v1827 = vpack.c.b16 %v1799, %v1797
      %v1828 = vpack.c.b16 %v1802, %v1800
      %v1829 = vpack.c.b16 %v1803, %v1801
      %v1830 = vpack.c.b16 %v1806, %v1804
      %v1831 = vpack.c.b16 %v1807, %v1805
      %v1832 = vpack.c.b16 %v1810, %v1808
      %v1833 = vpack.c.b16 %v1811, %v1809
      %v1834 = vpack.c.b16 %v1814, %v1812
      %v1835 = vpack.c.b16 %v1815, %v1813
      %v1836 = vpack.c.b16 %v1818, %v1816
      %v1837 = vpack.c.b16 %v1819, %v1817
      %v1857 = vsel %vm468, %v1764, 0
      %1859 = vmatprep.subr.bf16.mxu0 %v1821
      %1860 = vmatpush1.bf16.msra.mxu0 %v1820
      %1861 = vmatprep.subr.bf16.mxu0 %v1823
      %1862 = vmatpush1.bf16.msra.mxu0 %v1822
      %1863 = vmatprep.subr.bf16.mxu0 %v1825
      %1864 = vmatpush1.bf16.msra.mxu0 %v1824
      %1865 = vmatprep.subr.bf16.mxu0 %v1827
      %1866 = vmatpush1.bf16.msra.mxu0 %v1826
      %1867 = vmatprep.subr.bf16.mxu0 %v1829
      %1868 = vmatpush1.bf16.msra.mxu0 %v1828
      %1869 = vmatprep.subr.bf16.mxu0 %v1831
      %1870 = vmatpush1.bf16.msra.mxu0 %v1830
      %1871 = vmatprep.subr.bf16.mxu0 %v1833
      %1872 = vmatpush1.bf16.msra.mxu0 %v1832
      %1873 = vmatprep.subr.bf16.mxu0 %v1835
      %1874 = vmatpush1.bf16.msra.mxu0 %v1834
      %1875 = vmatprep.subr.bf16.mxu0 %v1837
      %1876 = vmatpush1.bf16.msra.mxu0 %v1836
      %1877 = vmatprep.subr.bf16.mxu0 0
      %1878 = vmatpush1.bf16.msra.mxu0 0
      %1879 = vmatprep.subr.bf16.mxu0 0
      %1880 = vmatpush1.bf16.msra.mxu0 0
      %1881 = vmatprep.subr.bf16.mxu0 0
      %1882 = vmatpush1.bf16.msra.mxu0 0
      %1883 = vmatprep.subr.bf16.mxu0 0
      %1884 = vmatpush1.bf16.msra.mxu0 0
      %1885 = vmatprep.subr.bf16.mxu0 0
      %1886 = vmatpush1.bf16.msra.mxu0 0
      %1887 = vmatprep.subr.bf16.mxu0 0
      %1888 = vmatpush1.bf16.msra.mxu0 0
      %1889 = vmatprep.subr.bf16.mxu0 0
      %1890 = vmatpush1.bf16.msra.mxu0 0
      %1891 = vmatprep.mubr.bf16.mxu0 %v1857
      %1892 = vmatmul.mubr.bf16.gmra.mrb[0].mxu0 %v1753
      %v1893 = vpop.f32.mrb[0].mxu0
      %v1894 = vadd.f32 0.0, %v1893
      %v1895 = vpop.f32.mrb[0].mxu0
      %v1896 = vadd.f32 0.0, %v1895
      %v1897 = vpop.f32.mrb[0].mxu0
      %v1898 = vadd.f32 0.0, %v1897
      %v1899 = vpop.f32.mrb[0].mxu0
      %v1900 = vadd.f32 0.0, %v1899
      %1901 = vdwg.mxu0
      %v1902 = vadd.f32 %v1714, %v1894
      %v1903 = vadd.f32 %v1715, %v1896
      %v1904 = vadd.f32 %v1716, %v1898
      %v1905 = vadd.f32 %v1717, %v1900
      %s1906 = scalar_lea.vmem %s3, 576
      %v1907 = vld [vmem:[%s1906] sm:$0xff]
      %v1908 = vld [vmem:[%s1906 + $0x8] sm:$0xff]
      %v1909 = vld [vmem:[%s1906 + $0x10] sm:$0xff]
      %v1910 = vld [vmem:[%s1906 + $0x18] sm:$0xff]
      %v1911 = vld [vmem:[%s1906 + $0x20] sm:$0xff]
      %v1912 = vld [vmem:[%s1906 + $0x28] sm:$0xff]
      %v1913 = vld [vmem:[%s1906 + $0x30] sm:$0xff]
      %v1914 = vld [vmem:[%s1906 + $0x38] sm:$0xff]
      %v1915 = vld [vmem:[%s1906 + $0x40] sm:$0xff]
      %v1916 = vld [vmem:[%s1906 + $0x48] sm:$0xff]
      %v1917 = vld [vmem:[%s1906 + $0x50] sm:$0xff]
      %v1918 = vld [vmem:[%s1906 + $0x58] sm:$0xff]
      %v1919 = vld [vmem:[%s1906 + $0x60] sm:$0xff]
      %v1920 = vld [vmem:[%s1906 + $0x68] sm:$0xff]
      %v1921 = vld [vmem:[%s1906 + $0x70] sm:$0xff]
      %v1922 = vld [vmem:[%s1906 + $0x78] sm:$0xff]
      %v1923 = vld [vmem:[%s1906 + $0x80] sm:$0xff]
      %v1924 = vld [vmem:[%s1906 + $0x88] sm:$0xff]
      %v1926 = vunpack.c.l.b16 %v1381
      %v1927 = vunpack.c.h.b16 %v1381
      %v1928 = vpack.c.b16 %v1926, %v1926
      %v1929 = vpack.c.b16 %v1927, %v1927
      %v1931 = vshrl.u32 %v1575, 16
      %v1933 = vshll.u32 %v1575, 16
      %v1935 = vrot.slane %v1933, 1
      %v1936 = vor.u32 %v1931, %v1935
      %v1938 = vshll.u32 %v1928, 16
      %v1940 = vrot.slane %v1938, 1
      %v1941 = vsel %vm684, %v1936, %v1940
      %v1942 = vshrl.u32 %v1576, 16
      %v1944 = vshll.u32 %v1576, 16
      %v1946 = vrot.slane %v1944, 1
      %v1947 = vor.u32 %v1942, %v1946
      %v1949 = vshll.u32 %v1929, 16
      %v1951 = vrot.slane %v1949, 1
      %v1952 = vsel %vm684, %v1947, %v1951
      %v1972 = vunpack.c.l.b16 %v1907
      %v1973 = vunpack.c.h.b16 %v1907
      %v1974 = vunpack.c.l.b16 %v1908
      %v1975 = vunpack.c.h.b16 %v1908
      %v1976 = vunpack.c.l.b16 %v1909
      %v1977 = vunpack.c.h.b16 %v1909
      %v1978 = vunpack.c.l.b16 %v1910
      %v1979 = vunpack.c.h.b16 %v1910
      %v1980 = vunpack.c.l.b16 %v1911
      %v1981 = vunpack.c.h.b16 %v1911
      %v1982 = vunpack.c.l.b16 %v1912
      %v1983 = vunpack.c.h.b16 %v1912
      %v1984 = vunpack.c.l.b16 %v1913
      %v1985 = vunpack.c.h.b16 %v1913
      %v1986 = vunpack.c.l.b16 %v1914
      %v1987 = vunpack.c.h.b16 %v1914
      %v1988 = vunpack.c.l.b16 %v1915
      %v1989 = vunpack.c.h.b16 %v1915
      %v1990 = vunpack.c.l.b16 %v1916
      %v1991 = vunpack.c.h.b16 %v1916
      %v1992 = vunpack.c.l.b16 %v1917
      %v1993 = vunpack.c.h.b16 %v1917
      %v1994 = vunpack.c.l.b16 %v1918
      %v1995 = vunpack.c.h.b16 %v1918
      %v1996 = vunpack.c.l.b16 %v1919
      %v1997 = vunpack.c.h.b16 %v1919
      %v1998 = vunpack.c.l.b16 %v1920
      %v1999 = vunpack.c.h.b16 %v1920
      %v2000 = vunpack.c.l.b16 %v1921
      %v2001 = vunpack.c.h.b16 %v1921
      %v2002 = vunpack.c.l.b16 %v1922
      %v2003 = vunpack.c.h.b16 %v1922
      %v2004 = vunpack.c.l.b16 %v1923
      %v2005 = vunpack.c.h.b16 %v1923
      %v2006 = vunpack.c.l.b16 %v1924
      %v2007 = vunpack.c.h.b16 %v1924
      %v2008 = vpack.c.b16 %v1974, %v1972
      %v2009 = vpack.c.b16 %v1975, %v1973
      %v2010 = vpack.c.b16 %v1978, %v1976
      %v2011 = vpack.c.b16 %v1979, %v1977
      %v2012 = vpack.c.b16 %v1982, %v1980
      %v2013 = vpack.c.b16 %v1983, %v1981
      %v2014 = vpack.c.b16 %v1986, %v1984
      %v2015 = vpack.c.b16 %v1987, %v1985
      %v2016 = vpack.c.b16 %v1990, %v1988
      %v2017 = vpack.c.b16 %v1991, %v1989
      %v2018 = vpack.c.b16 %v1994, %v1992
      %v2019 = vpack.c.b16 %v1995, %v1993
      %v2020 = vpack.c.b16 %v1998, %v1996
      %v2021 = vpack.c.b16 %v1999, %v1997
      %v2022 = vpack.c.b16 %v2002, %v2000
      %v2023 = vpack.c.b16 %v2003, %v2001
      %v2024 = vpack.c.b16 %v2006, %v2004
      %v2025 = vpack.c.b16 %v2007, %v2005
      %v2045 = vsel %vm468, %v1952, 0
      %2047 = vmatprep.subr.bf16.mxu0 %v2009
      %2048 = vmatpush1.bf16.msra.mxu0 %v2008
      %2049 = vmatprep.subr.bf16.mxu0 %v2011
      %2050 = vmatpush1.bf16.msra.mxu0 %v2010
      %2051 = vmatprep.subr.bf16.mxu0 %v2013
      %2052 = vmatpush1.bf16.msra.mxu0 %v2012
      %2053 = vmatprep.subr.bf16.mxu0 %v2015
      %2054 = vmatpush1.bf16.msra.mxu0 %v2014
      %2055 = vmatprep.subr.bf16.mxu0 %v2017
      %2056 = vmatpush1.bf16.msra.mxu0 %v2016
      %2057 = vmatprep.subr.bf16.mxu0 %v2019
      %2058 = vmatpush1.bf16.msra.mxu0 %v2018
      %2059 = vmatprep.subr.bf16.mxu0 %v2021
      %2060 = vmatpush1.bf16.msra.mxu0 %v2020
      %2061 = vmatprep.subr.bf16.mxu0 %v2023
      %2062 = vmatpush1.bf16.msra.mxu0 %v2022
      %2063 = vmatprep.subr.bf16.mxu0 %v2025
      %2064 = vmatpush1.bf16.msra.mxu0 %v2024
      %2065 = vmatprep.subr.bf16.mxu0 0
      %2066 = vmatpush1.bf16.msra.mxu0 0
      %2067 = vmatprep.subr.bf16.mxu0 0
      %2068 = vmatpush1.bf16.msra.mxu0 0
      %2069 = vmatprep.subr.bf16.mxu0 0
      %2070 = vmatpush1.bf16.msra.mxu0 0
      %2071 = vmatprep.subr.bf16.mxu0 0
      %2072 = vmatpush1.bf16.msra.mxu0 0
      %2073 = vmatprep.subr.bf16.mxu0 0
      %2074 = vmatpush1.bf16.msra.mxu0 0
      %2075 = vmatprep.subr.bf16.mxu0 0
      %2076 = vmatpush1.bf16.msra.mxu0 0
      %2077 = vmatprep.subr.bf16.mxu0 0
      %2078 = vmatpush1.bf16.msra.mxu0 0
      %2079 = vmatprep.mubr.bf16.mxu0 %v2045
      %2080 = vmatmul.mubr.bf16.gmra.mrb[0].mxu0 %v1941
      %v2081 = vpop.f32.mrb[0].mxu0
      %v2082 = vadd.f32 0.0, %v2081
      %v2083 = vpop.f32.mrb[0].mxu0
      %v2084 = vadd.f32 0.0, %v2083
      %v2085 = vpop.f32.mrb[0].mxu0
      %v2086 = vadd.f32 0.0, %v2085
      %v2087 = vpop.f32.mrb[0].mxu0
      %v2088 = vadd.f32 0.0, %v2087
      %2089 = vdwg.mxu0
      %v2090 = vadd.f32 %v1902, %v2082
      %v2091 = vadd.f32 %v1903, %v2084
      %v2092 = vadd.f32 %v1904, %v2086
      %v2093 = vadd.f32 %v1905, %v2088
      %s2094 = scalar_lea.vmem %s1, 720
      %v2095 = vld [vmem:[%s2094] sm:$0xff]
      %v2096 = vld [vmem:[%s2094 + $0x8] sm:$0xff]
      %v2097 = vld [vmem:[%s2094 + $0x10] sm:$0xff]
      %v2098 = vld [vmem:[%s2094 + $0x18] sm:$0xff]
      %v2099 = vld [vmem:[%s2094 + $0x20] sm:$0xff]
      %v2100 = vld [vmem:[%s2094 + $0x28] sm:$0xff]
      %v2101 = vld [vmem:[%s2094 + $0x30] sm:$0xff]
      %v2102 = vld [vmem:[%s2094 + $0x38] sm:$0xff]
      %v2103 = vld [vmem:[%s2094 + $0x40] sm:$0xff]
      %v2104 = vld [vmem:[%s2094 + $0x48] sm:$0xff]
      %v2105 = vld [vmem:[%s2094 + $0x50] sm:$0xff]
      %v2106 = vld [vmem:[%s2094 + $0x58] sm:$0xff]
      %v2107 = vld [vmem:[%s2094 + $0x60] sm:$0xff]
      %v2108 = vld [vmem:[%s2094 + $0x68] sm:$0xff]
      %v2109 = vld [vmem:[%s2094 + $0x70] sm:$0xff]
      %v2110 = vld [vmem:[%s2094 + $0x78] sm:$0xff]
      %v2111 = vld [vmem:[%s2094 + $0x80] sm:$0xff]
      %v2112 = vld [vmem:[%s2094 + $0x88] sm:$0xff]
      %v2113 = vrot.slane %v1407, 1
      %v2114 = vrot.slane %v1740, 1
      %v2115 = vsel %vm1056, %v2113, %v2114
      %v2116 = vrot.slane %v1408, 1
      %v2117 = vrot.slane %v1741, 1
      %v2118 = vsel %vm1056, %v2116, %v2117
      %v2138 = vunpack.c.l.b16 %v2095
      %v2139 = vunpack.c.h.b16 %v2095
      %v2140 = vunpack.c.l.b16 %v2096
      %v2141 = vunpack.c.h.b16 %v2096
      %v2142 = vunpack.c.l.b16 %v2097
      %v2143 = vunpack.c.h.b16 %v2097
      %v2144 = vunpack.c.l.b16 %v2098
      %v2145 = vunpack.c.h.b16 %v2098
      %v2146 = vunpack.c.l.b16 %v2099
      %v2147 = vunpack.c.h.b16 %v2099
      %v2148 = vunpack.c.l.b16 %v2100
      %v2149 = vunpack.c.h.b16 %v2100
      %v2150 = vunpack.c.l.b16 %v2101
      %v2151 = vunpack.c.h.b16 %v2101
      %v2152 = vunpack.c.l.b16 %v2102
      %v2153 = vunpack.c.h.b16 %v2102
      %v2154 = vunpack.c.l.b16 %v2103
      %v2155 = vunpack.c.h.b16 %v2103
      %v2156 = vunpack.c.l.b16 %v2104
      %v2157 = vunpack.c.h.b16 %v2104
      %v2158 = vunpack.c.l.b16 %v2105
      %v2159 = vunpack.c.h.b16 %v2105
      %v2160 = vunpack.c.l.b16 %v2106
      %v2161 = vunpack.c.h.b16 %v2106
      %v2162 = vunpack.c.l.b16 %v2107
      %v2163 = vunpack.c.h.b16 %v2107
      %v2164 = vunpack.c.l.b16 %v2108
      %v2165 = vunpack.c.h.b16 %v2108
      %v2166 = vunpack.c.l.b16 %v2109
      %v2167 = vunpack.c.h.b16 %v2109
      %v2168 = vunpack.c.l.b16 %v2110
      %v2169 = vunpack.c.h.b16 %v2110
      %v2170 = vunpack.c.l.b16 %v2111
      %v2171 = vunpack.c.h.b16 %v2111
      %v2172 = vunpack.c.l.b16 %v2112
      %v2173 = vunpack.c.h.b16 %v2112
      %v2174 = vpack.c.b16 %v2140, %v2138
      %v2175 = vpack.c.b16 %v2141, %v2139
      %v2176 = vpack.c.b16 %v2144, %v2142
      %v2177 = vpack.c.b16 %v2145, %v2143
      %v2178 = vpack.c.b16 %v2148, %v2146
      %v2179 = vpack.c.b16 %v2149, %v2147
      %v2180 = vpack.c.b16 %v2152, %v2150
      %v2181 = vpack.c.b16 %v2153, %v2151
      %v2182 = vpack.c.b16 %v2156, %v2154
      %v2183 = vpack.c.b16 %v2157, %v2155
      %v2184 = vpack.c.b16 %v2160, %v2158
      %v2185 = vpack.c.b16 %v2161, %v2159
      %v2186 = vpack.c.b16 %v2164, %v2162
      %v2187 = vpack.c.b16 %v2165, %v2163
      %v2188 = vpack.c.b16 %v2168, %v2166
      %v2189 = vpack.c.b16 %v2169, %v2167
      %v2190 = vpack.c.b16 %v2172, %v2170
      %v2191 = vpack.c.b16 %v2173, %v2171
      %v2211 = vsel %vm468, %v2118, 0
      %2213 = vmatprep.subr.bf16.mxu0 %v2175
      %2214 = vmatpush1.bf16.msra.mxu0 %v2174
      %2215 = vmatprep.subr.bf16.mxu0 %v2177
      %2216 = vmatpush1.bf16.msra.mxu0 %v2176
      %2217 = vmatprep.subr.bf16.mxu0 %v2179
      %2218 = vmatpush1.bf16.msra.mxu0 %v2178
      %2219 = vmatprep.subr.bf16.mxu0 %v2181
      %2220 = vmatpush1.bf16.msra.mxu0 %v2180
      %2221 = vmatprep.subr.bf16.mxu0 %v2183
      %2222 = vmatpush1.bf16.msra.mxu0 %v2182
      %2223 = vmatprep.subr.bf16.mxu0 %v2185
      %2224 = vmatpush1.bf16.msra.mxu0 %v2184
      %2225 = vmatprep.subr.bf16.mxu0 %v2187
      %2226 = vmatpush1.bf16.msra.mxu0 %v2186
      %2227 = vmatprep.subr.bf16.mxu0 %v2189
      %2228 = vmatpush1.bf16.msra.mxu0 %v2188
      %2229 = vmatprep.subr.bf16.mxu0 %v2191
      %2230 = vmatpush1.bf16.msra.mxu0 %v2190
      %2231 = vmatprep.subr.bf16.mxu0 0
      %2232 = vmatpush1.bf16.msra.mxu0 0
      %2233 = vmatprep.subr.bf16.mxu0 0
      %2234 = vmatpush1.bf16.msra.mxu0 0
      %2235 = vmatprep.subr.bf16.mxu0 0
      %2236 = vmatpush1.bf16.msra.mxu0 0
      %2237 = vmatprep.subr.bf16.mxu0 0
      %2238 = vmatpush1.bf16.msra.mxu0 0
      %2239 = vmatprep.subr.bf16.mxu0 0
      %2240 = vmatpush1.bf16.msra.mxu0 0
      %2241 = vmatprep.subr.bf16.mxu0 0
      %2242 = vmatpush1.bf16.msra.mxu0 0
      %2243 = vmatprep.subr.bf16.mxu0 0
      %2244 = vmatpush1.bf16.msra.mxu0 0
      %2245 = vmatprep.mubr.bf16.mxu0 %v2211
      %2246 = vmatmul.mubr.bf16.gmra.mrb[0].mxu0 %v2115
      %v2247 = vpop.f32.mrb[0].mxu0
      %v2248 = vadd.f32 0.0, %v2247
      %v2249 = vpop.f32.mrb[0].mxu0
      %v2250 = vadd.f32 0.0, %v2249
      %v2251 = vpop.f32.mrb[0].mxu0
      %v2252 = vadd.f32 0.0, %v2251
      %v2253 = vpop.f32.mrb[0].mxu0
      %v2254 = vadd.f32 0.0, %v2253
      %2255 = vdwg.mxu0
      %v2256 = vadd.f32 %v2090, %v2248
      %v2257 = vadd.f32 %v2091, %v2250
      %v2258 = vadd.f32 %v2092, %v2252
      %v2259 = vadd.f32 %v2093, %v2254
      %s2260 = scalar_lea.vmem %s3, 720
      %v2261 = vld [vmem:[%s2260] sm:$0xff]
      %v2262 = vld [vmem:[%s2260 + $0x8] sm:$0xff]
      %v2263 = vld [vmem:[%s2260 + $0x10] sm:$0xff]
      %v2264 = vld [vmem:[%s2260 + $0x18] sm:$0xff]
      %v2265 = vld [vmem:[%s2260 + $0x20] sm:$0xff]
      %v2266 = vld [vmem:[%s2260 + $0x28] sm:$0xff]
      %v2267 = vld [vmem:[%s2260 + $0x30] sm:$0xff]
      %v2268 = vld [vmem:[%s2260 + $0x38] sm:$0xff]
      %v2269 = vld [vmem:[%s2260 + $0x40] sm:$0xff]
      %v2270 = vld [vmem:[%s2260 + $0x48] sm:$0xff]
      %v2271 = vld [vmem:[%s2260 + $0x50] sm:$0xff]
      %v2272 = vld [vmem:[%s2260 + $0x58] sm:$0xff]
      %v2273 = vld [vmem:[%s2260 + $0x60] sm:$0xff]
      %v2274 = vld [vmem:[%s2260 + $0x68] sm:$0xff]
      %v2275 = vld [vmem:[%s2260 + $0x70] sm:$0xff]
      %v2276 = vld [vmem:[%s2260 + $0x78] sm:$0xff]
      %v2277 = vld [vmem:[%s2260 + $0x80] sm:$0xff]
      %v2278 = vld [vmem:[%s2260 + $0x88] sm:$0xff]
      %v2279 = vrot.slane %v1575, 1
      %v2280 = vrot.slane %v1928, 1
      %v2281 = vsel %vm1056, %v2279, %v2280
      %v2282 = vrot.slane %v1576, 1
      %v2283 = vrot.slane %v1929, 1
      %v2284 = vsel %vm1056, %v2282, %v2283
      %v2304 = vunpack.c.l.b16 %v2261
      %v2305 = vunpack.c.h.b16 %v2261
      %v2306 = vunpack.c.l.b16 %v2262
      %v2307 = vunpack.c.h.b16 %v2262
      %v2308 = vunpack.c.l.b16 %v2263
      %v2309 = vunpack.c.h.b16 %v2263
      %v2310 = vunpack.c.l.b16 %v2264
      %v2311 = vunpack.c.h.b16 %v2264
      %v2312 = vunpack.c.l.b16 %v2265
      %v2313 = vunpack.c.h.b16 %v2265
      %v2314 = vunpack.c.l.b16 %v2266
      %v2315 = vunpack.c.h.b16 %v2266
      %v2316 = vunpack.c.l.b16 %v2267
      %v2317 = vunpack.c.h.b16 %v2267
      %v2318 = vunpack.c.l.b16 %v2268
      %v2319 = vunpack.c.h.b16 %v2268
      %v2320 = vunpack.c.l.b16 %v2269
      %v2321 = vunpack.c.h.b16 %v2269
      %v2322 = vunpack.c.l.b16 %v2270
      %v2323 = vunpack.c.h.b16 %v2270
      %v2324 = vunpack.c.l.b16 %v2271
      %v2325 = vunpack.c.h.b16 %v2271
      %v2326 = vunpack.c.l.b16 %v2272
      %v2327 = vunpack.c.h.b16 %v2272
      %v2328 = vunpack.c.l.b16 %v2273
      %v2329 = vunpack.c.h.b16 %v2273
      %v2330 = vunpack.c.l.b16 %v2274
      %v2331 = vunpack.c.h.b16 %v2274
      %v2332 = vunpack.c.l.b16 %v2275
      %v2333 = vunpack.c.h.b16 %v2275
      %v2334 = vunpack.c.l.b16 %v2276
      %v2335 = vunpack.c.h.b16 %v2276
      %v2336 = vunpack.c.l.b16 %v2277
      %v2337 = vunpack.c.h.b16 %v2277
      %v2338 = vunpack.c.l.b16 %v2278
      %v2339 = vunpack.c.h.b16 %v2278
      %v2340 = vpack.c.b16 %v2306, %v2304
      %v2341 = vpack.c.b16 %v2307, %v2305
      %v2342 = vpack.c.b16 %v2310, %v2308
      %v2343 = vpack.c.b16 %v2311, %v2309
      %v2344 = vpack.c.b16 %v2314, %v2312
      %v2345 = vpack.c.b16 %v2315, %v2313
      %v2346 = vpack.c.b16 %v2318, %v2316
      %v2347 = vpack.c.b16 %v2319, %v2317
      %v2348 = vpack.c.b16 %v2322, %v2320
      %v2349 = vpack.c.b16 %v2323, %v2321
      %v2350 = vpack.c.b16 %v2326, %v2324
      %v2351 = vpack.c.b16 %v2327, %v2325
      %v2352 = vpack.c.b16 %v2330, %v2328
      %v2353 = vpack.c.b16 %v2331, %v2329
      %v2354 = vpack.c.b16 %v2334, %v2332
      %v2355 = vpack.c.b16 %v2335, %v2333
      %v2356 = vpack.c.b16 %v2338, %v2336
      %v2357 = vpack.c.b16 %v2339, %v2337
      %v2377 = vsel %vm468, %v2284, 0
      %2379 = vmatprep.subr.bf16.mxu0 %v2341
      %2380 = vmatpush1.bf16.msra.mxu0 %v2340
      %2381 = vmatprep.subr.bf16.mxu0 %v2343
      %2382 = vmatpush1.bf16.msra.mxu0 %v2342
      %2383 = vmatprep.subr.bf16.mxu0 %v2345
      %2384 = vmatpush1.bf16.msra.mxu0 %v2344
      %2385 = vmatprep.subr.bf16.mxu0 %v2347
      %2386 = vmatpush1.bf16.msra.mxu0 %v2346
      %2387 = vmatprep.subr.bf16.mxu0 %v2349
      %2388 = vmatpush1.bf16.msra.mxu0 %v2348
      %2389 = vmatprep.subr.bf16.mxu0 %v2351
      %2390 = vmatpush1.bf16.msra.mxu0 %v2350
      %2391 = vmatprep.subr.bf16.mxu0 %v2353
      %2392 = vmatpush1.bf16.msra.mxu0 %v2352
      %2393 = vmatprep.subr.bf16.mxu0 %v2355
      %2394 = vmatpush1.bf16.msra.mxu0 %v2354
      %2395 = vmatprep.subr.bf16.mxu0 %v2357
      %2396 = vmatpush1.bf16.msra.mxu0 %v2356
      %2397 = vmatprep.subr.bf16.mxu0 0
      %2398 = vmatpush1.bf16.msra.mxu0 0
      %2399 = vmatprep.subr.bf16.mxu0 0
      %2400 = vmatpush1.bf16.msra.mxu0 0
      %2401 = vmatprep.subr.bf16.mxu0 0
      %2402 = vmatpush1.bf16.msra.mxu0 0
      %2403 = vmatprep.subr.bf16.mxu0 0
      %2404 = vmatpush1.bf16.msra.mxu0 0
      %2405 = vmatprep.subr.bf16.mxu0 0
      %2406 = vmatpush1.bf16.msra.mxu0 0
      %2407 = vmatprep.subr.bf16.mxu0 0
      %2408 = vmatpush1.bf16.msra.mxu0 0
      %2409 = vmatprep.subr.bf16.mxu0 0
      %2410 = vmatpush1.bf16.msra.mxu0 0
      %2411 = vmatprep.mubr.bf16.mxu0 %v2377
      %2412 = vmatmul.mubr.bf16.gmra.mrb[0].mxu0 %v2281
      %v2413 = vpop.f32.mrb[0].mxu0
      %v2414 = vadd.f32 0.0, %v2413
      %v2415 = vpop.f32.mrb[0].mxu0
      %v2416 = vadd.f32 0.0, %v2415
      %v2417 = vpop.f32.mrb[0].mxu0
      %v2418 = vadd.f32 0.0, %v2417
      %v2419 = vpop.f32.mrb[0].mxu0
      %v2420 = vadd.f32 0.0, %v2419
      %2421 = vdwg.mxu0
      %v2422 = vadd.f32 %v2256, %v2414
      %v2423 = vadd.f32 %v2257, %v2416
      %v2424 = vadd.f32 %v2258, %v2418
      %v2425 = vadd.f32 %v2259, %v2420
      %s2426 = sadd.s32 %s23, 2
      %s2427 = smul.u32 %s2426, 6
      %s2428 = smul.addr %s2427, 4
      %s2429 = scalar_lea.vmem %s306, %s2428
      %v2430 = vld [vmem:[%s2429] sm:$0xff]
      %v2431 = vld [vmem:[%s2429 + $0x8] sm:$0xff]
      %v2432 = vld [vmem:[%s2429 + $0x10] sm:$0x11]
      %s2433 = smul.addr %s2427, 4
      %s2434 = scalar_lea.vmem %s311, %s2433
      %v2435 = vld [vmem:[%s2434] sm:$0xff]
      %v2436 = vld [vmem:[%s2434 + $0x8] sm:$0xff]
      %v2437 = vld [vmem:[%s2434 + $0x10] sm:$0x11]
      %s2438 = scalar_lea.vmem %s1, 864
      %v2439 = vld [vmem:[%s2438] sm:$0xff]
      %v2440 = vld [vmem:[%s2438 + $0x8] sm:$0xff]
      %v2441 = vld [vmem:[%s2438 + $0x10] sm:$0xff]
      %v2442 = vld [vmem:[%s2438 + $0x18] sm:$0xff]
      %v2443 = vld [vmem:[%s2438 + $0x20] sm:$0xff]
      %v2444 = vld [vmem:[%s2438 + $0x28] sm:$0xff]
      %v2445 = vld [vmem:[%s2438 + $0x30] sm:$0xff]
      %v2446 = vld [vmem:[%s2438 + $0x38] sm:$0xff]
      %v2447 = vld [vmem:[%s2438 + $0x40] sm:$0xff]
      %v2448 = vld [vmem:[%s2438 + $0x48] sm:$0xff]
      %v2449 = vld [vmem:[%s2438 + $0x50] sm:$0xff]
      %v2450 = vld [vmem:[%s2438 + $0x58] sm:$0xff]
      %v2451 = vld [vmem:[%s2438 + $0x60] sm:$0xff]
      %v2452 = vld [vmem:[%s2438 + $0x68] sm:$0xff]
      %v2453 = vld [vmem:[%s2438 + $0x70] sm:$0xff]
      %v2454 = vld [vmem:[%s2438 + $0x78] sm:$0xff]
      %v2455 = vld [vmem:[%s2438 + $0x80] sm:$0xff]
      %v2456 = vld [vmem:[%s2438 + $0x88] sm:$0xff]
      %v2459 = vunpack.c.l.b16 %v2430
      %v2460 = vunpack.c.h.b16 %v2430
      %v2461 = vunpack.c.l.b16 %v2431
      %v2462 = vunpack.c.h.b16 %v2431
      %v2463 = vpack.c.b16 %v2461, %v2459
      %v2464 = vpack.c.b16 %v2462, %v2460
      %v2484 = vunpack.c.l.b16 %v2439
      %v2485 = vunpack.c.h.b16 %v2439
      %v2486 = vunpack.c.l.b16 %v2440
      %v2487 = vunpack.c.h.b16 %v2440
      %v2488 = vunpack.c.l.b16 %v2441
      %v2489 = vunpack.c.h.b16 %v2441
      %v2490 = vunpack.c.l.b16 %v2442
      %v2491 = vunpack.c.h.b16 %v2442
      %v2492 = vunpack.c.l.b16 %v2443
      %v2493 = vunpack.c.h.b16 %v2443
      %v2494 = vunpack.c.l.b16 %v2444
      %v2495 = vunpack.c.h.b16 %v2444
      %v2496 = vunpack.c.l.b16 %v2445
      %v2497 = vunpack.c.h.b16 %v2445
      %v2498 = vunpack.c.l.b16 %v2446
      %v2499 = vunpack.c.h.b16 %v2446
      %v2500 = vunpack.c.l.b16 %v2447
      %v2501 = vunpack.c.h.b16 %v2447
      %v2502 = vunpack.c.l.b16 %v2448
      %v2503 = vunpack.c.h.b16 %v2448
      %v2504 = vunpack.c.l.b16 %v2449
      %v2505 = vunpack.c.h.b16 %v2449
      %v2506 = vunpack.c.l.b16 %v2450
      %v2507 = vunpack.c.h.b16 %v2450
      %v2508 = vunpack.c.l.b16 %v2451
      %v2509 = vunpack.c.h.b16 %v2451
      %v2510 = vunpack.c.l.b16 %v2452
      %v2511 = vunpack.c.h.b16 %v2452
      %v2512 = vunpack.c.l.b16 %v2453
      %v2513 = vunpack.c.h.b16 %v2453
      %v2514 = vunpack.c.l.b16 %v2454
      %v2515 = vunpack.c.h.b16 %v2454
      %v2516 = vunpack.c.l.b16 %v2455
      %v2517 = vunpack.c.h.b16 %v2455
      %v2518 = vunpack.c.l.b16 %v2456
      %v2519 = vunpack.c.h.b16 %v2456
      %v2520 = vpack.c.b16 %v2486, %v2484
      %v2521 = vpack.c.b16 %v2487, %v2485
      %v2522 = vpack.c.b16 %v2490, %v2488
      %v2523 = vpack.c.b16 %v2491, %v2489
      %v2524 = vpack.c.b16 %v2494, %v2492
      %v2525 = vpack.c.b16 %v2495, %v2493
      %v2526 = vpack.c.b16 %v2498, %v2496
      %v2527 = vpack.c.b16 %v2499, %v2497
      %v2528 = vpack.c.b16 %v2502, %v2500
      %v2529 = vpack.c.b16 %v2503, %v2501
      %v2530 = vpack.c.b16 %v2506, %v2504
      %v2531 = vpack.c.b16 %v2507, %v2505
      %v2532 = vpack.c.b16 %v2510, %v2508
      %v2533 = vpack.c.b16 %v2511, %v2509
      %v2534 = vpack.c.b16 %v2514, %v2512
      %v2535 = vpack.c.b16 %v2515, %v2513
      %v2536 = vpack.c.b16 %v2518, %v2516
      %v2537 = vpack.c.b16 %v2519, %v2517
      %v2557 = vsel %vm468, %v2464, 0
      %2559 = vmatprep.subr.bf16.mxu0 %v2521
      %2560 = vmatpush1.bf16.msra.mxu0 %v2520
      %2561 = vmatprep.subr.bf16.mxu0 %v2523
      %2562 = vmatpush1.bf16.msra.mxu0 %v2522
      %2563 = vmatprep.subr.bf16.mxu0 %v2525
      %2564 = vmatpush1.bf16.msra.mxu0 %v2524
      %2565 = vmatprep.subr.bf16.mxu0 %v2527
      %2566 = vmatpush1.bf16.msra.mxu0 %v2526
      %2567 = vmatprep.subr.bf16.mxu0 %v2529
      %2568 = vmatpush1.bf16.msra.mxu0 %v2528
      %2569 = vmatprep.subr.bf16.mxu0 %v2531
      %2570 = vmatpush1.bf16.msra.mxu0 %v2530
      %2571 = vmatprep.subr.bf16.mxu0 %v2533
      %2572 = vmatpush1.bf16.msra.mxu0 %v2532
      %2573 = vmatprep.subr.bf16.mxu0 %v2535
      %2574 = vmatpush1.bf16.msra.mxu0 %v2534
      %2575 = vmatprep.subr.bf16.mxu0 %v2537
      %2576 = vmatpush1.bf16.msra.mxu0 %v2536
      %2577 = vmatprep.subr.bf16.mxu0 0
      %2578 = vmatpush1.bf16.msra.mxu0 0
      %2579 = vmatprep.subr.bf16.mxu0 0
      %2580 = vmatpush1.bf16.msra.mxu0 0
      %2581 = vmatprep.subr.bf16.mxu0 0
      %2582 = vmatpush1.bf16.msra.mxu0 0
      %2583 = vmatprep.subr.bf16.mxu0 0
      %2584 = vmatpush1.bf16.msra.mxu0 0
      %2585 = vmatprep.subr.bf16.mxu0 0
      %2586 = vmatpush1.bf16.msra.mxu0 0
      %2587 = vmatprep.subr.bf16.mxu0 0
      %2588 = vmatpush1.bf16.msra.mxu0 0
      %2589 = vmatprep.subr.bf16.mxu0 0
      %2590 = vmatpush1.bf16.msra.mxu0 0
      %2591 = vmatprep.mubr.bf16.mxu0 %v2557
      %2592 = vmatmul.mubr.bf16.gmra.mrb[0].mxu0 %v2463
      %v2593 = vpop.f32.mrb[0].mxu0
      %v2594 = vadd.f32 0.0, %v2593
      %v2595 = vpop.f32.mrb[0].mxu0
      %v2596 = vadd.f32 0.0, %v2595
      %v2597 = vpop.f32.mrb[0].mxu0
      %v2598 = vadd.f32 0.0, %v2597
      %v2599 = vpop.f32.mrb[0].mxu0
      %v2600 = vadd.f32 0.0, %v2599
      %2601 = vdwg.mxu0
      %v2602 = vadd.f32 %v2422, %v2594
      %v2603 = vadd.f32 %v2423, %v2596
      %v2604 = vadd.f32 %v2424, %v2598
      %v2605 = vadd.f32 %v2425, %v2600
      %s2606 = scalar_lea.vmem %s3, 864
      %v2607 = vld [vmem:[%s2606] sm:$0xff]
      %v2608 = vld [vmem:[%s2606 + $0x8] sm:$0xff]
      %v2609 = vld [vmem:[%s2606 + $0x10] sm:$0xff]
      %v2610 = vld [vmem:[%s2606 + $0x18] sm:$0xff]
      %v2611 = vld [vmem:[%s2606 + $0x20] sm:$0xff]
      %v2612 = vld [vmem:[%s2606 + $0x28] sm:$0xff]
      %v2613 = vld [vmem:[%s2606 + $0x30] sm:$0xff]
      %v2614 = vld [vmem:[%s2606 + $0x38] sm:$0xff]
      %v2615 = vld [vmem:[%s2606 + $0x40] sm:$0xff]
      %v2616 = vld [vmem:[%s2606 + $0x48] sm:$0xff]
      %v2617 = vld [vmem:[%s2606 + $0x50] sm:$0xff]
      %v2618 = vld [vmem:[%s2606 + $0x58] sm:$0xff]
      %v2619 = vld [vmem:[%s2606 + $0x60] sm:$0xff]
      %v2620 = vld [vmem:[%s2606 + $0x68] sm:$0xff]
      %v2621 = vld [vmem:[%s2606 + $0x70] sm:$0xff]
      %v2622 = vld [vmem:[%s2606 + $0x78] sm:$0xff]
      %v2623 = vld [vmem:[%s2606 + $0x80] sm:$0xff]
      %v2624 = vld [vmem:[%s2606 + $0x88] sm:$0xff]
      %v2627 = vunpack.c.l.b16 %v2435
      %v2628 = vunpack.c.h.b16 %v2435
      %v2629 = vunpack.c.l.b16 %v2436
      %v2630 = vunpack.c.h.b16 %v2436
      %v2631 = vpack.c.b16 %v2629, %v2627
      %v2632 = vpack.c.b16 %v2630, %v2628
      %v2652 = vunpack.c.l.b16 %v2607
      %v2653 = vunpack.c.h.b16 %v2607
      %v2654 = vunpack.c.l.b16 %v2608
      %v2655 = vunpack.c.h.b16 %v2608
      %v2656 = vunpack.c.l.b16 %v2609
      %v2657 = vunpack.c.h.b16 %v2609
      %v2658 = vunpack.c.l.b16 %v2610
      %v2659 = vunpack.c.h.b16 %v2610
      %v2660 = vunpack.c.l.b16 %v2611
      %v2661 = vunpack.c.h.b16 %v2611
      %v2662 = vunpack.c.l.b16 %v2612
      %v2663 = vunpack.c.h.b16 %v2612
      %v2664 = vunpack.c.l.b16 %v2613
      %v2665 = vunpack.c.h.b16 %v2613
      %v2666 = vunpack.c.l.b16 %v2614
      %v2667 = vunpack.c.h.b16 %v2614
      %v2668 = vunpack.c.l.b16 %v2615
      %v2669 = vunpack.c.h.b16 %v2615
      %v2670 = vunpack.c.l.b16 %v2616
      %v2671 = vunpack.c.h.b16 %v2616
      %v2672 = vunpack.c.l.b16 %v2617
      %v2673 = vunpack.c.h.b16 %v2617
      %v2674 = vunpack.c.l.b16 %v2618
      %v2675 = vunpack.c.h.b16 %v2618
      %v2676 = vunpack.c.l.b16 %v2619
      %v2677 = vunpack.c.h.b16 %v2619
      %v2678 = vunpack.c.l.b16 %v2620
      %v2679 = vunpack.c.h.b16 %v2620
      %v2680 = vunpack.c.l.b16 %v2621
      %v2681 = vunpack.c.h.b16 %v2621
      %v2682 = vunpack.c.l.b16 %v2622
      %v2683 = vunpack.c.h.b16 %v2622
      %v2684 = vunpack.c.l.b16 %v2623
      %v2685 = vunpack.c.h.b16 %v2623
      %v2686 = vunpack.c.l.b16 %v2624
      %v2687 = vunpack.c.h.b16 %v2624
      %v2688 = vpack.c.b16 %v2654, %v2652
      %v2689 = vpack.c.b16 %v2655, %v2653
      %v2690 = vpack.c.b16 %v2658, %v2656
      %v2691 = vpack.c.b16 %v2659, %v2657
      %v2692 = vpack.c.b16 %v2662, %v2660
      %v2693 = vpack.c.b16 %v2663, %v2661
      %v2694 = vpack.c.b16 %v2666, %v2664
      %v2695 = vpack.c.b16 %v2667, %v2665
      %v2696 = vpack.c.b16 %v2670, %v2668
      %v2697 = vpack.c.b16 %v2671, %v2669
      %v2698 = vpack.c.b16 %v2674, %v2672
      %v2699 = vpack.c.b16 %v2675, %v2673
      %v2700 = vpack.c.b16 %v2678, %v2676
      %v2701 = vpack.c.b16 %v2679, %v2677
      %v2702 = vpack.c.b16 %v2682, %v2680
      %v2703 = vpack.c.b16 %v2683, %v2681
      %v2704 = vpack.c.b16 %v2686, %v2684
      %v2705 = vpack.c.b16 %v2687, %v2685
      %v2725 = vsel %vm468, %v2632, 0
      %2727 = vmatprep.subr.bf16.mxu0 %v2689
      %2728 = vmatpush1.bf16.msra.mxu0 %v2688
      %2729 = vmatprep.subr.bf16.mxu0 %v2691
      %2730 = vmatpush1.bf16.msra.mxu0 %v2690
      %2731 = vmatprep.subr.bf16.mxu0 %v2693
      %2732 = vmatpush1.bf16.msra.mxu0 %v2692
      %2733 = vmatprep.subr.bf16.mxu0 %v2695
      %2734 = vmatpush1.bf16.msra.mxu0 %v2694
      %2735 = vmatprep.subr.bf16.mxu0 %v2697
      %2736 = vmatpush1.bf16.msra.mxu0 %v2696
      %2737 = vmatprep.subr.bf16.mxu0 %v2699
      %2738 = vmatpush1.bf16.msra.mxu0 %v2698
      %2739 = vmatprep.subr.bf16.mxu0 %v2701
      %2740 = vmatpush1.bf16.msra.mxu0 %v2700
      %2741 = vmatprep.subr.bf16.mxu0 %v2703
      %2742 = vmatpush1.bf16.msra.mxu0 %v2702
      %2743 = vmatprep.subr.bf16.mxu0 %v2705
      %2744 = vmatpush1.bf16.msra.mxu0 %v2704
      %2745 = vmatprep.subr.bf16.mxu0 0
      %2746 = vmatpush1.bf16.msra.mxu0 0
      %2747 = vmatprep.subr.bf16.mxu0 0
      %2748 = vmatpush1.bf16.msra.mxu0 0
      %2749 = vmatprep.subr.bf16.mxu0 0
      %2750 = vmatpush1.bf16.msra.mxu0 0
      %2751 = vmatprep.subr.bf16.mxu0 0
      %2752 = vmatpush1.bf16.msra.mxu0 0
      %2753 = vmatprep.subr.bf16.mxu0 0
      %2754 = vmatpush1.bf16.msra.mxu0 0
      %2755 = vmatprep.subr.bf16.mxu0 0
      %2756 = vmatpush1.bf16.msra.mxu0 0
      %2757 = vmatprep.subr.bf16.mxu0 0
      %2758 = vmatpush1.bf16.msra.mxu0 0
      %2759 = vmatprep.mubr.bf16.mxu0 %v2725
      %2760 = vmatmul.mubr.bf16.gmra.mrb[0].mxu0 %v2631
      %v2761 = vpop.f32.mrb[0].mxu0
      %v2762 = vadd.f32 0.0, %v2761
      %v2763 = vpop.f32.mrb[0].mxu0
      %v2764 = vadd.f32 0.0, %v2763
      %v2765 = vpop.f32.mrb[0].mxu0
      %v2766 = vadd.f32 0.0, %v2765
      %v2767 = vpop.f32.mrb[0].mxu0
      %v2768 = vadd.f32 0.0, %v2767
      %2769 = vdwg.mxu0
      %v2770 = vadd.f32 %v2602, %v2762
      %v2771 = vadd.f32 %v2603, %v2764
      %v2772 = vadd.f32 %v2604, %v2766
      %v2773 = vadd.f32 %v2605, %v2768
      %s2774 = scalar_lea.vmem %s1, 1008
      %v2775 = vld [vmem:[%s2774] sm:$0xff]
      %v2776 = vld [vmem:[%s2774 + $0x8] sm:$0xff]
      %v2777 = vld [vmem:[%s2774 + $0x10] sm:$0xff]
      %v2778 = vld [vmem:[%s2774 + $0x18] sm:$0xff]
      %v2779 = vld [vmem:[%s2774 + $0x20] sm:$0xff]
      %v2780 = vld [vmem:[%s2774 + $0x28] sm:$0xff]
      %v2781 = vld [vmem:[%s2774 + $0x30] sm:$0xff]
      %v2782 = vld [vmem:[%s2774 + $0x38] sm:$0xff]
      %v2783 = vld [vmem:[%s2774 + $0x40] sm:$0xff]
      %v2784 = vld [vmem:[%s2774 + $0x48] sm:$0xff]
      %v2785 = vld [vmem:[%s2774 + $0x50] sm:$0xff]
      %v2786 = vld [vmem:[%s2774 + $0x58] sm:$0xff]
      %v2787 = vld [vmem:[%s2774 + $0x60] sm:$0xff]
      %v2788 = vld [vmem:[%s2774 + $0x68] sm:$0xff]
      %v2789 = vld [vmem:[%s2774 + $0x70] sm:$0xff]
      %v2790 = vld [vmem:[%s2774 + $0x78] sm:$0xff]
      %v2791 = vld [vmem:[%s2774 + $0x80] sm:$0xff]
      %v2792 = vld [vmem:[%s2774 + $0x88] sm:$0xff]
      %v2794 = vunpack.c.l.b16 %v2432
      %v2795 = vunpack.c.h.b16 %v2432
      %v2796 = vpack.c.b16 %v2794, %v2794
      %v2797 = vpack.c.b16 %v2795, %v2795
      %v2799 = vshrl.u32 %v2463, 16
      %v2801 = vshll.u32 %v2463, 16
      %v2803 = vrot.slane %v2801, 1
      %v2804 = vor.u32 %v2799, %v2803
      %v2806 = vshll.u32 %v2796, 16
      %v2808 = vrot.slane %v2806, 1
      %v2809 = vsel %vm684, %v2804, %v2808
      %v2810 = vshrl.u32 %v2464, 16
      %v2812 = vshll.u32 %v2464, 16
      %v2814 = vrot.slane %v2812, 1
      %v2815 = vor.u32 %v2810, %v2814
      %v2817 = vshll.u32 %v2797, 16
      %v2819 = vrot.slane %v2817, 1
      %v2820 = vsel %vm684, %v2815, %v2819
      %v2840 = vunpack.c.l.b16 %v2775
      %v2841 = vunpack.c.h.b16 %v2775
      %v2842 = vunpack.c.l.b16 %v2776
      %v2843 = vunpack.c.h.b16 %v2776
      %v2844 = vunpack.c.l.b16 %v2777
      %v2845 = vunpack.c.h.b16 %v2777
      %v2846 = vunpack.c.l.b16 %v2778
      %v2847 = vunpack.c.h.b16 %v2778
      %v2848 = vunpack.c.l.b16 %v2779
      %v2849 = vunpack.c.h.b16 %v2779
      %v2850 = vunpack.c.l.b16 %v2780
      %v2851 = vunpack.c.h.b16 %v2780
      %v2852 = vunpack.c.l.b16 %v2781
      %v2853 = vunpack.c.h.b16 %v2781
      %v2854 = vunpack.c.l.b16 %v2782
      %v2855 = vunpack.c.h.b16 %v2782
      %v2856 = vunpack.c.l.b16 %v2783
      %v2857 = vunpack.c.h.b16 %v2783
      %v2858 = vunpack.c.l.b16 %v2784
      %v2859 = vunpack.c.h.b16 %v2784
      %v2860 = vunpack.c.l.b16 %v2785
      %v2861 = vunpack.c.h.b16 %v2785
      %v2862 = vunpack.c.l.b16 %v2786
      %v2863 = vunpack.c.h.b16 %v2786
      %v2864 = vunpack.c.l.b16 %v2787
      %v2865 = vunpack.c.h.b16 %v2787
      %v2866 = vunpack.c.l.b16 %v2788
      %v2867 = vunpack.c.h.b16 %v2788
      %v2868 = vunpack.c.l.b16 %v2789
      %v2869 = vunpack.c.h.b16 %v2789
      %v2870 = vunpack.c.l.b16 %v2790
      %v2871 = vunpack.c.h.b16 %v2790
      %v2872 = vunpack.c.l.b16 %v2791
      %v2873 = vunpack.c.h.b16 %v2791
      %v2874 = vunpack.c.l.b16 %v2792
      %v2875 = vunpack.c.h.b16 %v2792
      %v2876 = vpack.c.b16 %v2842, %v2840
      %v2877 = vpack.c.b16 %v2843, %v2841
      %v2878 = vpack.c.b16 %v2846, %v2844
      %v2879 = vpack.c.b16 %v2847, %v2845
      %v2880 = vpack.c.b16 %v2850, %v2848
      %v2881 = vpack.c.b16 %v2851, %v2849
      %v2882 = vpack.c.b16 %v2854, %v2852
      %v2883 = vpack.c.b16 %v2855, %v2853
      %v2884 = vpack.c.b16 %v2858, %v2856
      %v2885 = vpack.c.b16 %v2859, %v2857
      %v2886 = vpack.c.b16 %v2862, %v2860
      %v2887 = vpack.c.b16 %v2863, %v2861
      %v2888 = vpack.c.b16 %v2866, %v2864
      %v2889 = vpack.c.b16 %v2867, %v2865
      %v2890 = vpack.c.b16 %v2870, %v2868
      %v2891 = vpack.c.b16 %v2871, %v2869
      %v2892 = vpack.c.b16 %v2874, %v2872
      %v2893 = vpack.c.b16 %v2875, %v2873
      %v2913 = vsel %vm468, %v2820, 0
      %2915 = vmatprep.subr.bf16.mxu0 %v2877
      %2916 = vmatpush1.bf16.msra.mxu0 %v2876
      %2917 = vmatprep.subr.bf16.mxu0 %v2879
      %2918 = vmatpush1.bf16.msra.mxu0 %v2878
      %2919 = vmatprep.subr.bf16.mxu0 %v2881
      %2920 = vmatpush1.bf16.msra.mxu0 %v2880
      %2921 = vmatprep.subr.bf16.mxu0 %v2883
      %2922 = vmatpush1.bf16.msra.mxu0 %v2882
      %2923 = vmatprep.subr.bf16.mxu0 %v2885
      %2924 = vmatpush1.bf16.msra.mxu0 %v2884
      %2925 = vmatprep.subr.bf16.mxu0 %v2887
      %2926 = vmatpush1.bf16.msra.mxu0 %v2886
      %2927 = vmatprep.subr.bf16.mxu0 %v2889
      %2928 = vmatpush1.bf16.msra.mxu0 %v2888
      %2929 = vmatprep.subr.bf16.mxu0 %v2891
      %2930 = vmatpush1.bf16.msra.mxu0 %v2890
      %2931 = vmatprep.subr.bf16.mxu0 %v2893
      %2932 = vmatpush1.bf16.msra.mxu0 %v2892
      %2933 = vmatprep.subr.bf16.mxu0 0
      %2934 = vmatpush1.bf16.msra.mxu0 0
      %2935 = vmatprep.subr.bf16.mxu0 0
      %2936 = vmatpush1.bf16.msra.mxu0 0
      %2937 = vmatprep.subr.bf16.mxu0 0
      %2938 = vmatpush1.bf16.msra.mxu0 0
      %2939 = vmatprep.subr.bf16.mxu0 0
      %2940 = vmatpush1.bf16.msra.mxu0 0
      %2941 = vmatprep.subr.bf16.mxu0 0
      %2942 = vmatpush1.bf16.msra.mxu0 0
      %2943 = vmatprep.subr.bf16.mxu0 0
      %2944 = vmatpush1.bf16.msra.mxu0 0
      %2945 = vmatprep.subr.bf16.mxu0 0
      %2946 = vmatpush1.bf16.msra.mxu0 0
      %2947 = vmatprep.mubr.bf16.mxu0 %v2913
      %2948 = vmatmul.mubr.bf16.gmra.mrb[0].mxu0 %v2809
      %v2949 = vpop.f32.mrb[0].mxu0
      %v2950 = vadd.f32 0.0, %v2949
      %v2951 = vpop.f32.mrb[0].mxu0
      %v2952 = vadd.f32 0.0, %v2951
      %v2953 = vpop.f32.mrb[0].mxu0
      %v2954 = vadd.f32 0.0, %v2953
      %v2955 = vpop.f32.mrb[0].mxu0
      %v2956 = vadd.f32 0.0, %v2955
      %2957 = vdwg.mxu0
      %v2958 = vadd.f32 %v2770, %v2950
      %v2959 = vadd.f32 %v2771, %v2952
      %v2960 = vadd.f32 %v2772, %v2954
      %v2961 = vadd.f32 %v2773, %v2956
      %s2962 = scalar_lea.vmem %s3, 1008
      %v2963 = vld [vmem:[%s2962] sm:$0xff]
      %v2964 = vld [vmem:[%s2962 + $0x8] sm:$0xff]
      %v2965 = vld [vmem:[%s2962 + $0x10] sm:$0xff]
      %v2966 = vld [vmem:[%s2962 + $0x18] sm:$0xff]
      %v2967 = vld [vmem:[%s2962 + $0x20] sm:$0xff]
      %v2968 = vld [vmem:[%s2962 + $0x28] sm:$0xff]
      %v2969 = vld [vmem:[%s2962 + $0x30] sm:$0xff]
      %v2970 = vld [vmem:[%s2962 + $0x38] sm:$0xff]
      %v2971 = vld [vmem:[%s2962 + $0x40] sm:$0xff]
      %v2972 = vld [vmem:[%s2962 + $0x48] sm:$0xff]
      %v2973 = vld [vmem:[%s2962 + $0x50] sm:$0xff]
      %v2974 = vld [vmem:[%s2962 + $0x58] sm:$0xff]
      %v2975 = vld [vmem:[%s2962 + $0x60] sm:$0xff]
      %v2976 = vld [vmem:[%s2962 + $0x68] sm:$0xff]
      %v2977 = vld [vmem:[%s2962 + $0x70] sm:$0xff]
      %v2978 = vld [vmem:[%s2962 + $0x78] sm:$0xff]
      %v2979 = vld [vmem:[%s2962 + $0x80] sm:$0xff]
      %v2980 = vld [vmem:[%s2962 + $0x88] sm:$0xff]
      %v2982 = vunpack.c.l.b16 %v2437
      %v2983 = vunpack.c.h.b16 %v2437
      %v2984 = vpack.c.b16 %v2982, %v2982
      %v2985 = vpack.c.b16 %v2983, %v2983
      %v2987 = vshrl.u32 %v2631, 16
      %v2989 = vshll.u32 %v2631, 16
      %v2991 = vrot.slane %v2989, 1
      %v2992 = vor.u32 %v2987, %v2991
      %v2994 = vshll.u32 %v2984, 16
      %v2996 = vrot.slane %v2994, 1
      %v2997 = vsel %vm684, %v2992, %v2996
      %v2998 = vshrl.u32 %v2632, 16
      %v3000 = vshll.u32 %v2632, 16
      %v3002 = vrot.slane %v3000, 1
      %v3003 = vor.u32 %v2998, %v3002
      %v3005 = vshll.u32 %v2985, 16
      %v3007 = vrot.slane %v3005, 1
      %v3008 = vsel %vm684, %v3003, %v3007
      %v3028 = vunpack.c.l.b16 %v2963
      %v3029 = vunpack.c.h.b16 %v2963
      %v3030 = vunpack.c.l.b16 %v2964
      %v3031 = vunpack.c.h.b16 %v2964
      %v3032 = vunpack.c.l.b16 %v2965
      %v3033 = vunpack.c.h.b16 %v2965
      %v3034 = vunpack.c.l.b16 %v2966
      %v3035 = vunpack.c.h.b16 %v2966
      %v3036 = vunpack.c.l.b16 %v2967
      %v3037 = vunpack.c.h.b16 %v2967
      %v3038 = vunpack.c.l.b16 %v2968
      %v3039 = vunpack.c.h.b16 %v2968
      %v3040 = vunpack.c.l.b16 %v2969
      %v3041 = vunpack.c.h.b16 %v2969
      %v3042 = vunpack.c.l.b16 %v2970
      %v3043 = vunpack.c.h.b16 %v2970
      %v3044 = vunpack.c.l.b16 %v2971
      %v3045 = vunpack.c.h.b16 %v2971
      %v3046 = vunpack.c.l.b16 %v2972
      %v3047 = vunpack.c.h.b16 %v2972
      %v3048 = vunpack.c.l.b16 %v2973
      %v3049 = vunpack.c.h.b16 %v2973
      %v3050 = vunpack.c.l.b16 %v2974
      %v3051 = vunpack.c.h.b16 %v2974
      %v3052 = vunpack.c.l.b16 %v2975
      %v3053 = vunpack.c.h.b16 %v2975
      %v3054 = vunpack.c.l.b16 %v2976
      %v3055 = vunpack.c.h.b16 %v2976
      %v3056 = vunpack.c.l.b16 %v2977
      %v3057 = vunpack.c.h.b16 %v2977
      %v3058 = vunpack.c.l.b16 %v2978
      %v3059 = vunpack.c.h.b16 %v2978
      %v3060 = vunpack.c.l.b16 %v2979
      %v3061 = vunpack.c.h.b16 %v2979
      %v3062 = vunpack.c.l.b16 %v2980
      %v3063 = vunpack.c.h.b16 %v2980
      %v3064 = vpack.c.b16 %v3030, %v3028
      %v3065 = vpack.c.b16 %v3031, %v3029
      %v3066 = vpack.c.b16 %v3034, %v3032
      %v3067 = vpack.c.b16 %v3035, %v3033
      %v3068 = vpack.c.b16 %v3038, %v3036
      %v3069 = vpack.c.b16 %v3039, %v3037
      %v3070 = vpack.c.b16 %v3042, %v3040
      %v3071 = vpack.c.b16 %v3043, %v3041
      %v3072 = vpack.c.b16 %v3046, %v3044
      %v3073 = vpack.c.b16 %v3047, %v3045
      %v3074 = vpack.c.b16 %v3050, %v3048
      %v3075 = vpack.c.b16 %v3051, %v3049
      %v3076 = vpack.c.b16 %v3054, %v3052
      %v3077 = vpack.c.b16 %v3055, %v3053
      %v3078 = vpack.c.b16 %v3058, %v3056
      %v3079 = vpack.c.b16 %v3059, %v3057
      %v3080 = vpack.c.b16 %v3062, %v3060
      %v3081 = vpack.c.b16 %v3063, %v3061
      %v3101 = vsel %vm468, %v3008, 0
      %3103 = vmatprep.subr.bf16.mxu0 %v3065
      %3104 = vmatpush1.bf16.msra.mxu0 %v3064
      %3105 = vmatprep.subr.bf16.mxu0 %v3067
      %3106 = vmatpush1.bf16.msra.mxu0 %v3066
      %3107 = vmatprep.subr.bf16.mxu0 %v3069
      %3108 = vmatpush1.bf16.msra.mxu0 %v3068
      %3109 = vmatprep.subr.bf16.mxu0 %v3071
      %3110 = vmatpush1.bf16.msra.mxu0 %v3070
      %3111 = vmatprep.subr.bf16.mxu0 %v3073
      %3112 = vmatpush1.bf16.msra.mxu0 %v3072
      %3113 = vmatprep.subr.bf16.mxu0 %v3075
      %3114 = vmatpush1.bf16.msra.mxu0 %v3074
      %3115 = vmatprep.subr.bf16.mxu0 %v3077
      %3116 = vmatpush1.bf16.msra.mxu0 %v3076
      %3117 = vmatprep.subr.bf16.mxu0 %v3079
      %3118 = vmatpush1.bf16.msra.mxu0 %v3078
      %3119 = vmatprep.subr.bf16.mxu0 %v3081
      %3120 = vmatpush1.bf16.msra.mxu0 %v3080
      %3121 = vmatprep.subr.bf16.mxu0 0
      %3122 = vmatpush1.bf16.msra.mxu0 0
      %3123 = vmatprep.subr.bf16.mxu0 0
      %3124 = vmatpush1.bf16.msra.mxu0 0
      %3125 = vmatprep.subr.bf16.mxu0 0
      %3126 = vmatpush1.bf16.msra.mxu0 0
      %3127 = vmatprep.subr.bf16.mxu0 0
      %3128 = vmatpush1.bf16.msra.mxu0 0
      %3129 = vmatprep.subr.bf16.mxu0 0
      %3130 = vmatpush1.bf16.msra.mxu0 0
      %3131 = vmatprep.subr.bf16.mxu0 0
      %3132 = vmatpush1.bf16.msra.mxu0 0
      %3133 = vmatprep.subr.bf16.mxu0 0
      %3134 = vmatpush1.bf16.msra.mxu0 0
      %3135 = vmatprep.mubr.bf16.mxu0 %v3101
      %3136 = vmatmul.mubr.bf16.gmra.mrb[0].mxu0 %v2997
      %v3137 = vpop.f32.mrb[0].mxu0
      %v3138 = vadd.f32 0.0, %v3137
      %v3139 = vpop.f32.mrb[0].mxu0
      %v3140 = vadd.f32 0.0, %v3139
      %v3141 = vpop.f32.mrb[0].mxu0
      %v3142 = vadd.f32 0.0, %v3141
      %v3143 = vpop.f32.mrb[0].mxu0
      %v3144 = vadd.f32 0.0, %v3143
      %3145 = vdwg.mxu0
      %v3146 = vadd.f32 %v2958, %v3138
      %v3147 = vadd.f32 %v2959, %v3140
      %v3148 = vadd.f32 %v2960, %v3142
      %v3149 = vadd.f32 %v2961, %v3144
      %s3150 = scalar_lea.vmem %s1, 1152
      %v3151 = vld [vmem:[%s3150] sm:$0xff]
      %v3152 = vld [vmem:[%s3150 + $0x8] sm:$0xff]
      %v3153 = vld [vmem:[%s3150 + $0x10] sm:$0xff]
      %v3154 = vld [vmem:[%s3150 + $0x18] sm:$0xff]
      %v3155 = vld [vmem:[%s3150 + $0x20] sm:$0xff]
      %v3156 = vld [vmem:[%s3150 + $0x28] sm:$0xff]
      %v3157 = vld [vmem:[%s3150 + $0x30] sm:$0xff]
      %v3158 = vld [vmem:[%s3150 + $0x38] sm:$0xff]
      %v3159 = vld [vmem:[%s3150 + $0x40] sm:$0xff]
      %v3160 = vld [vmem:[%s3150 + $0x48] sm:$0xff]
      %v3161 = vld [vmem:[%s3150 + $0x50] sm:$0xff]
      %v3162 = vld [vmem:[%s3150 + $0x58] sm:$0xff]
      %v3163 = vld [vmem:[%s3150 + $0x60] sm:$0xff]
      %v3164 = vld [vmem:[%s3150 + $0x68] sm:$0xff]
      %v3165 = vld [vmem:[%s3150 + $0x70] sm:$0xff]
      %v3166 = vld [vmem:[%s3150 + $0x78] sm:$0xff]
      %v3167 = vld [vmem:[%s3150 + $0x80] sm:$0xff]
      %v3168 = vld [vmem:[%s3150 + $0x88] sm:$0xff]
      %v3169 = vrot.slane %v2463, 1
      %v3170 = vrot.slane %v2796, 1
      %v3171 = vsel %vm1056, %v3169, %v3170
      %v3172 = vrot.slane %v2464, 1
      %v3173 = vrot.slane %v2797, 1
      %v3174 = vsel %vm1056, %v3172, %v3173
      %v3194 = vunpack.c.l.b16 %v3151
      %v3195 = vunpack.c.h.b16 %v3151
      %v3196 = vunpack.c.l.b16 %v3152
      %v3197 = vunpack.c.h.b16 %v3152
      %v3198 = vunpack.c.l.b16 %v3153
      %v3199 = vunpack.c.h.b16 %v3153
      %v3200 = vunpack.c.l.b16 %v3154
      %v3201 = vunpack.c.h.b16 %v3154
      %v3202 = vunpack.c.l.b16 %v3155
      %v3203 = vunpack.c.h.b16 %v3155
      %v3204 = vunpack.c.l.b16 %v3156
      %v3205 = vunpack.c.h.b16 %v3156
      %v3206 = vunpack.c.l.b16 %v3157
      %v3207 = vunpack.c.h.b16 %v3157
      %v3208 = vunpack.c.l.b16 %v3158
      %v3209 = vunpack.c.h.b16 %v3158
      %v3210 = vunpack.c.l.b16 %v3159
      %v3211 = vunpack.c.h.b16 %v3159
      %v3212 = vunpack.c.l.b16 %v3160
      %v3213 = vunpack.c.h.b16 %v3160
      %v3214 = vunpack.c.l.b16 %v3161
      %v3215 = vunpack.c.h.b16 %v3161
      %v3216 = vunpack.c.l.b16 %v3162
      %v3217 = vunpack.c.h.b16 %v3162
      %v3218 = vunpack.c.l.b16 %v3163
      %v3219 = vunpack.c.h.b16 %v3163
      %v3220 = vunpack.c.l.b16 %v3164
      %v3221 = vunpack.c.h.b16 %v3164
      %v3222 = vunpack.c.l.b16 %v3165
      %v3223 = vunpack.c.h.b16 %v3165
      %v3224 = vunpack.c.l.b16 %v3166
      %v3225 = vunpack.c.h.b16 %v3166
      %v3226 = vunpack.c.l.b16 %v3167
      %v3227 = vunpack.c.h.b16 %v3167
      %v3228 = vunpack.c.l.b16 %v3168
      %v3229 = vunpack.c.h.b16 %v3168
      %v3230 = vpack.c.b16 %v3196, %v3194
      %v3231 = vpack.c.b16 %v3197, %v3195
      %v3232 = vpack.c.b16 %v3200, %v3198
      %v3233 = vpack.c.b16 %v3201, %v3199
      %v3234 = vpack.c.b16 %v3204, %v3202
      %v3235 = vpack.c.b16 %v3205, %v3203
      %v3236 = vpack.c.b16 %v3208, %v3206
      %v3237 = vpack.c.b16 %v3209, %v3207
      %v3238 = vpack.c.b16 %v3212, %v3210
      %v3239 = vpack.c.b16 %v3213, %v3211
      %v3240 = vpack.c.b16 %v3216, %v3214
      %v3241 = vpack.c.b16 %v3217, %v3215
      %v3242 = vpack.c.b16 %v3220, %v3218
      %v3243 = vpack.c.b16 %v3221, %v3219
      %v3244 = vpack.c.b16 %v3224, %v3222
      %v3245 = vpack.c.b16 %v3225, %v3223
      %v3246 = vpack.c.b16 %v3228, %v3226
      %v3247 = vpack.c.b16 %v3229, %v3227
      %v3267 = vsel %vm468, %v3174, 0
      %3269 = vmatprep.subr.bf16.mxu0 %v3231
      %3270 = vmatpush1.bf16.msra.mxu0 %v3230
      %3271 = vmatprep.subr.bf16.mxu0 %v3233
      %3272 = vmatpush1.bf16.msra.mxu0 %v3232
      %3273 = vmatprep.subr.bf16.mxu0 %v3235
      %3274 = vmatpush1.bf16.msra.mxu0 %v3234
      %3275 = vmatprep.subr.bf16.mxu0 %v3237
      %3276 = vmatpush1.bf16.msra.mxu0 %v3236
      %3277 = vmatprep.subr.bf16.mxu0 %v3239
      %3278 = vmatpush1.bf16.msra.mxu0 %v3238
      %3279 = vmatprep.subr.bf16.mxu0 %v3241
      %3280 = vmatpush1.bf16.msra.mxu0 %v3240
      %3281 = vmatprep.subr.bf16.mxu0 %v3243
      %3282 = vmatpush1.bf16.msra.mxu0 %v3242
      %3283 = vmatprep.subr.bf16.mxu0 %v3245
      %3284 = vmatpush1.bf16.msra.mxu0 %v3244
      %3285 = vmatprep.subr.bf16.mxu0 %v3247
      %3286 = vmatpush1.bf16.msra.mxu0 %v3246
      %3287 = vmatprep.subr.bf16.mxu0 0
      %3288 = vmatpush1.bf16.msra.mxu0 0
      %3289 = vmatprep.subr.bf16.mxu0 0
      %3290 = vmatpush1.bf16.msra.mxu0 0
      %3291 = vmatprep.subr.bf16.mxu0 0
      %3292 = vmatpush1.bf16.msra.mxu0 0
      %3293 = vmatprep.subr.bf16.mxu0 0
      %3294 = vmatpush1.bf16.msra.mxu0 0
      %3295 = vmatprep.subr.bf16.mxu0 0
      %3296 = vmatpush1.bf16.msra.mxu0 0
      %3297 = vmatprep.subr.bf16.mxu0 0
      %3298 = vmatpush1.bf16.msra.mxu0 0
      %3299 = vmatprep.subr.bf16.mxu0 0
      %3300 = vmatpush1.bf16.msra.mxu0 0
      %3301 = vmatprep.mubr.bf16.mxu0 %v3267
      %3302 = vmatmul.mubr.bf16.gmra.mrb[0].mxu0 %v3171
      %v3303 = vpop.f32.mrb[0].mxu0
      %v3304 = vadd.f32 0.0, %v3303
      %v3305 = vpop.f32.mrb[0].mxu0
      %v3306 = vadd.f32 0.0, %v3305
      %v3307 = vpop.f32.mrb[0].mxu0
      %v3308 = vadd.f32 0.0, %v3307
      %v3309 = vpop.f32.mrb[0].mxu0
      %v3310 = vadd.f32 0.0, %v3309
      %3311 = vdwg.mxu0
      %v3312 = vadd.f32 %v3146, %v3304
      %v3313 = vadd.f32 %v3147, %v3306
      %v3314 = vadd.f32 %v3148, %v3308
      %v3315 = vadd.f32 %v3149, %v3310
      %s3316 = scalar_lea.vmem %s3, 1152
      %v3317 = vld [vmem:[%s3316] sm:$0xff]
      %v3318 = vld [vmem:[%s3316 + $0x8] sm:$0xff]
      %v3319 = vld [vmem:[%s3316 + $0x10] sm:$0xff]
      %v3320 = vld [vmem:[%s3316 + $0x18] sm:$0xff]
      %v3321 = vld [vmem:[%s3316 + $0x20] sm:$0xff]
      %v3322 = vld [vmem:[%s3316 + $0x28] sm:$0xff]
      %v3323 = vld [vmem:[%s3316 + $0x30] sm:$0xff]
      %v3324 = vld [vmem:[%s3316 + $0x38] sm:$0xff]
      %v3325 = vld [vmem:[%s3316 + $0x40] sm:$0xff]
      %v3326 = vld [vmem:[%s3316 + $0x48] sm:$0xff]
      %v3327 = vld [vmem:[%s3316 + $0x50] sm:$0xff]
      %v3328 = vld [vmem:[%s3316 + $0x58] sm:$0xff]
      %v3329 = vld [vmem:[%s3316 + $0x60] sm:$0xff]
      %v3330 = vld [vmem:[%s3316 + $0x68] sm:$0xff]
      %v3331 = vld [vmem:[%s3316 + $0x70] sm:$0xff]
      %v3332 = vld [vmem:[%s3316 + $0x78] sm:$0xff]
      %v3333 = vld [vmem:[%s3316 + $0x80] sm:$0xff]
      %v3334 = vld [vmem:[%s3316 + $0x88] sm:$0xff]
      %v3335 = vrot.slane %v2631, 1
      %v3336 = vrot.slane %v2984, 1
      %v3337 = vsel %vm1056, %v3335, %v3336
      %v3338 = vrot.slane %v2632, 1
      %v3339 = vrot.slane %v2985, 1
      %v3340 = vsel %vm1056, %v3338, %v3339
      %v3360 = vunpack.c.l.b16 %v3317
      %v3361 = vunpack.c.h.b16 %v3317
      %v3362 = vunpack.c.l.b16 %v3318
      %v3363 = vunpack.c.h.b16 %v3318
      %v3364 = vunpack.c.l.b16 %v3319
      %v3365 = vunpack.c.h.b16 %v3319
      %v3366 = vunpack.c.l.b16 %v3320
      %v3367 = vunpack.c.h.b16 %v3320
      %v3368 = vunpack.c.l.b16 %v3321
      %v3369 = vunpack.c.h.b16 %v3321
      %v3370 = vunpack.c.l.b16 %v3322
      %v3371 = vunpack.c.h.b16 %v3322
      %v3372 = vunpack.c.l.b16 %v3323
      %v3373 = vunpack.c.h.b16 %v3323
      %v3374 = vunpack.c.l.b16 %v3324
      %v3375 = vunpack.c.h.b16 %v3324
      %v3376 = vunpack.c.l.b16 %v3325
      %v3377 = vunpack.c.h.b16 %v3325
      %v3378 = vunpack.c.l.b16 %v3326
      %v3379 = vunpack.c.h.b16 %v3326
      %v3380 = vunpack.c.l.b16 %v3327
      %v3381 = vunpack.c.h.b16 %v3327
      %v3382 = vunpack.c.l.b16 %v3328
      %v3383 = vunpack.c.h.b16 %v3328
      %v3384 = vunpack.c.l.b16 %v3329
      %v3385 = vunpack.c.h.b16 %v3329
      %v3386 = vunpack.c.l.b16 %v3330
      %v3387 = vunpack.c.h.b16 %v3330
      %v3388 = vunpack.c.l.b16 %v3331
      %v3389 = vunpack.c.h.b16 %v3331
      %v3390 = vunpack.c.l.b16 %v3332
      %v3391 = vunpack.c.h.b16 %v3332
      %v3392 = vunpack.c.l.b16 %v3333
      %v3393 = vunpack.c.h.b16 %v3333
      %v3394 = vunpack.c.l.b16 %v3334
      %v3395 = vunpack.c.h.b16 %v3334
      %v3396 = vpack.c.b16 %v3362, %v3360
      %v3397 = vpack.c.b16 %v3363, %v3361
      %v3398 = vpack.c.b16 %v3366, %v3364
      %v3399 = vpack.c.b16 %v3367, %v3365
      %v3400 = vpack.c.b16 %v3370, %v3368
      %v3401 = vpack.c.b16 %v3371, %v3369
      %v3402 = vpack.c.b16 %v3374, %v3372
      %v3403 = vpack.c.b16 %v3375, %v3373
      %v3404 = vpack.c.b16 %v3378, %v3376
      %v3405 = vpack.c.b16 %v3379, %v3377
      %v3406 = vpack.c.b16 %v3382, %v3380
      %v3407 = vpack.c.b16 %v3383, %v3381
      %v3408 = vpack.c.b16 %v3386, %v3384
      %v3409 = vpack.c.b16 %v3387, %v3385
      %v3410 = vpack.c.b16 %v3390, %v3388
      %v3411 = vpack.c.b16 %v3391, %v3389
      %v3412 = vpack.c.b16 %v3394, %v3392
      %v3413 = vpack.c.b16 %v3395, %v3393
      %v3433 = vsel %vm468, %v3340, 0
      %3435 = vmatprep.subr.bf16.mxu0 %v3397
      %3436 = vmatpush1.bf16.msra.mxu0 %v3396
      %3437 = vmatprep.subr.bf16.mxu0 %v3399
      %3438 = vmatpush1.bf16.msra.mxu0 %v3398
      %3439 = vmatprep.subr.bf16.mxu0 %v3401
      %3440 = vmatpush1.bf16.msra.mxu0 %v3400
      %3441 = vmatprep.subr.bf16.mxu0 %v3403
      %3442 = vmatpush1.bf16.msra.mxu0 %v3402
      %3443 = vmatprep.subr.bf16.mxu0 %v3405
      %3444 = vmatpush1.bf16.msra.mxu0 %v3404
      %3445 = vmatprep.subr.bf16.mxu0 %v3407
      %3446 = vmatpush1.bf16.msra.mxu0 %v3406
      %3447 = vmatprep.subr.bf16.mxu0 %v3409
      %3448 = vmatpush1.bf16.msra.mxu0 %v3408
      %3449 = vmatprep.subr.bf16.mxu0 %v3411
      %3450 = vmatpush1.bf16.msra.mxu0 %v3410
      %3451 = vmatprep.subr.bf16.mxu0 %v3413
      %3452 = vmatpush1.bf16.msra.mxu0 %v3412
      %3453 = vmatprep.subr.bf16.mxu0 0
      %3454 = vmatpush1.bf16.msra.mxu0 0
      %3455 = vmatprep.subr.bf16.mxu0 0
      %3456 = vmatpush1.bf16.msra.mxu0 0
      %3457 = vmatprep.subr.bf16.mxu0 0
      %3458 = vmatpush1.bf16.msra.mxu0 0
      %3459 = vmatprep.subr.bf16.mxu0 0
      %3460 = vmatpush1.bf16.msra.mxu0 0
      %3461 = vmatprep.subr.bf16.mxu0 0
      %3462 = vmatpush1.bf16.msra.mxu0 0
      %3463 = vmatprep.subr.bf16.mxu0 0
      %3464 = vmatpush1.bf16.msra.mxu0 0
      %3465 = vmatprep.subr.bf16.mxu0 0
      %3466 = vmatpush1.bf16.msra.mxu0 0
      %3467 = vmatprep.mubr.bf16.mxu0 %v3433
      %3468 = vmatmul.mubr.bf16.gmra.mrb[0].mxu0 %v3337
      %v3469 = vpop.f32.mrb[0].mxu0
      %v3470 = vadd.f32 0.0, %v3469
      %v3471 = vpop.f32.mrb[0].mxu0
      %v3472 = vadd.f32 0.0, %v3471
      %v3473 = vpop.f32.mrb[0].mxu0
      %v3474 = vadd.f32 0.0, %v3473
      %v3475 = vpop.f32.mrb[0].mxu0
      %v3476 = vadd.f32 0.0, %v3475
      %3477 = vdwg.mxu0
      %v3478 = vadd.f32 %v3312, %v3470
      %v3479 = vadd.f32 %v3313, %v3472
      %v3480 = vadd.f32 %v3314, %v3474
      %v3481 = vadd.f32 %v3315, %v3476
      %v3482 = vld [vmem:[%s4] sm:$0x3]
      %v3484 = vlaneseq
      %v3485 = vshrl.u32 %v3484, 7
      %v3486 = vsub.s32 0, %v3485
      %v3487 = vrot.slane %v3482, %v3486
      %v3488 = vlaneseq
      %v3489 = vshrl.u32 %v3488, 7
      %v3490 = vsub.s32 1, %v3489
      %v3491 = vrot.slane %v3482, %v3490
      %v3494 = vadd.f32 %v3478, %v3487
      %v3495 = vadd.f32 %v3479, %v3491
      %v3496 = vadd.f32 %v3480, %v3487
      %v3497 = vadd.f32 %v3481, %v3491
      %v3498 = vmax.f32 %v3494, 0.0
      %v3499 = vmax.f32 %v3495, 0.0
      %v3500 = vmax.f32 %v3496, 0.0
      %v3501 = vmax.f32 %v3497, 0.0
      %v3502 = vld [vmem:[%s5] sm:$0xff]
      %v3503 = vld [vmem:[%s5 + $0x8] sm:$0xff]
      %v3504 = vld [vmem:[%s5 + $0x10] sm:$0xff]
      %v3505 = vld [vmem:[%s5 + $0x18] sm:$0xff]
      %v3506 = vld [vmem:[%s5 + $0x20] sm:$0xff]
      %v3507 = vld [vmem:[%s5 + $0x28] sm:$0xff]
      %v3508 = vld [vmem:[%s5 + $0x30] sm:$0xff]
      %v3509 = vld [vmem:[%s5 + $0x38] sm:$0xff]
      %v3510 = vld [vmem:[%s5 + $0x40] sm:$0xff]
      %v3511 = vld [vmem:[%s5 + $0x48] sm:$0xff]
      %v3512 = vld [vmem:[%s5 + $0x50] sm:$0xff]
      %v3513 = vld [vmem:[%s5 + $0x58] sm:$0xff]
      %v3514 = vld [vmem:[%s5 + $0x60] sm:$0xff]
      %v3515 = vld [vmem:[%s5 + $0x68] sm:$0xff]
      %v3516 = vld [vmem:[%s5 + $0x70] sm:$0xff]
      %v3517 = vld [vmem:[%s5 + $0x78] sm:$0xff]
      %v3518 = vld [vmem:[%s5 + $0x80] sm:$0xff]
      %v3519 = vld [vmem:[%s5 + $0x88] sm:$0xff]
      %v3520 = vld [vmem:[%s5 + $0x90] sm:$0xff]
      %v3521 = vld [vmem:[%s5 + $0x98] sm:$0xff]
      %v3522 = vld [vmem:[%s5 + $0xa0] sm:$0xff]
      %v3523 = vld [vmem:[%s5 + $0xa8] sm:$0xff]
      %v3524 = vld [vmem:[%s5 + $0xb0] sm:$0xff]
      %v3525 = vld [vmem:[%s5 + $0xb8] sm:$0xff]
      %v3526 = vld [vmem:[%s5 + $0xc0] sm:$0xff]
      %v3527 = vld [vmem:[%s5 + $0xc8] sm:$0xff]
      %v3528 = vld [vmem:[%s5 + $0xd0] sm:$0xff]
      %v3529 = vld [vmem:[%s5 + $0xd8] sm:$0xff]
      %v3530 = vld [vmem:[%s5 + $0xe0] sm:$0xff]
      %v3531 = vld [vmem:[%s5 + $0xe8] sm:$0xff]
      %v3532 = vld [vmem:[%s5 + $0xf0] sm:$0xff]
      %v3533 = vld [vmem:[%s5 + $0xf8] sm:$0xff]
      %v3534 = vld [vmem:[%s5 + $0x100] sm:$0xff]
      %v3535 = vld [vmem:[%s5 + $0x108] sm:$0xff]
      %v3536 = vld [vmem:[%s5 + $0x110] sm:$0xff]
      %v3537 = vld [vmem:[%s5 + $0x118] sm:$0xff]
      %v3538 = vld [vmem:[%s5 + $0x120] sm:$0xff]
      %v3539 = vld [vmem:[%s5 + $0x128] sm:$0xff]
      %v3540 = vld [vmem:[%s5 + $0x130] sm:$0xff]
      %v3541 = vld [vmem:[%s5 + $0x138] sm:$0xff]
      %v3542 = vld [vmem:[%s5 + $0x140] sm:$0xff]
      %v3543 = vld [vmem:[%s5 + $0x148] sm:$0xff]
      %v3544 = vld [vmem:[%s5 + $0x150] sm:$0xff]
      %v3545 = vld [vmem:[%s5 + $0x158] sm:$0xff]
      %v3546 = vld [vmem:[%s5 + $0x160] sm:$0xff]
      %v3547 = vld [vmem:[%s5 + $0x168] sm:$0xff]
      %v3548 = vld [vmem:[%s5 + $0x170] sm:$0xff]
      %v3549 = vld [vmem:[%s5 + $0x178] sm:$0xff]
      %v3550 = vld [vmem:[%s5 + $0x180] sm:$0xff]
      %v3551 = vld [vmem:[%s5 + $0x188] sm:$0xff]
      %v3552 = vld [vmem:[%s5 + $0x190] sm:$0xff]
      %v3553 = vld [vmem:[%s5 + $0x198] sm:$0xff]
      %v3554 = vld [vmem:[%s5 + $0x1a0] sm:$0xff]
      %v3555 = vld [vmem:[%s5 + $0x1a8] sm:$0xff]
      %v3556 = vld [vmem:[%s5 + $0x1b0] sm:$0xff]
      %v3557 = vld [vmem:[%s5 + $0x1b8] sm:$0xff]
      %v3558 = vld [vmem:[%s5 + $0x1c0] sm:$0xff]
      %v3559 = vld [vmem:[%s5 + $0x1c8] sm:$0xff]
      %v3560 = vld [vmem:[%s5 + $0x1d0] sm:$0xff]
      %v3561 = vld [vmem:[%s5 + $0x1d8] sm:$0xff]
      %v3562 = vld [vmem:[%s5 + $0x1e0] sm:$0xff]
      %v3563 = vld [vmem:[%s5 + $0x1e8] sm:$0xff]
      %v3564 = vld [vmem:[%s5 + $0x1f0] sm:$0xff]
      %v3565 = vld [vmem:[%s5 + $0x1f8] sm:$0xff]
      %v3566 = vld [vmem:[%s6] sm:$0x3]
      %v3568 = vlaneseq
      %v3569 = vshrl.u32 %v3568, 7
      %v3570 = vsub.s32 0, %v3569
      %v3571 = vrot.slane %v3566, %v3570
      %v3572 = vlaneseq
      %v3573 = vshrl.u32 %v3572, 7
      %v3574 = vsub.s32 1, %v3573
      %v3575 = vrot.slane %v3566, %v3574
      %3578 = vmatprep.subr.mxu0 %v3503
      %3579 = vmatpush1.msra.mxu0 %v3502
      %3580 = vmatprep.subr.mxu0 %v3505
      %3581 = vmatpush1.msra.mxu0 %v3504
      %3582 = vmatprep.subr.mxu0 %v3507
      %3583 = vmatpush1.msra.mxu0 %v3506
      %3584 = vmatprep.subr.mxu0 %v3509
      %3585 = vmatpush1.msra.mxu0 %v3508
      %3586 = vmatprep.subr.mxu0 %v3511
      %3587 = vmatpush1.msra.mxu0 %v3510
      %3588 = vmatprep.subr.mxu0 %v3513
      %3589 = vmatpush1.msra.mxu0 %v3512
      %3590 = vmatprep.subr.mxu0 %v3515
      %3591 = vmatpush1.msra.mxu0 %v3514
      %3592 = vmatprep.subr.mxu0 %v3517
      %3593 = vmatpush1.msra.mxu0 %v3516
      %3594 = vmatprep.subr.mxu0 %v3519
      %3595 = vmatpush1.msra.mxu0 %v3518
      %3596 = vmatprep.subr.mxu0 %v3521
      %3597 = vmatpush1.msra.mxu0 %v3520
      %3598 = vmatprep.subr.mxu0 %v3523
      %3599 = vmatpush1.msra.mxu0 %v3522
      %3600 = vmatprep.subr.mxu0 %v3525
      %3601 = vmatpush1.msra.mxu0 %v3524
      %3602 = vmatprep.subr.mxu0 %v3527
      %3603 = vmatpush1.msra.mxu0 %v3526
      %3604 = vmatprep.subr.mxu0 %v3529
      %3605 = vmatpush1.msra.mxu0 %v3528
      %3606 = vmatprep.subr.mxu0 %v3531
      %3607 = vmatpush1.msra.mxu0 %v3530
      %3608 = vmatprep.subr.mxu0 %v3533
      %3609 = vmatpush1.msra.mxu0 %v3532
      %3610 = vmatprep.subr.mxu0 %v3535
      %3611 = vmatpush1.msra.mxu0 %v3534
      %3612 = vmatprep.subr.mxu0 %v3537
      %3613 = vmatpush1.msra.mxu0 %v3536
      %3614 = vmatprep.subr.mxu0 %v3539
      %3615 = vmatpush1.msra.mxu0 %v3538
      %3616 = vmatprep.subr.mxu0 %v3541
      %3617 = vmatpush1.msra.mxu0 %v3540
      %3618 = vmatprep.subr.mxu0 %v3543
      %3619 = vmatpush1.msra.mxu0 %v3542
      %3620 = vmatprep.subr.mxu0 %v3545
      %3621 = vmatpush1.msra.mxu0 %v3544
      %3622 = vmatprep.subr.mxu0 %v3547
      %3623 = vmatpush1.msra.mxu0 %v3546
      %3624 = vmatprep.subr.mxu0 %v3549
      %3625 = vmatpush1.msra.mxu0 %v3548
      %3626 = vmatprep.subr.mxu0 %v3551
      %3627 = vmatpush1.msra.mxu0 %v3550
      %3628 = vmatprep.subr.mxu0 %v3553
      %3629 = vmatpush1.msra.mxu0 %v3552
      %3630 = vmatprep.subr.mxu0 %v3555
      %3631 = vmatpush1.msra.mxu0 %v3554
      %3632 = vmatprep.subr.mxu0 %v3557
      %3633 = vmatpush1.msra.mxu0 %v3556
      %3634 = vmatprep.subr.mxu0 %v3559
      %3635 = vmatpush1.msra.mxu0 %v3558
      %3636 = vmatprep.subr.mxu0 %v3561
      %3637 = vmatpush1.msra.mxu0 %v3560
      %3638 = vmatprep.subr.mxu0 %v3563
      %3639 = vmatpush1.msra.mxu0 %v3562
      %3640 = vmatprep.subr.mxu0 %v3565
      %3641 = vmatpush1.msra.mxu0 %v3564
      %3642 = vmatprep.mubr.f32.mxu0 %v3499
      %3643 = vmatmul.mubr.f32.gmra.mrb[0].mxu0 %v3498
      %v3644 = vpop.f32.mrb[0].mxu0
      %v3645 = vadd.f32 %v3571, %v3644
      %v3646 = vpop.f32.mrb[0].mxu0
      %v3647 = vadd.f32 %v3575, %v3646
      %3648 = vmatprep.mubr.f32.mxu0 %v3501
      %3649 = vmatmul.mubr.f32.gmra.mrb[0].mxu0 %v3500
      %v3650 = vpop.f32.mrb[0].mxu0
      %v3651 = vadd.f32 %v3571, %v3650
      %v3652 = vpop.f32.mrb[0].mxu0
      %v3653 = vadd.f32 %v3575, %v3652
      %3654 = vdwg.mxu0
      %3655 = vst [vmem:[%s320] sm:$0xff] %v3645
      %3656 = vst [vmem:[%s320 + $0x8] sm:$0xff] %v3647
      %3657 = vst [vmem:[%s320 + $0x10] sm:$0xff] %v3651
      %3658 = vst [vmem:[%s320 + $0x18] sm:$0xff] %v3653
      %p3659 = scmp.lt.s32.totalorder %s22, 1
      %s3660 = scalar_select %p3659, %s22, 1
      %p3661 = scmp.lt.s32.totalorder %s23, 3
      %s3662 = scalar_select %p3661, %s23, 3
      %s3663 = smul.addr %s3662, 4
      %s3664 = smul.addr %s3660, 16
      %s3665 = sadd.s32 %s3663, %s3664
      %s3666 = smul.addr %s3665, 8
      %s3667 = scalar_lea.vmem %s7, %s3666
      // Predicated region
      $region49: #{decoder3d_forward.5} parent=47 // pred_check
        %p3668 = pneg %p207
      $region50: #{decoder3d_forward.5} parent=47 // pred_check_branch
        %3670 = sbr.rel (%p3668) target = $region52
      $region51: #{decoder3d_forward.5} parent=47 // pred_region
        _
      $region52: #{decoder3d_forward.5} parent=47 // pred_fallthru
        _
    $region48: #{decoder3d_forward.5} parent=5 // pred_fallthru
      _
    %p3671 = scmp.le.s32.totalorder 2, %s13
    // Predicated region
    $region53: #{decoder3d_forward.5} parent=5 // pred_check
      %p3672 = pneg %p3671
    $region54: #{decoder3d_forward.5} parent=5 // pred_check_branch
      %3674 = sbr.rel (%p3672) target = $region56
    $region55: #{decoder3d_forward.5} parent=5 // pred_region
      %s3675 = ssub.s32 %s13, 2
      // Predicated region
      $region57: #{decoder3d_forward.5} parent=55 // pred_check
        %p3676 = pneg %p213
      $region58: #{decoder3d_forward.5} parent=55 // pred_check_branch
        %3678 = sbr.rel (%p3676) target = $region60
      $region59: #{decoder3d_forward.5} parent=55 // pred_region
        %p3679 = scmp.lt.s32.totalorder %s24, 1
        %s3680 = scalar_select %p3679, %s24, 1
        %p3681 = scmp.lt.s32.totalorder %s25, 3
        %s3682 = scalar_select %p3681, %s25, 3
        %s3683 = smul.addr %s3682, 4
        %s3684 = smul.addr %s3680, 16
        %s3685 = sadd.s32 %s3683, %s3684
        %s3686 = smul.addr %s3685, 8
        %s3687 = scalar_lea.vmem %s7, %s3686
      $region60: #{decoder3d_forward.5} parent=55 // pred_fallthru
        _
    $region56: #{decoder3d_forward.5} parent=5 // pred_fallthru
      _
  $region6: #{decoder3d_forward.5} parent=0 // loop_footer
    %s17 = sadd.s32 1, %s13
  $region7: #{decoder3d_forward.5} parent=0 // loop_footer_branch
    %12 = sbr.rel target = $region3
  $region8: #{decoder3d_forward.5} parent=0 // loop_exit
    _

</llo_original>
